<compile_context>
chip_gen: v5e
topology: v5e:2x2
jax: 0.10.0
libtpu: 0.0.40
codegen_flags: <defaults>
</compile_context>

<pallas_src>
import jax
import jax.numpy as jnp
import numpy as np
from jax.experimental import pallas as pl
from jax.experimental.pallas import tpu as pltpu

EPS = 1e-5
LANES = 128  # TPU vreg lane width (same on v5e / v6e / v7x)


def _round_up(x, m):
    return (x + m - 1) // m * m


def _basic_block_kernel(x_ref, w1_ref, g1_ref, b1_ref, w2_ref, g2_ref, b2_ref,
                        out_ref, imcol_ref):
    """Fused conv3x3 -> BN -> ReLU -> conv3x3 -> BN -> +residual -> ReLU.

    Shapes (static; channels pre-padded to Cp, a multiple of 128):
      x_ref     : (N, H, W, Cp)     input + residual, f32
      w1_ref    : (9*Cp, Cp)        im2col conv1 weights, rows ordered (dy, dx, ci)
      w2_ref    : (9*Cp, Cp)        im2col conv2 weights
      g*/b*     : (1, Cp)           BN affine params
      out_ref   : (N, H, W, Cp)
      imcol_ref : (N, H, W, 9*Cp)   VMEM scratch: im2col patches (reused by both convs)
    """
    N, H, W, Cp = x_ref.shape
    M = N * H * W
    K = 9 * Cp

    # Halo handling: regions of the im2col scratch that correspond to
    # out-of-bounds taps are never written; zero them exactly once (the zero
    # pattern is identical for both convs and valid regions are overwritten).
    imcol_ref[...] = jnp.zeros_like(imcol_ref)

    def scatter_patches(src4d_slice):
        # Write the 9 shifted (dy, dx) windows into lane-aligned 128-wide
        # column blocks of the im2col scratch -> dense, unmasked stores.
        for dy in range(3):
            oy = dy - 1
            i0, i1 = max(0, -oy), min(H, H - oy)
            for dx in range(3):
                ox = dx - 1
                j0, j1 = max(0, -ox), min(W, W - ox)
                k = dy * 3 + dx
                imcol_ref[:, i0:i1, j0:j1, k * Cp:(k + 1) * Cp] = src4d_slice(
                    i0 + oy, i1 + oy, j0 + ox, j1 + ox)

    def conv3x3(w):
        # Single MXU contraction per conv. Default precision -> single-pass
        # bf16 MXU (vs. 6-pass under Precision.HIGHEST).
        p = imcol_ref[...].reshape(M, K)
        return jnp.dot(p, w, preferred_element_type=jnp.float32)

    def batchnorm(h, gamma, beta):
        # Training-mode BN in one pass over h: per-channel sum and
        # sum-of-squares, then a single folded scale/bias FMA per element.
        s = jnp.sum(h, axis=0, keepdims=True)
        ss = jnp.sum(h * h, axis=0, keepdims=True)
        mean = s * (1.0 / M)
        var = ss * (1.0 / M) - mean * mean          # biased variance
        scale = gamma * jax.lax.rsqrt(var + EPS)
        bias = beta - mean * scale
        return h * scale + bias

    # --- conv1 -> bn1 -> relu ---
    scatter_patches(lambda a, b, c, d: x_ref[:, a:b, c:d, :])
    h1 = jnp.maximum(batchnorm(conv3x3(w1_ref[...]), g1_ref[...], b1_ref[...]),
                     0.0)

    # --- conv2 -> bn2 (reuse the same im2col scratch) ---
    h1_4d = h1.reshape(N, H, W, Cp)
    scatter_patches(lambda a, b, c, d: h1_4d[:, a:b, c:d, :])
    h2 = batchnorm(conv3x3(w2_ref[...]), g2_ref[...], b2_ref[...])

    # --- residual add -> relu (lane-dense store: Cp % 128 == 0) ---
    out_ref[...] = jnp.maximum(h2.reshape(N, H, W, Cp) + x_ref[...], 0.0)


@jax.jit
def basic_block_forward(x_nchw, w1_oihw, g1, b1, w2_oihw, g2, b2):
    """BasicBlock forward; x_nchw is PyTorch-layout NCHW (stride=1, no downsample)."""
    N, Cin, H, W = x_nchw.shape
    Cout = w1_oihw.shape[0]
    Cp = _round_up(max(Cin, Cout), LANES)

    # Layout glue: NCHW -> NHWC, pad the channel axis to a lane-dense multiple
    # of 128 (padded channels stay exactly zero end-to-end and are sliced off).
    # TODO(synk): keep activations persistently in padded NHWC across layers so
    # these boundary transposes are not paid around every block.
    x = jnp.transpose(x_nchw, (0, 2, 3, 1)).astype(jnp.float32)
    x = jnp.pad(x, ((0, 0), (0, 0), (0, 0), (0, Cp - Cin)))

    def prep_w(w_oihw):
        w = jnp.transpose(w_oihw, (2, 3, 1, 0)).astype(jnp.float32)  # HWIO (3,3,Ci,Co)
        w = jnp.pad(w, ((0, 0), (0, 0),
                        (0, Cp - w.shape[2]), (0, Cp - w.shape[3])))
        return w.reshape(9 * Cp, Cp)  # row index = (dy*3 + dx) * Cp + ci

    def prep_v(v):
        return jnp.pad(v.astype(jnp.float32), (0, Cp - v.shape[0])).reshape(1, Cp)

    # NOTE: BatchNorm couples every output pixel to full-batch statistics, so a
    # single-pass fused kernel cannot be spatially tiled; at this shape the
    # whole problem fits comfortably in VMEM as one grid point.
    # TODO(synk): for real ResNet sizes, split into a gridded two-pass variant
    # (conv + stats pass, then normalize + conv pass) with halo-tiled row bands
    # and a "parallel" grid axis so v7x's two TensorCores are both used.
    out = pl.pallas_call(
        _basic_block_kernel,
        out_shape=jax.ShapeDtypeStruct((N, H, W, Cp), jnp.float32),
        in_specs=[pl.BlockSpec(memory_space=pltpu.MemorySpace.VMEM)] * 7,
        out_specs=pl.BlockSpec(memory_space=pltpu.MemorySpace.VMEM),
        scratch_shapes=[pltpu.VMEM((N, H, W, 9 * Cp), jnp.float32)],
        compiler_params=pltpu.CompilerParams(vmem_limit_bytes=32 * 1024 * 1024),
    )(x, prep_w(w1_oihw), prep_v(g1), prep_v(b1),
      prep_w(w2_oihw), prep_v(g2), prep_v(b2))

    # Drop the channel padding and go back to NCHW.
    return jnp.transpose(out[..., :Cout], (0, 3, 1, 2))


def _reference_forward(x_nchw, w1_oihw, w2_oihw):
    """Pure-JAX reference matching PyTorch BasicBlock (training BN, gamma=1, beta=0)."""
    def conv(x, w):
        return jax.lax.conv_general_dilated(
            x, w, window_strides=(1, 1), padding=((1, 1), (1, 1)),
            dimension_numbers=("NCHW", "OIHW", "NCHW"),
            precision=jax.lax.Precision.HIGHEST)

    def bn(h):
        mean = h.mean(axis=(0, 2, 3), keepdims=True)
        var = ((h - mean) ** 2).mean(axis=(0, 2, 3), keepdims=True)
        return (h - mean) / jnp.sqrt(var + EPS)

    out = jnp.maximum(bn(conv(x_nchw, w1_oihw)), 0.0)
    out = bn(conv(out, w2_oihw)) + x_nchw
    return jnp.maximum(out, 0.0)


if __name__ == "__main__":
    # inplanes = planes = 4, stride = 1, downsample = None
    N, C, H, W = 2, 4, 16, 16

    key = jax.random.PRNGKey(0)
    kx, kw1, kw2 = jax.random.split(key, 3)

    x = jax.random.normal(kx, (N, C, H, W), dtype=jnp.float32)
    # PyTorch OIHW conv weights (Cout, Cin, 3, 3), no bias.
    w1 = jax.random.normal(kw1, (C, C, 3, 3), dtype=jnp.float32) * 0.1
    w2 = jax.random.normal(kw2, (C, C, 3, 3), dtype=jnp.float32) * 0.1
    # BatchNorm2d default init: weight=1, bias=0.
    g1 = jnp.ones((C,), jnp.float32)
    b1 = jnp.zeros((C,), jnp.float32)
    g2 = jnp.ones((C,), jnp.float32)
    b2 = jnp.zeros((C,), jnp.float32)

    out = jax.block_until_ready(basic_block_forward(x, w1, g1, b1, w2, g2, b2))
    ref = jax.block_until_ready(_reference_forward(x, w1, w2))

    # Kernel matmuls run at default (single-pass bf16) MXU precision, so the
    # comparison tolerance is bf16-level.
    np.testing.assert_allclose(np.asarray(out), np.asarray(ref),
                               rtol=5e-2, atol=5e-2)

    print("KERNEL_OK")
</pallas_src>

<mosaic_0001>
module attributes {stable_mosaic.version = 11 : i64} {
  func.func @_basic_block_kernel(%arg0: memref<2x16x16x128xf32, #tpu.memory_space<vmem>>, %arg1: memref<1152x128xf32, #tpu.memory_space<vmem>>, %arg2: memref<1x128xf32, #tpu.memory_space<vmem>>, %arg3: memref<1x128xf32, #tpu.memory_space<vmem>>, %arg4: memref<1152x128xf32, #tpu.memory_space<vmem>>, %arg5: memref<1x128xf32, #tpu.memory_space<vmem>>, %arg6: memref<1x128xf32, #tpu.memory_space<vmem>>, %arg7: memref<2x16x16x128xf32, #tpu.memory_space<vmem>>, %arg8: memref<2x16x16x1152xf32, #tpu.memory_space<vmem>>) attributes {dimension_semantics = [], scalar_prefetch = 0 : i64, scratch_operands = 1 : i64, tpu.core_type = #tpu.core_type<tc>} {
    %cst = arith.constant 0.000000e+00 : f32
    %0 = vector.broadcast %cst : f32 to vector<2x16x16x1152xf32>
    %c0 = arith.constant 0 : index
    %c0_0 = arith.constant 0 : index
    %c0_1 = arith.constant 0 : index
    %c0_2 = arith.constant 0 : index
    %1 = vector.load %arg8[%c0, %c0_0, %c0_1, %c0_2] : memref<2x16x16x1152xf32, #tpu.memory_space<vmem>>, vector<2x16x16x1152xf32>
    tpu.vector_store %arg8[%c0, %c0_0, %c0_1, %c0_2], %0 {strides = array<i32>} : memref<2x16x16x1152xf32, #tpu.memory_space<vmem>>, vector<2x16x16x1152xf32>,
    %c0_3 = arith.constant 0 : index
    %c0_4 = arith.constant 0 : index
    %c0_5 = arith.constant 0 : index
    %c0_6 = arith.constant 0 : index
    %2 = vector.load %arg0[%c0_3, %c0_4, %c0_5, %c0_6] : memref<2x16x16x128xf32, #tpu.memory_space<vmem>>, vector<2x15x15x128xf32>
    %c0_7 = arith.constant 0 : index
    %c1 = arith.constant 1 : index
    %c1_8 = arith.constant 1 : index
    %c0_9 = arith.constant 0 : index
    %3 = vector.load %arg8[%c0_7, %c1, %c1_8, %c0_9] : memref<2x16x16x1152xf32, #tpu.memory_space<vmem>>, vector<2x15x15x128xf32>
    tpu.vector_store %arg8[%c0_7, %c1, %c1_8, %c0_9], %2 {strides = array<i32>} : memref<2x16x16x1152xf32, #tpu.memory_space<vmem>>, vector<2x15x15x128xf32>,
    %c0_10 = arith.constant 0 : index
    %c0_11 = arith.constant 0 : index
    %c0_12 = arith.constant 0 : index
    %c0_13 = arith.constant 0 : index
    %4 = vector.load %arg0[%c0_10, %c0_11, %c0_12, %c0_13] : memref<2x16x16x128xf32, #tpu.memory_space<vmem>>, vector<2x15x16x128xf32>
    %c0_14 = arith.constant 0 : index
    %c1_15 = arith.constant 1 : index
    %c0_16 = arith.constant 0 : index
    %c128 = arith.constant 128 : index
    %5 = vector.load %arg8[%c0_14, %c1_15, %c0_16, %c128] : memref<2x16x16x1152xf32, #tpu.memory_space<vmem>>, vector<2x15x16x128xf32>
    tpu.vector_store %arg8[%c0_14, %c1_15, %c0_16, %c128], %4 {strides = array<i32>} : memref<2x16x16x1152xf32, #tpu.memory_space<vmem>>, vector<2x15x16x128xf32>,
    %c0_17 = arith.constant 0 : index
    %c0_18 = arith.constant 0 : index
    %c1_19 = arith.constant 1 : index
    %c0_20 = arith.constant 0 : index
    %6 = vector.load %arg0[%c0_17, %c0_18, %c1_19, %c0_20] : memref<2x16x16x128xf32, #tpu.memory_space<vmem>>, vector<2x15x15x128xf32>
    %c0_21 = arith.constant 0 : index
    %c1_22 = arith.constant 1 : index
    %c0_23 = arith.constant 0 : index
    %c256 = arith.constant 256 : index
    %7 = vector.load %arg8[%c0_21, %c1_22, %c0_23, %c256] : memref<2x16x16x1152xf32, #tpu.memory_space<vmem>>, vector<2x15x15x128xf32>
    tpu.vector_store %arg8[%c0_21, %c1_22, %c0_23, %c256], %6 {strides = array<i32>} : memref<2x16x16x1152xf32, #tpu.memory_space<vmem>>, vector<2x15x15x128xf32>,
    %c0_24 = arith.constant 0 : index
    %c0_25 = arith.constant 0 : index
    %c0_26 = arith.constant 0 : index
    %c0_27 = arith.constant 0 : index
    %8 = vector.load %arg0[%c0_24, %c0_25, %c0_26, %c0_27] : memref<2x16x16x128xf32, #tpu.memory_space<vmem>>, vector<2x16x15x128xf32>
    %c0_28 = arith.constant 0 : index
    %c0_29 = arith.constant 0 : index
    %c1_30 = arith.constant 1 : index
    %c384 = arith.constant 384 : index
    %9 = vector.load %arg8[%c0_28, %c0_29, %c1_30, %c384] : memref<2x16x16x1152xf32, #tpu.memory_space<vmem>>, vector<2x16x15x128xf32>
    tpu.vector_store %arg8[%c0_28, %c0_29, %c1_30, %c384], %8 {strides = array<i32>} : memref<2x16x16x1152xf32, #tpu.memory_space<vmem>>, vector<2x16x15x128xf32>,
    %c0_31 = arith.constant 0 : index
    %c0_32 = arith.constant 0 : index
    %c0_33 = arith.constant 0 : index
    %c0_34 = arith.constant 0 : index
    %10 = vector.load %arg0[%c0_31, %c0_32, %c0_33, %c0_34] : memref<2x16x16x128xf32, #tpu.memory_space<vmem>>, vector<2x16x16x128xf32>
    %c0_35 = arith.constant 0 : index
    %c0_36 = arith.constant 0 : index
    %c0_37 = arith.constant 0 : index
    %c512 = arith.constant 512 : index
    %11 = vector.load %arg8[%c0_35, %c0_36, %c0_37, %c512] : memref<2x16x16x1152xf32, #tpu.memory_space<vmem>>, vector<2x16x16x128xf32>
    tpu.vector_store %arg8[%c0_35, %c0_36, %c0_37, %c512], %10 {strides = array<i32>} : memref<2x16x16x1152xf32, #tpu.memory_space<vmem>>, vector<2x16x16x128xf32>,
    %c0_38 = arith.constant 0 : index
    %c0_39 = arith.constant 0 : index
    %c1_40 = arith.constant 1 : index
    %c0_41 = arith.constant 0 : index
    %12 = vector.load %arg0[%c0_38, %c0_39, %c1_40, %c0_41] : memref<2x16x16x128xf32, #tpu.memory_space<vmem>>, vector<2x16x15x128xf32>
    %c0_42 = arith.constant 0 : index
    %c0_43 = arith.constant 0 : index
    %c0_44 = arith.constant 0 : index
    %c640 = arith.constant 640 : index
    %13 = vector.load %arg8[%c0_42, %c0_43, %c0_44, %c640] : memref<2x16x16x1152xf32, #tpu.memory_space<vmem>>, vector<2x16x15x128xf32>
    tpu.vector_store %arg8[%c0_42, %c0_43, %c0_44, %c640], %12 {strides = array<i32>} : memref<2x16x16x1152xf32, #tpu.memory_space<vmem>>, vector<2x16x15x128xf32>,
    %c0_45 = arith.constant 0 : index
    %c1_46 = arith.constant 1 : index
    %c0_47 = arith.constant 0 : index
    %c0_48 = arith.constant 0 : index
    %14 = vector.load %arg0[%c0_45, %c1_46, %c0_47, %c0_48] : memref<2x16x16x128xf32, #tpu.memory_space<vmem>>, vector<2x15x15x128xf32>
    %c0_49 = arith.constant 0 : index
    %c0_50 = arith.constant 0 : index
    %c1_51 = arith.constant 1 : index
    %c768 = arith.constant 768 : index
    %15 = vector.load %arg8[%c0_49, %c0_50, %c1_51, %c768] : memref<2x16x16x1152xf32, #tpu.memory_space<vmem>>, vector<2x15x15x128xf32>
    tpu.vector_store %arg8[%c0_49, %c0_50, %c1_51, %c768], %14 {strides = array<i32>} : memref<2x16x16x1152xf32, #tpu.memory_space<vmem>>, vector<2x15x15x128xf32>,
    %c0_52 = arith.constant 0 : index
    %c1_53 = arith.constant 1 : index
    %c0_54 = arith.constant 0 : index
    %c0_55 = arith.constant 0 : index
    %16 = vector.load %arg0[%c0_52, %c1_53, %c0_54, %c0_55] : memref<2x16x16x128xf32, #tpu.memory_space<vmem>>, vector<2x15x16x128xf32>
    %c0_56 = arith.constant 0 : index
    %c0_57 = arith.constant 0 : index
    %c0_58 = arith.constant 0 : index
    %c896 = arith.constant 896 : index
    %17 = vector.load %arg8[%c0_56, %c0_57, %c0_58, %c896] : memref<2x16x16x1152xf32, #tpu.memory_space<vmem>>, vector<2x15x16x128xf32>
    tpu.vector_store %arg8[%c0_56, %c0_57, %c0_58, %c896], %16 {strides = array<i32>} : memref<2x16x16x1152xf32, #tpu.memory_space<vmem>>, vector<2x15x16x128xf32>,
    %c0_59 = arith.constant 0 : index
    %c1_60 = arith.constant 1 : index
    %c1_61 = arith.constant 1 : index
    %c0_62 = arith.constant 0 : index
    %18 = vector.load %arg0[%c0_59, %c1_60, %c1_61, %c0_62] : memref<2x16x16x128xf32, #tpu.memory_space<vmem>>, vector<2x15x15x128xf32>
    %c0_63 = arith.constant 0 : index
    %c0_64 = arith.constant 0 : index
    %c0_65 = arith.constant 0 : index
    %c1024 = arith.constant 1024 : index
    %19 = vector.load %arg8[%c0_63, %c0_64, %c0_65, %c1024] : memref<2x16x16x1152xf32, #tpu.memory_space<vmem>>, vector<2x15x15x128xf32>
    tpu.vector_store %arg8[%c0_63, %c0_64, %c0_65, %c1024], %18 {strides = array<i32>} : memref<2x16x16x1152xf32, #tpu.memory_space<vmem>>, vector<2x15x15x128xf32>,
    %c0_66 = arith.constant 0 : index
    %c0_67 = arith.constant 0 : index
    %20 = vector.load %arg1[%c0_66, %c0_67] : memref<1152x128xf32, #tpu.memory_space<vmem>>, vector<1152x128xf32>
    %c0_68 = arith.constant 0 : index
    %c0_69 = arith.constant 0 : index
    %c0_70 = arith.constant 0 : index
    %c0_71 = arith.constant 0 : index
    %21 = vector.load %arg8[%c0_68, %c0_69, %c0_70, %c0_71] : memref<2x16x16x1152xf32, #tpu.memory_space<vmem>>, vector<2x16x16x1152xf32>
    %22 = vector.shape_cast %21 : vector<2x16x16x1152xf32> to vector<512x1152xf32>
    %cst_72 = arith.constant dense<0.000000e+00> : vector<512x128xf32>
    %23 = tpu.matmul %22, %20, %cst_72 {dimension_numbers = #tpu.dot_dimension_numbers<[1], [0], [0], [1], [0, 0, 1, 1], [], []>} : vector<512x1152xf32>, vector<1152x128xf32>, vector<512x128xf32> -> vector<512x128xf32>
    %c0_73 = arith.constant 0 : index
    %c0_74 = arith.constant 0 : index
    %24 = vector.load %arg2[%c0_73, %c0_74] : memref<1x128xf32, #tpu.memory_space<vmem>>, vector<1x128xf32>
    %c0_75 = arith.constant 0 : index
    %c0_76 = arith.constant 0 : index
    %25 = vector.load %arg3[%c0_75, %c0_76] : memref<1x128xf32, #tpu.memory_space<vmem>>, vector<1x128xf32>
    %cst_77 = arith.constant dense<0.000000e+00> : vector<128xf32>
    %26 = vector.multi_reduction <add>, %23, %cst_77 [0] : vector<512x128xf32> to vector<128xf32>
    %27 = vector.shape_cast %26 : vector<128xf32> to vector<1x128xf32>
    %28 = arith.mulf %23, %23 : vector<512x128xf32>
    %cst_78 = arith.constant dense<0.000000e+00> : vector<128xf32>
    %29 = vector.multi_reduction <add>, %28, %cst_78 [0] : vector<512x128xf32> to vector<128xf32>
    %30 = vector.shape_cast %29 : vector<128xf32> to vector<1x128xf32>
    %cst_79 = arith.constant 0.001953125 : f32
    %31 = vector.broadcast %cst_79 : f32 to vector<1x128xf32>
    %32 = arith.mulf %27, %31 : vector<1x128xf32>
    %cst_80 = arith.constant 0.001953125 : f32
    %33 = vector.broadcast %cst_80 : f32 to vector<1x128xf32>
    %34 = arith.mulf %30, %33 : vector<1x128xf32>
    %35 = arith.mulf %32, %32 : vector<1x128xf32>
    %36 = arith.subf %34, %35 : vector<1x128xf32>
    %cst_81 = arith.constant 9.99999974E-6 : f32
    %37 = vector.broadcast %cst_81 : f32 to vector<1x128xf32>
    %38 = arith.addf %36, %37 : vector<1x128xf32>
    %39 = math.rsqrt %38 : vector<1x128xf32>
    %40 = arith.mulf %24, %39 : vector<1x128xf32>
    %41 = arith.mulf %32, %40 : vector<1x128xf32>
    %42 = arith.subf %25, %41 : vector<1x128xf32>
    %43 = vector.broadcast %40 : vector<1x128xf32> to vector<512x128xf32>
    %44 = arith.mulf %23, %43 : vector<512x128xf32>
    %45 = vector.broadcast %42 : vector<1x128xf32> to vector<512x128xf32>
    %46 = arith.addf %44, %45 : vector<512x128xf32>
    %cst_82 = arith.constant 0.000000e+00 : f32
    %47 = vector.broadcast %cst_82 : f32 to vector<512x128xf32>
    %48 = arith.maximumf %46, %47 : vector<512x128xf32>
    %49 = vector.shape_cast %48 : vector<512x128xf32> to vector<2x16x16x128xf32>
    %50 = vector.extract_strided_slice %49 {offsets = [0, 0, 0, 0], sizes = [2, 15, 15, 128], strides = [1, 1, 1, 1]} : vector<2x16x16x128xf32> to vector<2x15x15x128xf32>
    %c0_83 = arith.constant 0 : index
    %c1_84 = arith.constant 1 : index
    %c1_85 = arith.constant 1 : index
    %c0_86 = arith.constant 0 : index
    %51 = vector.load %arg8[%c0_83, %c1_84, %c1_85, %c0_86] : memref<2x16x16x1152xf32, #tpu.memory_space<vmem>>, vector<2x15x15x128xf32>
    tpu.vector_store %arg8[%c0_83, %c1_84, %c1_85, %c0_86], %50 {strides = array<i32>} : memref<2x16x16x1152xf32, #tpu.memory_space<vmem>>, vector<2x15x15x128xf32>,
    %52 = vector.extract_strided_slice %49 {offsets = [0, 0, 0, 0], sizes = [2, 15, 16, 128], strides = [1, 1, 1, 1]} : vector<2x16x16x128xf32> to vector<2x15x16x128xf32>
    %c0_87 = arith.constant 0 : index
    %c1_88 = arith.constant 1 : index
    %c0_89 = arith.constant 0 : index
    %c128_90 = arith.constant 128 : index
    %53 = vector.load %arg8[%c0_87, %c1_88, %c0_89, %c128_90] : memref<2x16x16x1152xf32, #tpu.memory_space<vmem>>, vector<2x15x16x128xf32>
    tpu.vector_store %arg8[%c0_87, %c1_88, %c0_89, %c128_90], %52 {strides = array<i32>} : memref<2x16x16x1152xf32, #tpu.memory_space<vmem>>, vector<2x15x16x128xf32>,
    %54 = vector.extract_strided_slice %49 {offsets = [0, 0, 1, 0], sizes = [2, 15, 15, 128], strides = [1, 1, 1, 1]} : vector<2x16x16x128xf32> to vector<2x15x15x128xf32>
    %c0_91 = arith.constant 0 : index
    %c1_92 = arith.constant 1 : index
    %c0_93 = arith.constant 0 : index
    %c256_94 = arith.constant 256 : index
    %55 = vector.load %arg8[%c0_91, %c1_92, %c0_93, %c256_94] : memref<2x16x16x1152xf32, #tpu.memory_space<vmem>>, vector<2x15x15x128xf32>
    tpu.vector_store %arg8[%c0_91, %c1_92, %c0_93, %c256_94], %54 {strides = array<i32>} : memref<2x16x16x1152xf32, #tpu.memory_space<vmem>>, vector<2x15x15x128xf32>,
    %56 = vector.extract_strided_slice %49 {offsets = [0, 0, 0, 0], sizes = [2, 16, 15, 128], strides = [1, 1, 1, 1]} : vector<2x16x16x128xf32> to vector<2x16x15x128xf32>
    %c0_95 = arith.constant 0 : index
    %c0_96 = arith.constant 0 : index
    %c1_97 = arith.constant 1 : index
    %c384_98 = arith.constant 384 : index
    %57 = vector.load %arg8[%c0_95, %c0_96, %c1_97, %c384_98] : memref<2x16x16x1152xf32, #tpu.memory_space<vmem>>, vector<2x16x15x128xf32>
    tpu.vector_store %arg8[%c0_95, %c0_96, %c1_97, %c384_98], %56 {strides = array<i32>} : memref<2x16x16x1152xf32, #tpu.memory_space<vmem>>, vector<2x16x15x128xf32>,
    %c0_99 = arith.constant 0 : index
    %c0_100 = arith.constant 0 : index
    %c0_101 = arith.constant 0 : index
    %c512_102 = arith.constant 512 : index
    %58 = vector.load %arg8[%c0_99, %c0_100, %c0_101, %c512_102] : memref<2x16x16x1152xf32, #tpu.memory_space<vmem>>, vector<2x16x16x128xf32>
    tpu.vector_store %arg8[%c0_99, %c0_100, %c0_101, %c512_102], %49 {strides = array<i32>} : memref<2x16x16x1152xf32, #tpu.memory_space<vmem>>, vector<2x16x16x128xf32>,
    %59 = vector.extract_strided_slice %49 {offsets = [0, 0, 1, 0], sizes = [2, 16, 15, 128], strides = [1, 1, 1, 1]} : vector<2x16x16x128xf32> to vector<2x16x15x128xf32>
    %c0_103 = arith.constant 0 : index
    %c0_104 = arith.constant 0 : index
    %c0_105 = arith.constant 0 : index
    %c640_106 = arith.constant 640 : index
    %60 = vector.load %arg8[%c0_103, %c0_104, %c0_105, %c640_106] : memref<2x16x16x1152xf32, #tpu.memory_space<vmem>>, vector<2x16x15x128xf32>
    tpu.vector_store %arg8[%c0_103, %c0_104, %c0_105, %c640_106], %59 {strides = array<i32>} : memref<2x16x16x1152xf32, #tpu.memory_space<vmem>>, vector<2x16x15x128xf32>,
    %61 = vector.extract_strided_slice %49 {offsets = [0, 1, 0, 0], sizes = [2, 15, 15, 128], strides = [1, 1, 1, 1]} : vector<2x16x16x128xf32> to vector<2x15x15x128xf32>
    %c0_107 = arith.constant 0 : index
    %c0_108 = arith.constant 0 : index
    %c1_109 = arith.constant 1 : index
    %c768_110 = arith.constant 768 : index
    %62 = vector.load %arg8[%c0_107, %c0_108, %c1_109, %c768_110] : memref<2x16x16x1152xf32, #tpu.memory_space<vmem>>, vector<2x15x15x128xf32>
    tpu.vector_store %arg8[%c0_107, %c0_108, %c1_109, %c768_110], %61 {strides = array<i32>} : memref<2x16x16x1152xf32, #tpu.memory_space<vmem>>, vector<2x15x15x128xf32>,
    %63 = vector.extract_strided_slice %49 {offsets = [0, 1, 0, 0], sizes = [2, 15, 16, 128], strides = [1, 1, 1, 1]} : vector<2x16x16x128xf32> to vector<2x15x16x128xf32>
    %c0_111 = arith.constant 0 : index
    %c0_112 = arith.constant 0 : index
    %c0_113 = arith.constant 0 : index
    %c896_114 = arith.constant 896 : index
    %64 = vector.load %arg8[%c0_111, %c0_112, %c0_113, %c896_114] : memref<2x16x16x1152xf32, #tpu.memory_space<vmem>>, vector<2x15x16x128xf32>
    tpu.vector_store %arg8[%c0_111, %c0_112, %c0_113, %c896_114], %63 {strides = array<i32>} : memref<2x16x16x1152xf32, #tpu.memory_space<vmem>>, vector<2x15x16x128xf32>,
    %65 = vector.extract_strided_slice %49 {offsets = [0, 1, 1, 0], sizes = [2, 15, 15, 128], strides = [1, 1, 1, 1]} : vector<2x16x16x128xf32> to vector<2x15x15x128xf32>
    %c0_115 = arith.constant 0 : index
    %c0_116 = arith.constant 0 : index
    %c0_117 = arith.constant 0 : index
    %c1024_118 = arith.constant 1024 : index
    %66 = vector.load %arg8[%c0_115, %c0_116, %c0_117, %c1024_118] : memref<2x16x16x1152xf32, #tpu.memory_space<vmem>>, vector<2x15x15x128xf32>
    tpu.vector_store %arg8[%c0_115, %c0_116, %c0_117, %c1024_118], %65 {strides = array<i32>} : memref<2x16x16x1152xf32, #tpu.memory_space<vmem>>, vector<2x15x15x128xf32>,
    %c0_119 = arith.constant 0 : index
    %c0_120 = arith.constant 0 : index
    %67 = vector.load %arg4[%c0_119, %c0_120] : memref<1152x128xf32, #tpu.memory_space<vmem>>, vector<1152x128xf32>
    %c0_121 = arith.constant 0 : index
    %c0_122 = arith.constant 0 : index
    %c0_123 = arith.constant 0 : index
    %c0_124 = arith.constant 0 : index
    %68 = vector.load %arg8[%c0_121, %c0_122, %c0_123, %c0_124] : memref<2x16x16x1152xf32, #tpu.memory_space<vmem>>, vector<2x16x16x1152xf32>
    %69 = vector.shape_cast %68 : vector<2x16x16x1152xf32> to vector<512x1152xf32>
    %cst_125 = arith.constant dense<0.000000e+00> : vector<512x128xf32>
    %70 = tpu.matmul %69, %67, %cst_125 {dimension_numbers = #tpu.dot_dimension_numbers<[1], [0], [0], [1], [0, 0, 1, 1], [], []>} : vector<512x1152xf32>, vector<1152x128xf32>, vector<512x128xf32> -> vector<512x128xf32>
    %c0_126 = arith.constant 0 : index
    %c0_127 = arith.constant 0 : index
    %71 = vector.load %arg5[%c0_126, %c0_127] : memref<1x128xf32, #tpu.memory_space<vmem>>, vector<1x128xf32>
    %c0_128 = arith.constant 0 : index
    %c0_129 = arith.constant 0 : index
    %72 = vector.load %arg6[%c0_128, %c0_129] : memref<1x128xf32, #tpu.memory_space<vmem>>, vector<1x128xf32>
    %cst_130 = arith.constant dense<0.000000e+00> : vector<128xf32>
    %73 = vector.multi_reduction <add>, %70, %cst_130 [0] : vector<512x128xf32> to vector<128xf32>
    %74 = vector.shape_cast %73 : vector<128xf32> to vector<1x128xf32>
    %75 = arith.mulf %70, %70 : vector<512x128xf32>
    %cst_131 = arith.constant dense<0.000000e+00> : vector<128xf32>
    %76 = vector.multi_reduction <add>, %75, %cst_131 [0] : vector<512x128xf32> to vector<128xf32>
    %77 = vector.shape_cast %76 : vector<128xf32> to vector<1x128xf32>
    %cst_132 = arith.constant 0.001953125 : f32
    %78 = vector.broadcast %cst_132 : f32 to vector<1x128xf32>
    %79 = arith.mulf %74, %78 : vector<1x128xf32>
    %cst_133 = arith.constant 0.001953125 : f32
    %80 = vector.broadcast %cst_133 : f32 to vector<1x128xf32>
    %81 = arith.mulf %77, %80 : vector<1x128xf32>
    %82 = arith.mulf %79, %79 : vector<1x128xf32>
    %83 = arith.subf %81, %82 : vector<1x128xf32>
    %cst_134 = arith.constant 9.99999974E-6 : f32
    %84 = vector.broadcast %cst_134 : f32 to vector<1x128xf32>
    %85 = arith.addf %83, %84 : vector<1x128xf32>
    %86 = math.rsqrt %85 : vector<1x128xf32>
    %87 = arith.mulf %71, %86 : vector<1x128xf32>
    %88 = arith.mulf %79, %87 : vector<1x128xf32>
    %89 = arith.subf %72, %88 : vector<1x128xf32>
    %90 = vector.broadcast %87 : vector<1x128xf32> to vector<512x128xf32>
    %91 = arith.mulf %70, %90 : vector<512x128xf32>
    %92 = vector.broadcast %89 : vector<1x128xf32> to vector<512x128xf32>
    %93 = arith.addf %91, %92 : vector<512x128xf32>
    %94 = vector.shape_cast %93 : vector<512x128xf32> to vector<2x16x16x128xf32>
    %c0_135 = arith.constant 0 : index
    %c0_136 = arith.constant 0 : index
    %c0_137 = arith.constant 0 : index
    %c0_138 = arith.constant 0 : index
    %95 = vector.load %arg0[%c0_135, %c0_136, %c0_137, %c0_138] : memref<2x16x16x128xf32, #tpu.memory_space<vmem>>, vector<2x16x16x128xf32>
    %96 = arith.addf %94, %95 : vector<2x16x16x128xf32>
    %cst_139 = arith.constant 0.000000e+00 : f32
    %97 = vector.broadcast %cst_139 : f32 to vector<2x16x16x128xf32>
    %98 = arith.maximumf %96, %97 : vector<2x16x16x128xf32>
    %c0_140 = arith.constant 0 : index
    %c0_141 = arith.constant 0 : index
    %c0_142 = arith.constant 0 : index
    %c0_143 = arith.constant 0 : index
    %99 = vector.load %arg7[%c0_140, %c0_141, %c0_142, %c0_143] : memref<2x16x16x128xf32, #tpu.memory_space<vmem>>, vector<2x16x16x128xf32>
    tpu.vector_store %arg7[%c0_140, %c0_141, %c0_142, %c0_143], %98 {strides = array<i32>} : memref<2x16x16x128xf32, #tpu.memory_space<vmem>>, vector<2x16x16x128xf32>,
    return
  }
}

</mosaic_0001>

<llo_original>
// kernel: basic_block_forward.1
$region0: #{basic_block_forward.1}
  #allocation0 [shape = 'u32[]', space=smem, size = 0x4, offset = 0x4, fixed_abs, tag = 'smem constant byte address 0x4 - core index']
  #allocation1 [shape = 'u32[72,128]{1,0:T(1,128)}', space=vmem, size = 0x9000, scoped, tag = 'internal scratch']
  #allocation2 [shape = 'f32[2,16,16,1152]{3,2,1,0:T(8,128)}', space=vmem, size = 0x240000, scoped, tag = 'scratch operand']
  %s0 = inlined_call_operand.vmem [shape: f32[2,16,16,128], index: 0, kind: input, shape index: {}]
  %s1 = inlined_call_operand.vmem [shape: f32[1152,128], index: 1, kind: input, shape index: {}]
  %s2 = inlined_call_operand.vmem [shape: f32[1,128], index: 2, kind: input, shape index: {}]
  %s3 = inlined_call_operand.vmem [shape: f32[1,128], index: 3, kind: input, shape index: {}]
  %s4 = inlined_call_operand.vmem [shape: f32[1152,128], index: 4, kind: input, shape index: {}]
  %s5 = inlined_call_operand.vmem [shape: f32[1,128], index: 5, kind: input, shape index: {}]
  %s6 = inlined_call_operand.vmem [shape: f32[1,128], index: 6, kind: input, shape index: {}]
  %s7 = inlined_call_operand.vmem [shape: f32[2,16,16,128], index: 7, kind: output, shape index: {}]
  %s8 = sld [smem:[#allocation0]]
  $region38: #{basic_block_forward.1} parent=0
    _
  %s10 = ssub.s32 1, %s8
  %s11 = scalar_select 0, %s10, %s8
  // Predicated region
  $region2: #{basic_block_forward.1} parent=0 // pred_check
    _
  $region3: #{basic_block_forward.1} parent=0 // pred_check_branch
    %13 = sbr.rel (0) target = $region5
  $region4: #{basic_block_forward.1} parent=0 // pred_region
    _
  $region5: #{basic_block_forward.1} parent=0 // pred_fallthru
    _
  // Predicated region
  $region6: #{basic_block_forward.1} parent=0 // pred_check
    _
  $region7: #{basic_block_forward.1} parent=0 // pred_check_branch
    %15 = sbr.rel (0) target = $region9
  $region8: #{basic_block_forward.1} parent=0 // pred_region
    _
  $region9: #{basic_block_forward.1} parent=0 // pred_fallthru
    _
  // Predicated region
  $region10: #{basic_block_forward.1} parent=0 // pred_check
    _
  $region11: #{basic_block_forward.1} parent=0 // pred_check_branch
    %17 = sbr.rel (0) target = $region13
  $region12: #{basic_block_forward.1} parent=0 // pred_region
    _
  $region13: #{basic_block_forward.1} parent=0 // pred_fallthru
    _
  // Predicated region
  $region14: #{basic_block_forward.1} parent=0 // pred_check
    _
  $region15: #{basic_block_forward.1} parent=0 // pred_check_branch
    %19 = sbr.rel (0) target = $region17
  $region16: #{basic_block_forward.1} parent=0 // pred_region
    _
  $region17: #{basic_block_forward.1} parent=0 // pred_fallthru
    _
  // Predicated region
  $region18: #{basic_block_forward.1} parent=0 // pred_check
    _
  $region19: #{basic_block_forward.1} parent=0 // pred_check_branch
    %21 = sbr.rel (0) target = $region21
  $region20: #{basic_block_forward.1} parent=0 // pred_region
    _
  $region21: #{basic_block_forward.1} parent=0 // pred_fallthru
    _
  // Predicated region
  $region22: #{basic_block_forward.1} parent=0 // pred_check
    _
  $region23: #{basic_block_forward.1} parent=0 // pred_check_branch
    %23 = sbr.rel (0) target = $region25
  $region24: #{basic_block_forward.1} parent=0 // pred_region
    _
  $region25: #{basic_block_forward.1} parent=0 // pred_fallthru
    _
  // Predicated region
  $region26: #{basic_block_forward.1} parent=0 // pred_check
    _
  $region27: #{basic_block_forward.1} parent=0 // pred_check_branch
    %25 = sbr.rel (0) target = $region29
  $region28: #{basic_block_forward.1} parent=0 // pred_region
    _
  $region29: #{basic_block_forward.1} parent=0 // pred_fallthru
    _
  %26 = vst [vmem:[#allocation2] sm:$0xff] 0.0
  %27 = vst [vmem:[#allocation2 + $0x8] sm:$0xff] 0.0
  %28 = vst [vmem:[#allocation2 + $0x10] sm:$0xff] 0.0
  %29 = vst [vmem:[#allocation2 + $0x18] sm:$0xff] 0.0
  %30 = vst [vmem:[#allocation2 + $0x20] sm:$0xff] 0.0
  %31 = vst [vmem:[#allocation2 + $0x28] sm:$0xff] 0.0
  %32 = vst [vmem:[#allocation2 + $0x30] sm:$0xff] 0.0
  %33 = vst [vmem:[#allocation2 + $0x38] sm:$0xff] 0.0
  %34 = vst [vmem:[#allocation2 + $0x40] sm:$0xff] 0.0
  %35 = vst [vmem:[#allocation2 + $0x48] sm:$0xff] 0.0
  %36 = vst [vmem:[#allocation2 + $0x50] sm:$0xff] 0.0
  %37 = vst [vmem:[#allocation2 + $0x58] sm:$0xff] 0.0
  %38 = vst [vmem:[#allocation2 + $0x60] sm:$0xff] 0.0
  %39 = vst [vmem:[#allocation2 + $0x68] sm:$0xff] 0.0
  %40 = vst [vmem:[#allocation2 + $0x70] sm:$0xff] 0.0
  %41 = vst [vmem:[#allocation2 + $0x78] sm:$0xff] 0.0
  %42 = vst [vmem:[#allocation2 + $0x80] sm:$0xff] 0.0
  %43 = vst [vmem:[#allocation2 + $0x88] sm:$0xff] 0.0
  %44 = vst [vmem:[#allocation2 + $0x90] sm:$0xff] 0.0
  %45 = vst [vmem:[#allocation2 + $0x98] sm:$0xff] 0.0
  %46 = vst [vmem:[#allocation2 + $0xa0] sm:$0xff] 0.0
  %47 = vst [vmem:[#allocation2 + $0xa8] sm:$0xff] 0.0
  %48 = vst [vmem:[#allocation2 + $0xb0] sm:$0xff] 0.0
  %49 = vst [vmem:[#allocation2 + $0xb8] sm:$0xff] 0.0
  %50 = vst [vmem:[#allocation2 + $0xc0] sm:$0xff] 0.0
  %51 = vst [vmem:[#allocation2 + $0xc8] sm:$0xff] 0.0
  %52 = vst [vmem:[#allocation2 + $0xd0] sm:$0xff] 0.0
  %53 = vst [vmem:[#allocation2 + $0xd8] sm:$0xff] 0.0
  %54 = vst [vmem:[#allocation2 + $0xe0] sm:$0xff] 0.0
  %55 = vst [vmem:[#allocation2 + $0xe8] sm:$0xff] 0.0
  %56 = vst [vmem:[#allocation2 + $0xf0] sm:$0xff] 0.0
  %57 = vst [vmem:[#allocation2 + $0xf8] sm:$0xff] 0.0
  %58 = vst [vmem:[#allocation2 + $0x100] sm:$0xff] 0.0
  %59 = vst [vmem:[#allocation2 + $0x108] sm:$0xff] 0.0
  %60 = vst [vmem:[#allocation2 + $0x110] sm:$0xff] 0.0
  %61 = vst [vmem:[#allocation2 + $0x118] sm:$0xff] 0.0
  %62 = vst [vmem:[#allocation2 + $0x120] sm:$0xff] 0.0
  %63 = vst [vmem:[#allocation2 + $0x128] sm:$0xff] 0.0
  %64 = vst [vmem:[#allocation2 + $0x130] sm:$0xff] 0.0
  %65 = vst [vmem:[#allocation2 + $0x138] sm:$0xff] 0.0
  %66 = vst [vmem:[#allocation2 + $0x140] sm:$0xff] 0.0
  %67 = vst [vmem:[#allocation2 + $0x148] sm:$0xff] 0.0
  %68 = vst [vmem:[#allocation2 + $0x150] sm:$0xff] 0.0
  %69 = vst [vmem:[#allocation2 + $0x158] sm:$0xff] 0.0
  %70 = vst [vmem:[#allocation2 + $0x160] sm:$0xff] 0.0
  %71 = vst [vmem:[#allocation2 + $0x168] sm:$0xff] 0.0
  %72 = vst [vmem:[#allocation2 + $0x170] sm:$0xff] 0.0
  %73 = vst [vmem:[#allocation2 + $0x178] sm:$0xff] 0.0
  %74 = vst [vmem:[#allocation2 + $0x180] sm:$0xff] 0.0
  %75 = vst [vmem:[#allocation2 + $0x188] sm:$0xff] 0.0
  %76 = vst [vmem:[#allocation2 + $0x190] sm:$0xff] 0.0
  %77 = vst [vmem:[#allocation2 + $0x198] sm:$0xff] 0.0
  %78 = vst [vmem:[#allocation2 + $0x1a0] sm:$0xff] 0.0
  %79 = vst [vmem:[#allocation2 + $0x1a8] sm:$0xff] 0.0
  %80 = vst [vmem:[#allocation2 + $0x1b0] sm:$0xff] 0.0
  %81 = vst [vmem:[#allocation2 + $0x1b8] sm:$0xff] 0.0
  %82 = vst [vmem:[#allocation2 + $0x1c0] sm:$0xff] 0.0
  %83 = vst [vmem:[#allocation2 + $0x1c8] sm:$0xff] 0.0
  %84 = vst [vmem:[#allocation2 + $0x1d0] sm:$0xff] 0.0
  %85 = vst [vmem:[#allocation2 + $0x1d8] sm:$0xff] 0.0
  %86 = vst [vmem:[#allocation2 + $0x1e0] sm:$0xff] 0.0
  %87 = vst [vmem:[#allocation2 + $0x1e8] sm:$0xff] 0.0
  %88 = vst [vmem:[#allocation2 + $0x1f0] sm:$0xff] 0.0
  %89 = vst [vmem:[#allocation2 + $0x1f8] sm:$0xff] 0.0
  %90 = vst [vmem:[#allocation2 + $0x200] sm:$0xff] 0.0
  %91 = vst [vmem:[#allocation2 + $0x208] sm:$0xff] 0.0
  %92 = vst [vmem:[#allocation2 + $0x210] sm:$0xff] 0.0
  %93 = vst [vmem:[#allocation2 + $0x218] sm:$0xff] 0.0
  %94 = vst [vmem:[#allocation2 + $0x220] sm:$0xff] 0.0
  %95 = vst [vmem:[#allocation2 + $0x228] sm:$0xff] 0.0
  %96 = vst [vmem:[#allocation2 + $0x230] sm:$0xff] 0.0
  %97 = vst [vmem:[#allocation2 + $0x238] sm:$0xff] 0.0
  %98 = vst [vmem:[#allocation2 + $0x240] sm:$0xff] 0.0
  %99 = vst [vmem:[#allocation2 + $0x248] sm:$0xff] 0.0
  %100 = vst [vmem:[#allocation2 + $0x250] sm:$0xff] 0.0
  %101 = vst [vmem:[#allocation2 + $0x258] sm:$0xff] 0.0
  %102 = vst [vmem:[#allocation2 + $0x260] sm:$0xff] 0.0
  %103 = vst [vmem:[#allocation2 + $0x268] sm:$0xff] 0.0
  %104 = vst [vmem:[#allocation2 + $0x270] sm:$0xff] 0.0
  %105 = vst [vmem:[#allocation2 + $0x278] sm:$0xff] 0.0
  %106 = vst [vmem:[#allocation2 + $0x280] sm:$0xff] 0.0
  %107 = vst [vmem:[#allocation2 + $0x288] sm:$0xff] 0.0
  %108 = vst [vmem:[#allocation2 + $0x290] sm:$0xff] 0.0
  %109 = vst [vmem:[#allocation2 + $0x298] sm:$0xff] 0.0
  %110 = vst [vmem:[#allocation2 + $0x2a0] sm:$0xff] 0.0
  %111 = vst [vmem:[#allocation2 + $0x2a8] sm:$0xff] 0.0
  %112 = vst [vmem:[#allocation2 + $0x2b0] sm:$0xff] 0.0
  %113 = vst [vmem:[#allocation2 + $0x2b8] sm:$0xff] 0.0
  %114 = vst [vmem:[#allocation2 + $0x2c0] sm:$0xff] 0.0
  %115 = vst [vmem:[#allocation2 + $0x2c8] sm:$0xff] 0.0
  %116 = vst [vmem:[#allocation2 + $0x2d0] sm:$0xff] 0.0
  %117 = vst [vmem:[#allocation2 + $0x2d8] sm:$0xff] 0.0
  %118 = vst [vmem:[#allocation2 + $0x2e0] sm:$0xff] 0.0
  %119 = vst [vmem:[#allocation2 + $0x2e8] sm:$0xff] 0.0
  %120 = vst [vmem:[#allocation2 + $0x2f0] sm:$0xff] 0.0
  %121 = vst [vmem:[#allocation2 + $0x2f8] sm:$0xff] 0.0
  %122 = vst [vmem:[#allocation2 + $0x300] sm:$0xff] 0.0
  %123 = vst [vmem:[#allocation2 + $0x308] sm:$0xff] 0.0
  %124 = vst [vmem:[#allocation2 + $0x310] sm:$0xff] 0.0
  %125 = vst [vmem:[#allocation2 + $0x318] sm:$0xff] 0.0
  %126 = vst [vmem:[#allocation2 + $0x320] sm:$0xff] 0.0
  %127 = vst [vmem:[#allocation2 + $0x328] sm:$0xff] 0.0
  %128 = vst [vmem:[#allocation2 + $0x330] sm:$0xff] 0.0
  %129 = vst [vmem:[#allocation2 + $0x338] sm:$0xff] 0.0
  %130 = vst [vmem:[#allocation2 + $0x340] sm:$0xff] 0.0
  %131 = vst [vmem:[#allocation2 + $0x348] sm:$0xff] 0.0
  %132 = vst [vmem:[#allocation2 + $0x350] sm:$0xff] 0.0
  %133 = vst [vmem:[#allocation2 + $0x358] sm:$0xff] 0.0
  %134 = vst [vmem:[#allocation2 + $0x360] sm:$0xff] 0.0
  %135 = vst [vmem:[#allocation2 + $0x368] sm:$0xff] 0.0
  %136 = vst [vmem:[#allocation2 + $0x370] sm:$0xff] 0.0
  %137 = vst [vmem:[#allocation2 + $0x378] sm:$0xff] 0.0
  %138 = vst [vmem:[#allocation2 + $0x380] sm:$0xff] 0.0
  %139 = vst [vmem:[#allocation2 + $0x388] sm:$0xff] 0.0
  %140 = vst [vmem:[#allocation2 + $0x390] sm:$0xff] 0.0
  %141 = vst [vmem:[#allocation2 + $0x398] sm:$0xff] 0.0
  %142 = vst [vmem:[#allocation2 + $0x3a0] sm:$0xff] 0.0
  %143 = vst [vmem:[#allocation2 + $0x3a8] sm:$0xff] 0.0
  %144 = vst [vmem:[#allocation2 + $0x3b0] sm:$0xff] 0.0
  %145 = vst [vmem:[#allocation2 + $0x3b8] sm:$0xff] 0.0
  %146 = vst [vmem:[#allocation2 + $0x3c0] sm:$0xff] 0.0
  %147 = vst [vmem:[#allocation2 + $0x3c8] sm:$0xff] 0.0
  %148 = vst [vmem:[#allocation2 + $0x3d0] sm:$0xff] 0.0
  %149 = vst [vmem:[#allocation2 + $0x3d8] sm:$0xff] 0.0
  %150 = vst [vmem:[#allocation2 + $0x3e0] sm:$0xff] 0.0
  %151 = vst [vmem:[#allocation2 + $0x3e8] sm:$0xff] 0.0
  %152 = vst [vmem:[#allocation2 + $0x3f0] sm:$0xff] 0.0
  %153 = vst [vmem:[#allocation2 + $0x3f8] sm:$0xff] 0.0
  %154 = vst [vmem:[#allocation2 + $0x400] sm:$0xff] 0.0
  %155 = vst [vmem:[#allocation2 + $0x408] sm:$0xff] 0.0
  %156 = vst [vmem:[#allocation2 + $0x410] sm:$0xff] 0.0
  %157 = vst [vmem:[#allocation2 + $0x418] sm:$0xff] 0.0
  %158 = vst [vmem:[#allocation2 + $0x420] sm:$0xff] 0.0
  %159 = vst [vmem:[#allocation2 + $0x428] sm:$0xff] 0.0
  %160 = vst [vmem:[#allocation2 + $0x430] sm:$0xff] 0.0
  %161 = vst [vmem:[#allocation2 + $0x438] sm:$0xff] 0.0
  %162 = vst [vmem:[#allocation2 + $0x440] sm:$0xff] 0.0
  %163 = vst [vmem:[#allocation2 + $0x448] sm:$0xff] 0.0
  %164 = vst [vmem:[#allocation2 + $0x450] sm:$0xff] 0.0
  %165 = vst [vmem:[#allocation2 + $0x458] sm:$0xff] 0.0
  %166 = vst [vmem:[#allocation2 + $0x460] sm:$0xff] 0.0
  %167 = vst [vmem:[#allocation2 + $0x468] sm:$0xff] 0.0
  %168 = vst [vmem:[#allocation2 + $0x470] sm:$0xff] 0.0
  %169 = vst [vmem:[#allocation2 + $0x478] sm:$0xff] 0.0
  %170 = vst [vmem:[#allocation2 + $0x480] sm:$0xff] 0.0
  %171 = vst [vmem:[#allocation2 + $0x488] sm:$0xff] 0.0
  %172 = vst [vmem:[#allocation2 + $0x490] sm:$0xff] 0.0
  %173 = vst [vmem:[#allocation2 + $0x498] sm:$0xff] 0.0
  %174 = vst [vmem:[#allocation2 + $0x4a0] sm:$0xff] 0.0
  %175 = vst [vmem:[#allocation2 + $0x4a8] sm:$0xff] 0.0
  %176 = vst [vmem:[#allocation2 + $0x4b0] sm:$0xff] 0.0
  %177 = vst [vmem:[#allocation2 + $0x4b8] sm:$0xff] 0.0
  %178 = vst [vmem:[#allocation2 + $0x4c0] sm:$0xff] 0.0
  %179 = vst [vmem:[#allocation2 + $0x4c8] sm:$0xff] 0.0
  %180 = vst [vmem:[#allocation2 + $0x4d0] sm:$0xff] 0.0
  %181 = vst [vmem:[#allocation2 + $0x4d8] sm:$0xff] 0.0
  %182 = vst [vmem:[#allocation2 + $0x4e0] sm:$0xff] 0.0
  %183 = vst [vmem:[#allocation2 + $0x4e8] sm:$0xff] 0.0
  %184 = vst [vmem:[#allocation2 + $0x4f0] sm:$0xff] 0.0
  %185 = vst [vmem:[#allocation2 + $0x4f8] sm:$0xff] 0.0
  %186 = vst [vmem:[#allocation2 + $0x500] sm:$0xff] 0.0
  %187 = vst [vmem:[#allocation2 + $0x508] sm:$0xff] 0.0
  %188 = vst [vmem:[#allocation2 + $0x510] sm:$0xff] 0.0
  %189 = vst [vmem:[#allocation2 + $0x518] sm:$0xff] 0.0
  %190 = vst [vmem:[#allocation2 + $0x520] sm:$0xff] 0.0
  %191 = vst [vmem:[#allocation2 + $0x528] sm:$0xff] 0.0
  %192 = vst [vmem:[#allocation2 + $0x530] sm:$0xff] 0.0
  %193 = vst [vmem:[#allocation2 + $0x538] sm:$0xff] 0.0
  %194 = vst [vmem:[#allocation2 + $0x540] sm:$0xff] 0.0
  %195 = vst [vmem:[#allocation2 + $0x548] sm:$0xff] 0.0
  %196 = vst [vmem:[#allocation2 + $0x550] sm:$0xff] 0.0
  %197 = vst [vmem:[#allocation2 + $0x558] sm:$0xff] 0.0
  %198 = vst [vmem:[#allocation2 + $0x560] sm:$0xff] 0.0
  %199 = vst [vmem:[#allocation2 + $0x568] sm:$0xff] 0.0
  %200 = vst [vmem:[#allocation2 + $0x570] sm:$0xff] 0.0
  %201 = vst [vmem:[#allocation2 + $0x578] sm:$0xff] 0.0
  %202 = vst [vmem:[#allocation2 + $0x580] sm:$0xff] 0.0
  %203 = vst [vmem:[#allocation2 + $0x588] sm:$0xff] 0.0
  %204 = vst [vmem:[#allocation2 + $0x590] sm:$0xff] 0.0
  %205 = vst [vmem:[#allocation2 + $0x598] sm:$0xff] 0.0
  %206 = vst [vmem:[#allocation2 + $0x5a0] sm:$0xff] 0.0
  %207 = vst [vmem:[#allocation2 + $0x5a8] sm:$0xff] 0.0
  %208 = vst [vmem:[#allocation2 + $0x5b0] sm:$0xff] 0.0
  %209 = vst [vmem:[#allocation2 + $0x5b8] sm:$0xff] 0.0
  %210 = vst [vmem:[#allocation2 + $0x5c0] sm:$0xff] 0.0
  %211 = vst [vmem:[#allocation2 + $0x5c8] sm:$0xff] 0.0
  %212 = vst [vmem:[#allocation2 + $0x5d0] sm:$0xff] 0.0
  %213 = vst [vmem:[#allocation2 + $0x5d8] sm:$0xff] 0.0
  %214 = vst [vmem:[#allocation2 + $0x5e0] sm:$0xff] 0.0
  %215 = vst [vmem:[#allocation2 + $0x5e8] sm:$0xff] 0.0
  %216 = vst [vmem:[#allocation2 + $0x5f0] sm:$0xff] 0.0
  %217 = vst [vmem:[#allocation2 + $0x5f8] sm:$0xff] 0.0
  %218 = vst [vmem:[#allocation2 + $0x600] sm:$0xff] 0.0
  %219 = vst [vmem:[#allocation2 + $0x608] sm:$0xff] 0.0
  %220 = vst [vmem:[#allocation2 + $0x610] sm:$0xff] 0.0
  %221 = vst [vmem:[#allocation2 + $0x618] sm:$0xff] 0.0
  %222 = vst [vmem:[#allocation2 + $0x620] sm:$0xff] 0.0
  %223 = vst [vmem:[#allocation2 + $0x628] sm:$0xff] 0.0
  %224 = vst [vmem:[#allocation2 + $0x630] sm:$0xff] 0.0
  %225 = vst [vmem:[#allocation2 + $0x638] sm:$0xff] 0.0
  %226 = vst [vmem:[#allocation2 + $0x640] sm:$0xff] 0.0
  %227 = vst [vmem:[#allocation2 + $0x648] sm:$0xff] 0.0
  %228 = vst [vmem:[#allocation2 + $0x650] sm:$0xff] 0.0
  %229 = vst [vmem:[#allocation2 + $0x658] sm:$0xff] 0.0
  %230 = vst [vmem:[#allocation2 + $0x660] sm:$0xff] 0.0
  %231 = vst [vmem:[#allocation2 + $0x668] sm:$0xff] 0.0
  %232 = vst [vmem:[#allocation2 + $0x670] sm:$0xff] 0.0
  %233 = vst [vmem:[#allocation2 + $0x678] sm:$0xff] 0.0
  %234 = vst [vmem:[#allocation2 + $0x680] sm:$0xff] 0.0
  %235 = vst [vmem:[#allocation2 + $0x688] sm:$0xff] 0.0
  %236 = vst [vmem:[#allocation2 + $0x690] sm:$0xff] 0.0
  %237 = vst [vmem:[#allocation2 + $0x698] sm:$0xff] 0.0
  %238 = vst [vmem:[#allocation2 + $0x6a0] sm:$0xff] 0.0
  %239 = vst [vmem:[#allocation2 + $0x6a8] sm:$0xff] 0.0
  %240 = vst [vmem:[#allocation2 + $0x6b0] sm:$0xff] 0.0
  %241 = vst [vmem:[#allocation2 + $0x6b8] sm:$0xff] 0.0
  %242 = vst [vmem:[#allocation2 + $0x6c0] sm:$0xff] 0.0
  %243 = vst [vmem:[#allocation2 + $0x6c8] sm:$0xff] 0.0
  %244 = vst [vmem:[#allocation2 + $0x6d0] sm:$0xff] 0.0
  %245 = vst [vmem:[#allocation2 + $0x6d8] sm:$0xff] 0.0
  %246 = vst [vmem:[#allocation2 + $0x6e0] sm:$0xff] 0.0
  %247 = vst [vmem:[#allocation2 + $0x6e8] sm:$0xff] 0.0
  %248 = vst [vmem:[#allocation2 + $0x6f0] sm:$0xff] 0.0
  %249 = vst [vmem:[#allocation2 + $0x6f8] sm:$0xff] 0.0
  %250 = vst [vmem:[#allocation2 + $0x700] sm:$0xff] 0.0
  %251 = vst [vmem:[#allocation2 + $0x708] sm:$0xff] 0.0
  %252 = vst [vmem:[#allocation2 + $0x710] sm:$0xff] 0.0
  %253 = vst [vmem:[#allocation2 + $0x718] sm:$0xff] 0.0
  %254 = vst [vmem:[#allocation2 + $0x720] sm:$0xff] 0.0
  %255 = vst [vmem:[#allocation2 + $0x728] sm:$0xff] 0.0
  %256 = vst [vmem:[#allocation2 + $0x730] sm:$0xff] 0.0
  %257 = vst [vmem:[#allocation2 + $0x738] sm:$0xff] 0.0
  %258 = vst [vmem:[#allocation2 + $0x740] sm:$0xff] 0.0
  %259 = vst [vmem:[#allocation2 + $0x748] sm:$0xff] 0.0
  %260 = vst [vmem:[#allocation2 + $0x750] sm:$0xff] 0.0
  %261 = vst [vmem:[#allocation2 + $0x758] sm:$0xff] 0.0
  %262 = vst [vmem:[#allocation2 + $0x760] sm:$0xff] 0.0
  %263 = vst [vmem:[#allocation2 + $0x768] sm:$0xff] 0.0
  %264 = vst [vmem:[#allocation2 + $0x770] sm:$0xff] 0.0
  %265 = vst [vmem:[#allocation2 + $0x778] sm:$0xff] 0.0
  %266 = vst [vmem:[#allocation2 + $0x780] sm:$0xff] 0.0
  %267 = vst [vmem:[#allocation2 + $0x788] sm:$0xff] 0.0
  %268 = vst [vmem:[#allocation2 + $0x790] sm:$0xff] 0.0
  %269 = vst [vmem:[#allocation2 + $0x798] sm:$0xff] 0.0
  %270 = vst [vmem:[#allocation2 + $0x7a0] sm:$0xff] 0.0
  %271 = vst [vmem:[#allocation2 + $0x7a8] sm:$0xff] 0.0
  %272 = vst [vmem:[#allocation2 + $0x7b0] sm:$0xff] 0.0
  %273 = vst [vmem:[#allocation2 + $0x7b8] sm:$0xff] 0.0
  %274 = vst [vmem:[#allocation2 + $0x7c0] sm:$0xff] 0.0
  %275 = vst [vmem:[#allocation2 + $0x7c8] sm:$0xff] 0.0
  %276 = vst [vmem:[#allocation2 + $0x7d0] sm:$0xff] 0.0
  %277 = vst [vmem:[#allocation2 + $0x7d8] sm:$0xff] 0.0
  %278 = vst [vmem:[#allocation2 + $0x7e0] sm:$0xff] 0.0
  %279 = vst [vmem:[#allocation2 + $0x7e8] sm:$0xff] 0.0
  %280 = vst [vmem:[#allocation2 + $0x7f0] sm:$0xff] 0.0
  %281 = vst [vmem:[#allocation2 + $0x7f8] sm:$0xff] 0.0
  %282 = vst [vmem:[#allocation2 + $0x800] sm:$0xff] 0.0
  %283 = vst [vmem:[#allocation2 + $0x808] sm:$0xff] 0.0
  %284 = vst [vmem:[#allocation2 + $0x810] sm:$0xff] 0.0
  %285 = vst [vmem:[#allocation2 + $0x818] sm:$0xff] 0.0
  %286 = vst [vmem:[#allocation2 + $0x820] sm:$0xff] 0.0
  %287 = vst [vmem:[#allocation2 + $0x828] sm:$0xff] 0.0
  %288 = vst [vmem:[#allocation2 + $0x830] sm:$0xff] 0.0
  %289 = vst [vmem:[#allocation2 + $0x838] sm:$0xff] 0.0
  %290 = vst [vmem:[#allocation2 + $0x840] sm:$0xff] 0.0
  %291 = vst [vmem:[#allocation2 + $0x848] sm:$0xff] 0.0
  %292 = vst [vmem:[#allocation2 + $0x850] sm:$0xff] 0.0
  %293 = vst [vmem:[#allocation2 + $0x858] sm:$0xff] 0.0
  %294 = vst [vmem:[#allocation2 + $0x860] sm:$0xff] 0.0
  %295 = vst [vmem:[#allocation2 + $0x868] sm:$0xff] 0.0
  %296 = vst [vmem:[#allocation2 + $0x870] sm:$0xff] 0.0
  %297 = vst [vmem:[#allocation2 + $0x878] sm:$0xff] 0.0
  %298 = vst [vmem:[#allocation2 + $0x880] sm:$0xff] 0.0
  %299 = vst [vmem:[#allocation2 + $0x888] sm:$0xff] 0.0
  %300 = vst [vmem:[#allocation2 + $0x890] sm:$0xff] 0.0
  %301 = vst [vmem:[#allocation2 + $0x898] sm:$0xff] 0.0
  %302 = vst [vmem:[#allocation2 + $0x8a0] sm:$0xff] 0.0
  %303 = vst [vmem:[#allocation2 + $0x8a8] sm:$0xff] 0.0
  %304 = vst [vmem:[#allocation2 + $0x8b0] sm:$0xff] 0.0
  %305 = vst [vmem:[#allocation2 + $0x8b8] sm:$0xff] 0.0
  %306 = vst [vmem:[#allocation2 + $0x8c0] sm:$0xff] 0.0
  %307 = vst [vmem:[#allocation2 + $0x8c8] sm:$0xff] 0.0
  %308 = vst [vmem:[#allocation2 + $0x8d0] sm:$0xff] 0.0
  %309 = vst [vmem:[#allocation2 + $0x8d8] sm:$0xff] 0.0
  %310 = vst [vmem:[#allocation2 + $0x8e0] sm:$0xff] 0.0
  %311 = vst [vmem:[#allocation2 + $0x8e8] sm:$0xff] 0.0
  %312 = vst [vmem:[#allocation2 + $0x8f0] sm:$0xff] 0.0
  %313 = vst [vmem:[#allocation2 + $0x8f8] sm:$0xff] 0.0
  %314 = vst [vmem:[#allocation2 + $0x900] sm:$0xff] 0.0
  %315 = vst [vmem:[#allocation2 + $0x908] sm:$0xff] 0.0
  %316 = vst [vmem:[#allocation2 + $0x910] sm:$0xff] 0.0
  %317 = vst [vmem:[#allocation2 + $0x918] sm:$0xff] 0.0
  %318 = vst [vmem:[#allocation2 + $0x920] sm:$0xff] 0.0
  %319 = vst [vmem:[#allocation2 + $0x928] sm:$0xff] 0.0
  %320 = vst [vmem:[#allocation2 + $0x930] sm:$0xff] 0.0
  %321 = vst [vmem:[#allocation2 + $0x938] sm:$0xff] 0.0
  %322 = vst [vmem:[#allocation2 + $0x940] sm:$0xff] 0.0
  %323 = vst [vmem:[#allocation2 + $0x948] sm:$0xff] 0.0
  %324 = vst [vmem:[#allocation2 + $0x950] sm:$0xff] 0.0
  %325 = vst [vmem:[#allocation2 + $0x958] sm:$0xff] 0.0
  %326 = vst [vmem:[#allocation2 + $0x960] sm:$0xff] 0.0
  %327 = vst [vmem:[#allocation2 + $0x968] sm:$0xff] 0.0
  %328 = vst [vmem:[#allocation2 + $0x970] sm:$0xff] 0.0
  %329 = vst [vmem:[#allocation2 + $0x978] sm:$0xff] 0.0
  %330 = vst [vmem:[#allocation2 + $0x980] sm:$0xff] 0.0
  %331 = vst [vmem:[#allocation2 + $0x988] sm:$0xff] 0.0
  %332 = vst [vmem:[#allocation2 + $0x990] sm:$0xff] 0.0
  %333 = vst [vmem:[#allocation2 + $0x998] sm:$0xff] 0.0
  %334 = vst [vmem:[#allocation2 + $0x9a0] sm:$0xff] 0.0
  %335 = vst [vmem:[#allocation2 + $0x9a8] sm:$0xff] 0.0
  %336 = vst [vmem:[#allocation2 + $0x9b0] sm:$0xff] 0.0
  %337 = vst [vmem:[#allocation2 + $0x9b8] sm:$0xff] 0.0
  %338 = vst [vmem:[#allocation2 + $0x9c0] sm:$0xff] 0.0
  %339 = vst [vmem:[#allocation2 + $0x9c8] sm:$0xff] 0.0
  %340 = vst [vmem:[#allocation2 + $0x9d0] sm:$0xff] 0.0
  %341 = vst [vmem:[#allocation2 + $0x9d8] sm:$0xff] 0.0
  %342 = vst [vmem:[#allocation2 + $0x9e0] sm:$0xff] 0.0
  %343 = vst [vmem:[#allocation2 + $0x9e8] sm:$0xff] 0.0
  %344 = vst [vmem:[#allocation2 + $0x9f0] sm:$0xff] 0.0
  %345 = vst [vmem:[#allocation2 + $0x9f8] sm:$0xff] 0.0
  %346 = vst [vmem:[#allocation2 + $0xa00] sm:$0xff] 0.0
  %347 = vst [vmem:[#allocation2 + $0xa08] sm:$0xff] 0.0
  %348 = vst [vmem:[#allocation2 + $0xa10] sm:$0xff] 0.0
  %349 = vst [vmem:[#allocation2 + $0xa18] sm:$0xff] 0.0
  %350 = vst [vmem:[#allocation2 + $0xa20] sm:$0xff] 0.0
  %351 = vst [vmem:[#allocation2 + $0xa28] sm:$0xff] 0.0
  %352 = vst [vmem:[#allocation2 + $0xa30] sm:$0xff] 0.0
  %353 = vst [vmem:[#allocation2 + $0xa38] sm:$0xff] 0.0
  %354 = vst [vmem:[#allocation2 + $0xa40] sm:$0xff] 0.0
  %355 = vst [vmem:[#allocation2 + $0xa48] sm:$0xff] 0.0
  %356 = vst [vmem:[#allocation2 + $0xa50] sm:$0xff] 0.0
  %357 = vst [vmem:[#allocation2 + $0xa58] sm:$0xff] 0.0
  %358 = vst [vmem:[#allocation2 + $0xa60] sm:$0xff] 0.0
  %359 = vst [vmem:[#allocation2 + $0xa68] sm:$0xff] 0.0
  %360 = vst [vmem:[#allocation2 + $0xa70] sm:$0xff] 0.0
  %361 = vst [vmem:[#allocation2 + $0xa78] sm:$0xff] 0.0
  %362 = vst [vmem:[#allocation2 + $0xa80] sm:$0xff] 0.0
  %363 = vst [vmem:[#allocation2 + $0xa88] sm:$0xff] 0.0
  %364 = vst [vmem:[#allocation2 + $0xa90] sm:$0xff] 0.0
  %365 = vst [vmem:[#allocation2 + $0xa98] sm:$0xff] 0.0
  %366 = vst [vmem:[#allocation2 + $0xaa0] sm:$0xff] 0.0
  %367 = vst [vmem:[#allocation2 + $0xaa8] sm:$0xff] 0.0
  %368 = vst [vmem:[#allocation2 + $0xab0] sm:$0xff] 0.0
  %369 = vst [vmem:[#allocation2 + $0xab8] sm:$0xff] 0.0
  %370 = vst [vmem:[#allocation2 + $0xac0] sm:$0xff] 0.0
  %371 = vst [vmem:[#allocation2 + $0xac8] sm:$0xff] 0.0
  %372 = vst [vmem:[#allocation2 + $0xad0] sm:$0xff] 0.0
  %373 = vst [vmem:[#allocation2 + $0xad8] sm:$0xff] 0.0
  %374 = vst [vmem:[#allocation2 + $0xae0] sm:$0xff] 0.0
  %375 = vst [vmem:[#allocation2 + $0xae8] sm:$0xff] 0.0
  %376 = vst [vmem:[#allocation2 + $0xaf0] sm:$0xff] 0.0
  %377 = vst [vmem:[#allocation2 + $0xaf8] sm:$0xff] 0.0
  %378 = vst [vmem:[#allocation2 + $0xb00] sm:$0xff] 0.0
  %379 = vst [vmem:[#allocation2 + $0xb08] sm:$0xff] 0.0
  %380 = vst [vmem:[#allocation2 + $0xb10] sm:$0xff] 0.0
  %381 = vst [vmem:[#allocation2 + $0xb18] sm:$0xff] 0.0
  %382 = vst [vmem:[#allocation2 + $0xb20] sm:$0xff] 0.0
  %383 = vst [vmem:[#allocation2 + $0xb28] sm:$0xff] 0.0
  %384 = vst [vmem:[#allocation2 + $0xb30] sm:$0xff] 0.0
  %385 = vst [vmem:[#allocation2 + $0xb38] sm:$0xff] 0.0
  %386 = vst [vmem:[#allocation2 + $0xb40] sm:$0xff] 0.0
  %387 = vst [vmem:[#allocation2 + $0xb48] sm:$0xff] 0.0
  %388 = vst [vmem:[#allocation2 + $0xb50] sm:$0xff] 0.0
  %389 = vst [vmem:[#allocation2 + $0xb58] sm:$0xff] 0.0
  %390 = vst [vmem:[#allocation2 + $0xb60] sm:$0xff] 0.0
  %391 = vst [vmem:[#allocation2 + $0xb68] sm:$0xff] 0.0
  %392 = vst [vmem:[#allocation2 + $0xb70] sm:$0xff] 0.0
  %393 = vst [vmem:[#allocation2 + $0xb78] sm:$0xff] 0.0
  %394 = vst [vmem:[#allocation2 + $0xb80] sm:$0xff] 0.0
  %395 = vst [vmem:[#allocation2 + $0xb88] sm:$0xff] 0.0
  %396 = vst [vmem:[#allocation2 + $0xb90] sm:$0xff] 0.0
  %397 = vst [vmem:[#allocation2 + $0xb98] sm:$0xff] 0.0
  %398 = vst [vmem:[#allocation2 + $0xba0] sm:$0xff] 0.0
  %399 = vst [vmem:[#allocation2 + $0xba8] sm:$0xff] 0.0
  %400 = vst [vmem:[#allocation2 + $0xbb0] sm:$0xff] 0.0
  %401 = vst [vmem:[#allocation2 + $0xbb8] sm:$0xff] 0.0
  %402 = vst [vmem:[#allocation2 + $0xbc0] sm:$0xff] 0.0
  %403 = vst [vmem:[#allocation2 + $0xbc8] sm:$0xff] 0.0
  %404 = vst [vmem:[#allocation2 + $0xbd0] sm:$0xff] 0.0
  %405 = vst [vmem:[#allocation2 + $0xbd8] sm:$0xff] 0.0
  %406 = vst [vmem:[#allocation2 + $0xbe0] sm:$0xff] 0.0
  %407 = vst [vmem:[#allocation2 + $0xbe8] sm:$0xff] 0.0
  %408 = vst [vmem:[#allocation2 + $0xbf0] sm:$0xff] 0.0
  %409 = vst [vmem:[#allocation2 + $0xbf8] sm:$0xff] 0.0
  %410 = vst [vmem:[#allocation2 + $0xc00] sm:$0xff] 0.0
  %411 = vst [vmem:[#allocation2 + $0xc08] sm:$0xff] 0.0
  %412 = vst [vmem:[#allocation2 + $0xc10] sm:$0xff] 0.0
  %413 = vst [vmem:[#allocation2 + $0xc18] sm:$0xff] 0.0
  %414 = vst [vmem:[#allocation2 + $0xc20] sm:$0xff] 0.0
  %415 = vst [vmem:[#allocation2 + $0xc28] sm:$0xff] 0.0
  %416 = vst [vmem:[#allocation2 + $0xc30] sm:$0xff] 0.0
  %417 = vst [vmem:[#allocation2 + $0xc38] sm:$0xff] 0.0
  %418 = vst [vmem:[#allocation2 + $0xc40] sm:$0xff] 0.0
  %419 = vst [vmem:[#allocation2 + $0xc48] sm:$0xff] 0.0
  %420 = vst [vmem:[#allocation2 + $0xc50] sm:$0xff] 0.0
  %421 = vst [vmem:[#allocation2 + $0xc58] sm:$0xff] 0.0
  %422 = vst [vmem:[#allocation2 + $0xc60] sm:$0xff] 0.0
  %423 = vst [vmem:[#allocation2 + $0xc68] sm:$0xff] 0.0
  %424 = vst [vmem:[#allocation2 + $0xc70] sm:$0xff] 0.0
  %425 = vst [vmem:[#allocation2 + $0xc78] sm:$0xff] 0.0
  %426 = vst [vmem:[#allocation2 + $0xc80] sm:$0xff] 0.0
  %427 = vst [vmem:[#allocation2 + $0xc88] sm:$0xff] 0.0
  %428 = vst [vmem:[#allocation2 + $0xc90] sm:$0xff] 0.0
  %429 = vst [vmem:[#allocation2 + $0xc98] sm:$0xff] 0.0
  %430 = vst [vmem:[#allocation2 + $0xca0] sm:$0xff] 0.0
  %431 = vst [vmem:[#allocation2 + $0xca8] sm:$0xff] 0.0
  %432 = vst [vmem:[#allocation2 + $0xcb0] sm:$0xff] 0.0
  %433 = vst [vmem:[#allocation2 + $0xcb8] sm:$0xff] 0.0
  %434 = vst [vmem:[#allocation2 + $0xcc0] sm:$0xff] 0.0
  %435 = vst [vmem:[#allocation2 + $0xcc8] sm:$0xff] 0.0
  %436 = vst [vmem:[#allocation2 + $0xcd0] sm:$0xff] 0.0
  %437 = vst [vmem:[#allocation2 + $0xcd8] sm:$0xff] 0.0
  %438 = vst [vmem:[#allocation2 + $0xce0] sm:$0xff] 0.0
  %439 = vst [vmem:[#allocation2 + $0xce8] sm:$0xff] 0.0
  %440 = vst [vmem:[#allocation2 + $0xcf0] sm:$0xff] 0.0
  %441 = vst [vmem:[#allocation2 + $0xcf8] sm:$0xff] 0.0
  %442 = vst [vmem:[#allocation2 + $0xd00] sm:$0xff] 0.0
  %443 = vst [vmem:[#allocation2 + $0xd08] sm:$0xff] 0.0
  %444 = vst [vmem:[#allocation2 + $0xd10] sm:$0xff] 0.0
  %445 = vst [vmem:[#allocation2 + $0xd18] sm:$0xff] 0.0
  %446 = vst [vmem:[#allocation2 + $0xd20] sm:$0xff] 0.0
  %447 = vst [vmem:[#allocation2 + $0xd28] sm:$0xff] 0.0
  %448 = vst [vmem:[#allocation2 + $0xd30] sm:$0xff] 0.0
  %449 = vst [vmem:[#allocation2 + $0xd38] sm:$0xff] 0.0
  %450 = vst [vmem:[#allocation2 + $0xd40] sm:$0xff] 0.0
  %451 = vst [vmem:[#allocation2 + $0xd48] sm:$0xff] 0.0
  %452 = vst [vmem:[#allocation2 + $0xd50] sm:$0xff] 0.0
  %453 = vst [vmem:[#allocation2 + $0xd58] sm:$0xff] 0.0
  %454 = vst [vmem:[#allocation2 + $0xd60] sm:$0xff] 0.0
  %455 = vst [vmem:[#allocation2 + $0xd68] sm:$0xff] 0.0
  %456 = vst [vmem:[#allocation2 + $0xd70] sm:$0xff] 0.0
  %457 = vst [vmem:[#allocation2 + $0xd78] sm:$0xff] 0.0
  %458 = vst [vmem:[#allocation2 + $0xd80] sm:$0xff] 0.0
  %459 = vst [vmem:[#allocation2 + $0xd88] sm:$0xff] 0.0
  %460 = vst [vmem:[#allocation2 + $0xd90] sm:$0xff] 0.0
  %461 = vst [vmem:[#allocation2 + $0xd98] sm:$0xff] 0.0
  %462 = vst [vmem:[#allocation2 + $0xda0] sm:$0xff] 0.0
  %463 = vst [vmem:[#allocation2 + $0xda8] sm:$0xff] 0.0
  %464 = vst [vmem:[#allocation2 + $0xdb0] sm:$0xff] 0.0
  %465 = vst [vmem:[#allocation2 + $0xdb8] sm:$0xff] 0.0
  %466 = vst [vmem:[#allocation2 + $0xdc0] sm:$0xff] 0.0
  %467 = vst [vmem:[#allocation2 + $0xdc8] sm:$0xff] 0.0
  %468 = vst [vmem:[#allocation2 + $0xdd0] sm:$0xff] 0.0
  %469 = vst [vmem:[#allocation2 + $0xdd8] sm:$0xff] 0.0
  %470 = vst [vmem:[#allocation2 + $0xde0] sm:$0xff] 0.0
  %471 = vst [vmem:[#allocation2 + $0xde8] sm:$0xff] 0.0
  %472 = vst [vmem:[#allocation2 + $0xdf0] sm:$0xff] 0.0
  %473 = vst [vmem:[#allocation2 + $0xdf8] sm:$0xff] 0.0
  %474 = vst [vmem:[#allocation2 + $0xe00] sm:$0xff] 0.0
  %475 = vst [vmem:[#allocation2 + $0xe08] sm:$0xff] 0.0
  %476 = vst [vmem:[#allocation2 + $0xe10] sm:$0xff] 0.0
  %477 = vst [vmem:[#allocation2 + $0xe18] sm:$0xff] 0.0
  %478 = vst [vmem:[#allocation2 + $0xe20] sm:$0xff] 0.0
  %479 = vst [vmem:[#allocation2 + $0xe28] sm:$0xff] 0.0
  %480 = vst [vmem:[#allocation2 + $0xe30] sm:$0xff] 0.0
  %481 = vst [vmem:[#allocation2 + $0xe38] sm:$0xff] 0.0
  %482 = vst [vmem:[#allocation2 + $0xe40] sm:$0xff] 0.0
  %483 = vst [vmem:[#allocation2 + $0xe48] sm:$0xff] 0.0
  %484 = vst [vmem:[#allocation2 + $0xe50] sm:$0xff] 0.0
  %485 = vst [vmem:[#allocation2 + $0xe58] sm:$0xff] 0.0
  %486 = vst [vmem:[#allocation2 + $0xe60] sm:$0xff] 0.0
  %487 = vst [vmem:[#allocation2 + $0xe68] sm:$0xff] 0.0
  %488 = vst [vmem:[#allocation2 + $0xe70] sm:$0xff] 0.0
  %489 = vst [vmem:[#allocation2 + $0xe78] sm:$0xff] 0.0
  %490 = vst [vmem:[#allocation2 + $0xe80] sm:$0xff] 0.0
  %491 = vst [vmem:[#allocation2 + $0xe88] sm:$0xff] 0.0
  %492 = vst [vmem:[#allocation2 + $0xe90] sm:$0xff] 0.0
  %493 = vst [vmem:[#allocation2 + $0xe98] sm:$0xff] 0.0
  %494 = vst [vmem:[#allocation2 + $0xea0] sm:$0xff] 0.0
  %495 = vst [vmem:[#allocation2 + $0xea8] sm:$0xff] 0.0
  %496 = vst [vmem:[#allocation2 + $0xeb0] sm:$0xff] 0.0
  %497 = vst [vmem:[#allocation2 + $0xeb8] sm:$0xff] 0.0
  %498 = vst [vmem:[#allocation2 + $0xec0] sm:$0xff] 0.0
  %499 = vst [vmem:[#allocation2 + $0xec8] sm:$0xff] 0.0
  %500 = vst [vmem:[#allocation2 + $0xed0] sm:$0xff] 0.0
  %501 = vst [vmem:[#allocation2 + $0xed8] sm:$0xff] 0.0
  %502 = vst [vmem:[#allocation2 + $0xee0] sm:$0xff] 0.0
  %503 = vst [vmem:[#allocation2 + $0xee8] sm:$0xff] 0.0
  %504 = vst [vmem:[#allocation2 + $0xef0] sm:$0xff] 0.0
  %505 = vst [vmem:[#allocation2 + $0xef8] sm:$0xff] 0.0
  %506 = vst [vmem:[#allocation2 + $0xf00] sm:$0xff] 0.0
  %507 = vst [vmem:[#allocation2 + $0xf08] sm:$0xff] 0.0
  %508 = vst [vmem:[#allocation2 + $0xf10] sm:$0xff] 0.0
  %509 = vst [vmem:[#allocation2 + $0xf18] sm:$0xff] 0.0
  %510 = vst [vmem:[#allocation2 + $0xf20] sm:$0xff] 0.0
  %511 = vst [vmem:[#allocation2 + $0xf28] sm:$0xff] 0.0
  %512 = vst [vmem:[#allocation2 + $0xf30] sm:$0xff] 0.0
  %513 = vst [vmem:[#allocation2 + $0xf38] sm:$0xff] 0.0
  %514 = vst [vmem:[#allocation2 + $0xf40] sm:$0xff] 0.0
  %515 = vst [vmem:[#allocation2 + $0xf48] sm:$0xff] 0.0
  %516 = vst [vmem:[#allocation2 + $0xf50] sm:$0xff] 0.0
  %517 = vst [vmem:[#allocation2 + $0xf58] sm:$0xff] 0.0
  %518 = vst [vmem:[#allocation2 + $0xf60] sm:$0xff] 0.0
  %519 = vst [vmem:[#allocation2 + $0xf68] sm:$0xff] 0.0
  %520 = vst [vmem:[#allocation2 + $0xf70] sm:$0xff] 0.0
  %521 = vst [vmem:[#allocation2 + $0xf78] sm:$0xff] 0.0
  %522 = vst [vmem:[#allocation2 + $0xf80] sm:$0xff] 0.0
  %523 = vst [vmem:[#allocation2 + $0xf88] sm:$0xff] 0.0
  %524 = vst [vmem:[#allocation2 + $0xf90] sm:$0xff] 0.0
  %525 = vst [vmem:[#allocation2 + $0xf98] sm:$0xff] 0.0
  %526 = vst [vmem:[#allocation2 + $0xfa0] sm:$0xff] 0.0
  %527 = vst [vmem:[#allocation2 + $0xfa8] sm:$0xff] 0.0
  %528 = vst [vmem:[#allocation2 + $0xfb0] sm:$0xff] 0.0
  %529 = vst [vmem:[#allocation2 + $0xfb8] sm:$0xff] 0.0
  %530 = vst [vmem:[#allocation2 + $0xfc0] sm:$0xff] 0.0
  %531 = vst [vmem:[#allocation2 + $0xfc8] sm:$0xff] 0.0
  %532 = vst [vmem:[#allocation2 + $0xfd0] sm:$0xff] 0.0
  %533 = vst [vmem:[#allocation2 + $0xfd8] sm:$0xff] 0.0
  %534 = vst [vmem:[#allocation2 + $0xfe0] sm:$0xff] 0.0
  %535 = vst [vmem:[#allocation2 + $0xfe8] sm:$0xff] 0.0
  %536 = vst [vmem:[#allocation2 + $0xff0] sm:$0xff] 0.0
  %537 = vst [vmem:[#allocation2 + $0xff8] sm:$0xff] 0.0
  %538 = vst [vmem:[#allocation2 + $0x1000] sm:$0xff] 0.0
  %539 = vst [vmem:[#allocation2 + $0x1008] sm:$0xff] 0.0
  %540 = vst [vmem:[#allocation2 + $0x1010] sm:$0xff] 0.0
  %541 = vst [vmem:[#allocation2 + $0x1018] sm:$0xff] 0.0
  %542 = vst [vmem:[#allocation2 + $0x1020] sm:$0xff] 0.0
  %543 = vst [vmem:[#allocation2 + $0x1028] sm:$0xff] 0.0
  %544 = vst [vmem:[#allocation2 + $0x1030] sm:$0xff] 0.0
  %545 = vst [vmem:[#allocation2 + $0x1038] sm:$0xff] 0.0
  %546 = vst [vmem:[#allocation2 + $0x1040] sm:$0xff] 0.0
  %547 = vst [vmem:[#allocation2 + $0x1048] sm:$0xff] 0.0
  %548 = vst [vmem:[#allocation2 + $0x1050] sm:$0xff] 0.0
  %549 = vst [vmem:[#allocation2 + $0x1058] sm:$0xff] 0.0
  %550 = vst [vmem:[#allocation2 + $0x1060] sm:$0xff] 0.0
  %551 = vst [vmem:[#allocation2 + $0x1068] sm:$0xff] 0.0
  %552 = vst [vmem:[#allocation2 + $0x1070] sm:$0xff] 0.0
  %553 = vst [vmem:[#allocation2 + $0x1078] sm:$0xff] 0.0
  %554 = vst [vmem:[#allocation2 + $0x1080] sm:$0xff] 0.0
  %555 = vst [vmem:[#allocation2 + $0x1088] sm:$0xff] 0.0
  %556 = vst [vmem:[#allocation2 + $0x1090] sm:$0xff] 0.0
  %557 = vst [vmem:[#allocation2 + $0x1098] sm:$0xff] 0.0
  %558 = vst [vmem:[#allocation2 + $0x10a0] sm:$0xff] 0.0
  %559 = vst [vmem:[#allocation2 + $0x10a8] sm:$0xff] 0.0
  %560 = vst [vmem:[#allocation2 + $0x10b0] sm:$0xff] 0.0
  %561 = vst [vmem:[#allocation2 + $0x10b8] sm:$0xff] 0.0
  %562 = vst [vmem:[#allocation2 + $0x10c0] sm:$0xff] 0.0
  %563 = vst [vmem:[#allocation2 + $0x10c8] sm:$0xff] 0.0
  %564 = vst [vmem:[#allocation2 + $0x10d0] sm:$0xff] 0.0
  %565 = vst [vmem:[#allocation2 + $0x10d8] sm:$0xff] 0.0
  %566 = vst [vmem:[#allocation2 + $0x10e0] sm:$0xff] 0.0
  %567 = vst [vmem:[#allocation2 + $0x10e8] sm:$0xff] 0.0
  %568 = vst [vmem:[#allocation2 + $0x10f0] sm:$0xff] 0.0
  %569 = vst [vmem:[#allocation2 + $0x10f8] sm:$0xff] 0.0
  %570 = vst [vmem:[#allocation2 + $0x1100] sm:$0xff] 0.0
  %571 = vst [vmem:[#allocation2 + $0x1108] sm:$0xff] 0.0
  %572 = vst [vmem:[#allocation2 + $0x1110] sm:$0xff] 0.0
  %573 = vst [vmem:[#allocation2 + $0x1118] sm:$0xff] 0.0
  %574 = vst [vmem:[#allocation2 + $0x1120] sm:$0xff] 0.0
  %575 = vst [vmem:[#allocation2 + $0x1128] sm:$0xff] 0.0
  %576 = vst [vmem:[#allocation2 + $0x1130] sm:$0xff] 0.0
  %577 = vst [vmem:[#allocation2 + $0x1138] sm:$0xff] 0.0
  %578 = vst [vmem:[#allocation2 + $0x1140] sm:$0xff] 0.0
  %579 = vst [vmem:[#allocation2 + $0x1148] sm:$0xff] 0.0
  %580 = vst [vmem:[#allocation2 + $0x1150] sm:$0xff] 0.0
  %581 = vst [vmem:[#allocation2 + $0x1158] sm:$0xff] 0.0
  %582 = vst [vmem:[#allocation2 + $0x1160] sm:$0xff] 0.0
  %583 = vst [vmem:[#allocation2 + $0x1168] sm:$0xff] 0.0
  %584 = vst [vmem:[#allocation2 + $0x1170] sm:$0xff] 0.0
  %585 = vst [vmem:[#allocation2 + $0x1178] sm:$0xff] 0.0
  %586 = vst [vmem:[#allocation2 + $0x1180] sm:$0xff] 0.0
  %587 = vst [vmem:[#allocation2 + $0x1188] sm:$0xff] 0.0
  %588 = vst [vmem:[#allocation2 + $0x1190] sm:$0xff] 0.0
  %589 = vst [vmem:[#allocation2 + $0x1198] sm:$0xff] 0.0
  %590 = vst [vmem:[#allocation2 + $0x11a0] sm:$0xff] 0.0
  %591 = vst [vmem:[#allocation2 + $0x11a8] sm:$0xff] 0.0
  %592 = vst [vmem:[#allocation2 + $0x11b0] sm:$0xff] 0.0
  %593 = vst [vmem:[#allocation2 + $0x11b8] sm:$0xff] 0.0
  %594 = vst [vmem:[#allocation2 + $0x11c0] sm:$0xff] 0.0
  %595 = vst [vmem:[#allocation2 + $0x11c8] sm:$0xff] 0.0
  %596 = vst [vmem:[#allocation2 + $0x11d0] sm:$0xff] 0.0
  %597 = vst [vmem:[#allocation2 + $0x11d8] sm:$0xff] 0.0
  %598 = vst [vmem:[#allocation2 + $0x11e0] sm:$0xff] 0.0
  %599 = vst [vmem:[#allocation2 + $0x11e8] sm:$0xff] 0.0
  %600 = vst [vmem:[#allocation2 + $0x11f0] sm:$0xff] 0.0
  %601 = vst [vmem:[#allocation2 + $0x11f8] sm:$0xff] 0.0
  %v602 = vld [vmem:[%s0] sm:$0xff]
  %v603 = vld [vmem:[%s0 + $0x8] sm:$0x7f]
  %v604 = vld [vmem:[%s0 + $0x10] sm:$0xff]
  %v605 = vld [vmem:[%s0 + $0x18] sm:$0x7f]
  %v606 = vld [vmem:[%s0 + $0x20] sm:$0xff]
  %v607 = vld [vmem:[%s0 + $0x28] sm:$0x7f]
  %v608 = vld [vmem:[%s0 + $0x30] sm:$0xff]
  %v609 = vld [vmem:[%s0 + $0x38] sm:$0x7f]
  %v610 = vld [vmem:[%s0 + $0x40] sm:$0xff]
  %v611 = vld [vmem:[%s0 + $0x48] sm:$0x7f]
  %v612 = vld [vmem:[%s0 + $0x50] sm:$0xff]
  %v613 = vld [vmem:[%s0 + $0x58] sm:$0x7f]
  %v614 = vld [vmem:[%s0 + $0x60] sm:$0xff]
  %v615 = vld [vmem:[%s0 + $0x68] sm:$0x7f]
  %v616 = vld [vmem:[%s0 + $0x70] sm:$0xff]
  %v617 = vld [vmem:[%s0 + $0x78] sm:$0x7f]
  %v618 = vld [vmem:[%s0 + $0x80] sm:$0xff]
  %v619 = vld [vmem:[%s0 + $0x88] sm:$0x7f]
  %v620 = vld [vmem:[%s0 + $0x90] sm:$0xff]
  %v621 = vld [vmem:[%s0 + $0x98] sm:$0x7f]
  %v622 = vld [vmem:[%s0 + $0xa0] sm:$0xff]
  %v623 = vld [vmem:[%s0 + $0xa8] sm:$0x7f]
  %v624 = vld [vmem:[%s0 + $0xb0] sm:$0xff]
  %v625 = vld [vmem:[%s0 + $0xb8] sm:$0x7f]
  %v626 = vld [vmem:[%s0 + $0xc0] sm:$0xff]
  %v627 = vld [vmem:[%s0 + $0xc8] sm:$0x7f]
  %v628 = vld [vmem:[%s0 + $0xd0] sm:$0xff]
  %v629 = vld [vmem:[%s0 + $0xd8] sm:$0x7f]
  %v630 = vld [vmem:[%s0 + $0xe0] sm:$0xff]
  %v631 = vld [vmem:[%s0 + $0xe8] sm:$0x7f]
  %v632 = vld [vmem:[%s0 + $0x100] sm:$0xff]
  %v633 = vld [vmem:[%s0 + $0x108] sm:$0x7f]
  %v634 = vld [vmem:[%s0 + $0x110] sm:$0xff]
  %v635 = vld [vmem:[%s0 + $0x118] sm:$0x7f]
  %v636 = vld [vmem:[%s0 + $0x120] sm:$0xff]
  %v637 = vld [vmem:[%s0 + $0x128] sm:$0x7f]
  %v638 = vld [vmem:[%s0 + $0x130] sm:$0xff]
  %v639 = vld [vmem:[%s0 + $0x138] sm:$0x7f]
  %v640 = vld [vmem:[%s0 + $0x140] sm:$0xff]
  %v641 = vld [vmem:[%s0 + $0x148] sm:$0x7f]
  %v642 = vld [vmem:[%s0 + $0x150] sm:$0xff]
  %v643 = vld [vmem:[%s0 + $0x158] sm:$0x7f]
  %v644 = vld [vmem:[%s0 + $0x160] sm:$0xff]
  %v645 = vld [vmem:[%s0 + $0x168] sm:$0x7f]
  %v646 = vld [vmem:[%s0 + $0x170] sm:$0xff]
  %v647 = vld [vmem:[%s0 + $0x178] sm:$0x7f]
  %v648 = vld [vmem:[%s0 + $0x180] sm:$0xff]
  %v649 = vld [vmem:[%s0 + $0x188] sm:$0x7f]
  %v650 = vld [vmem:[%s0 + $0x190] sm:$0xff]
  %v651 = vld [vmem:[%s0 + $0x198] sm:$0x7f]
  %v652 = vld [vmem:[%s0 + $0x1a0] sm:$0xff]
  %v653 = vld [vmem:[%s0 + $0x1a8] sm:$0x7f]
  %v654 = vld [vmem:[%s0 + $0x1b0] sm:$0xff]
  %v655 = vld [vmem:[%s0 + $0x1b8] sm:$0x7f]
  %v656 = vld [vmem:[%s0 + $0x1c0] sm:$0xff]
  %v657 = vld [vmem:[%s0 + $0x1c8] sm:$0x7f]
  %v658 = vld [vmem:[%s0 + $0x1d0] sm:$0xff]
  %v659 = vld [vmem:[%s0 + $0x1d8] sm:$0x7f]
  %v660 = vld [vmem:[%s0 + $0x1e0] sm:$0xff]
  %v661 = vld [vmem:[%s0 + $0x1e8] sm:$0x7f]
  %vm722 = vcmask 1040384
  %v723 = vrot.slane %v602, 7
  %v724 = vrot.slane %v603, 7
  %v725 = vsel %vm722, %v723, %v724
  %v726 = vrot.slane %v604, 7
  %v727 = vrot.slane %v605, 7
  %v728 = vsel %vm722, %v726, %v727
  %v729 = vrot.slane %v606, 7
  %v730 = vrot.slane %v607, 7
  %v731 = vsel %vm722, %v729, %v730
  %v732 = vrot.slane %v608, 7
  %v733 = vrot.slane %v609, 7
  %v734 = vsel %vm722, %v732, %v733
  %v735 = vrot.slane %v610, 7
  %v736 = vrot.slane %v611, 7
  %v737 = vsel %vm722, %v735, %v736
  %v738 = vrot.slane %v612, 7
  %v739 = vrot.slane %v613, 7
  %v740 = vsel %vm722, %v738, %v739
  %v741 = vrot.slane %v614, 7
  %v742 = vrot.slane %v615, 7
  %v743 = vsel %vm722, %v741, %v742
  %v744 = vrot.slane %v616, 7
  %v745 = vrot.slane %v617, 7
  %v746 = vsel %vm722, %v744, %v745
  %v747 = vrot.slane %v618, 7
  %v748 = vrot.slane %v619, 7
  %v749 = vsel %vm722, %v747, %v748
  %v750 = vrot.slane %v620, 7
  %v751 = vrot.slane %v621, 7
  %v752 = vsel %vm722, %v750, %v751
  %v753 = vrot.slane %v622, 7
  %v754 = vrot.slane %v623, 7
  %v755 = vsel %vm722, %v753, %v754
  %v756 = vrot.slane %v624, 7
  %v757 = vrot.slane %v625, 7
  %v758 = vsel %vm722, %v756, %v757
  %v759 = vrot.slane %v626, 7
  %v760 = vrot.slane %v627, 7
  %v761 = vsel %vm722, %v759, %v760
  %v762 = vrot.slane %v628, 7
  %v763 = vrot.slane %v629, 7
  %v764 = vsel %vm722, %v762, %v763
  %v765 = vrot.slane %v630, 7
  %v766 = vrot.slane %v631, 7
  %v767 = vsel %vm722, %v765, %v766
  %v768 = vrot.slane %v632, 7
  %v769 = vrot.slane %v633, 7
  %v770 = vsel %vm722, %v768, %v769
  %v771 = vrot.slane %v634, 7
  %v772 = vrot.slane %v635, 7
  %v773 = vsel %vm722, %v771, %v772
  %v774 = vrot.slane %v636, 7
  %v775 = vrot.slane %v637, 7
  %v776 = vsel %vm722, %v774, %v775
  %v777 = vrot.slane %v638, 7
  %v778 = vrot.slane %v639, 7
  %v779 = vsel %vm722, %v777, %v778
  %v780 = vrot.slane %v640, 7
  %v781 = vrot.slane %v641, 7
  %v782 = vsel %vm722, %v780, %v781
  %v783 = vrot.slane %v642, 7
  %v784 = vrot.slane %v643, 7
  %v785 = vsel %vm722, %v783, %v784
  %v786 = vrot.slane %v644, 7
  %v787 = vrot.slane %v645, 7
  %v788 = vsel %vm722, %v786, %v787
  %v789 = vrot.slane %v646, 7
  %v790 = vrot.slane %v647, 7
  %v791 = vsel %vm722, %v789, %v790
  %v792 = vrot.slane %v648, 7
  %v793 = vrot.slane %v649, 7
  %v794 = vsel %vm722, %v792, %v793
  %v795 = vrot.slane %v650, 7
  %v796 = vrot.slane %v651, 7
  %v797 = vsel %vm722, %v795, %v796
  %v798 = vrot.slane %v652, 7
  %v799 = vrot.slane %v653, 7
  %v800 = vsel %vm722, %v798, %v799
  %v801 = vrot.slane %v654, 7
  %v802 = vrot.slane %v655, 7
  %v803 = vsel %vm722, %v801, %v802
  %v804 = vrot.slane %v656, 7
  %v805 = vrot.slane %v657, 7
  %v806 = vsel %vm722, %v804, %v805
  %v807 = vrot.slane %v658, 7
  %v808 = vrot.slane %v659, 7
  %v809 = vsel %vm722, %v807, %v808
  %v810 = vrot.slane %v660, 7
  %v811 = vrot.slane %v661, 7
  %v812 = vsel %vm722, %v810, %v811
  %s873 = scalar_lea.vmem [#allocation2], 144
  %874 = vst [vmem:[%s873] sm:$0xfe] %v723
  %875 = vst [vmem:[%s873 + $0x48] sm:$0xff] %v725
  %876 = vst [vmem:[%s873 + $0x90] sm:$0xfe] %v726
  %877 = vst [vmem:[%s873 + $0xd8] sm:$0xff] %v728
  %878 = vst [vmem:[%s873 + $0x120] sm:$0xfe] %v729
  %879 = vst [vmem:[%s873 + $0x168] sm:$0xff] %v731
  %880 = vst [vmem:[%s873 + $0x1b0] sm:$0xfe] %v732
  %881 = vst [vmem:[%s873 + $0x1f8] sm:$0xff] %v734
  %882 = vst [vmem:[%s873 + $0x240] sm:$0xfe] %v735
  %883 = vst [vmem:[%s873 + $0x288] sm:$0xff] %v737
  %884 = vst [vmem:[%s873 + $0x2d0] sm:$0xfe] %v738
  %885 = vst [vmem:[%s873 + $0x318] sm:$0xff] %v740
  %886 = vst [vmem:[%s873 + $0x360] sm:$0xfe] %v741
  %887 = vst [vmem:[%s873 + $0x3a8] sm:$0xff] %v743
  %888 = vst [vmem:[%s873 + $0x3f0] sm:$0xfe] %v744
  %889 = vst [vmem:[%s873 + $0x438] sm:$0xff] %v746
  %890 = vst [vmem:[%s873 + $0x480] sm:$0xfe] %v747
  %891 = vst [vmem:[%s873 + $0x4c8] sm:$0xff] %v749
  %892 = vst [vmem:[%s873 + $0x510] sm:$0xfe] %v750
  %893 = vst [vmem:[%s873 + $0x558] sm:$0xff] %v752
  %894 = vst [vmem:[%s873 + $0x5a0] sm:$0xfe] %v753
  %895 = vst [vmem:[%s873 + $0x5e8] sm:$0xff] %v755
  %896 = vst [vmem:[%s873 + $0x630] sm:$0xfe] %v756
  %897 = vst [vmem:[%s873 + $0x678] sm:$0xff] %v758
  %898 = vst [vmem:[%s873 + $0x6c0] sm:$0xfe] %v759
  %899 = vst [vmem:[%s873 + $0x708] sm:$0xff] %v761
  %900 = vst [vmem:[%s873 + $0x750] sm:$0xfe] %v762
  %901 = vst [vmem:[%s873 + $0x798] sm:$0xff] %v764
  %902 = vst [vmem:[%s873 + $0x7e0] sm:$0xfe] %v765
  %903 = vst [vmem:[%s873 + $0x828] sm:$0xff] %v767
  %904 = vst [vmem:[%s873 + $0x900] sm:$0xfe] %v768
  %905 = vst [vmem:[%s873 + $0x948] sm:$0xff] %v770
  %906 = vst [vmem:[%s873 + $0x990] sm:$0xfe] %v771
  %907 = vst [vmem:[%s873 + $0x9d8] sm:$0xff] %v773
  %908 = vst [vmem:[%s873 + $0xa20] sm:$0xfe] %v774
  %909 = vst [vmem:[%s873 + $0xa68] sm:$0xff] %v776
  %910 = vst [vmem:[%s873 + $0xab0] sm:$0xfe] %v777
  %911 = vst [vmem:[%s873 + $0xaf8] sm:$0xff] %v779
  %912 = vst [vmem:[%s873 + $0xb40] sm:$0xfe] %v780
  %913 = vst [vmem:[%s873 + $0xb88] sm:$0xff] %v782
  %914 = vst [vmem:[%s873 + $0xbd0] sm:$0xfe] %v783
  %915 = vst [vmem:[%s873 + $0xc18] sm:$0xff] %v785
  %916 = vst [vmem:[%s873 + $0xc60] sm:$0xfe] %v786
  %917 = vst [vmem:[%s873 + $0xca8] sm:$0xff] %v788
  %918 = vst [vmem:[%s873 + $0xcf0] sm:$0xfe] %v789
  %919 = vst [vmem:[%s873 + $0xd38] sm:$0xff] %v791
  %920 = vst [vmem:[%s873 + $0xd80] sm:$0xfe] %v792
  %921 = vst [vmem:[%s873 + $0xdc8] sm:$0xff] %v794
  %922 = vst [vmem:[%s873 + $0xe10] sm:$0xfe] %v795
  %923 = vst [vmem:[%s873 + $0xe58] sm:$0xff] %v797
  %924 = vst [vmem:[%s873 + $0xea0] sm:$0xfe] %v798
  %925 = vst [vmem:[%s873 + $0xee8] sm:$0xff] %v800
  %926 = vst [vmem:[%s873 + $0xf30] sm:$0xfe] %v801
  %927 = vst [vmem:[%s873 + $0xf78] sm:$0xff] %v803
  %928 = vst [vmem:[%s873 + $0xfc0] sm:$0xfe] %v804
  %929 = vst [vmem:[%s873 + $0x1008] sm:$0xff] %v806
  %930 = vst [vmem:[%s873 + $0x1050] sm:$0xfe] %v807
  %931 = vst [vmem:[%s873 + $0x1098] sm:$0xff] %v809
  %932 = vst [vmem:[%s873 + $0x10e0] sm:$0xfe] %v810
  %933 = vst [vmem:[%s873 + $0x1128] sm:$0xff] %v812
  %v934 = vld [vmem:[%s0] sm:$0xff]
  %v935 = vld [vmem:[%s0 + $0x8] sm:$0xff]
  %v936 = vld [vmem:[%s0 + $0x10] sm:$0xff]
  %v937 = vld [vmem:[%s0 + $0x18] sm:$0xff]
  %v938 = vld [vmem:[%s0 + $0x20] sm:$0xff]
  %v939 = vld [vmem:[%s0 + $0x28] sm:$0xff]
  %v940 = vld [vmem:[%s0 + $0x30] sm:$0xff]
  %v941 = vld [vmem:[%s0 + $0x38] sm:$0xff]
  %v942 = vld [vmem:[%s0 + $0x40] sm:$0xff]
  %v943 = vld [vmem:[%s0 + $0x48] sm:$0xff]
  %v944 = vld [vmem:[%s0 + $0x50] sm:$0xff]
  %v945 = vld [vmem:[%s0 + $0x58] sm:$0xff]
  %v946 = vld [vmem:[%s0 + $0x60] sm:$0xff]
  %v947 = vld [vmem:[%s0 + $0x68] sm:$0xff]
  %v948 = vld [vmem:[%s0 + $0x70] sm:$0xff]
  %v949 = vld [vmem:[%s0 + $0x78] sm:$0xff]
  %v950 = vld [vmem:[%s0 + $0x80] sm:$0xff]
  %v951 = vld [vmem:[%s0 + $0x88] sm:$0xff]
  %v952 = vld [vmem:[%s0 + $0x90] sm:$0xff]
  %v953 = vld [vmem:[%s0 + $0x98] sm:$0xff]
  %v954 = vld [vmem:[%s0 + $0xa0] sm:$0xff]
  %v955 = vld [vmem:[%s0 + $0xa8] sm:$0xff]
  %v956 = vld [vmem:[%s0 + $0xb0] sm:$0xff]
  %v957 = vld [vmem:[%s0 + $0xb8] sm:$0xff]
  %v958 = vld [vmem:[%s0 + $0xc0] sm:$0xff]
  %v959 = vld [vmem:[%s0 + $0xc8] sm:$0xff]
  %v960 = vld [vmem:[%s0 + $0xd0] sm:$0xff]
  %v961 = vld [vmem:[%s0 + $0xd8] sm:$0xff]
  %v962 = vld [vmem:[%s0 + $0xe0] sm:$0xff]
  %v963 = vld [vmem:[%s0 + $0xe8] sm:$0xff]
  %v964 = vld [vmem:[%s0 + $0x100] sm:$0xff]
  %v965 = vld [vmem:[%s0 + $0x108] sm:$0xff]
  %v966 = vld [vmem:[%s0 + $0x110] sm:$0xff]
  %v967 = vld [vmem:[%s0 + $0x118] sm:$0xff]
  %v968 = vld [vmem:[%s0 + $0x120] sm:$0xff]
  %v969 = vld [vmem:[%s0 + $0x128] sm:$0xff]
  %v970 = vld [vmem:[%s0 + $0x130] sm:$0xff]
  %v971 = vld [vmem:[%s0 + $0x138] sm:$0xff]
  %v972 = vld [vmem:[%s0 + $0x140] sm:$0xff]
  %v973 = vld [vmem:[%s0 + $0x148] sm:$0xff]
  %v974 = vld [vmem:[%s0 + $0x150] sm:$0xff]
  %v975 = vld [vmem:[%s0 + $0x158] sm:$0xff]
  %v976 = vld [vmem:[%s0 + $0x160] sm:$0xff]
  %v977 = vld [vmem:[%s0 + $0x168] sm:$0xff]
  %v978 = vld [vmem:[%s0 + $0x170] sm:$0xff]
  %v979 = vld [vmem:[%s0 + $0x178] sm:$0xff]
  %v980 = vld [vmem:[%s0 + $0x180] sm:$0xff]
  %v981 = vld [vmem:[%s0 + $0x188] sm:$0xff]
  %v982 = vld [vmem:[%s0 + $0x190] sm:$0xff]
  %v983 = vld [vmem:[%s0 + $0x198] sm:$0xff]
  %v984 = vld [vmem:[%s0 + $0x1a0] sm:$0xff]
  %v985 = vld [vmem:[%s0 + $0x1a8] sm:$0xff]
  %v986 = vld [vmem:[%s0 + $0x1b0] sm:$0xff]
  %v987 = vld [vmem:[%s0 + $0x1b8] sm:$0xff]
  %v988 = vld [vmem:[%s0 + $0x1c0] sm:$0xff]
  %v989 = vld [vmem:[%s0 + $0x1c8] sm:$0xff]
  %v990 = vld [vmem:[%s0 + $0x1d0] sm:$0xff]
  %v991 = vld [vmem:[%s0 + $0x1d8] sm:$0xff]
  %v992 = vld [vmem:[%s0 + $0x1e0] sm:$0xff]
  %v993 = vld [vmem:[%s0 + $0x1e8] sm:$0xff]
  %994 = vst [vmem:[%s873 + $0x8] sm:$0xff] %v934
  %995 = vst [vmem:[%s873 + $0x50] sm:$0xff] %v935
  %996 = vst [vmem:[%s873 + $0x98] sm:$0xff] %v936
  %997 = vst [vmem:[%s873 + $0xe0] sm:$0xff] %v937
  %998 = vst [vmem:[%s873 + $0x128] sm:$0xff] %v938
  %999 = vst [vmem:[%s873 + $0x170] sm:$0xff] %v939
  %1000 = vst [vmem:[%s873 + $0x1b8] sm:$0xff] %v940
  %1001 = vst [vmem:[%s873 + $0x200] sm:$0xff] %v941
  %1002 = vst [vmem:[%s873 + $0x248] sm:$0xff] %v942
  %1003 = vst [vmem:[%s873 + $0x290] sm:$0xff] %v943
  %1004 = vst [vmem:[%s873 + $0x2d8] sm:$0xff] %v944
  %1005 = vst [vmem:[%s873 + $0x320] sm:$0xff] %v945
  %1006 = vst [vmem:[%s873 + $0x368] sm:$0xff] %v946
  %1007 = vst [vmem:[%s873 + $0x3b0] sm:$0xff] %v947
  %1008 = vst [vmem:[%s873 + $0x3f8] sm:$0xff] %v948
  %1009 = vst [vmem:[%s873 + $0x440] sm:$0xff] %v949
  %1010 = vst [vmem:[%s873 + $0x488] sm:$0xff] %v950
  %1011 = vst [vmem:[%s873 + $0x4d0] sm:$0xff] %v951
  %1012 = vst [vmem:[%s873 + $0x518] sm:$0xff] %v952
  %1013 = vst [vmem:[%s873 + $0x560] sm:$0xff] %v953
  %1014 = vst [vmem:[%s873 + $0x5a8] sm:$0xff] %v954
  %1015 = vst [vmem:[%s873 + $0x5f0] sm:$0xff] %v955
  %1016 = vst [vmem:[%s873 + $0x638] sm:$0xff] %v956
  %1017 = vst [vmem:[%s873 + $0x680] sm:$0xff] %v957
  %1018 = vst [vmem:[%s873 + $0x6c8] sm:$0xff] %v958
  %1019 = vst [vmem:[%s873 + $0x710] sm:$0xff] %v959
  %1020 = vst [vmem:[%s873 + $0x758] sm:$0xff] %v960
  %1021 = vst [vmem:[%s873 + $0x7a0] sm:$0xff] %v961
  %1022 = vst [vmem:[%s873 + $0x7e8] sm:$0xff] %v962
  %1023 = vst [vmem:[%s873 + $0x830] sm:$0xff] %v963
  %1024 = vst [vmem:[%s873 + $0x908] sm:$0xff] %v964
  %1025 = vst [vmem:[%s873 + $0x950] sm:$0xff] %v965
  %1026 = vst [vmem:[%s873 + $0x998] sm:$0xff] %v966
  %1027 = vst [vmem:[%s873 + $0x9e0] sm:$0xff] %v967
  %1028 = vst [vmem:[%s873 + $0xa28] sm:$0xff] %v968
  %1029 = vst [vmem:[%s873 + $0xa70] sm:$0xff] %v969
  %1030 = vst [vmem:[%s873 + $0xab8] sm:$0xff] %v970
  %1031 = vst [vmem:[%s873 + $0xb00] sm:$0xff] %v971
  %1032 = vst [vmem:[%s873 + $0xb48] sm:$0xff] %v972
  %1033 = vst [vmem:[%s873 + $0xb90] sm:$0xff] %v973
  %1034 = vst [vmem:[%s873 + $0xbd8] sm:$0xff] %v974
  %1035 = vst [vmem:[%s873 + $0xc20] sm:$0xff] %v975
  %1036 = vst [vmem:[%s873 + $0xc68] sm:$0xff] %v976
  %1037 = vst [vmem:[%s873 + $0xcb0] sm:$0xff] %v977
  %1038 = vst [vmem:[%s873 + $0xcf8] sm:$0xff] %v978
  %1039 = vst [vmem:[%s873 + $0xd40] sm:$0xff] %v979
  %1040 = vst [vmem:[%s873 + $0xd88] sm:$0xff] %v980
  %1041 = vst [vmem:[%s873 + $0xdd0] sm:$0xff] %v981
  %1042 = vst [vmem:[%s873 + $0xe18] sm:$0xff] %v982
  %1043 = vst [vmem:[%s873 + $0xe60] sm:$0xff] %v983
  %1044 = vst [vmem:[%s873 + $0xea8] sm:$0xff] %v984
  %1045 = vst [vmem:[%s873 + $0xef0] sm:$0xff] %v985
  %1046 = vst [vmem:[%s873 + $0xf38] sm:$0xff] %v986
  %1047 = vst [vmem:[%s873 + $0xf80] sm:$0xff] %v987
  %1048 = vst [vmem:[%s873 + $0xfc8] sm:$0xff] %v988
  %1049 = vst [vmem:[%s873 + $0x1010] sm:$0xff] %v989
  %1050 = vst [vmem:[%s873 + $0x1058] sm:$0xff] %v990
  %1051 = vst [vmem:[%s873 + $0x10a0] sm:$0xff] %v991
  %1052 = vst [vmem:[%s873 + $0x10e8] sm:$0xff] %v992
  %1053 = vst [vmem:[%s873 + $0x1130] sm:$0xff] %v993
  %v1054 = vld [vmem:[%s0 + $0x1] sm:$0xff]
  %v1055 = vld [vmem:[%s0 + $0x9] sm:$0x7f]
  %v1056 = vld [vmem:[%s0 + $0x11] sm:$0xff]
  %v1057 = vld [vmem:[%s0 + $0x19] sm:$0x7f]
  %v1058 = vld [vmem:[%s0 + $0x21] sm:$0xff]
  %v1059 = vld [vmem:[%s0 + $0x29] sm:$0x7f]
  %v1060 = vld [vmem:[%s0 + $0x31] sm:$0xff]
  %v1061 = vld [vmem:[%s0 + $0x39] sm:$0x7f]
  %v1062 = vld [vmem:[%s0 + $0x41] sm:$0xff]
  %v1063 = vld [vmem:[%s0 + $0x49] sm:$0x7f]
  %v1064 = vld [vmem:[%s0 + $0x51] sm:$0xff]
  %v1065 = vld [vmem:[%s0 + $0x59] sm:$0x7f]
  %v1066 = vld [vmem:[%s0 + $0x61] sm:$0xff]
  %v1067 = vld [vmem:[%s0 + $0x69] sm:$0x7f]
  %v1068 = vld [vmem:[%s0 + $0x71] sm:$0xff]
  %v1069 = vld [vmem:[%s0 + $0x79] sm:$0x7f]
  %v1070 = vld [vmem:[%s0 + $0x81] sm:$0xff]
  %v1071 = vld [vmem:[%s0 + $0x89] sm:$0x7f]
  %v1072 = vld [vmem:[%s0 + $0x91] sm:$0xff]
  %v1073 = vld [vmem:[%s0 + $0x99] sm:$0x7f]
  %v1074 = vld [vmem:[%s0 + $0xa1] sm:$0xff]
  %v1075 = vld [vmem:[%s0 + $0xa9] sm:$0x7f]
  %v1076 = vld [vmem:[%s0 + $0xb1] sm:$0xff]
  %v1077 = vld [vmem:[%s0 + $0xb9] sm:$0x7f]
  %v1078 = vld [vmem:[%s0 + $0xc1] sm:$0xff]
  %v1079 = vld [vmem:[%s0 + $0xc9] sm:$0x7f]
  %v1080 = vld [vmem:[%s0 + $0xd1] sm:$0xff]
  %v1081 = vld [vmem:[%s0 + $0xd9] sm:$0x7f]
  %v1082 = vld [vmem:[%s0 + $0xe1] sm:$0xff]
  %v1083 = vld [vmem:[%s0 + $0xe9] sm:$0x7f]
  %v1084 = vld [vmem:[%s0 + $0x101] sm:$0xff]
  %v1085 = vld [vmem:[%s0 + $0x109] sm:$0x7f]
  %v1086 = vld [vmem:[%s0 + $0x111] sm:$0xff]
  %v1087 = vld [vmem:[%s0 + $0x119] sm:$0x7f]
  %v1088 = vld [vmem:[%s0 + $0x121] sm:$0xff]
  %v1089 = vld [vmem:[%s0 + $0x129] sm:$0x7f]
  %v1090 = vld [vmem:[%s0 + $0x131] sm:$0xff]
  %v1091 = vld [vmem:[%s0 + $0x139] sm:$0x7f]
  %v1092 = vld [vmem:[%s0 + $0x141] sm:$0xff]
  %v1093 = vld [vmem:[%s0 + $0x149] sm:$0x7f]
  %v1094 = vld [vmem:[%s0 + $0x151] sm:$0xff]
  %v1095 = vld [vmem:[%s0 + $0x159] sm:$0x7f]
  %v1096 = vld [vmem:[%s0 + $0x161] sm:$0xff]
  %v1097 = vld [vmem:[%s0 + $0x169] sm:$0x7f]
  %v1098 = vld [vmem:[%s0 + $0x171] sm:$0xff]
  %v1099 = vld [vmem:[%s0 + $0x179] sm:$0x7f]
  %v1100 = vld [vmem:[%s0 + $0x181] sm:$0xff]
  %v1101 = vld [vmem:[%s0 + $0x189] sm:$0x7f]
  %v1102 = vld [vmem:[%s0 + $0x191] sm:$0xff]
  %v1103 = vld [vmem:[%s0 + $0x199] sm:$0x7f]
  %v1104 = vld [vmem:[%s0 + $0x1a1] sm:$0xff]
  %v1105 = vld [vmem:[%s0 + $0x1a9] sm:$0x7f]
  %v1106 = vld [vmem:[%s0 + $0x1b1] sm:$0xff]
  %v1107 = vld [vmem:[%s0 + $0x1b9] sm:$0x7f]
  %v1108 = vld [vmem:[%s0 + $0x1c1] sm:$0xff]
  %v1109 = vld [vmem:[%s0 + $0x1c9] sm:$0x7f]
  %v1110 = vld [vmem:[%s0 + $0x1d1] sm:$0xff]
  %v1111 = vld [vmem:[%s0 + $0x1d9] sm:$0x7f]
  %v1112 = vld [vmem:[%s0 + $0x1e1] sm:$0xff]
  %v1113 = vld [vmem:[%s0 + $0x1e9] sm:$0x7f]
  %1114 = vst [vmem:[%s873 + $0x10] sm:$0xff] %v1054
  %1115 = vst [vmem:[%s873 + $0x58] sm:$0x7f] %v1055
  %1116 = vst [vmem:[%s873 + $0xa0] sm:$0xff] %v1056
  %1117 = vst [vmem:[%s873 + $0xe8] sm:$0x7f] %v1057
  %1118 = vst [vmem:[%s873 + $0x130] sm:$0xff] %v1058
  %1119 = vst [vmem:[%s873 + $0x178] sm:$0x7f] %v1059
  %1120 = vst [vmem:[%s873 + $0x1c0] sm:$0xff] %v1060
  %1121 = vst [vmem:[%s873 + $0x208] sm:$0x7f] %v1061
  %1122 = vst [vmem:[%s873 + $0x250] sm:$0xff] %v1062
  %1123 = vst [vmem:[%s873 + $0x298] sm:$0x7f] %v1063
  %1124 = vst [vmem:[%s873 + $0x2e0] sm:$0xff] %v1064
  %1125 = vst [vmem:[%s873 + $0x328] sm:$0x7f] %v1065
  %1126 = vst [vmem:[%s873 + $0x370] sm:$0xff] %v1066
  %1127 = vst [vmem:[%s873 + $0x3b8] sm:$0x7f] %v1067
  %1128 = vst [vmem:[%s873 + $0x400] sm:$0xff] %v1068
  %1129 = vst [vmem:[%s873 + $0x448] sm:$0x7f] %v1069
  %1130 = vst [vmem:[%s873 + $0x490] sm:$0xff] %v1070
  %1131 = vst [vmem:[%s873 + $0x4d8] sm:$0x7f] %v1071
  %1132 = vst [vmem:[%s873 + $0x520] sm:$0xff] %v1072
  %1133 = vst [vmem:[%s873 + $0x568] sm:$0x7f] %v1073
  %1134 = vst [vmem:[%s873 + $0x5b0] sm:$0xff] %v1074
  %1135 = vst [vmem:[%s873 + $0x5f8] sm:$0x7f] %v1075
  %1136 = vst [vmem:[%s873 + $0x640] sm:$0xff] %v1076
  %1137 = vst [vmem:[%s873 + $0x688] sm:$0x7f] %v1077
  %1138 = vst [vmem:[%s873 + $0x6d0] sm:$0xff] %v1078
  %1139 = vst [vmem:[%s873 + $0x718] sm:$0x7f] %v1079
  %1140 = vst [vmem:[%s873 + $0x760] sm:$0xff] %v1080
  %1141 = vst [vmem:[%s873 + $0x7a8] sm:$0x7f] %v1081
  %1142 = vst [vmem:[%s873 + $0x7f0] sm:$0xff] %v1082
  %1143 = vst [vmem:[%s873 + $0x838] sm:$0x7f] %v1083
  %1144 = vst [vmem:[%s873 + $0x910] sm:$0xff] %v1084
  %1145 = vst [vmem:[%s873 + $0x958] sm:$0x7f] %v1085
  %1146 = vst [vmem:[%s873 + $0x9a0] sm:$0xff] %v1086
  %1147 = vst [vmem:[%s873 + $0x9e8] sm:$0x7f] %v1087
  %1148 = vst [vmem:[%s873 + $0xa30] sm:$0xff] %v1088
  %1149 = vst [vmem:[%s873 + $0xa78] sm:$0x7f] %v1089
  %1150 = vst [vmem:[%s873 + $0xac0] sm:$0xff] %v1090
  %1151 = vst [vmem:[%s873 + $0xb08] sm:$0x7f] %v1091
  %1152 = vst [vmem:[%s873 + $0xb50] sm:$0xff] %v1092
  %1153 = vst [vmem:[%s873 + $0xb98] sm:$0x7f] %v1093
  %1154 = vst [vmem:[%s873 + $0xbe0] sm:$0xff] %v1094
  %1155 = vst [vmem:[%s873 + $0xc28] sm:$0x7f] %v1095
  %1156 = vst [vmem:[%s873 + $0xc70] sm:$0xff] %v1096
  %1157 = vst [vmem:[%s873 + $0xcb8] sm:$0x7f] %v1097
  %1158 = vst [vmem:[%s873 + $0xd00] sm:$0xff] %v1098
  %1159 = vst [vmem:[%s873 + $0xd48] sm:$0x7f] %v1099
  %1160 = vst [vmem:[%s873 + $0xd90] sm:$0xff] %v1100
  %1161 = vst [vmem:[%s873 + $0xdd8] sm:$0x7f] %v1101
  %1162 = vst [vmem:[%s873 + $0xe20] sm:$0xff] %v1102
  %1163 = vst [vmem:[%s873 + $0xe68] sm:$0x7f] %v1103
  %1164 = vst [vmem:[%s873 + $0xeb0] sm:$0xff] %v1104
  %1165 = vst [vmem:[%s873 + $0xef8] sm:$0x7f] %v1105
  %1166 = vst [vmem:[%s873 + $0xf40] sm:$0xff] %v1106
  %1167 = vst [vmem:[%s873 + $0xf88] sm:$0x7f] %v1107
  %1168 = vst [vmem:[%s873 + $0xfd0] sm:$0xff] %v1108
  %1169 = vst [vmem:[%s873 + $0x1018] sm:$0x7f] %v1109
  %1170 = vst [vmem:[%s873 + $0x1060] sm:$0xff] %v1110
  %1171 = vst [vmem:[%s873 + $0x10a8] sm:$0x7f] %v1111
  %1172 = vst [vmem:[%s873 + $0x10f0] sm:$0xff] %v1112
  %1173 = vst [vmem:[%s873 + $0x1138] sm:$0x7f] %v1113
  %v1174 = vld [vmem:[%s0] sm:$0xff]
  %v1175 = vld [vmem:[%s0 + $0x8] sm:$0x7f]
  %v1176 = vld [vmem:[%s0 + $0x10] sm:$0xff]
  %v1177 = vld [vmem:[%s0 + $0x18] sm:$0x7f]
  %v1178 = vld [vmem:[%s0 + $0x20] sm:$0xff]
  %v1179 = vld [vmem:[%s0 + $0x28] sm:$0x7f]
  %v1180 = vld [vmem:[%s0 + $0x30] sm:$0xff]
  %v1181 = vld [vmem:[%s0 + $0x38] sm:$0x7f]
  %v1182 = vld [vmem:[%s0 + $0x40] sm:$0xff]
  %v1183 = vld [vmem:[%s0 + $0x48] sm:$0x7f]
  %v1184 = vld [vmem:[%s0 + $0x50] sm:$0xff]
  %v1185 = vld [vmem:[%s0 + $0x58] sm:$0x7f]
  %v1186 = vld [vmem:[%s0 + $0x60] sm:$0xff]
  %v1187 = vld [vmem:[%s0 + $0x68] sm:$0x7f]
  %v1188 = vld [vmem:[%s0 + $0x70] sm:$0xff]
  %v1189 = vld [vmem:[%s0 + $0x78] sm:$0x7f]
  %v1190 = vld [vmem:[%s0 + $0x80] sm:$0xff]
  %v1191 = vld [vmem:[%s0 + $0x88] sm:$0x7f]
  %v1192 = vld [vmem:[%s0 + $0x90] sm:$0xff]
  %v1193 = vld [vmem:[%s0 + $0x98] sm:$0x7f]
  %v1194 = vld [vmem:[%s0 + $0xa0] sm:$0xff]
  %v1195 = vld [vmem:[%s0 + $0xa8] sm:$0x7f]
  %v1196 = vld [vmem:[%s0 + $0xb0] sm:$0xff]
  %v1197 = vld [vmem:[%s0 + $0xb8] sm:$0x7f]
  %v1198 = vld [vmem:[%s0 + $0xc0] sm:$0xff]
  %v1199 = vld [vmem:[%s0 + $0xc8] sm:$0x7f]
  %v1200 = vld [vmem:[%s0 + $0xd0] sm:$0xff]
  %v1201 = vld [vmem:[%s0 + $0xd8] sm:$0x7f]
  %v1202 = vld [vmem:[%s0 + $0xe0] sm:$0xff]
  %v1203 = vld [vmem:[%s0 + $0xe8] sm:$0x7f]
  %v1204 = vld [vmem:[%s0 + $0xf0] sm:$0xff]
  %v1205 = vld [vmem:[%s0 + $0xf8] sm:$0x7f]
  %v1206 = vld [vmem:[%s0 + $0x100] sm:$0xff]
  %v1207 = vld [vmem:[%s0 + $0x108] sm:$0x7f]
  %v1208 = vld [vmem:[%s0 + $0x110] sm:$0xff]
  %v1209 = vld [vmem:[%s0 + $0x118] sm:$0x7f]
  %v1210 = vld [vmem:[%s0 + $0x120] sm:$0xff]
  %v1211 = vld [vmem:[%s0 + $0x128] sm:$0x7f]
  %v1212 = vld [vmem:[%s0 + $0x130] sm:$0xff]
  %v1213 = vld [vmem:[%s0 + $0x138] sm:$0x7f]
  %v1214 = vld [vmem:[%s0 + $0x140] sm:$0xff]
  %v1215 = vld [vmem:[%s0 + $0x148] sm:$0x7f]
  %v1216 = vld [vmem:[%s0 + $0x150] sm:$0xff]
  %v1217 = vld [vmem:[%s0 + $0x158] sm:$0x7f]
  %v1218 = vld [vmem:[%s0 + $0x160] sm:$0xff]
  %v1219 = vld [vmem:[%s0 + $0x168] sm:$0x7f]
  %v1220 = vld [vmem:[%s0 + $0x170] sm:$0xff]
  %v1221 = vld [vmem:[%s0 + $0x178] sm:$0x7f]
  %v1222 = vld [vmem:[%s0 + $0x180] sm:$0xff]
  %v1223 = vld [vmem:[%s0 + $0x188] sm:$0x7f]
  %v1224 = vld [vmem:[%s0 + $0x190] sm:$0xff]
  %v1225 = vld [vmem:[%s0 + $0x198] sm:$0x7f]
  %v1226 = vld [vmem:[%s0 + $0x1a0] sm:$0xff]
  %v1227 = vld [vmem:[%s0 + $0x1a8] sm:$0x7f]
  %v1228 = vld [vmem:[%s0 + $0x1b0] sm:$0xff]
  %v1229 = vld [vmem:[%s0 + $0x1b8] sm:$0x7f]
  %v1230 = vld [vmem:[%s0 + $0x1c0] sm:$0xff]
  %v1231 = vld [vmem:[%s0 + $0x1c8] sm:$0x7f]
  %v1232 = vld [vmem:[%s0 + $0x1d0] sm:$0xff]
  %v1233 = vld [vmem:[%s0 + $0x1d8] sm:$0x7f]
  %v1234 = vld [vmem:[%s0 + $0x1e0] sm:$0xff]
  %v1235 = vld [vmem:[%s0 + $0x1e8] sm:$0x7f]
  %v1236 = vld [vmem:[%s0 + $0x1f0] sm:$0xff]
  %v1237 = vld [vmem:[%s0 + $0x1f8] sm:$0x7f]
  %v1302 = vrot.slane %v1174, 7
  %v1303 = vrot.slane %v1175, 7
  %v1304 = vsel %vm722, %v1302, %v1303
  %v1305 = vrot.slane %v1176, 7
  %v1306 = vrot.slane %v1177, 7
  %v1307 = vsel %vm722, %v1305, %v1306
  %v1308 = vrot.slane %v1178, 7
  %v1309 = vrot.slane %v1179, 7
  %v1310 = vsel %vm722, %v1308, %v1309
  %v1311 = vrot.slane %v1180, 7
  %v1312 = vrot.slane %v1181, 7
  %v1313 = vsel %vm722, %v1311, %v1312
  %v1314 = vrot.slane %v1182, 7
  %v1315 = vrot.slane %v1183, 7
  %v1316 = vsel %vm722, %v1314, %v1315
  %v1317 = vrot.slane %v1184, 7
  %v1318 = vrot.slane %v1185, 7
  %v1319 = vsel %vm722, %v1317, %v1318
  %v1320 = vrot.slane %v1186, 7
  %v1321 = vrot.slane %v1187, 7
  %v1322 = vsel %vm722, %v1320, %v1321
  %v1323 = vrot.slane %v1188, 7
  %v1324 = vrot.slane %v1189, 7
  %v1325 = vsel %vm722, %v1323, %v1324
  %v1326 = vrot.slane %v1190, 7
  %v1327 = vrot.slane %v1191, 7
  %v1328 = vsel %vm722, %v1326, %v1327
  %v1329 = vrot.slane %v1192, 7
  %v1330 = vrot.slane %v1193, 7
  %v1331 = vsel %vm722, %v1329, %v1330
  %v1332 = vrot.slane %v1194, 7
  %v1333 = vrot.slane %v1195, 7
  %v1334 = vsel %vm722, %v1332, %v1333
  %v1335 = vrot.slane %v1196, 7
  %v1336 = vrot.slane %v1197, 7
  %v1337 = vsel %vm722, %v1335, %v1336
  %v1338 = vrot.slane %v1198, 7
  %v1339 = vrot.slane %v1199, 7
  %v1340 = vsel %vm722, %v1338, %v1339
  %v1341 = vrot.slane %v1200, 7
  %v1342 = vrot.slane %v1201, 7
  %v1343 = vsel %vm722, %v1341, %v1342
  %v1344 = vrot.slane %v1202, 7
  %v1345 = vrot.slane %v1203, 7
  %v1346 = vsel %vm722, %v1344, %v1345
  %v1347 = vrot.slane %v1204, 7
  %v1348 = vrot.slane %v1205, 7
  %v1349 = vsel %vm722, %v1347, %v1348
  %v1350 = vrot.slane %v1206, 7
  %v1351 = vrot.slane %v1207, 7
  %v1352 = vsel %vm722, %v1350, %v1351
  %v1353 = vrot.slane %v1208, 7
  %v1354 = vrot.slane %v1209, 7
  %v1355 = vsel %vm722, %v1353, %v1354
  %v1356 = vrot.slane %v1210, 7
  %v1357 = vrot.slane %v1211, 7
  %v1358 = vsel %vm722, %v1356, %v1357
  %v1359 = vrot.slane %v1212, 7
  %v1360 = vrot.slane %v1213, 7
  %v1361 = vsel %vm722, %v1359, %v1360
  %v1362 = vrot.slane %v1214, 7
  %v1363 = vrot.slane %v1215, 7
  %v1364 = vsel %vm722, %v1362, %v1363
  %v1365 = vrot.slane %v1216, 7
  %v1366 = vrot.slane %v1217, 7
  %v1367 = vsel %vm722, %v1365, %v1366
  %v1368 = vrot.slane %v1218, 7
  %v1369 = vrot.slane %v1219, 7
  %v1370 = vsel %vm722, %v1368, %v1369
  %v1371 = vrot.slane %v1220, 7
  %v1372 = vrot.slane %v1221, 7
  %v1373 = vsel %vm722, %v1371, %v1372
  %v1374 = vrot.slane %v1222, 7
  %v1375 = vrot.slane %v1223, 7
  %v1376 = vsel %vm722, %v1374, %v1375
  %v1377 = vrot.slane %v1224, 7
  %v1378 = vrot.slane %v1225, 7
  %v1379 = vsel %vm722, %v1377, %v1378
  %v1380 = vrot.slane %v1226, 7
  %v1381 = vrot.slane %v1227, 7
  %v1382 = vsel %vm722, %v1380, %v1381
  %v1383 = vrot.slane %v1228, 7
  %v1384 = vrot.slane %v1229, 7
  %v1385 = vsel %vm722, %v1383, %v1384
  %v1386 = vrot.slane %v1230, 7
  %v1387 = vrot.slane %v1231, 7
  %v1388 = vsel %vm722, %v1386, %v1387
  %v1389 = vrot.slane %v1232, 7
  %v1390 = vrot.slane %v1233, 7
  %v1391 = vsel %vm722, %v1389, %v1390
  %v1392 = vrot.slane %v1234, 7
  %v1393 = vrot.slane %v1235, 7
  %v1394 = vsel %vm722, %v1392, %v1393
  %v1395 = vrot.slane %v1236, 7
  %v1396 = vrot.slane %v1237, 7
  %v1397 = vsel %vm722, %v1395, %v1396
  %1462 = vst [vmem:[#allocation2 + $0x18] sm:$0xfe] %v1302
  %1463 = vst [vmem:[#allocation2 + $0x60] sm:$0xff] %v1304
  %1464 = vst [vmem:[#allocation2 + $0xa8] sm:$0xfe] %v1305
  %1465 = vst [vmem:[#allocation2 + $0xf0] sm:$0xff] %v1307
  %1466 = vst [vmem:[#allocation2 + $0x138] sm:$0xfe] %v1308
  %1467 = vst [vmem:[#allocation2 + $0x180] sm:$0xff] %v1310
  %1468 = vst [vmem:[#allocation2 + $0x1c8] sm:$0xfe] %v1311
  %1469 = vst [vmem:[#allocation2 + $0x210] sm:$0xff] %v1313
  %1470 = vst [vmem:[#allocation2 + $0x258] sm:$0xfe] %v1314
  %1471 = vst [vmem:[#allocation2 + $0x2a0] sm:$0xff] %v1316
  %1472 = vst [vmem:[#allocation2 + $0x2e8] sm:$0xfe] %v1317
  %1473 = vst [vmem:[#allocation2 + $0x330] sm:$0xff] %v1319
  %1474 = vst [vmem:[#allocation2 + $0x378] sm:$0xfe] %v1320
  %1475 = vst [vmem:[#allocation2 + $0x3c0] sm:$0xff] %v1322
  %1476 = vst [vmem:[#allocation2 + $0x408] sm:$0xfe] %v1323
  %1477 = vst [vmem:[#allocation2 + $0x450] sm:$0xff] %v1325
  %1478 = vst [vmem:[#allocation2 + $0x498] sm:$0xfe] %v1326
  %1479 = vst [vmem:[#allocation2 + $0x4e0] sm:$0xff] %v1328
  %1480 = vst [vmem:[#allocation2 + $0x528] sm:$0xfe] %v1329
  %1481 = vst [vmem:[#allocation2 + $0x570] sm:$0xff] %v1331
  %1482 = vst [vmem:[#allocation2 + $0x5b8] sm:$0xfe] %v1332
  %1483 = vst [vmem:[#allocation2 + $0x600] sm:$0xff] %v1334
  %1484 = vst [vmem:[#allocation2 + $0x648] sm:$0xfe] %v1335
  %1485 = vst [vmem:[#allocation2 + $0x690] sm:$0xff] %v1337
  %1486 = vst [vmem:[#allocation2 + $0x6d8] sm:$0xfe] %v1338
  %1487 = vst [vmem:[#allocation2 + $0x720] sm:$0xff] %v1340
  %1488 = vst [vmem:[#allocation2 + $0x768] sm:$0xfe] %v1341
  %1489 = vst [vmem:[#allocation2 + $0x7b0] sm:$0xff] %v1343
  %1490 = vst [vmem:[#allocation2 + $0x7f8] sm:$0xfe] %v1344
  %1491 = vst [vmem:[#allocation2 + $0x840] sm:$0xff] %v1346
  %1492 = vst [vmem:[#allocation2 + $0x888] sm:$0xfe] %v1347
  %1493 = vst [vmem:[#allocation2 + $0x8d0] sm:$0xff] %v1349
  %1494 = vst [vmem:[#allocation2 + $0x918] sm:$0xfe] %v1350
  %1495 = vst [vmem:[#allocation2 + $0x960] sm:$0xff] %v1352
  %1496 = vst [vmem:[#allocation2 + $0x9a8] sm:$0xfe] %v1353
  %1497 = vst [vmem:[#allocation2 + $0x9f0] sm:$0xff] %v1355
  %1498 = vst [vmem:[#allocation2 + $0xa38] sm:$0xfe] %v1356
  %1499 = vst [vmem:[#allocation2 + $0xa80] sm:$0xff] %v1358
  %1500 = vst [vmem:[#allocation2 + $0xac8] sm:$0xfe] %v1359
  %1501 = vst [vmem:[#allocation2 + $0xb10] sm:$0xff] %v1361
  %1502 = vst [vmem:[#allocation2 + $0xb58] sm:$0xfe] %v1362
  %1503 = vst [vmem:[#allocation2 + $0xba0] sm:$0xff] %v1364
  %1504 = vst [vmem:[#allocation2 + $0xbe8] sm:$0xfe] %v1365
  %1505 = vst [vmem:[#allocation2 + $0xc30] sm:$0xff] %v1367
  %1506 = vst [vmem:[#allocation2 + $0xc78] sm:$0xfe] %v1368
  %1507 = vst [vmem:[#allocation2 + $0xcc0] sm:$0xff] %v1370
  %1508 = vst [vmem:[#allocation2 + $0xd08] sm:$0xfe] %v1371
  %1509 = vst [vmem:[#allocation2 + $0xd50] sm:$0xff] %v1373
  %1510 = vst [vmem:[#allocation2 + $0xd98] sm:$0xfe] %v1374
  %1511 = vst [vmem:[#allocation2 + $0xde0] sm:$0xff] %v1376
  %1512 = vst [vmem:[#allocation2 + $0xe28] sm:$0xfe] %v1377
  %1513 = vst [vmem:[#allocation2 + $0xe70] sm:$0xff] %v1379
  %1514 = vst [vmem:[#allocation2 + $0xeb8] sm:$0xfe] %v1380
  %1515 = vst [vmem:[#allocation2 + $0xf00] sm:$0xff] %v1382
  %1516 = vst [vmem:[#allocation2 + $0xf48] sm:$0xfe] %v1383
  %1517 = vst [vmem:[#allocation2 + $0xf90] sm:$0xff] %v1385
  %1518 = vst [vmem:[#allocation2 + $0xfd8] sm:$0xfe] %v1386
  %1519 = vst [vmem:[#allocation2 + $0x1020] sm:$0xff] %v1388
  %1520 = vst [vmem:[#allocation2 + $0x1068] sm:$0xfe] %v1389
  %1521 = vst [vmem:[#allocation2 + $0x10b0] sm:$0xff] %v1391
  %1522 = vst [vmem:[#allocation2 + $0x10f8] sm:$0xfe] %v1392
  %1523 = vst [vmem:[#allocation2 + $0x1140] sm:$0xff] %v1394
  %1524 = vst [vmem:[#allocation2 + $0x1188] sm:$0xfe] %v1395
  %1525 = vst [vmem:[#allocation2 + $0x11d0] sm:$0xff] %v1397
  %v1526 = vld [vmem:[%s0] sm:$0xff]
  %v1527 = vld [vmem:[%s0 + $0x8] sm:$0xff]
  %v1528 = vld [vmem:[%s0 + $0x10] sm:$0xff]
  %v1529 = vld [vmem:[%s0 + $0x18] sm:$0xff]
  %v1530 = vld [vmem:[%s0 + $0x20] sm:$0xff]
  %v1531 = vld [vmem:[%s0 + $0x28] sm:$0xff]
  %v1532 = vld [vmem:[%s0 + $0x30] sm:$0xff]
  %v1533 = vld [vmem:[%s0 + $0x38] sm:$0xff]
  %v1534 = vld [vmem:[%s0 + $0x40] sm:$0xff]
  %v1535 = vld [vmem:[%s0 + $0x48] sm:$0xff]
  %v1536 = vld [vmem:[%s0 + $0x50] sm:$0xff]
  %v1537 = vld [vmem:[%s0 + $0x58] sm:$0xff]
  %v1538 = vld [vmem:[%s0 + $0x60] sm:$0xff]
  %v1539 = vld [vmem:[%s0 + $0x68] sm:$0xff]
  %v1540 = vld [vmem:[%s0 + $0x70] sm:$0xff]
  %v1541 = vld [vmem:[%s0 + $0x78] sm:$0xff]
  %v1542 = vld [vmem:[%s0 + $0x80] sm:$0xff]
  %v1543 = vld [vmem:[%s0 + $0x88] sm:$0xff]
  %v1544 = vld [vmem:[%s0 + $0x90] sm:$0xff]
  %v1545 = vld [vmem:[%s0 + $0x98] sm:$0xff]
  %v1546 = vld [vmem:[%s0 + $0xa0] sm:$0xff]
  %v1547 = vld [vmem:[%s0 + $0xa8] sm:$0xff]
  %v1548 = vld [vmem:[%s0 + $0xb0] sm:$0xff]
  %v1549 = vld [vmem:[%s0 + $0xb8] sm:$0xff]
  %v1550 = vld [vmem:[%s0 + $0xc0] sm:$0xff]
  %v1551 = vld [vmem:[%s0 + $0xc8] sm:$0xff]
  %v1552 = vld [vmem:[%s0 + $0xd0] sm:$0xff]
  %v1553 = vld [vmem:[%s0 + $0xd8] sm:$0xff]
  %v1554 = vld [vmem:[%s0 + $0xe0] sm:$0xff]
  %v1555 = vld [vmem:[%s0 + $0xe8] sm:$0xff]
  %v1556 = vld [vmem:[%s0 + $0xf0] sm:$0xff]
  %v1557 = vld [vmem:[%s0 + $0xf8] sm:$0xff]
  %v1558 = vld [vmem:[%s0 + $0x100] sm:$0xff]
  %v1559 = vld [vmem:[%s0 + $0x108] sm:$0xff]
  %v1560 = vld [vmem:[%s0 + $0x110] sm:$0xff]
  %v1561 = vld [vmem:[%s0 + $0x118] sm:$0xff]
  %v1562 = vld [vmem:[%s0 + $0x120] sm:$0xff]
  %v1563 = vld [vmem:[%s0 + $0x128] sm:$0xff]
  %v1564 = vld [vmem:[%s0 + $0x130] sm:$0xff]
  %v1565 = vld [vmem:[%s0 + $0x138] sm:$0xff]
  %v1566 = vld [vmem:[%s0 + $0x140] sm:$0xff]
  %v1567 = vld [vmem:[%s0 + $0x148] sm:$0xff]
  %v1568 = vld [vmem:[%s0 + $0x150] sm:$0xff]
  %v1569 = vld [vmem:[%s0 + $0x158] sm:$0xff]
  %v1570 = vld [vmem:[%s0 + $0x160] sm:$0xff]
  %v1571 = vld [vmem:[%s0 + $0x168] sm:$0xff]
  %v1572 = vld [vmem:[%s0 + $0x170] sm:$0xff]
  %v1573 = vld [vmem:[%s0 + $0x178] sm:$0xff]
  %v1574 = vld [vmem:[%s0 + $0x180] sm:$0xff]
  %v1575 = vld [vmem:[%s0 + $0x188] sm:$0xff]
  %v1576 = vld [vmem:[%s0 + $0x190] sm:$0xff]
  %v1577 = vld [vmem:[%s0 + $0x198] sm:$0xff]
  %v1578 = vld [vmem:[%s0 + $0x1a0] sm:$0xff]
  %v1579 = vld [vmem:[%s0 + $0x1a8] sm:$0xff]
  %v1580 = vld [vmem:[%s0 + $0x1b0] sm:$0xff]
  %v1581 = vld [vmem:[%s0 + $0x1b8] sm:$0xff]
  %v1582 = vld [vmem:[%s0 + $0x1c0] sm:$0xff]
  %v1583 = vld [vmem:[%s0 + $0x1c8] sm:$0xff]
  %v1584 = vld [vmem:[%s0 + $0x1d0] sm:$0xff]
  %v1585 = vld [vmem:[%s0 + $0x1d8] sm:$0xff]
  %v1586 = vld [vmem:[%s0 + $0x1e0] sm:$0xff]
  %v1587 = vld [vmem:[%s0 + $0x1e8] sm:$0xff]
  %v1588 = vld [vmem:[%s0 + $0x1f0] sm:$0xff]
  %v1589 = vld [vmem:[%s0 + $0x1f8] sm:$0xff]
  %1590 = vst [vmem:[#allocation2 + $0x20] sm:$0xff] %v1526
  %1591 = vst [vmem:[#allocation2 + $0x68] sm:$0xff] %v1527
  %1592 = vst [vmem:[#allocation2 + $0xb0] sm:$0xff] %v1528
  %1593 = vst [vmem:[#allocation2 + $0xf8] sm:$0xff] %v1529
  %1594 = vst [vmem:[#allocation2 + $0x140] sm:$0xff] %v1530
  %1595 = vst [vmem:[#allocation2 + $0x188] sm:$0xff] %v1531
  %1596 = vst [vmem:[#allocation2 + $0x1d0] sm:$0xff] %v1532
  %1597 = vst [vmem:[#allocation2 + $0x218] sm:$0xff] %v1533
  %1598 = vst [vmem:[#allocation2 + $0x260] sm:$0xff] %v1534
  %1599 = vst [vmem:[#allocation2 + $0x2a8] sm:$0xff] %v1535
  %1600 = vst [vmem:[#allocation2 + $0x2f0] sm:$0xff] %v1536
  %1601 = vst [vmem:[#allocation2 + $0x338] sm:$0xff] %v1537
  %1602 = vst [vmem:[#allocation2 + $0x380] sm:$0xff] %v1538
  %1603 = vst [vmem:[#allocation2 + $0x3c8] sm:$0xff] %v1539
  %1604 = vst [vmem:[#allocation2 + $0x410] sm:$0xff] %v1540
  %1605 = vst [vmem:[#allocation2 + $0x458] sm:$0xff] %v1541
  %1606 = vst [vmem:[#allocation2 + $0x4a0] sm:$0xff] %v1542
  %1607 = vst [vmem:[#allocation2 + $0x4e8] sm:$0xff] %v1543
  %1608 = vst [vmem:[#allocation2 + $0x530] sm:$0xff] %v1544
  %1609 = vst [vmem:[#allocation2 + $0x578] sm:$0xff] %v1545
  %1610 = vst [vmem:[#allocation2 + $0x5c0] sm:$0xff] %v1546
  %1611 = vst [vmem:[#allocation2 + $0x608] sm:$0xff] %v1547
  %1612 = vst [vmem:[#allocation2 + $0x650] sm:$0xff] %v1548
  %1613 = vst [vmem:[#allocation2 + $0x698] sm:$0xff] %v1549
  %1614 = vst [vmem:[#allocation2 + $0x6e0] sm:$0xff] %v1550
  %1615 = vst [vmem:[#allocation2 + $0x728] sm:$0xff] %v1551
  %1616 = vst [vmem:[#allocation2 + $0x770] sm:$0xff] %v1552
  %1617 = vst [vmem:[#allocation2 + $0x7b8] sm:$0xff] %v1553
  %1618 = vst [vmem:[#allocation2 + $0x800] sm:$0xff] %v1554
  %1619 = vst [vmem:[#allocation2 + $0x848] sm:$0xff] %v1555
  %1620 = vst [vmem:[#allocation2 + $0x890] sm:$0xff] %v1556
  %1621 = vst [vmem:[#allocation2 + $0x8d8] sm:$0xff] %v1557
  %1622 = vst [vmem:[#allocation2 + $0x920] sm:$0xff] %v1558
  %1623 = vst [vmem:[#allocation2 + $0x968] sm:$0xff] %v1559
  %1624 = vst [vmem:[#allocation2 + $0x9b0] sm:$0xff] %v1560
  %1625 = vst [vmem:[#allocation2 + $0x9f8] sm:$0xff] %v1561
  %1626 = vst [vmem:[#allocation2 + $0xa40] sm:$0xff] %v1562
  %1627 = vst [vmem:[#allocation2 + $0xa88] sm:$0xff] %v1563
  %1628 = vst [vmem:[#allocation2 + $0xad0] sm:$0xff] %v1564
  %1629 = vst [vmem:[#allocation2 + $0xb18] sm:$0xff] %v1565
  %1630 = vst [vmem:[#allocation2 + $0xb60] sm:$0xff] %v1566
  %1631 = vst [vmem:[#allocation2 + $0xba8] sm:$0xff] %v1567
  %1632 = vst [vmem:[#allocation2 + $0xbf0] sm:$0xff] %v1568
  %1633 = vst [vmem:[#allocation2 + $0xc38] sm:$0xff] %v1569
  %1634 = vst [vmem:[#allocation2 + $0xc80] sm:$0xff] %v1570
  %1635 = vst [vmem:[#allocation2 + $0xcc8] sm:$0xff] %v1571
  %1636 = vst [vmem:[#allocation2 + $0xd10] sm:$0xff] %v1572
  %1637 = vst [vmem:[#allocation2 + $0xd58] sm:$0xff] %v1573
  %1638 = vst [vmem:[#allocation2 + $0xda0] sm:$0xff] %v1574
  %1639 = vst [vmem:[#allocation2 + $0xde8] sm:$0xff] %v1575
  %1640 = vst [vmem:[#allocation2 + $0xe30] sm:$0xff] %v1576
  %1641 = vst [vmem:[#allocation2 + $0xe78] sm:$0xff] %v1577
  %1642 = vst [vmem:[#allocation2 + $0xec0] sm:$0xff] %v1578
  %1643 = vst [vmem:[#allocation2 + $0xf08] sm:$0xff] %v1579
  %1644 = vst [vmem:[#allocation2 + $0xf50] sm:$0xff] %v1580
  %1645 = vst [vmem:[#allocation2 + $0xf98] sm:$0xff] %v1581
  %1646 = vst [vmem:[#allocation2 + $0xfe0] sm:$0xff] %v1582
  %1647 = vst [vmem:[#allocation2 + $0x1028] sm:$0xff] %v1583
  %1648 = vst [vmem:[#allocation2 + $0x1070] sm:$0xff] %v1584
  %1649 = vst [vmem:[#allocation2 + $0x10b8] sm:$0xff] %v1585
  %1650 = vst [vmem:[#allocation2 + $0x1100] sm:$0xff] %v1586
  %1651 = vst [vmem:[#allocation2 + $0x1148] sm:$0xff] %v1587
  %1652 = vst [vmem:[#allocation2 + $0x1190] sm:$0xff] %v1588
  %1653 = vst [vmem:[#allocation2 + $0x11d8] sm:$0xff] %v1589
  %v1654 = vld [vmem:[%s0 + $0x1] sm:$0xff]
  %v1655 = vld [vmem:[%s0 + $0x9] sm:$0x7f]
  %v1656 = vld [vmem:[%s0 + $0x11] sm:$0xff]
  %v1657 = vld [vmem:[%s0 + $0x19] sm:$0x7f]
  %v1658 = vld [vmem:[%s0 + $0x21] sm:$0xff]
  %v1659 = vld [vmem:[%s0 + $0x29] sm:$0x7f]
  %v1660 = vld [vmem:[%s0 + $0x31] sm:$0xff]
  %v1661 = vld [vmem:[%s0 + $0x39] sm:$0x7f]
  %v1662 = vld [vmem:[%s0 + $0x41] sm:$0xff]
  %v1663 = vld [vmem:[%s0 + $0x49] sm:$0x7f]
  %v1664 = vld [vmem:[%s0 + $0x51] sm:$0xff]
  %v1665 = vld [vmem:[%s0 + $0x59] sm:$0x7f]
  %v1666 = vld [vmem:[%s0 + $0x61] sm:$0xff]
  %v1667 = vld [vmem:[%s0 + $0x69] sm:$0x7f]
  %v1668 = vld [vmem:[%s0 + $0x71] sm:$0xff]
  %v1669 = vld [vmem:[%s0 + $0x79] sm:$0x7f]
  %v1670 = vld [vmem:[%s0 + $0x81] sm:$0xff]
  %v1671 = vld [vmem:[%s0 + $0x89] sm:$0x7f]
  %v1672 = vld [vmem:[%s0 + $0x91] sm:$0xff]
  %v1673 = vld [vmem:[%s0 + $0x99] sm:$0x7f]
  %v1674 = vld [vmem:[%s0 + $0xa1] sm:$0xff]
  %v1675 = vld [vmem:[%s0 + $0xa9] sm:$0x7f]
  %v1676 = vld [vmem:[%s0 + $0xb1] sm:$0xff]
  %v1677 = vld [vmem:[%s0 + $0xb9] sm:$0x7f]
  %v1678 = vld [vmem:[%s0 + $0xc1] sm:$0xff]
  %v1679 = vld [vmem:[%s0 + $0xc9] sm:$0x7f]
  %v1680 = vld [vmem:[%s0 + $0xd1] sm:$0xff]
  %v1681 = vld [vmem:[%s0 + $0xd9] sm:$0x7f]
  %v1682 = vld [vmem:[%s0 + $0xe1] sm:$0xff]
  %v1683 = vld [vmem:[%s0 + $0xe9] sm:$0x7f]
  %v1684 = vld [vmem:[%s0 + $0xf1] sm:$0xff]
  %v1685 = vld [vmem:[%s0 + $0xf9] sm:$0x7f]
  %v1686 = vld [vmem:[%s0 + $0x101] sm:$0xff]
  %v1687 = vld [vmem:[%s0 + $0x109] sm:$0x7f]
  %v1688 = vld [vmem:[%s0 + $0x111] sm:$0xff]
  %v1689 = vld [vmem:[%s0 + $0x119] sm:$0x7f]
  %v1690 = vld [vmem:[%s0 + $0x121] sm:$0xff]
  %v1691 = vld [vmem:[%s0 + $0x129] sm:$0x7f]
  %v1692 = vld [vmem:[%s0 + $0x131] sm:$0xff]
  %v1693 = vld [vmem:[%s0 + $0x139] sm:$0x7f]
  %v1694 = vld [vmem:[%s0 + $0x141] sm:$0xff]
  %v1695 = vld [vmem:[%s0 + $0x149] sm:$0x7f]
  %v1696 = vld [vmem:[%s0 + $0x151] sm:$0xff]
  %v1697 = vld [vmem:[%s0 + $0x159] sm:$0x7f]
  %v1698 = vld [vmem:[%s0 + $0x161] sm:$0xff]
  %v1699 = vld [vmem:[%s0 + $0x169] sm:$0x7f]
  %v1700 = vld [vmem:[%s0 + $0x171] sm:$0xff]
  %v1701 = vld [vmem:[%s0 + $0x179] sm:$0x7f]
  %v1702 = vld [vmem:[%s0 + $0x181] sm:$0xff]
  %v1703 = vld [vmem:[%s0 + $0x189] sm:$0x7f]
  %v1704 = vld [vmem:[%s0 + $0x191] sm:$0xff]
  %v1705 = vld [vmem:[%s0 + $0x199] sm:$0x7f]
  %v1706 = vld [vmem:[%s0 + $0x1a1] sm:$0xff]
  %v1707 = vld [vmem:[%s0 + $0x1a9] sm:$0x7f]
  %v1708 = vld [vmem:[%s0 + $0x1b1] sm:$0xff]
  %v1709 = vld [vmem:[%s0 + $0x1b9] sm:$0x7f]
  %v1710 = vld [vmem:[%s0 + $0x1c1] sm:$0xff]
  %v1711 = vld [vmem:[%s0 + $0x1c9] sm:$0x7f]
  %v1712 = vld [vmem:[%s0 + $0x1d1] sm:$0xff]
  %v1713 = vld [vmem:[%s0 + $0x1d9] sm:$0x7f]
  %v1714 = vld [vmem:[%s0 + $0x1e1] sm:$0xff]
  %v1715 = vld [vmem:[%s0 + $0x1e9] sm:$0x7f]
  %v1716 = vld [vmem:[%s0 + $0x1f1] sm:$0xff]
  %v1717 = vld [vmem:[%s0 + $0x1f9] sm:$0x7f]
  %1718 = vst [vmem:[#allocation2 + $0x28] sm:$0xff] %v1654
  %1719 = vst [vmem:[#allocation2 + $0x70] sm:$0x7f] %v1655
  %1720 = vst [vmem:[#allocation2 + $0xb8] sm:$0xff] %v1656
  %1721 = vst [vmem:[#allocation2 + $0x100] sm:$0x7f] %v1657
  %1722 = vst [vmem:[#allocation2 + $0x148] sm:$0xff] %v1658
  %1723 = vst [vmem:[#allocation2 + $0x190] sm:$0x7f] %v1659
  %1724 = vst [vmem:[#allocation2 + $0x1d8] sm:$0xff] %v1660
  %1725 = vst [vmem:[#allocation2 + $0x220] sm:$0x7f] %v1661
  %1726 = vst [vmem:[#allocation2 + $0x268] sm:$0xff] %v1662
  %1727 = vst [vmem:[#allocation2 + $0x2b0] sm:$0x7f] %v1663
  %1728 = vst [vmem:[#allocation2 + $0x2f8] sm:$0xff] %v1664
  %1729 = vst [vmem:[#allocation2 + $0x340] sm:$0x7f] %v1665
  %1730 = vst [vmem:[#allocation2 + $0x388] sm:$0xff] %v1666
  %1731 = vst [vmem:[#allocation2 + $0x3d0] sm:$0x7f] %v1667
  %1732 = vst [vmem:[#allocation2 + $0x418] sm:$0xff] %v1668
  %1733 = vst [vmem:[#allocation2 + $0x460] sm:$0x7f] %v1669
  %1734 = vst [vmem:[#allocation2 + $0x4a8] sm:$0xff] %v1670
  %1735 = vst [vmem:[#allocation2 + $0x4f0] sm:$0x7f] %v1671
  %1736 = vst [vmem:[#allocation2 + $0x538] sm:$0xff] %v1672
  %1737 = vst [vmem:[#allocation2 + $0x580] sm:$0x7f] %v1673
  %1738 = vst [vmem:[#allocation2 + $0x5c8] sm:$0xff] %v1674
  %1739 = vst [vmem:[#allocation2 + $0x610] sm:$0x7f] %v1675
  %1740 = vst [vmem:[#allocation2 + $0x658] sm:$0xff] %v1676
  %1741 = vst [vmem:[#allocation2 + $0x6a0] sm:$0x7f] %v1677
  %1742 = vst [vmem:[#allocation2 + $0x6e8] sm:$0xff] %v1678
  %1743 = vst [vmem:[#allocation2 + $0x730] sm:$0x7f] %v1679
  %1744 = vst [vmem:[#allocation2 + $0x778] sm:$0xff] %v1680
  %1745 = vst [vmem:[#allocation2 + $0x7c0] sm:$0x7f] %v1681
  %1746 = vst [vmem:[#allocation2 + $0x808] sm:$0xff] %v1682
  %1747 = vst [vmem:[#allocation2 + $0x850] sm:$0x7f] %v1683
  %1748 = vst [vmem:[#allocation2 + $0x898] sm:$0xff] %v1684
  %1749 = vst [vmem:[#allocation2 + $0x8e0] sm:$0x7f] %v1685
  %1750 = vst [vmem:[#allocation2 + $0x928] sm:$0xff] %v1686
  %1751 = vst [vmem:[#allocation2 + $0x970] sm:$0x7f] %v1687
  %1752 = vst [vmem:[#allocation2 + $0x9b8] sm:$0xff] %v1688
  %1753 = vst [vmem:[#allocation2 + $0xa00] sm:$0x7f] %v1689
  %1754 = vst [vmem:[#allocation2 + $0xa48] sm:$0xff] %v1690
  %1755 = vst [vmem:[#allocation2 + $0xa90] sm:$0x7f] %v1691
  %1756 = vst [vmem:[#allocation2 + $0xad8] sm:$0xff] %v1692
  %1757 = vst [vmem:[#allocation2 + $0xb20] sm:$0x7f] %v1693
  %1758 = vst [vmem:[#allocation2 + $0xb68] sm:$0xff] %v1694
  %1759 = vst [vmem:[#allocation2 + $0xbb0] sm:$0x7f] %v1695
  %1760 = vst [vmem:[#allocation2 + $0xbf8] sm:$0xff] %v1696
  %1761 = vst [vmem:[#allocation2 + $0xc40] sm:$0x7f] %v1697
  %1762 = vst [vmem:[#allocation2 + $0xc88] sm:$0xff] %v1698
  %1763 = vst [vmem:[#allocation2 + $0xcd0] sm:$0x7f] %v1699
  %1764 = vst [vmem:[#allocation2 + $0xd18] sm:$0xff] %v1700
  %1765 = vst [vmem:[#allocation2 + $0xd60] sm:$0x7f] %v1701
  %1766 = vst [vmem:[#allocation2 + $0xda8] sm:$0xff] %v1702
  %1767 = vst [vmem:[#allocation2 + $0xdf0] sm:$0x7f] %v1703
  %1768 = vst [vmem:[#allocation2 + $0xe38] sm:$0xff] %v1704
  %1769 = vst [vmem:[#allocation2 + $0xe80] sm:$0x7f] %v1705
  %1770 = vst [vmem:[#allocation2 + $0xec8] sm:$0xff] %v1706
  %1771 = vst [vmem:[#allocation2 + $0xf10] sm:$0x7f] %v1707
  %1772 = vst [vmem:[#allocation2 + $0xf58] sm:$0xff] %v1708
  %1773 = vst [vmem:[#allocation2 + $0xfa0] sm:$0x7f] %v1709
  %1774 = vst [vmem:[#allocation2 + $0xfe8] sm:$0xff] %v1710
  %1775 = vst [vmem:[#allocation2 + $0x1030] sm:$0x7f] %v1711
  %1776 = vst [vmem:[#allocation2 + $0x1078] sm:$0xff] %v1712
  %1777 = vst [vmem:[#allocation2 + $0x10c0] sm:$0x7f] %v1713
  %1778 = vst [vmem:[#allocation2 + $0x1108] sm:$0xff] %v1714
  %1779 = vst [vmem:[#allocation2 + $0x1150] sm:$0x7f] %v1715
  %1780 = vst [vmem:[#allocation2 + $0x1198] sm:$0xff] %v1716
  %1781 = vst [vmem:[#allocation2 + $0x11e0] sm:$0x7f] %v1717
  %s1782 = scalar_lea.vmem %s0, 16
  %v1783 = vld [vmem:[%s1782] sm:$0xff]
  %v1784 = vld [vmem:[%s1782 + $0x8] sm:$0x7f]
  %v1785 = vld [vmem:[%s1782 + $0x10] sm:$0xff]
  %v1786 = vld [vmem:[%s1782 + $0x18] sm:$0x7f]
  %v1787 = vld [vmem:[%s1782 + $0x20] sm:$0xff]
  %v1788 = vld [vmem:[%s1782 + $0x28] sm:$0x7f]
  %v1789 = vld [vmem:[%s1782 + $0x30] sm:$0xff]
  %v1790 = vld [vmem:[%s1782 + $0x38] sm:$0x7f]
  %v1791 = vld [vmem:[%s1782 + $0x40] sm:$0xff]
  %v1792 = vld [vmem:[%s1782 + $0x48] sm:$0x7f]
  %v1793 = vld [vmem:[%s1782 + $0x50] sm:$0xff]
  %v1794 = vld [vmem:[%s1782 + $0x58] sm:$0x7f]
  %v1795 = vld [vmem:[%s1782 + $0x60] sm:$0xff]
  %v1796 = vld [vmem:[%s1782 + $0x68] sm:$0x7f]
  %v1797 = vld [vmem:[%s1782 + $0x70] sm:$0xff]
  %v1798 = vld [vmem:[%s1782 + $0x78] sm:$0x7f]
  %v1799 = vld [vmem:[%s1782 + $0x80] sm:$0xff]
  %v1800 = vld [vmem:[%s1782 + $0x88] sm:$0x7f]
  %v1801 = vld [vmem:[%s1782 + $0x90] sm:$0xff]
  %v1802 = vld [vmem:[%s1782 + $0x98] sm:$0x7f]
  %v1803 = vld [vmem:[%s1782 + $0xa0] sm:$0xff]
  %v1804 = vld [vmem:[%s1782 + $0xa8] sm:$0x7f]
  %v1805 = vld [vmem:[%s1782 + $0xb0] sm:$0xff]
  %v1806 = vld [vmem:[%s1782 + $0xb8] sm:$0x7f]
  %v1807 = vld [vmem:[%s1782 + $0xc0] sm:$0xff]
  %v1808 = vld [vmem:[%s1782 + $0xc8] sm:$0x7f]
  %v1809 = vld [vmem:[%s1782 + $0xd0] sm:$0xff]
  %v1810 = vld [vmem:[%s1782 + $0xd8] sm:$0x7f]
  %v1811 = vld [vmem:[%s1782 + $0xe0] sm:$0xff]
  %v1812 = vld [vmem:[%s1782 + $0xe8] sm:$0x7f]
  %v1813 = vld [vmem:[%s1782 + $0x100] sm:$0xff]
  %v1814 = vld [vmem:[%s1782 + $0x108] sm:$0x7f]
  %v1815 = vld [vmem:[%s1782 + $0x110] sm:$0xff]
  %v1816 = vld [vmem:[%s1782 + $0x118] sm:$0x7f]
  %v1817 = vld [vmem:[%s1782 + $0x120] sm:$0xff]
  %v1818 = vld [vmem:[%s1782 + $0x128] sm:$0x7f]
  %v1819 = vld [vmem:[%s1782 + $0x130] sm:$0xff]
  %v1820 = vld [vmem:[%s1782 + $0x138] sm:$0x7f]
  %v1821 = vld [vmem:[%s1782 + $0x140] sm:$0xff]
  %v1822 = vld [vmem:[%s1782 + $0x148] sm:$0x7f]
  %v1823 = vld [vmem:[%s1782 + $0x150] sm:$0xff]
  %v1824 = vld [vmem:[%s1782 + $0x158] sm:$0x7f]
  %v1825 = vld [vmem:[%s1782 + $0x160] sm:$0xff]
  %v1826 = vld [vmem:[%s1782 + $0x168] sm:$0x7f]
  %v1827 = vld [vmem:[%s1782 + $0x170] sm:$0xff]
  %v1828 = vld [vmem:[%s1782 + $0x178] sm:$0x7f]
  %v1829 = vld [vmem:[%s1782 + $0x180] sm:$0xff]
  %v1830 = vld [vmem:[%s1782 + $0x188] sm:$0x7f]
  %v1831 = vld [vmem:[%s1782 + $0x190] sm:$0xff]
  %v1832 = vld [vmem:[%s1782 + $0x198] sm:$0x7f]
  %v1833 = vld [vmem:[%s1782 + $0x1a0] sm:$0xff]
  %v1834 = vld [vmem:[%s1782 + $0x1a8] sm:$0x7f]
  %v1835 = vld [vmem:[%s1782 + $0x1b0] sm:$0xff]
  %v1836 = vld [vmem:[%s1782 + $0x1b8] sm:$0x7f]
  %v1837 = vld [vmem:[%s1782 + $0x1c0] sm:$0xff]
  %v1838 = vld [vmem:[%s1782 + $0x1c8] sm:$0x7f]
  %v1839 = vld [vmem:[%s1782 + $0x1d0] sm:$0xff]
  %v1840 = vld [vmem:[%s1782 + $0x1d8] sm:$0x7f]
  %v1841 = vld [vmem:[%s1782 + $0x1e0] sm:$0xff]
  %v1842 = vld [vmem:[%s1782 + $0x1e8] sm:$0x7f]
  %v1903 = vrot.slane %v1783, 7
  %v1904 = vrot.slane %v1784, 7
  %v1905 = vsel %vm722, %v1903, %v1904
  %v1906 = vrot.slane %v1785, 7
  %v1907 = vrot.slane %v1786, 7
  %v1908 = vsel %vm722, %v1906, %v1907
  %v1909 = vrot.slane %v1787, 7
  %v1910 = vrot.slane %v1788, 7
  %v1911 = vsel %vm722, %v1909, %v1910
  %v1912 = vrot.slane %v1789, 7
  %v1913 = vrot.slane %v1790, 7
  %v1914 = vsel %vm722, %v1912, %v1913
  %v1915 = vrot.slane %v1791, 7
  %v1916 = vrot.slane %v1792, 7
  %v1917 = vsel %vm722, %v1915, %v1916
  %v1918 = vrot.slane %v1793, 7
  %v1919 = vrot.slane %v1794, 7
  %v1920 = vsel %vm722, %v1918, %v1919
  %v1921 = vrot.slane %v1795, 7
  %v1922 = vrot.slane %v1796, 7
  %v1923 = vsel %vm722, %v1921, %v1922
  %v1924 = vrot.slane %v1797, 7
  %v1925 = vrot.slane %v1798, 7
  %v1926 = vsel %vm722, %v1924, %v1925
  %v1927 = vrot.slane %v1799, 7
  %v1928 = vrot.slane %v1800, 7
  %v1929 = vsel %vm722, %v1927, %v1928
  %v1930 = vrot.slane %v1801, 7
  %v1931 = vrot.slane %v1802, 7
  %v1932 = vsel %vm722, %v1930, %v1931
  %v1933 = vrot.slane %v1803, 7
  %v1934 = vrot.slane %v1804, 7
  %v1935 = vsel %vm722, %v1933, %v1934
  %v1936 = vrot.slane %v1805, 7
  %v1937 = vrot.slane %v1806, 7
  %v1938 = vsel %vm722, %v1936, %v1937
  %v1939 = vrot.slane %v1807, 7
  %v1940 = vrot.slane %v1808, 7
  %v1941 = vsel %vm722, %v1939, %v1940
  %v1942 = vrot.slane %v1809, 7
  %v1943 = vrot.slane %v1810, 7
  %v1944 = vsel %vm722, %v1942, %v1943
  %v1945 = vrot.slane %v1811, 7
  %v1946 = vrot.slane %v1812, 7
  %v1947 = vsel %vm722, %v1945, %v1946
  %v1948 = vrot.slane %v1813, 7
  %v1949 = vrot.slane %v1814, 7
  %v1950 = vsel %vm722, %v1948, %v1949
  %v1951 = vrot.slane %v1815, 7
  %v1952 = vrot.slane %v1816, 7
  %v1953 = vsel %vm722, %v1951, %v1952
  %v1954 = vrot.slane %v1817, 7
  %v1955 = vrot.slane %v1818, 7
  %v1956 = vsel %vm722, %v1954, %v1955
  %v1957 = vrot.slane %v1819, 7
  %v1958 = vrot.slane %v1820, 7
  %v1959 = vsel %vm722, %v1957, %v1958
  %v1960 = vrot.slane %v1821, 7
  %v1961 = vrot.slane %v1822, 7
  %v1962 = vsel %vm722, %v1960, %v1961
  %v1963 = vrot.slane %v1823, 7
  %v1964 = vrot.slane %v1824, 7
  %v1965 = vsel %vm722, %v1963, %v1964
  %v1966 = vrot.slane %v1825, 7
  %v1967 = vrot.slane %v1826, 7
  %v1968 = vsel %vm722, %v1966, %v1967
  %v1969 = vrot.slane %v1827, 7
  %v1970 = vrot.slane %v1828, 7
  %v1971 = vsel %vm722, %v1969, %v1970
  %v1972 = vrot.slane %v1829, 7
  %v1973 = vrot.slane %v1830, 7
  %v1974 = vsel %vm722, %v1972, %v1973
  %v1975 = vrot.slane %v1831, 7
  %v1976 = vrot.slane %v1832, 7
  %v1977 = vsel %vm722, %v1975, %v1976
  %v1978 = vrot.slane %v1833, 7
  %v1979 = vrot.slane %v1834, 7
  %v1980 = vsel %vm722, %v1978, %v1979
  %v1981 = vrot.slane %v1835, 7
  %v1982 = vrot.slane %v1836, 7
  %v1983 = vsel %vm722, %v1981, %v1982
  %v1984 = vrot.slane %v1837, 7
  %v1985 = vrot.slane %v1838, 7
  %v1986 = vsel %vm722, %v1984, %v1985
  %v1987 = vrot.slane %v1839, 7
  %v1988 = vrot.slane %v1840, 7
  %v1989 = vsel %vm722, %v1987, %v1988
  %v1990 = vrot.slane %v1841, 7
  %v1991 = vrot.slane %v1842, 7
  %v1992 = vsel %vm722, %v1990, %v1991
  %2053 = vst [vmem:[#allocation2 + $0x30] sm:$0xfe] %v1903
  %2054 = vst [vmem:[#allocation2 + $0x78] sm:$0xff] %v1905
  %2055 = vst [vmem:[#allocation2 + $0xc0] sm:$0xfe] %v1906
  %2056 = vst [vmem:[#allocation2 + $0x108] sm:$0xff] %v1908
  %2057 = vst [vmem:[#allocation2 + $0x150] sm:$0xfe] %v1909
  %2058 = vst [vmem:[#allocation2 + $0x198] sm:$0xff] %v1911
  %2059 = vst [vmem:[#allocation2 + $0x1e0] sm:$0xfe] %v1912
  %2060 = vst [vmem:[#allocation2 + $0x228] sm:$0xff] %v1914
  %2061 = vst [vmem:[#allocation2 + $0x270] sm:$0xfe] %v1915
  %2062 = vst [vmem:[#allocation2 + $0x2b8] sm:$0xff] %v1917
  %2063 = vst [vmem:[#allocation2 + $0x300] sm:$0xfe] %v1918
  %2064 = vst [vmem:[#allocation2 + $0x348] sm:$0xff] %v1920
  %2065 = vst [vmem:[#allocation2 + $0x390] sm:$0xfe] %v1921
  %2066 = vst [vmem:[#allocation2 + $0x3d8] sm:$0xff] %v1923
  %2067 = vst [vmem:[#allocation2 + $0x420] sm:$0xfe] %v1924
  %2068 = vst [vmem:[#allocation2 + $0x468] sm:$0xff] %v1926
  %2069 = vst [vmem:[#allocation2 + $0x4b0] sm:$0xfe] %v1927
  %2070 = vst [vmem:[#allocation2 + $0x4f8] sm:$0xff] %v1929
  %2071 = vst [vmem:[#allocation2 + $0x540] sm:$0xfe] %v1930
  %2072 = vst [vmem:[#allocation2 + $0x588] sm:$0xff] %v1932
  %2073 = vst [vmem:[#allocation2 + $0x5d0] sm:$0xfe] %v1933
  %2074 = vst [vmem:[#allocation2 + $0x618] sm:$0xff] %v1935
  %2075 = vst [vmem:[#allocation2 + $0x660] sm:$0xfe] %v1936
  %2076 = vst [vmem:[#allocation2 + $0x6a8] sm:$0xff] %v1938
  %2077 = vst [vmem:[#allocation2 + $0x6f0] sm:$0xfe] %v1939
  %2078 = vst [vmem:[#allocation2 + $0x738] sm:$0xff] %v1941
  %2079 = vst [vmem:[#allocation2 + $0x780] sm:$0xfe] %v1942
  %2080 = vst [vmem:[#allocation2 + $0x7c8] sm:$0xff] %v1944
  %2081 = vst [vmem:[#allocation2 + $0x810] sm:$0xfe] %v1945
  %2082 = vst [vmem:[#allocation2 + $0x858] sm:$0xff] %v1947
  %2083 = vst [vmem:[#allocation2 + $0x930] sm:$0xfe] %v1948
  %2084 = vst [vmem:[#allocation2 + $0x978] sm:$0xff] %v1950
  %2085 = vst [vmem:[#allocation2 + $0x9c0] sm:$0xfe] %v1951
  %2086 = vst [vmem:[#allocation2 + $0xa08] sm:$0xff] %v1953
  %2087 = vst [vmem:[#allocation2 + $0xa50] sm:$0xfe] %v1954
  %2088 = vst [vmem:[#allocation2 + $0xa98] sm:$0xff] %v1956
  %2089 = vst [vmem:[#allocation2 + $0xae0] sm:$0xfe] %v1957
  %2090 = vst [vmem:[#allocation2 + $0xb28] sm:$0xff] %v1959
  %2091 = vst [vmem:[#allocation2 + $0xb70] sm:$0xfe] %v1960
  %2092 = vst [vmem:[#allocation2 + $0xbb8] sm:$0xff] %v1962
  %2093 = vst [vmem:[#allocation2 + $0xc00] sm:$0xfe] %v1963
  %2094 = vst [vmem:[#allocation2 + $0xc48] sm:$0xff] %v1965
  %2095 = vst [vmem:[#allocation2 + $0xc90] sm:$0xfe] %v1966
  %2096 = vst [vmem:[#allocation2 + $0xcd8] sm:$0xff] %v1968
  %2097 = vst [vmem:[#allocation2 + $0xd20] sm:$0xfe] %v1969
  %2098 = vst [vmem:[#allocation2 + $0xd68] sm:$0xff] %v1971
  %2099 = vst [vmem:[#allocation2 + $0xdb0] sm:$0xfe] %v1972
  %2100 = vst [vmem:[#allocation2 + $0xdf8] sm:$0xff] %v1974
  %2101 = vst [vmem:[#allocation2 + $0xe40] sm:$0xfe] %v1975
  %2102 = vst [vmem:[#allocation2 + $0xe88] sm:$0xff] %v1977
  %2103 = vst [vmem:[#allocation2 + $0xed0] sm:$0xfe] %v1978
  %2104 = vst [vmem:[#allocation2 + $0xf18] sm:$0xff] %v1980
  %2105 = vst [vmem:[#allocation2 + $0xf60] sm:$0xfe] %v1981
  %2106 = vst [vmem:[#allocation2 + $0xfa8] sm:$0xff] %v1983
  %2107 = vst [vmem:[#allocation2 + $0xff0] sm:$0xfe] %v1984
  %2108 = vst [vmem:[#allocation2 + $0x1038] sm:$0xff] %v1986
  %2109 = vst [vmem:[#allocation2 + $0x1080] sm:$0xfe] %v1987
  %2110 = vst [vmem:[#allocation2 + $0x10c8] sm:$0xff] %v1989
  %2111 = vst [vmem:[#allocation2 + $0x1110] sm:$0xfe] %v1990
  %2112 = vst [vmem:[#allocation2 + $0x1158] sm:$0xff] %v1992
  %v2113 = vld [vmem:[%s1782] sm:$0xff]
  %v2114 = vld [vmem:[%s1782 + $0x8] sm:$0xff]
  %v2115 = vld [vmem:[%s1782 + $0x10] sm:$0xff]
  %v2116 = vld [vmem:[%s1782 + $0x18] sm:$0xff]
  %v2117 = vld [vmem:[%s1782 + $0x20] sm:$0xff]
  %v2118 = vld [vmem:[%s1782 + $0x28] sm:$0xff]
  %v2119 = vld [vmem:[%s1782 + $0x30] sm:$0xff]
  %v2120 = vld [vmem:[%s1782 + $0x38] sm:$0xff]
  %v2121 = vld [vmem:[%s1782 + $0x40] sm:$0xff]
  %v2122 = vld [vmem:[%s1782 + $0x48] sm:$0xff]
  %v2123 = vld [vmem:[%s1782 + $0x50] sm:$0xff]
  %v2124 = vld [vmem:[%s1782 + $0x58] sm:$0xff]
  %v2125 = vld [vmem:[%s1782 + $0x60] sm:$0xff]
  %v2126 = vld [vmem:[%s1782 + $0x68] sm:$0xff]
  %v2127 = vld [vmem:[%s1782 + $0x70] sm:$0xff]
  %v2128 = vld [vmem:[%s1782 + $0x78] sm:$0xff]
  %v2129 = vld [vmem:[%s1782 + $0x80] sm:$0xff]
  %v2130 = vld [vmem:[%s1782 + $0x88] sm:$0xff]
  %v2131 = vld [vmem:[%s1782 + $0x90] sm:$0xff]
  %v2132 = vld [vmem:[%s1782 + $0x98] sm:$0xff]
  %v2133 = vld [vmem:[%s1782 + $0xa0] sm:$0xff]
  %v2134 = vld [vmem:[%s1782 + $0xa8] sm:$0xff]
  %v2135 = vld [vmem:[%s1782 + $0xb0] sm:$0xff]
  %v2136 = vld [vmem:[%s1782 + $0xb8] sm:$0xff]
  %v2137 = vld [vmem:[%s1782 + $0xc0] sm:$0xff]
  %v2138 = vld [vmem:[%s1782 + $0xc8] sm:$0xff]
  %v2139 = vld [vmem:[%s1782 + $0xd0] sm:$0xff]
  %v2140 = vld [vmem:[%s1782 + $0xd8] sm:$0xff]
  %v2141 = vld [vmem:[%s1782 + $0xe0] sm:$0xff]
  %v2142 = vld [vmem:[%s1782 + $0xe8] sm:$0xff]
  %v2143 = vld [vmem:[%s1782 + $0x100] sm:$0xff]
  %v2144 = vld [vmem:[%s1782 + $0x108] sm:$0xff]
  %v2145 = vld [vmem:[%s1782 + $0x110] sm:$0xff]
  %v2146 = vld [vmem:[%s1782 + $0x118] sm:$0xff]
  %v2147 = vld [vmem:[%s1782 + $0x120] sm:$0xff]
  %v2148 = vld [vmem:[%s1782 + $0x128] sm:$0xff]
  %v2149 = vld [vmem:[%s1782 + $0x130] sm:$0xff]
  %v2150 = vld [vmem:[%s1782 + $0x138] sm:$0xff]
  %v2151 = vld [vmem:[%s1782 + $0x140] sm:$0xff]
  %v2152 = vld [vmem:[%s1782 + $0x148] sm:$0xff]
  %v2153 = vld [vmem:[%s1782 + $0x150] sm:$0xff]
  %v2154 = vld [vmem:[%s1782 + $0x158] sm:$0xff]
  %v2155 = vld [vmem:[%s1782 + $0x160] sm:$0xff]
  %v2156 = vld [vmem:[%s1782 + $0x168] sm:$0xff]
  %v2157 = vld [vmem:[%s1782 + $0x170] sm:$0xff]
  %v2158 = vld [vmem:[%s1782 + $0x178] sm:$0xff]
  %v2159 = vld [vmem:[%s1782 + $0x180] sm:$0xff]
  %v2160 = vld [vmem:[%s1782 + $0x188] sm:$0xff]
  %v2161 = vld [vmem:[%s1782 + $0x190] sm:$0xff]
  %v2162 = vld [vmem:[%s1782 + $0x198] sm:$0xff]
  %v2163 = vld [vmem:[%s1782 + $0x1a0] sm:$0xff]
  %v2164 = vld [vmem:[%s1782 + $0x1a8] sm:$0xff]
  %v2165 = vld [vmem:[%s1782 + $0x1b0] sm:$0xff]
  %v2166 = vld [vmem:[%s1782 + $0x1b8] sm:$0xff]
  %v2167 = vld [vmem:[%s1782 + $0x1c0] sm:$0xff]
  %v2168 = vld [vmem:[%s1782 + $0x1c8] sm:$0xff]
  %v2169 = vld [vmem:[%s1782 + $0x1d0] sm:$0xff]
  %v2170 = vld [vmem:[%s1782 + $0x1d8] sm:$0xff]
  %v2171 = vld [vmem:[%s1782 + $0x1e0] sm:$0xff]
  %v2172 = vld [vmem:[%s1782 + $0x1e8] sm:$0xff]
  %2173 = vst [vmem:[#allocation2 + $0x38] sm:$0xff] %v2113
  %2174 = vst [vmem:[#allocation2 + $0x80] sm:$0xff] %v2114
  %2175 = vst [vmem:[#allocation2 + $0xc8] sm:$0xff] %v2115
  %2176 = vst [vmem:[#allocation2 + $0x110] sm:$0xff] %v2116
  %2177 = vst [vmem:[#allocation2 + $0x158] sm:$0xff] %v2117
  %2178 = vst [vmem:[#allocation2 + $0x1a0] sm:$0xff] %v2118
  %2179 = vst [vmem:[#allocation2 + $0x1e8] sm:$0xff] %v2119
  %2180 = vst [vmem:[#allocation2 + $0x230] sm:$0xff] %v2120
  %2181 = vst [vmem:[#allocation2 + $0x278] sm:$0xff] %v2121
  %2182 = vst [vmem:[#allocation2 + $0x2c0] sm:$0xff] %v2122
  %2183 = vst [vmem:[#allocation2 + $0x308] sm:$0xff] %v2123
  %2184 = vst [vmem:[#allocation2 + $0x350] sm:$0xff] %v2124
  %2185 = vst [vmem:[#allocation2 + $0x398] sm:$0xff] %v2125
  %2186 = vst [vmem:[#allocation2 + $0x3e0] sm:$0xff] %v2126
  %2187 = vst [vmem:[#allocation2 + $0x428] sm:$0xff] %v2127
  %2188 = vst [vmem:[#allocation2 + $0x470] sm:$0xff] %v2128
  %2189 = vst [vmem:[#allocation2 + $0x4b8] sm:$0xff] %v2129
  %2190 = vst [vmem:[#allocation2 + $0x500] sm:$0xff] %v2130
  %2191 = vst [vmem:[#allocation2 + $0x548] sm:$0xff] %v2131
  %2192 = vst [vmem:[#allocation2 + $0x590] sm:$0xff] %v2132
  %2193 = vst [vmem:[#allocation2 + $0x5d8] sm:$0xff] %v2133
  %2194 = vst [vmem:[#allocation2 + $0x620] sm:$0xff] %v2134
  %2195 = vst [vmem:[#allocation2 + $0x668] sm:$0xff] %v2135
  %2196 = vst [vmem:[#allocation2 + $0x6b0] sm:$0xff] %v2136
  %2197 = vst [vmem:[#allocation2 + $0x6f8] sm:$0xff] %v2137
  %2198 = vst [vmem:[#allocation2 + $0x740] sm:$0xff] %v2138
  %2199 = vst [vmem:[#allocation2 + $0x788] sm:$0xff] %v2139
  %2200 = vst [vmem:[#allocation2 + $0x7d0] sm:$0xff] %v2140
  %2201 = vst [vmem:[#allocation2 + $0x818] sm:$0xff] %v2141
  %2202 = vst [vmem:[#allocation2 + $0x860] sm:$0xff] %v2142
  %2203 = vst [vmem:[#allocation2 + $0x938] sm:$0xff] %v2143
  %2204 = vst [vmem:[#allocation2 + $0x980] sm:$0xff] %v2144
  %2205 = vst [vmem:[#allocation2 + $0x9c8] sm:$0xff] %v2145
  %2206 = vst [vmem:[#allocation2 + $0xa10] sm:$0xff] %v2146
  %2207 = vst [vmem:[#allocation2 + $0xa58] sm:$0xff] %v2147
  %2208 = vst [vmem:[#allocation2 + $0xaa0] sm:$0xff] %v2148
  %2209 = vst [vmem:[#allocation2 + $0xae8] sm:$0xff] %v2149
  %2210 = vst [vmem:[#allocation2 + $0xb30] sm:$0xff] %v2150
  %2211 = vst [vmem:[#allocation2 + $0xb78] sm:$0xff] %v2151
  %2212 = vst [vmem:[#allocation2 + $0xbc0] sm:$0xff] %v2152
  %2213 = vst [vmem:[#allocation2 + $0xc08] sm:$0xff] %v2153
  %2214 = vst [vmem:[#allocation2 + $0xc50] sm:$0xff] %v2154
  %2215 = vst [vmem:[#allocation2 + $0xc98] sm:$0xff] %v2155
  %2216 = vst [vmem:[#allocation2 + $0xce0] sm:$0xff] %v2156
  %2217 = vst [vmem:[#allocation2 + $0xd28] sm:$0xff] %v2157
  %2218 = vst [vmem:[#allocation2 + $0xd70] sm:$0xff] %v2158
  %2219 = vst [vmem:[#allocation2 + $0xdb8] sm:$0xff] %v2159
  %2220 = vst [vmem:[#allocation2 + $0xe00] sm:$0xff] %v2160
  %2221 = vst [vmem:[#allocation2 + $0xe48] sm:$0xff] %v2161
  %2222 = vst [vmem:[#allocation2 + $0xe90] sm:$0xff] %v2162
  %2223 = vst [vmem:[#allocation2 + $0xed8] sm:$0xff] %v2163
  %2224 = vst [vmem:[#allocation2 + $0xf20] sm:$0xff] %v2164
  %2225 = vst [vmem:[#allocation2 + $0xf68] sm:$0xff] %v2165
  %2226 = vst [vmem:[#allocation2 + $0xfb0] sm:$0xff] %v2166
  %2227 = vst [vmem:[#allocation2 + $0xff8] sm:$0xff] %v2167
  %2228 = vst [vmem:[#allocation2 + $0x1040] sm:$0xff] %v2168
  %2229 = vst [vmem:[#allocation2 + $0x1088] sm:$0xff] %v2169
  %2230 = vst [vmem:[#allocation2 + $0x10d0] sm:$0xff] %v2170
  %2231 = vst [vmem:[#allocation2 + $0x1118] sm:$0xff] %v2171
  %2232 = vst [vmem:[#allocation2 + $0x1160] sm:$0xff] %v2172
  %v2233 = vld [vmem:[%s1782 + $0x1] sm:$0xff]
  %v2234 = vld [vmem:[%s1782 + $0x9] sm:$0x7f]
  %v2235 = vld [vmem:[%s1782 + $0x11] sm:$0xff]
  %v2236 = vld [vmem:[%s1782 + $0x19] sm:$0x7f]
  %v2237 = vld [vmem:[%s1782 + $0x21] sm:$0xff]
  %v2238 = vld [vmem:[%s1782 + $0x29] sm:$0x7f]
  %v2239 = vld [vmem:[%s1782 + $0x31] sm:$0xff]
  %v2240 = vld [vmem:[%s1782 + $0x39] sm:$0x7f]
  %v2241 = vld [vmem:[%s1782 + $0x41] sm:$0xff]
  %v2242 = vld [vmem:[%s1782 + $0x49] sm:$0x7f]
  %v2243 = vld [vmem:[%s1782 + $0x51] sm:$0xff]
  %v2244 = vld [vmem:[%s1782 + $0x59] sm:$0x7f]
  %v2245 = vld [vmem:[%s1782 + $0x61] sm:$0xff]
  %v2246 = vld [vmem:[%s1782 + $0x69] sm:$0x7f]
  %v2247 = vld [vmem:[%s1782 + $0x71] sm:$0xff]
  %v2248 = vld [vmem:[%s1782 + $0x79] sm:$0x7f]
  %v2249 = vld [vmem:[%s1782 + $0x81] sm:$0xff]
  %v2250 = vld [vmem:[%s1782 + $0x89] sm:$0x7f]
  %v2251 = vld [vmem:[%s1782 + $0x91] sm:$0xff]
  %v2252 = vld [vmem:[%s1782 + $0x99] sm:$0x7f]
  %v2253 = vld [vmem:[%s1782 + $0xa1] sm:$0xff]
  %v2254 = vld [vmem:[%s1782 + $0xa9] sm:$0x7f]
  %v2255 = vld [vmem:[%s1782 + $0xb1] sm:$0xff]
  %v2256 = vld [vmem:[%s1782 + $0xb9] sm:$0x7f]
  %v2257 = vld [vmem:[%s1782 + $0xc1] sm:$0xff]
  %v2258 = vld [vmem:[%s1782 + $0xc9] sm:$0x7f]
  %v2259 = vld [vmem:[%s1782 + $0xd1] sm:$0xff]
  %v2260 = vld [vmem:[%s1782 + $0xd9] sm:$0x7f]
  %v2261 = vld [vmem:[%s1782 + $0xe1] sm:$0xff]
  %v2262 = vld [vmem:[%s1782 + $0xe9] sm:$0x7f]
  %v2263 = vld [vmem:[%s1782 + $0x101] sm:$0xff]
  %v2264 = vld [vmem:[%s1782 + $0x109] sm:$0x7f]
  %v2265 = vld [vmem:[%s1782 + $0x111] sm:$0xff]
  %v2266 = vld [vmem:[%s1782 + $0x119] sm:$0x7f]
  %v2267 = vld [vmem:[%s1782 + $0x121] sm:$0xff]
  %v2268 = vld [vmem:[%s1782 + $0x129] sm:$0x7f]
  %v2269 = vld [vmem:[%s1782 + $0x131] sm:$0xff]
  %v2270 = vld [vmem:[%s1782 + $0x139] sm:$0x7f]
  %v2271 = vld [vmem:[%s1782 + $0x141] sm:$0xff]
  %v2272 = vld [vmem:[%s1782 + $0x149] sm:$0x7f]
  %v2273 = vld [vmem:[%s1782 + $0x151] sm:$0xff]
  %v2274 = vld [vmem:[%s1782 + $0x159] sm:$0x7f]
  %v2275 = vld [vmem:[%s1782 + $0x161] sm:$0xff]
  %v2276 = vld [vmem:[%s1782 + $0x169] sm:$0x7f]
  %v2277 = vld [vmem:[%s1782 + $0x171] sm:$0xff]
  %v2278 = vld [vmem:[%s1782 + $0x179] sm:$0x7f]
  %v2279 = vld [vmem:[%s1782 + $0x181] sm:$0xff]
  %v2280 = vld [vmem:[%s1782 + $0x189] sm:$0x7f]
  %v2281 = vld [vmem:[%s1782 + $0x191] sm:$0xff]
  %v2282 = vld [vmem:[%s1782 + $0x199] sm:$0x7f]
  %v2283 = vld [vmem:[%s1782 + $0x1a1] sm:$0xff]
  %v2284 = vld [vmem:[%s1782 + $0x1a9] sm:$0x7f]
  %v2285 = vld [vmem:[%s1782 + $0x1b1] sm:$0xff]
  %v2286 = vld [vmem:[%s1782 + $0x1b9] sm:$0x7f]
  %v2287 = vld [vmem:[%s1782 + $0x1c1] sm:$0xff]
  %v2288 = vld [vmem:[%s1782 + $0x1c9] sm:$0x7f]
  %v2289 = vld [vmem:[%s1782 + $0x1d1] sm:$0xff]
  %v2290 = vld [vmem:[%s1782 + $0x1d9] sm:$0x7f]
  %v2291 = vld [vmem:[%s1782 + $0x1e1] sm:$0xff]
  %v2292 = vld [vmem:[%s1782 + $0x1e9] sm:$0x7f]
  %2293 = vst [vmem:[#allocation2 + $0x40] sm:$0xff] %v2233
  %2294 = vst [vmem:[#allocation2 + $0x88] sm:$0x7f] %v2234
  %2295 = vst [vmem:[#allocation2 + $0xd0] sm:$0xff] %v2235
  %2296 = vst [vmem:[#allocation2 + $0x118] sm:$0x7f] %v2236
  %2297 = vst [vmem:[#allocation2 + $0x160] sm:$0xff] %v2237
  %2298 = vst [vmem:[#allocation2 + $0x1a8] sm:$0x7f] %v2238
  %2299 = vst [vmem:[#allocation2 + $0x1f0] sm:$0xff] %v2239
  %2300 = vst [vmem:[#allocation2 + $0x238] sm:$0x7f] %v2240
  %2301 = vst [vmem:[#allocation2 + $0x280] sm:$0xff] %v2241
  %2302 = vst [vmem:[#allocation2 + $0x2c8] sm:$0x7f] %v2242
  %2303 = vst [vmem:[#allocation2 + $0x310] sm:$0xff] %v2243
  %2304 = vst [vmem:[#allocation2 + $0x358] sm:$0x7f] %v2244
  %2305 = vst [vmem:[#allocation2 + $0x3a0] sm:$0xff] %v2245
  %2306 = vst [vmem:[#allocation2 + $0x3e8] sm:$0x7f] %v2246
  %2307 = vst [vmem:[#allocation2 + $0x430] sm:$0xff] %v2247
  %2308 = vst [vmem:[#allocation2 + $0x478] sm:$0x7f] %v2248
  %2309 = vst [vmem:[#allocation2 + $0x4c0] sm:$0xff] %v2249
  %2310 = vst [vmem:[#allocation2 + $0x508] sm:$0x7f] %v2250
  %2311 = vst [vmem:[#allocation2 + $0x550] sm:$0xff] %v2251
  %2312 = vst [vmem:[#allocation2 + $0x598] sm:$0x7f] %v2252
  %2313 = vst [vmem:[#allocation2 + $0x5e0] sm:$0xff] %v2253
  %2314 = vst [vmem:[#allocation2 + $0x628] sm:$0x7f] %v2254
  %2315 = vst [vmem:[#allocation2 + $0x670] sm:$0xff] %v2255
  %2316 = vst [vmem:[#allocation2 + $0x6b8] sm:$0x7f] %v2256
  %2317 = vst [vmem:[#allocation2 + $0x700] sm:$0xff] %v2257
  %2318 = vst [vmem:[#allocation2 + $0x748] sm:$0x7f] %v2258
  %2319 = vst [vmem:[#allocation2 + $0x790] sm:$0xff] %v2259
  %2320 = vst [vmem:[#allocation2 + $0x7d8] sm:$0x7f] %v2260
  %2321 = vst [vmem:[#allocation2 + $0x820] sm:$0xff] %v2261
  %2322 = vst [vmem:[#allocation2 + $0x868] sm:$0x7f] %v2262
  %2323 = vst [vmem:[#allocation2 + $0x940] sm:$0xff] %v2263
  %2324 = vst [vmem:[#allocation2 + $0x988] sm:$0x7f] %v2264
  %2325 = vst [vmem:[#allocation2 + $0x9d0] sm:$0xff] %v2265
  %2326 = vst [vmem:[#allocation2 + $0xa18] sm:$0x7f] %v2266
  %2327 = vst [vmem:[#allocation2 + $0xa60] sm:$0xff] %v2267
  %2328 = vst [vmem:[#allocation2 + $0xaa8] sm:$0x7f] %v2268
  %2329 = vst [vmem:[#allocation2 + $0xaf0] sm:$0xff] %v2269
  %2330 = vst [vmem:[#allocation2 + $0xb38] sm:$0x7f] %v2270
  %2331 = vst [vmem:[#allocation2 + $0xb80] sm:$0xff] %v2271
  %2332 = vst [vmem:[#allocation2 + $0xbc8] sm:$0x7f] %v2272
  %2333 = vst [vmem:[#allocation2 + $0xc10] sm:$0xff] %v2273
  %2334 = vst [vmem:[#allocation2 + $0xc58] sm:$0x7f] %v2274
  %2335 = vst [vmem:[#allocation2 + $0xca0] sm:$0xff] %v2275
  %2336 = vst [vmem:[#allocation2 + $0xce8] sm:$0x7f] %v2276
  %2337 = vst [vmem:[#allocation2 + $0xd30] sm:$0xff] %v2277
  %2338 = vst [vmem:[#allocation2 + $0xd78] sm:$0x7f] %v2278
  %2339 = vst [vmem:[#allocation2 + $0xdc0] sm:$0xff] %v2279
  %2340 = vst [vmem:[#allocation2 + $0xe08] sm:$0x7f] %v2280
  %2341 = vst [vmem:[#allocation2 + $0xe50] sm:$0xff] %v2281
  %2342 = vst [vmem:[#allocation2 + $0xe98] sm:$0x7f] %v2282
  %2343 = vst [vmem:[#allocation2 + $0xee0] sm:$0xff] %v2283
  %2344 = vst [vmem:[#allocation2 + $0xf28] sm:$0x7f] %v2284
  %2345 = vst [vmem:[#allocation2 + $0xf70] sm:$0xff] %v2285
  %2346 = vst [vmem:[#allocation2 + $0xfb8] sm:$0x7f] %v2286
  %2347 = vst [vmem:[#allocation2 + $0x1000] sm:$0xff] %v2287
  %2348 = vst [vmem:[#allocation2 + $0x1048] sm:$0x7f] %v2288
  %2349 = vst [vmem:[#allocation2 + $0x1090] sm:$0xff] %v2289
  %2350 = vst [vmem:[#allocation2 + $0x10d8] sm:$0x7f] %v2290
  %2351 = vst [vmem:[#allocation2 + $0x1120] sm:$0xff] %v2291
  %2352 = vst [vmem:[#allocation2 + $0x1168] sm:$0x7f] %v2292
  %v2353 = vld [vmem:[%s1] sm:$0xff]
  %v2354 = vld [vmem:[%s1 + $0x8] sm:$0xff]
  %v2355 = vld [vmem:[%s1 + $0x10] sm:$0xff]
  %v2356 = vld [vmem:[%s1 + $0x18] sm:$0xff]
  %v2357 = vld [vmem:[%s1 + $0x20] sm:$0xff]
  %v2358 = vld [vmem:[%s1 + $0x28] sm:$0xff]
  %v2359 = vld [vmem:[%s1 + $0x30] sm:$0xff]
  %v2360 = vld [vmem:[%s1 + $0x38] sm:$0xff]
  %v2361 = vld [vmem:[%s1 + $0x40] sm:$0xff]
  %v2362 = vld [vmem:[%s1 + $0x48] sm:$0xff]
  %v2363 = vld [vmem:[%s1 + $0x50] sm:$0xff]
  %v2364 = vld [vmem:[%s1 + $0x58] sm:$0xff]
  %v2365 = vld [vmem:[%s1 + $0x60] sm:$0xff]
  %v2366 = vld [vmem:[%s1 + $0x68] sm:$0xff]
  %v2367 = vld [vmem:[%s1 + $0x70] sm:$0xff]
  %v2368 = vld [vmem:[%s1 + $0x78] sm:$0xff]
  %v2369 = vld [vmem:[%s1 + $0x80] sm:$0xff]
  %v2370 = vld [vmem:[%s1 + $0x88] sm:$0xff]
  %v2371 = vld [vmem:[%s1 + $0x90] sm:$0xff]
  %v2372 = vld [vmem:[%s1 + $0x98] sm:$0xff]
  %v2373 = vld [vmem:[%s1 + $0xa0] sm:$0xff]
  %v2374 = vld [vmem:[%s1 + $0xa8] sm:$0xff]
  %v2375 = vld [vmem:[%s1 + $0xb0] sm:$0xff]
  %v2376 = vld [vmem:[%s1 + $0xb8] sm:$0xff]
  %v2377 = vld [vmem:[%s1 + $0xc0] sm:$0xff]
  %v2378 = vld [vmem:[%s1 + $0xc8] sm:$0xff]
  %v2379 = vld [vmem:[%s1 + $0xd0] sm:$0xff]
  %v2380 = vld [vmem:[%s1 + $0xd8] sm:$0xff]
  %v2381 = vld [vmem:[%s1 + $0xe0] sm:$0xff]
  %v2382 = vld [vmem:[%s1 + $0xe8] sm:$0xff]
  %v2383 = vld [vmem:[%s1 + $0xf0] sm:$0xff]
  %v2384 = vld [vmem:[%s1 + $0xf8] sm:$0xff]
  %v2385 = vld [vmem:[%s1 + $0x100] sm:$0xff]
  %v2386 = vld [vmem:[%s1 + $0x108] sm:$0xff]
  %v2387 = vld [vmem:[%s1 + $0x110] sm:$0xff]
  %v2388 = vld [vmem:[%s1 + $0x118] sm:$0xff]
  %v2389 = vld [vmem:[%s1 + $0x120] sm:$0xff]
  %v2390 = vld [vmem:[%s1 + $0x128] sm:$0xff]
  %v2391 = vld [vmem:[%s1 + $0x130] sm:$0xff]
  %v2392 = vld [vmem:[%s1 + $0x138] sm:$0xff]
  %v2393 = vld [vmem:[%s1 + $0x140] sm:$0xff]
  %v2394 = vld [vmem:[%s1 + $0x148] sm:$0xff]
  %v2395 = vld [vmem:[%s1 + $0x150] sm:$0xff]
  %v2396 = vld [vmem:[%s1 + $0x158] sm:$0xff]
  %v2397 = vld [vmem:[%s1 + $0x160] sm:$0xff]
  %v2398 = vld [vmem:[%s1 + $0x168] sm:$0xff]
  %v2399 = vld [vmem:[%s1 + $0x170] sm:$0xff]
  %v2400 = vld [vmem:[%s1 + $0x178] sm:$0xff]
  %v2401 = vld [vmem:[%s1 + $0x180] sm:$0xff]
  %v2402 = vld [vmem:[%s1 + $0x188] sm:$0xff]
  %v2403 = vld [vmem:[%s1 + $0x190] sm:$0xff]
  %v2404 = vld [vmem:[%s1 + $0x198] sm:$0xff]
  %v2405 = vld [vmem:[%s1 + $0x1a0] sm:$0xff]
  %v2406 = vld [vmem:[%s1 + $0x1a8] sm:$0xff]
  %v2407 = vld [vmem:[%s1 + $0x1b0] sm:$0xff]
  %v2408 = vld [vmem:[%s1 + $0x1b8] sm:$0xff]
  %v2409 = vld [vmem:[%s1 + $0x1c0] sm:$0xff]
  %v2410 = vld [vmem:[%s1 + $0x1c8] sm:$0xff]
  %v2411 = vld [vmem:[%s1 + $0x1d0] sm:$0xff]
  %v2412 = vld [vmem:[%s1 + $0x1d8] sm:$0xff]
  %v2413 = vld [vmem:[%s1 + $0x1e0] sm:$0xff]
  %v2414 = vld [vmem:[%s1 + $0x1e8] sm:$0xff]
  %v2415 = vld [vmem:[%s1 + $0x1f0] sm:$0xff]
  %v2416 = vld [vmem:[%s1 + $0x1f8] sm:$0xff]
  %v2417 = vld [vmem:[%s1 + $0x200] sm:$0xff]
  %v2418 = vld [vmem:[%s1 + $0x208] sm:$0xff]
  %v2419 = vld [vmem:[%s1 + $0x210] sm:$0xff]
  %v2420 = vld [vmem:[%s1 + $0x218] sm:$0xff]
  %v2421 = vld [vmem:[%s1 + $0x220] sm:$0xff]
  %v2422 = vld [vmem:[%s1 + $0x228] sm:$0xff]
  %v2423 = vld [vmem:[%s1 + $0x230] sm:$0xff]
  %v2424 = vld [vmem:[%s1 + $0x238] sm:$0xff]
  %v2425 = vld [vmem:[%s1 + $0x240] sm:$0xff]
  %v2426 = vld [vmem:[%s1 + $0x248] sm:$0xff]
  %v2427 = vld [vmem:[%s1 + $0x250] sm:$0xff]
  %v2428 = vld [vmem:[%s1 + $0x258] sm:$0xff]
  %v2429 = vld [vmem:[%s1 + $0x260] sm:$0xff]
  %v2430 = vld [vmem:[%s1 + $0x268] sm:$0xff]
  %v2431 = vld [vmem:[%s1 + $0x270] sm:$0xff]
  %v2432 = vld [vmem:[%s1 + $0x278] sm:$0xff]
  %v2433 = vld [vmem:[%s1 + $0x280] sm:$0xff]
  %v2434 = vld [vmem:[%s1 + $0x288] sm:$0xff]
  %v2435 = vld [vmem:[%s1 + $0x290] sm:$0xff]
  %v2436 = vld [vmem:[%s1 + $0x298] sm:$0xff]
  %v2437 = vld [vmem:[%s1 + $0x2a0] sm:$0xff]
  %v2438 = vld [vmem:[%s1 + $0x2a8] sm:$0xff]
  %v2439 = vld [vmem:[%s1 + $0x2b0] sm:$0xff]
  %v2440 = vld [vmem:[%s1 + $0x2b8] sm:$0xff]
  %v2441 = vld [vmem:[%s1 + $0x2c0] sm:$0xff]
  %v2442 = vld [vmem:[%s1 + $0x2c8] sm:$0xff]
  %v2443 = vld [vmem:[%s1 + $0x2d0] sm:$0xff]
  %v2444 = vld [vmem:[%s1 + $0x2d8] sm:$0xff]
  %v2445 = vld [vmem:[%s1 + $0x2e0] sm:$0xff]
  %v2446 = vld [vmem:[%s1 + $0x2e8] sm:$0xff]
  %v2447 = vld [vmem:[%s1 + $0x2f0] sm:$0xff]
  %v2448 = vld [vmem:[%s1 + $0x2f8] sm:$0xff]
  %v2449 = vld [vmem:[%s1 + $0x300] sm:$0xff]
  %v2450 = vld [vmem:[%s1 + $0x308] sm:$0xff]
  %v2451 = vld [vmem:[%s1 + $0x310] sm:$0xff]
  %v2452 = vld [vmem:[%s1 + $0x318] sm:$0xff]
  %v2453 = vld [vmem:[%s1 + $0x320] sm:$0xff]
  %v2454 = vld [vmem:[%s1 + $0x328] sm:$0xff]
  %v2455 = vld [vmem:[%s1 + $0x330] sm:$0xff]
  %v2456 = vld [vmem:[%s1 + $0x338] sm:$0xff]
  %v2457 = vld [vmem:[%s1 + $0x340] sm:$0xff]
  %v2458 = vld [vmem:[%s1 + $0x348] sm:$0xff]
  %v2459 = vld [vmem:[%s1 + $0x350] sm:$0xff]
  %v2460 = vld [vmem:[%s1 + $0x358] sm:$0xff]
  %v2461 = vld [vmem:[%s1 + $0x360] sm:$0xff]
  %v2462 = vld [vmem:[%s1 + $0x368] sm:$0xff]
  %v2463 = vld [vmem:[%s1 + $0x370] sm:$0xff]
  %v2464 = vld [vmem:[%s1 + $0x378] sm:$0xff]
  %v2465 = vld [vmem:[%s1 + $0x380] sm:$0xff]
  %v2466 = vld [vmem:[%s1 + $0x388] sm:$0xff]
  %v2467 = vld [vmem:[%s1 + $0x390] sm:$0xff]
  %v2468 = vld [vmem:[%s1 + $0x398] sm:$0xff]
  %v2469 = vld [vmem:[%s1 + $0x3a0] sm:$0xff]
  %v2470 = vld [vmem:[%s1 + $0x3a8] sm:$0xff]
  %v2471 = vld [vmem:[%s1 + $0x3b0] sm:$0xff]
  %v2472 = vld [vmem:[%s1 + $0x3b8] sm:$0xff]
  %v2473 = vld [vmem:[%s1 + $0x3c0] sm:$0xff]
  %v2474 = vld [vmem:[%s1 + $0x3c8] sm:$0xff]
  %v2475 = vld [vmem:[%s1 + $0x3d0] sm:$0xff]
  %v2476 = vld [vmem:[%s1 + $0x3d8] sm:$0xff]
  %v2477 = vld [vmem:[%s1 + $0x3e0] sm:$0xff]
  %v2478 = vld [vmem:[%s1 + $0x3e8] sm:$0xff]
  %v2479 = vld [vmem:[%s1 + $0x3f0] sm:$0xff]
  %v2480 = vld [vmem:[%s1 + $0x3f8] sm:$0xff]
  %v2481 = vld [vmem:[%s1 + $0x400] sm:$0xff]
  %v2482 = vld [vmem:[%s1 + $0x408] sm:$0xff]
  %v2483 = vld [vmem:[%s1 + $0x410] sm:$0xff]
  %v2484 = vld [vmem:[%s1 + $0x418] sm:$0xff]
  %v2485 = vld [vmem:[%s1 + $0x420] sm:$0xff]
  %v2486 = vld [vmem:[%s1 + $0x428] sm:$0xff]
  %v2487 = vld [vmem:[%s1 + $0x430] sm:$0xff]
  %v2488 = vld [vmem:[%s1 + $0x438] sm:$0xff]
  %v2489 = vld [vmem:[%s1 + $0x440] sm:$0xff]
  %v2490 = vld [vmem:[%s1 + $0x448] sm:$0xff]
  %v2491 = vld [vmem:[%s1 + $0x450] sm:$0xff]
  %v2492 = vld [vmem:[%s1 + $0x458] sm:$0xff]
  %v2493 = vld [vmem:[%s1 + $0x460] sm:$0xff]
  %v2494 = vld [vmem:[%s1 + $0x468] sm:$0xff]
  %v2495 = vld [vmem:[%s1 + $0x470] sm:$0xff]
  %v2496 = vld [vmem:[%s1 + $0x478] sm:$0xff]
  %v2497 = vld [vmem:[#allocation2] sm:$0xff]
  %v2498 = vld [vmem:[#allocation2 + $0x8] sm:$0xff]
  %v2499 = vld [vmem:[#allocation2 + $0x10] sm:$0xff]
  %v2500 = vld [vmem:[#allocation2 + $0x18] sm:$0xff]
  %v2501 = vld [vmem:[#allocation2 + $0x20] sm:$0xff]
  %v2502 = vld [vmem:[#allocation2 + $0x28] sm:$0xff]
  %v2503 = vld [vmem:[#allocation2 + $0x30] sm:$0xff]
  %v2504 = vld [vmem:[#allocation2 + $0x38] sm:$0xff]
  %v2505 = vld [vmem:[#allocation2 + $0x40] sm:$0xff]
  %v2506 = vld [vmem:[#allocation2 + $0x48] sm:$0xff]
  %v2507 = vld [vmem:[#allocation2 + $0x50] sm:$0xff]
  %v2508 = vld [vmem:[#allocation2 + $0x58] sm:$0xff]
  %v2509 = vld [vmem:[#allocation2 + $0x60] sm:$0xff]
  %v2510 = vld [vmem:[#allocation2 + $0x68] sm:$0xff]
  %v2511 = vld [vmem:[#allocation2 + $0x70] sm:$0xff]
  %v2512 = vld [vmem:[#allocation2 + $0x78] sm:$0xff]
  %v2513 = vld [vmem:[#allocation2 + $0x80] sm:$0xff]
  %v2514 = vld [vmem:[#allocation2 + $0x88] sm:$0xff]
  %v2515 = vld [vmem:[#allocation2 + $0x90] sm:$0xff]
  %v2516 = vld [vmem:[#allocation2 + $0x98] sm:$0xff]
  %v2517 = vld [vmem:[#allocation2 + $0xa0] sm:$0xff]
  %v2518 = vld [vmem:[#allocation2 + $0xa8] sm:$0xff]
  %v2519 = vld [vmem:[#allocation2 + $0xb0] sm:$0xff]
  %v2520 = vld [vmem:[#allocation2 + $0xb8] sm:$0xff]
  %v2521 = vld [vmem:[#allocation2 + $0xc0] sm:$0xff]
  %v2522 = vld [vmem:[#allocation2 + $0xc8] sm:$0xff]
  %v2523 = vld [vmem:[#allocation2 + $0xd0] sm:$0xff]
  %v2524 = vld [vmem:[#allocation2 + $0xd8] sm:$0xff]
  %v2525 = vld [vmem:[#allocation2 + $0xe0] sm:$0xff]
  %v2526 = vld [vmem:[#allocation2 + $0xe8] sm:$0xff]
  %v2527 = vld [vmem:[#allocation2 + $0xf0] sm:$0xff]
  %v2528 = vld [vmem:[#allocation2 + $0xf8] sm:$0xff]
  %v2529 = vld [vmem:[#allocation2 + $0x100] sm:$0xff]
  %v2530 = vld [vmem:[#allocation2 + $0x108] sm:$0xff]
  %v2531 = vld [vmem:[#allocation2 + $0x110] sm:$0xff]
  %v2532 = vld [vmem:[#allocation2 + $0x118] sm:$0xff]
  %v2533 = vld [vmem:[#allocation2 + $0x120] sm:$0xff]
  %v2534 = vld [vmem:[#allocation2 + $0x128] sm:$0xff]
  %v2535 = vld [vmem:[#allocation2 + $0x130] sm:$0xff]
  %v2536 = vld [vmem:[#allocation2 + $0x138] sm:$0xff]
  %v2537 = vld [vmem:[#allocation2 + $0x140] sm:$0xff]
  %v2538 = vld [vmem:[#allocation2 + $0x148] sm:$0xff]
  %v2539 = vld [vmem:[#allocation2 + $0x150] sm:$0xff]
  %v2540 = vld [vmem:[#allocation2 + $0x158] sm:$0xff]
  %v2541 = vld [vmem:[#allocation2 + $0x160] sm:$0xff]
  %v2542 = vld [vmem:[#allocation2 + $0x168] sm:$0xff]
  %v2543 = vld [vmem:[#allocation2 + $0x170] sm:$0xff]
  %v2544 = vld [vmem:[#allocation2 + $0x178] sm:$0xff]
  %v2545 = vld [vmem:[#allocation2 + $0x180] sm:$0xff]
  %v2546 = vld [vmem:[#allocation2 + $0x188] sm:$0xff]
  %v2547 = vld [vmem:[#allocation2 + $0x190] sm:$0xff]
  %v2548 = vld [vmem:[#allocation2 + $0x198] sm:$0xff]
  %v2549 = vld [vmem:[#allocation2 + $0x1a0] sm:$0xff]
  %v2550 = vld [vmem:[#allocation2 + $0x1a8] sm:$0xff]
  %v2551 = vld [vmem:[#allocation2 + $0x1b0] sm:$0xff]
  %v2552 = vld [vmem:[#allocation2 + $0x1b8] sm:$0xff]
  %v2553 = vld [vmem:[#allocation2 + $0x1c0] sm:$0xff]
  %v2554 = vld [vmem:[#allocation2 + $0x1c8] sm:$0xff]
  %v2555 = vld [vmem:[#allocation2 + $0x1d0] sm:$0xff]
  %v2556 = vld [vmem:[#allocation2 + $0x1d8] sm:$0xff]
  %v2557 = vld [vmem:[#allocation2 + $0x1e0] sm:$0xff]
  %v2558 = vld [vmem:[#allocation2 + $0x1e8] sm:$0xff]
  %v2559 = vld [vmem:[#allocation2 + $0x1f0] sm:$0xff]
  %v2560 = vld [vmem:[#allocation2 + $0x1f8] sm:$0xff]
  %v2561 = vld [vmem:[#allocation2 + $0x200] sm:$0xff]
  %v2562 = vld [vmem:[#allocation2 + $0x208] sm:$0xff]
  %v2563 = vld [vmem:[#allocation2 + $0x210] sm:$0xff]
  %v2564 = vld [vmem:[#allocation2 + $0x218] sm:$0xff]
  %v2565 = vld [vmem:[#allocation2 + $0x220] sm:$0xff]
  %v2566 = vld [vmem:[#allocation2 + $0x228] sm:$0xff]
  %v2567 = vld [vmem:[#allocation2 + $0x230] sm:$0xff]
  %v2568 = vld [vmem:[#allocation2 + $0x238] sm:$0xff]
  %v2569 = vld [vmem:[#allocation2 + $0x240] sm:$0xff]
  %v2570 = vld [vmem:[#allocation2 + $0x248] sm:$0xff]
  %v2571 = vld [vmem:[#allocation2 + $0x250] sm:$0xff]
  %v2572 = vld [vmem:[#allocation2 + $0x258] sm:$0xff]
  %v2573 = vld [vmem:[#allocation2 + $0x260] sm:$0xff]
  %v2574 = vld [vmem:[#allocation2 + $0x268] sm:$0xff]
  %v2575 = vld [vmem:[#allocation2 + $0x270] sm:$0xff]
  %v2576 = vld [vmem:[#allocation2 + $0x278] sm:$0xff]
  %v2577 = vld [vmem:[#allocation2 + $0x280] sm:$0xff]
  %v2578 = vld [vmem:[#allocation2 + $0x288] sm:$0xff]
  %v2579 = vld [vmem:[#allocation2 + $0x290] sm:$0xff]
  %v2580 = vld [vmem:[#allocation2 + $0x298] sm:$0xff]
  %v2581 = vld [vmem:[#allocation2 + $0x2a0] sm:$0xff]
  %v2582 = vld [vmem:[#allocation2 + $0x2a8] sm:$0xff]
  %v2583 = vld [vmem:[#allocation2 + $0x2b0] sm:$0xff]
  %v2584 = vld [vmem:[#allocation2 + $0x2b8] sm:$0xff]
  %v2585 = vld [vmem:[#allocation2 + $0x2c0] sm:$0xff]
  %v2586 = vld [vmem:[#allocation2 + $0x2c8] sm:$0xff]
  %v2587 = vld [vmem:[#allocation2 + $0x2d0] sm:$0xff]
  %v2588 = vld [vmem:[#allocation2 + $0x2d8] sm:$0xff]
  %v2589 = vld [vmem:[#allocation2 + $0x2e0] sm:$0xff]
  %v2590 = vld [vmem:[#allocation2 + $0x2e8] sm:$0xff]
  %v2591 = vld [vmem:[#allocation2 + $0x2f0] sm:$0xff]
  %v2592 = vld [vmem:[#allocation2 + $0x2f8] sm:$0xff]
  %v2593 = vld [vmem:[#allocation2 + $0x300] sm:$0xff]
  %v2594 = vld [vmem:[#allocation2 + $0x308] sm:$0xff]
  %v2595 = vld [vmem:[#allocation2 + $0x310] sm:$0xff]
  %v2596 = vld [vmem:[#allocation2 + $0x318] sm:$0xff]
  %v2597 = vld [vmem:[#allocation2 + $0x320] sm:$0xff]
  %v2598 = vld [vmem:[#allocation2 + $0x328] sm:$0xff]
  %v2599 = vld [vmem:[#allocation2 + $0x330] sm:$0xff]
  %v2600 = vld [vmem:[#allocation2 + $0x338] sm:$0xff]
  %v2601 = vld [vmem:[#allocation2 + $0x340] sm:$0xff]
  %v2602 = vld [vmem:[#allocation2 + $0x348] sm:$0xff]
  %v2603 = vld [vmem:[#allocation2 + $0x350] sm:$0xff]
  %v2604 = vld [vmem:[#allocation2 + $0x358] sm:$0xff]
  %v2605 = vld [vmem:[#allocation2 + $0x360] sm:$0xff]
  %v2606 = vld [vmem:[#allocation2 + $0x368] sm:$0xff]
  %v2607 = vld [vmem:[#allocation2 + $0x370] sm:$0xff]
  %v2608 = vld [vmem:[#allocation2 + $0x378] sm:$0xff]
  %v2609 = vld [vmem:[#allocation2 + $0x380] sm:$0xff]
  %v2610 = vld [vmem:[#allocation2 + $0x388] sm:$0xff]
  %v2611 = vld [vmem:[#allocation2 + $0x390] sm:$0xff]
  %v2612 = vld [vmem:[#allocation2 + $0x398] sm:$0xff]
  %v2613 = vld [vmem:[#allocation2 + $0x3a0] sm:$0xff]
  %v2614 = vld [vmem:[#allocation2 + $0x3a8] sm:$0xff]
  %v2615 = vld [vmem:[#allocation2 + $0x3b0] sm:$0xff]
  %v2616 = vld [vmem:[#allocation2 + $0x3b8] sm:$0xff]
  %v2617 = vld [vmem:[#allocation2 + $0x3c0] sm:$0xff]
  %v2618 = vld [vmem:[#allocation2 + $0x3c8] sm:$0xff]
  %v2619 = vld [vmem:[#allocation2 + $0x3d0] sm:$0xff]
  %v2620 = vld [vmem:[#allocation2 + $0x3d8] sm:$0xff]
  %v2621 = vld [vmem:[#allocation2 + $0x3e0] sm:$0xff]
  %v2622 = vld [vmem:[#allocation2 + $0x3e8] sm:$0xff]
  %v2623 = vld [vmem:[#allocation2 + $0x3f0] sm:$0xff]
  %v2624 = vld [vmem:[#allocation2 + $0x3f8] sm:$0xff]
  %v2625 = vld [vmem:[#allocation2 + $0x400] sm:$0xff]
  %v2626 = vld [vmem:[#allocation2 + $0x408] sm:$0xff]
  %v2627 = vld [vmem:[#allocation2 + $0x410] sm:$0xff]
  %v2628 = vld [vmem:[#allocation2 + $0x418] sm:$0xff]
  %v2629 = vld [vmem:[#allocation2 + $0x420] sm:$0xff]
  %v2630 = vld [vmem:[#allocation2 + $0x428] sm:$0xff]
  %v2631 = vld [vmem:[#allocation2 + $0x430] sm:$0xff]
  %v2632 = vld [vmem:[#allocation2 + $0x438] sm:$0xff]
  %v2633 = vld [vmem:[#allocation2 + $0x440] sm:$0xff]
  %v2634 = vld [vmem:[#allocation2 + $0x448] sm:$0xff]
  %v2635 = vld [vmem:[#allocation2 + $0x450] sm:$0xff]
  %v2636 = vld [vmem:[#allocation2 + $0x458] sm:$0xff]
  %v2637 = vld [vmem:[#allocation2 + $0x460] sm:$0xff]
  %v2638 = vld [vmem:[#allocation2 + $0x468] sm:$0xff]
  %v2639 = vld [vmem:[#allocation2 + $0x470] sm:$0xff]
  %v2640 = vld [vmem:[#allocation2 + $0x478] sm:$0xff]
  %v2641 = vld [vmem:[#allocation2 + $0x480] sm:$0xff]
  %v2642 = vld [vmem:[#allocation2 + $0x488] sm:$0xff]
  %v2643 = vld [vmem:[#allocation2 + $0x490] sm:$0xff]
  %v2644 = vld [vmem:[#allocation2 + $0x498] sm:$0xff]
  %v2645 = vld [vmem:[#allocation2 + $0x4a0] sm:$0xff]
  %v2646 = vld [vmem:[#allocation2 + $0x4a8] sm:$0xff]
  %v2647 = vld [vmem:[#allocation2 + $0x4b0] sm:$0xff]
  %v2648 = vld [vmem:[#allocation2 + $0x4b8] sm:$0xff]
  %v2649 = vld [vmem:[#allocation2 + $0x4c0] sm:$0xff]
  %v2650 = vld [vmem:[#allocation2 + $0x4c8] sm:$0xff]
  %v2651 = vld [vmem:[#allocation2 + $0x4d0] sm:$0xff]
  %v2652 = vld [vmem:[#allocation2 + $0x4d8] sm:$0xff]
  %v2653 = vld [vmem:[#allocation2 + $0x4e0] sm:$0xff]
  %v2654 = vld [vmem:[#allocation2 + $0x4e8] sm:$0xff]
  %v2655 = vld [vmem:[#allocation2 + $0x4f0] sm:$0xff]
  %v2656 = vld [vmem:[#allocation2 + $0x4f8] sm:$0xff]
  %v2657 = vld [vmem:[#allocation2 + $0x500] sm:$0xff]
  %v2658 = vld [vmem:[#allocation2 + $0x508] sm:$0xff]
  %v2659 = vld [vmem:[#allocation2 + $0x510] sm:$0xff]
  %v2660 = vld [vmem:[#allocation2 + $0x518] sm:$0xff]
  %v2661 = vld [vmem:[#allocation2 + $0x520] sm:$0xff]
  %v2662 = vld [vmem:[#allocation2 + $0x528] sm:$0xff]
  %v2663 = vld [vmem:[#allocation2 + $0x530] sm:$0xff]
  %v2664 = vld [vmem:[#allocation2 + $0x538] sm:$0xff]
  %v2665 = vld [vmem:[#allocation2 + $0x540] sm:$0xff]
  %v2666 = vld [vmem:[#allocation2 + $0x548] sm:$0xff]
  %v2667 = vld [vmem:[#allocation2 + $0x550] sm:$0xff]
  %v2668 = vld [vmem:[#allocation2 + $0x558] sm:$0xff]
  %v2669 = vld [vmem:[#allocation2 + $0x560] sm:$0xff]
  %v2670 = vld [vmem:[#allocation2 + $0x568] sm:$0xff]
  %v2671 = vld [vmem:[#allocation2 + $0x570] sm:$0xff]
  %v2672 = vld [vmem:[#allocation2 + $0x578] sm:$0xff]
  %v2673 = vld [vmem:[#allocation2 + $0x580] sm:$0xff]
  %v2674 = vld [vmem:[#allocation2 + $0x588] sm:$0xff]
  %v2675 = vld [vmem:[#allocation2 + $0x590] sm:$0xff]
  %v2676 = vld [vmem:[#allocation2 + $0x598] sm:$0xff]
  %v2677 = vld [vmem:[#allocation2 + $0x5a0] sm:$0xff]
  %v2678 = vld [vmem:[#allocation2 + $0x5a8] sm:$0xff]
  %v2679 = vld [vmem:[#allocation2 + $0x5b0] sm:$0xff]
  %v2680 = vld [vmem:[#allocation2 + $0x5b8] sm:$0xff]
  %v2681 = vld [vmem:[#allocation2 + $0x5c0] sm:$0xff]
  %v2682 = vld [vmem:[#allocation2 + $0x5c8] sm:$0xff]
  %v2683 = vld [vmem:[#allocation2 + $0x5d0] sm:$0xff]
  %v2684 = vld [vmem:[#allocation2 + $0x5d8] sm:$0xff]
  %v2685 = vld [vmem:[#allocation2 + $0x5e0] sm:$0xff]
  %v2686 = vld [vmem:[#allocation2 + $0x5e8] sm:$0xff]
  %v2687 = vld [vmem:[#allocation2 + $0x5f0] sm:$0xff]
  %v2688 = vld [vmem:[#allocation2 + $0x5f8] sm:$0xff]
  %v2689 = vld [vmem:[#allocation2 + $0x600] sm:$0xff]
  %v2690 = vld [vmem:[#allocation2 + $0x608] sm:$0xff]
  %v2691 = vld [vmem:[#allocation2 + $0x610] sm:$0xff]
  %v2692 = vld [vmem:[#allocation2 + $0x618] sm:$0xff]
  %v2693 = vld [vmem:[#allocation2 + $0x620] sm:$0xff]
  %v2694 = vld [vmem:[#allocation2 + $0x628] sm:$0xff]
  %v2695 = vld [vmem:[#allocation2 + $0x630] sm:$0xff]
  %v2696 = vld [vmem:[#allocation2 + $0x638] sm:$0xff]
  %v2697 = vld [vmem:[#allocation2 + $0x640] sm:$0xff]
  %v2698 = vld [vmem:[#allocation2 + $0x648] sm:$0xff]
  %v2699 = vld [vmem:[#allocation2 + $0x650] sm:$0xff]
  %v2700 = vld [vmem:[#allocation2 + $0x658] sm:$0xff]
  %v2701 = vld [vmem:[#allocation2 + $0x660] sm:$0xff]
  %v2702 = vld [vmem:[#allocation2 + $0x668] sm:$0xff]
  %v2703 = vld [vmem:[#allocation2 + $0x670] sm:$0xff]
  %v2704 = vld [vmem:[#allocation2 + $0x678] sm:$0xff]
  %v2705 = vld [vmem:[#allocation2 + $0x680] sm:$0xff]
  %v2706 = vld [vmem:[#allocation2 + $0x688] sm:$0xff]
  %v2707 = vld [vmem:[#allocation2 + $0x690] sm:$0xff]
  %v2708 = vld [vmem:[#allocation2 + $0x698] sm:$0xff]
  %v2709 = vld [vmem:[#allocation2 + $0x6a0] sm:$0xff]
  %v2710 = vld [vmem:[#allocation2 + $0x6a8] sm:$0xff]
  %v2711 = vld [vmem:[#allocation2 + $0x6b0] sm:$0xff]
  %v2712 = vld [vmem:[#allocation2 + $0x6b8] sm:$0xff]
  %v2713 = vld [vmem:[#allocation2 + $0x6c0] sm:$0xff]
  %v2714 = vld [vmem:[#allocation2 + $0x6c8] sm:$0xff]
  %v2715 = vld [vmem:[#allocation2 + $0x6d0] sm:$0xff]
  %v2716 = vld [vmem:[#allocation2 + $0x6d8] sm:$0xff]
  %v2717 = vld [vmem:[#allocation2 + $0x6e0] sm:$0xff]
  %v2718 = vld [vmem:[#allocation2 + $0x6e8] sm:$0xff]
  %v2719 = vld [vmem:[#allocation2 + $0x6f0] sm:$0xff]
  %v2720 = vld [vmem:[#allocation2 + $0x6f8] sm:$0xff]
  %v2721 = vld [vmem:[#allocation2 + $0x700] sm:$0xff]
  %v2722 = vld [vmem:[#allocation2 + $0x708] sm:$0xff]
  %v2723 = vld [vmem:[#allocation2 + $0x710] sm:$0xff]
  %v2724 = vld [vmem:[#allocation2 + $0x718] sm:$0xff]
  %v2725 = vld [vmem:[#allocation2 + $0x720] sm:$0xff]
  %v2726 = vld [vmem:[#allocation2 + $0x728] sm:$0xff]
  %v2727 = vld [vmem:[#allocation2 + $0x730] sm:$0xff]
  %v2728 = vld [vmem:[#allocation2 + $0x738] sm:$0xff]
  %v2729 = vld [vmem:[#allocation2 + $0x740] sm:$0xff]
  %v2730 = vld [vmem:[#allocation2 + $0x748] sm:$0xff]
  %v2731 = vld [vmem:[#allocation2 + $0x750] sm:$0xff]
  %v2732 = vld [vmem:[#allocation2 + $0x758] sm:$0xff]
  %v2733 = vld [vmem:[#allocation2 + $0x760] sm:$0xff]
  %v2734 = vld [vmem:[#allocation2 + $0x768] sm:$0xff]
  %v2735 = vld [vmem:[#allocation2 + $0x770] sm:$0xff]
  %v2736 = vld [vmem:[#allocation2 + $0x778] sm:$0xff]
  %v2737 = vld [vmem:[#allocation2 + $0x780] sm:$0xff]
  %v2738 = vld [vmem:[#allocation2 + $0x788] sm:$0xff]
  %v2739 = vld [vmem:[#allocation2 + $0x790] sm:$0xff]
  %v2740 = vld [vmem:[#allocation2 + $0x798] sm:$0xff]
  %v2741 = vld [vmem:[#allocation2 + $0x7a0] sm:$0xff]
  %v2742 = vld [vmem:[#allocation2 + $0x7a8] sm:$0xff]
  %v2743 = vld [vmem:[#allocation2 + $0x7b0] sm:$0xff]
  %v2744 = vld [vmem:[#allocation2 + $0x7b8] sm:$0xff]
  %v2745 = vld [vmem:[#allocation2 + $0x7c0] sm:$0xff]
  %v2746 = vld [vmem:[#allocation2 + $0x7c8] sm:$0xff]
  %v2747 = vld [vmem:[#allocation2 + $0x7d0] sm:$0xff]
  %v2748 = vld [vmem:[#allocation2 + $0x7d8] sm:$0xff]
  %v2749 = vld [vmem:[#allocation2 + $0x7e0] sm:$0xff]
  %v2750 = vld [vmem:[#allocation2 + $0x7e8] sm:$0xff]
  %v2751 = vld [vmem:[#allocation2 + $0x7f0] sm:$0xff]
  %v2752 = vld [vmem:[#allocation2 + $0x7f8] sm:$0xff]
  %v2753 = vld [vmem:[#allocation2 + $0x800] sm:$0xff]
  %v2754 = vld [vmem:[#allocation2 + $0x808] sm:$0xff]
  %v2755 = vld [vmem:[#allocation2 + $0x810] sm:$0xff]
  %v2756 = vld [vmem:[#allocation2 + $0x818] sm:$0xff]
  %v2757 = vld [vmem:[#allocation2 + $0x820] sm:$0xff]
  %v2758 = vld [vmem:[#allocation2 + $0x828] sm:$0xff]
  %v2759 = vld [vmem:[#allocation2 + $0x830] sm:$0xff]
  %v2760 = vld [vmem:[#allocation2 + $0x838] sm:$0xff]
  %v2761 = vld [vmem:[#allocation2 + $0x840] sm:$0xff]
  %v2762 = vld [vmem:[#allocation2 + $0x848] sm:$0xff]
  %v2763 = vld [vmem:[#allocation2 + $0x850] sm:$0xff]
  %v2764 = vld [vmem:[#allocation2 + $0x858] sm:$0xff]
  %v2765 = vld [vmem:[#allocation2 + $0x860] sm:$0xff]
  %v2766 = vld [vmem:[#allocation2 + $0x868] sm:$0xff]
  %v2767 = vld [vmem:[#allocation2 + $0x870] sm:$0xff]
  %v2768 = vld [vmem:[#allocation2 + $0x878] sm:$0xff]
  %v2769 = vld [vmem:[#allocation2 + $0x880] sm:$0xff]
  %v2770 = vld [vmem:[#allocation2 + $0x888] sm:$0xff]
  %v2771 = vld [vmem:[#allocation2 + $0x890] sm:$0xff]
  %v2772 = vld [vmem:[#allocation2 + $0x898] sm:$0xff]
  %v2773 = vld [vmem:[#allocation2 + $0x8a0] sm:$0xff]
  %v2774 = vld [vmem:[#allocation2 + $0x8a8] sm:$0xff]
  %v2775 = vld [vmem:[#allocation2 + $0x8b0] sm:$0xff]
  %v2776 = vld [vmem:[#allocation2 + $0x8b8] sm:$0xff]
  %v2777 = vld [vmem:[#allocation2 + $0x8c0] sm:$0xff]
  %v2778 = vld [vmem:[#allocation2 + $0x8c8] sm:$0xff]
  %v2779 = vld [vmem:[#allocation2 + $0x8d0] sm:$0xff]
  %v2780 = vld [vmem:[#allocation2 + $0x8d8] sm:$0xff]
  %v2781 = vld [vmem:[#allocation2 + $0x8e0] sm:$0xff]
  %v2782 = vld [vmem:[#allocation2 + $0x8e8] sm:$0xff]
  %v2783 = vld [vmem:[#allocation2 + $0x8f0] sm:$0xff]
  %v2784 = vld [vmem:[#allocation2 + $0x8f8] sm:$0xff]
  %v2785 = vld [vmem:[#allocation2 + $0x900] sm:$0xff]
  %v2786 = vld [vmem:[#allocation2 + $0x908] sm:$0xff]
  %v2787 = vld [vmem:[#allocation2 + $0x910] sm:$0xff]
  %v2788 = vld [vmem:[#allocation2 + $0x918] sm:$0xff]
  %v2789 = vld [vmem:[#allocation2 + $0x920] sm:$0xff]
  %v2790 = vld [vmem:[#allocation2 + $0x928] sm:$0xff]
  %v2791 = vld [vmem:[#allocation2 + $0x930] sm:$0xff]
  %v2792 = vld [vmem:[#allocation2 + $0x938] sm:$0xff]
  %v2793 = vld [vmem:[#allocation2 + $0x940] sm:$0xff]
  %v2794 = vld [vmem:[#allocation2 + $0x948] sm:$0xff]
  %v2795 = vld [vmem:[#allocation2 + $0x950] sm:$0xff]
  %v2796 = vld [vmem:[#allocation2 + $0x958] sm:$0xff]
  %v2797 = vld [vmem:[#allocation2 + $0x960] sm:$0xff]
  %v2798 = vld [vmem:[#allocation2 + $0x968] sm:$0xff]
  %v2799 = vld [vmem:[#allocation2 + $0x970] sm:$0xff]
  %v2800 = vld [vmem:[#allocation2 + $0x978] sm:$0xff]
  %v2801 = vld [vmem:[#allocation2 + $0x980] sm:$0xff]
  %v2802 = vld [vmem:[#allocation2 + $0x988] sm:$0xff]
  %v2803 = vld [vmem:[#allocation2 + $0x990] sm:$0xff]
  %v2804 = vld [vmem:[#allocation2 + $0x998] sm:$0xff]
  %v2805 = vld [vmem:[#allocation2 + $0x9a0] sm:$0xff]
  %v2806 = vld [vmem:[#allocation2 + $0x9a8] sm:$0xff]
  %v2807 = vld [vmem:[#allocation2 + $0x9b0] sm:$0xff]
  %v2808 = vld [vmem:[#allocation2 + $0x9b8] sm:$0xff]
  %v2809 = vld [vmem:[#allocation2 + $0x9c0] sm:$0xff]
  %v2810 = vld [vmem:[#allocation2 + $0x9c8] sm:$0xff]
  %v2811 = vld [vmem:[#allocation2 + $0x9d0] sm:$0xff]
  %v2812 = vld [vmem:[#allocation2 + $0x9d8] sm:$0xff]
  %v2813 = vld [vmem:[#allocation2 + $0x9e0] sm:$0xff]
  %v2814 = vld [vmem:[#allocation2 + $0x9e8] sm:$0xff]
  %v2815 = vld [vmem:[#allocation2 + $0x9f0] sm:$0xff]
  %v2816 = vld [vmem:[#allocation2 + $0x9f8] sm:$0xff]
  %v2817 = vld [vmem:[#allocation2 + $0xa00] sm:$0xff]
  %v2818 = vld [vmem:[#allocation2 + $0xa08] sm:$0xff]
  %v2819 = vld [vmem:[#allocation2 + $0xa10] sm:$0xff]
  %v2820 = vld [vmem:[#allocation2 + $0xa18] sm:$0xff]
  %v2821 = vld [vmem:[#allocation2 + $0xa20] sm:$0xff]
  %v2822 = vld [vmem:[#allocation2 + $0xa28] sm:$0xff]
  %v2823 = vld [vmem:[#allocation2 + $0xa30] sm:$0xff]
  %v2824 = vld [vmem:[#allocation2 + $0xa38] sm:$0xff]
  %v2825 = vld [vmem:[#allocation2 + $0xa40] sm:$0xff]
  %v2826 = vld [vmem:[#allocation2 + $0xa48] sm:$0xff]
  %v2827 = vld [vmem:[#allocation2 + $0xa50] sm:$0xff]
  %v2828 = vld [vmem:[#allocation2 + $0xa58] sm:$0xff]
  %v2829 = vld [vmem:[#allocation2 + $0xa60] sm:$0xff]
  %v2830 = vld [vmem:[#allocation2 + $0xa68] sm:$0xff]
  %v2831 = vld [vmem:[#allocation2 + $0xa70] sm:$0xff]
  %v2832 = vld [vmem:[#allocation2 + $0xa78] sm:$0xff]
  %v2833 = vld [vmem:[#allocation2 + $0xa80] sm:$0xff]
  %v2834 = vld [vmem:[#allocation2 + $0xa88] sm:$0xff]
  %v2835 = vld [vmem:[#allocation2 + $0xa90] sm:$0xff]
  %v2836 = vld [vmem:[#allocation2 + $0xa98] sm:$0xff]
  %v2837 = vld [vmem:[#allocation2 + $0xaa0] sm:$0xff]
  %v2838 = vld [vmem:[#allocation2 + $0xaa8] sm:$0xff]
  %v2839 = vld [vmem:[#allocation2 + $0xab0] sm:$0xff]
  %v2840 = vld [vmem:[#allocation2 + $0xab8] sm:$0xff]
  %v2841 = vld [vmem:[#allocation2 + $0xac0] sm:$0xff]
  %v2842 = vld [vmem:[#allocation2 + $0xac8] sm:$0xff]
  %v2843 = vld [vmem:[#allocation2 + $0xad0] sm:$0xff]
  %v2844 = vld [vmem:[#allocation2 + $0xad8] sm:$0xff]
  %v2845 = vld [vmem:[#allocation2 + $0xae0] sm:$0xff]
  %v2846 = vld [vmem:[#allocation2 + $0xae8] sm:$0xff]
  %v2847 = vld [vmem:[#allocation2 + $0xaf0] sm:$0xff]
  %v2848 = vld [vmem:[#allocation2 + $0xaf8] sm:$0xff]
  %v2849 = vld [vmem:[#allocation2 + $0xb00] sm:$0xff]
  %v2850 = vld [vmem:[#allocation2 + $0xb08] sm:$0xff]
  %v2851 = vld [vmem:[#allocation2 + $0xb10] sm:$0xff]
  %v2852 = vld [vmem:[#allocation2 + $0xb18] sm:$0xff]
  %v2853 = vld [vmem:[#allocation2 + $0xb20] sm:$0xff]
  %v2854 = vld [vmem:[#allocation2 + $0xb28] sm:$0xff]
  %v2855 = vld [vmem:[#allocation2 + $0xb30] sm:$0xff]
  %v2856 = vld [vmem:[#allocation2 + $0xb38] sm:$0xff]
  %v2857 = vld [vmem:[#allocation2 + $0xb40] sm:$0xff]
  %v2858 = vld [vmem:[#allocation2 + $0xb48] sm:$0xff]
  %v2859 = vld [vmem:[#allocation2 + $0xb50] sm:$0xff]
  %v2860 = vld [vmem:[#allocation2 + $0xb58] sm:$0xff]
  %v2861 = vld [vmem:[#allocation2 + $0xb60] sm:$0xff]
  %v2862 = vld [vmem:[#allocation2 + $0xb68] sm:$0xff]
  %v2863 = vld [vmem:[#allocation2 + $0xb70] sm:$0xff]
  %v2864 = vld [vmem:[#allocation2 + $0xb78] sm:$0xff]
  %v2865 = vld [vmem:[#allocation2 + $0xb80] sm:$0xff]
  %v2866 = vld [vmem:[#allocation2 + $0xb88] sm:$0xff]
  %v2867 = vld [vmem:[#allocation2 + $0xb90] sm:$0xff]
  %v2868 = vld [vmem:[#allocation2 + $0xb98] sm:$0xff]
  %v2869 = vld [vmem:[#allocation2 + $0xba0] sm:$0xff]
  %v2870 = vld [vmem:[#allocation2 + $0xba8] sm:$0xff]
  %v2871 = vld [vmem:[#allocation2 + $0xbb0] sm:$0xff]
  %v2872 = vld [vmem:[#allocation2 + $0xbb8] sm:$0xff]
  %v2873 = vld [vmem:[#allocation2 + $0xbc0] sm:$0xff]
  %v2874 = vld [vmem:[#allocation2 + $0xbc8] sm:$0xff]
  %v2875 = vld [vmem:[#allocation2 + $0xbd0] sm:$0xff]
  %v2876 = vld [vmem:[#allocation2 + $0xbd8] sm:$0xff]
  %v2877 = vld [vmem:[#allocation2 + $0xbe0] sm:$0xff]
  %v2878 = vld [vmem:[#allocation2 + $0xbe8] sm:$0xff]
  %v2879 = vld [vmem:[#allocation2 + $0xbf0] sm:$0xff]
  %v2880 = vld [vmem:[#allocation2 + $0xbf8] sm:$0xff]
  %v2881 = vld [vmem:[#allocation2 + $0xc00] sm:$0xff]
  %v2882 = vld [vmem:[#allocation2 + $0xc08] sm:$0xff]
  %v2883 = vld [vmem:[#allocation2 + $0xc10] sm:$0xff]
  %v2884 = vld [vmem:[#allocation2 + $0xc18] sm:$0xff]
  %v2885 = vld [vmem:[#allocation2 + $0xc20] sm:$0xff]
  %v2886 = vld [vmem:[#allocation2 + $0xc28] sm:$0xff]
  %v2887 = vld [vmem:[#allocation2 + $0xc30] sm:$0xff]
  %v2888 = vld [vmem:[#allocation2 + $0xc38] sm:$0xff]
  %v2889 = vld [vmem:[#allocation2 + $0xc40] sm:$0xff]
  %v2890 = vld [vmem:[#allocation2 + $0xc48] sm:$0xff]
  %v2891 = vld [vmem:[#allocation2 + $0xc50] sm:$0xff]
  %v2892 = vld [vmem:[#allocation2 + $0xc58] sm:$0xff]
  %v2893 = vld [vmem:[#allocation2 + $0xc60] sm:$0xff]
  %v2894 = vld [vmem:[#allocation2 + $0xc68] sm:$0xff]
  %v2895 = vld [vmem:[#allocation2 + $0xc70] sm:$0xff]
  %v2896 = vld [vmem:[#allocation2 + $0xc78] sm:$0xff]
  %v2897 = vld [vmem:[#allocation2 + $0xc80] sm:$0xff]
  %v2898 = vld [vmem:[#allocation2 + $0xc88] sm:$0xff]
  %v2899 = vld [vmem:[#allocation2 + $0xc90] sm:$0xff]
  %v2900 = vld [vmem:[#allocation2 + $0xc98] sm:$0xff]
  %v2901 = vld [vmem:[#allocation2 + $0xca0] sm:$0xff]
  %v2902 = vld [vmem:[#allocation2 + $0xca8] sm:$0xff]
  %v2903 = vld [vmem:[#allocation2 + $0xcb0] sm:$0xff]
  %v2904 = vld [vmem:[#allocation2 + $0xcb8] sm:$0xff]
  %v2905 = vld [vmem:[#allocation2 + $0xcc0] sm:$0xff]
  %v2906 = vld [vmem:[#allocation2 + $0xcc8] sm:$0xff]
  %v2907 = vld [vmem:[#allocation2 + $0xcd0] sm:$0xff]
  %v2908 = vld [vmem:[#allocation2 + $0xcd8] sm:$0xff]
  %v2909 = vld [vmem:[#allocation2 + $0xce0] sm:$0xff]
  %v2910 = vld [vmem:[#allocation2 + $0xce8] sm:$0xff]
  %v2911 = vld [vmem:[#allocation2 + $0xcf0] sm:$0xff]
  %v2912 = vld [vmem:[#allocation2 + $0xcf8] sm:$0xff]
  %v2913 = vld [vmem:[#allocation2 + $0xd00] sm:$0xff]
  %v2914 = vld [vmem:[#allocation2 + $0xd08] sm:$0xff]
  %v2915 = vld [vmem:[#allocation2 + $0xd10] sm:$0xff]
  %v2916 = vld [vmem:[#allocation2 + $0xd18] sm:$0xff]
  %v2917 = vld [vmem:[#allocation2 + $0xd20] sm:$0xff]
  %v2918 = vld [vmem:[#allocation2 + $0xd28] sm:$0xff]
  %v2919 = vld [vmem:[#allocation2 + $0xd30] sm:$0xff]
  %v2920 = vld [vmem:[#allocation2 + $0xd38] sm:$0xff]
  %v2921 = vld [vmem:[#allocation2 + $0xd40] sm:$0xff]
  %v2922 = vld [vmem:[#allocation2 + $0xd48] sm:$0xff]
  %v2923 = vld [vmem:[#allocation2 + $0xd50] sm:$0xff]
  %v2924 = vld [vmem:[#allocation2 + $0xd58] sm:$0xff]
  %v2925 = vld [vmem:[#allocation2 + $0xd60] sm:$0xff]
  %v2926 = vld [vmem:[#allocation2 + $0xd68] sm:$0xff]
  %v2927 = vld [vmem:[#allocation2 + $0xd70] sm:$0xff]
  %v2928 = vld [vmem:[#allocation2 + $0xd78] sm:$0xff]
  %v2929 = vld [vmem:[#allocation2 + $0xd80] sm:$0xff]
  %v2930 = vld [vmem:[#allocation2 + $0xd88] sm:$0xff]
  %v2931 = vld [vmem:[#allocation2 + $0xd90] sm:$0xff]
  %v2932 = vld [vmem:[#allocation2 + $0xd98] sm:$0xff]
  %v2933 = vld [vmem:[#allocation2 + $0xda0] sm:$0xff]
  %v2934 = vld [vmem:[#allocation2 + $0xda8] sm:$0xff]
  %v2935 = vld [vmem:[#allocation2 + $0xdb0] sm:$0xff]
  %v2936 = vld [vmem:[#allocation2 + $0xdb8] sm:$0xff]
  %v2937 = vld [vmem:[#allocation2 + $0xdc0] sm:$0xff]
  %v2938 = vld [vmem:[#allocation2 + $0xdc8] sm:$0xff]
  %v2939 = vld [vmem:[#allocation2 + $0xdd0] sm:$0xff]
  %v2940 = vld [vmem:[#allocation2 + $0xdd8] sm:$0xff]
  %v2941 = vld [vmem:[#allocation2 + $0xde0] sm:$0xff]
  %v2942 = vld [vmem:[#allocation2 + $0xde8] sm:$0xff]
  %v2943 = vld [vmem:[#allocation2 + $0xdf0] sm:$0xff]
  %v2944 = vld [vmem:[#allocation2 + $0xdf8] sm:$0xff]
  %v2945 = vld [vmem:[#allocation2 + $0xe00] sm:$0xff]
  %v2946 = vld [vmem:[#allocation2 + $0xe08] sm:$0xff]
  %v2947 = vld [vmem:[#allocation2 + $0xe10] sm:$0xff]
  %v2948 = vld [vmem:[#allocation2 + $0xe18] sm:$0xff]
  %v2949 = vld [vmem:[#allocation2 + $0xe20] sm:$0xff]
  %v2950 = vld [vmem:[#allocation2 + $0xe28] sm:$0xff]
  %v2951 = vld [vmem:[#allocation2 + $0xe30] sm:$0xff]
  %v2952 = vld [vmem:[#allocation2 + $0xe38] sm:$0xff]
  %v2953 = vld [vmem:[#allocation2 + $0xe40] sm:$0xff]
  %v2954 = vld [vmem:[#allocation2 + $0xe48] sm:$0xff]
  %v2955 = vld [vmem:[#allocation2 + $0xe50] sm:$0xff]
  %v2956 = vld [vmem:[#allocation2 + $0xe58] sm:$0xff]
  %v2957 = vld [vmem:[#allocation2 + $0xe60] sm:$0xff]
  %v2958 = vld [vmem:[#allocation2 + $0xe68] sm:$0xff]
  %v2959 = vld [vmem:[#allocation2 + $0xe70] sm:$0xff]
  %v2960 = vld [vmem:[#allocation2 + $0xe78] sm:$0xff]
  %v2961 = vld [vmem:[#allocation2 + $0xe80] sm:$0xff]
  %v2962 = vld [vmem:[#allocation2 + $0xe88] sm:$0xff]
  %v2963 = vld [vmem:[#allocation2 + $0xe90] sm:$0xff]
  %v2964 = vld [vmem:[#allocation2 + $0xe98] sm:$0xff]
  %v2965 = vld [vmem:[#allocation2 + $0xea0] sm:$0xff]
  %v2966 = vld [vmem:[#allocation2 + $0xea8] sm:$0xff]
  %v2967 = vld [vmem:[#allocation2 + $0xeb0] sm:$0xff]
  %v2968 = vld [vmem:[#allocation2 + $0xeb8] sm:$0xff]
  %v2969 = vld [vmem:[#allocation2 + $0xec0] sm:$0xff]
  %v2970 = vld [vmem:[#allocation2 + $0xec8] sm:$0xff]
  %v2971 = vld [vmem:[#allocation2 + $0xed0] sm:$0xff]
  %v2972 = vld [vmem:[#allocation2 + $0xed8] sm:$0xff]
  %v2973 = vld [vmem:[#allocation2 + $0xee0] sm:$0xff]
  %v2974 = vld [vmem:[#allocation2 + $0xee8] sm:$0xff]
  %v2975 = vld [vmem:[#allocation2 + $0xef0] sm:$0xff]
  %v2976 = vld [vmem:[#allocation2 + $0xef8] sm:$0xff]
  %v2977 = vld [vmem:[#allocation2 + $0xf00] sm:$0xff]
  %v2978 = vld [vmem:[#allocation2 + $0xf08] sm:$0xff]
  %v2979 = vld [vmem:[#allocation2 + $0xf10] sm:$0xff]
  %v2980 = vld [vmem:[#allocation2 + $0xf18] sm:$0xff]
  %v2981 = vld [vmem:[#allocation2 + $0xf20] sm:$0xff]
  %v2982 = vld [vmem:[#allocation2 + $0xf28] sm:$0xff]
  %v2983 = vld [vmem:[#allocation2 + $0xf30] sm:$0xff]
  %v2984 = vld [vmem:[#allocation2 + $0xf38] sm:$0xff]
  %v2985 = vld [vmem:[#allocation2 + $0xf40] sm:$0xff]
  %v2986 = vld [vmem:[#allocation2 + $0xf48] sm:$0xff]
  %v2987 = vld [vmem:[#allocation2 + $0xf50] sm:$0xff]
  %v2988 = vld [vmem:[#allocation2 + $0xf58] sm:$0xff]
  %v2989 = vld [vmem:[#allocation2 + $0xf60] sm:$0xff]
  %v2990 = vld [vmem:[#allocation2 + $0xf68] sm:$0xff]
  %v2991 = vld [vmem:[#allocation2 + $0xf70] sm:$0xff]
  %v2992 = vld [vmem:[#allocation2 + $0xf78] sm:$0xff]
  %v2993 = vld [vmem:[#allocation2 + $0xf80] sm:$0xff]
  %v2994 = vld [vmem:[#allocation2 + $0xf88] sm:$0xff]
  %v2995 = vld [vmem:[#allocation2 + $0xf90] sm:$0xff]
  %v2996 = vld [vmem:[#allocation2 + $0xf98] sm:$0xff]
  %v2997 = vld [vmem:[#allocation2 + $0xfa0] sm:$0xff]
  %v2998 = vld [vmem:[#allocation2 + $0xfa8] sm:$0xff]
  %v2999 = vld [vmem:[#allocation2 + $0xfb0] sm:$0xff]
  %v3000 = vld [vmem:[#allocation2 + $0xfb8] sm:$0xff]
  %v3001 = vld [vmem:[#allocation2 + $0xfc0] sm:$0xff]
  %v3002 = vld [vmem:[#allocation2 + $0xfc8] sm:$0xff]
  %v3003 = vld [vmem:[#allocation2 + $0xfd0] sm:$0xff]
  %v3004 = vld [vmem:[#allocation2 + $0xfd8] sm:$0xff]
  %v3005 = vld [vmem:[#allocation2 + $0xfe0] sm:$0xff]
  %v3006 = vld [vmem:[#allocation2 + $0xfe8] sm:$0xff]
  %v3007 = vld [vmem:[#allocation2 + $0xff0] sm:$0xff]
  %v3008 = vld [vmem:[#allocation2 + $0xff8] sm:$0xff]
  %v3009 = vld [vmem:[#allocation2 + $0x1000] sm:$0xff]
  %v3010 = vld [vmem:[#allocation2 + $0x1008] sm:$0xff]
  %v3011 = vld [vmem:[#allocation2 + $0x1010] sm:$0xff]
  %v3012 = vld [vmem:[#allocation2 + $0x1018] sm:$0xff]
  %v3013 = vld [vmem:[#allocation2 + $0x1020] sm:$0xff]
  %v3014 = vld [vmem:[#allocation2 + $0x1028] sm:$0xff]
  %v3015 = vld [vmem:[#allocation2 + $0x1030] sm:$0xff]
  %v3016 = vld [vmem:[#allocation2 + $0x1038] sm:$0xff]
  %v3017 = vld [vmem:[#allocation2 + $0x1040] sm:$0xff]
  %v3018 = vld [vmem:[#allocation2 + $0x1048] sm:$0xff]
  %v3019 = vld [vmem:[#allocation2 + $0x1050] sm:$0xff]
  %v3020 = vld [vmem:[#allocation2 + $0x1058] sm:$0xff]
  %v3021 = vld [vmem:[#allocation2 + $0x1060] sm:$0xff]
  %v3022 = vld [vmem:[#allocation2 + $0x1068] sm:$0xff]
  %v3023 = vld [vmem:[#allocation2 + $0x1070] sm:$0xff]
  %v3024 = vld [vmem:[#allocation2 + $0x1078] sm:$0xff]
  %v3025 = vld [vmem:[#allocation2 + $0x1080] sm:$0xff]
  %v3026 = vld [vmem:[#allocation2 + $0x1088] sm:$0xff]
  %v3027 = vld [vmem:[#allocation2 + $0x1090] sm:$0xff]
  %v3028 = vld [vmem:[#allocation2 + $0x1098] sm:$0xff]
  %v3029 = vld [vmem:[#allocation2 + $0x10a0] sm:$0xff]
  %v3030 = vld [vmem:[#allocation2 + $0x10a8] sm:$0xff]
  %v3031 = vld [vmem:[#allocation2 + $0x10b0] sm:$0xff]
  %v3032 = vld [vmem:[#allocation2 + $0x10b8] sm:$0xff]
  %v3033 = vld [vmem:[#allocation2 + $0x10c0] sm:$0xff]
  %v3034 = vld [vmem:[#allocation2 + $0x10c8] sm:$0xff]
  %v3035 = vld [vmem:[#allocation2 + $0x10d0] sm:$0xff]
  %v3036 = vld [vmem:[#allocation2 + $0x10d8] sm:$0xff]
  %v3037 = vld [vmem:[#allocation2 + $0x10e0] sm:$0xff]
  %v3038 = vld [vmem:[#allocation2 + $0x10e8] sm:$0xff]
  %v3039 = vld [vmem:[#allocation2 + $0x10f0] sm:$0xff]
  %v3040 = vld [vmem:[#allocation2 + $0x10f8] sm:$0xff]
  %v3041 = vld [vmem:[#allocation2 + $0x1100] sm:$0xff]
  %v3042 = vld [vmem:[#allocation2 + $0x1108] sm:$0xff]
  %v3043 = vld [vmem:[#allocation2 + $0x1110] sm:$0xff]
  %v3044 = vld [vmem:[#allocation2 + $0x1118] sm:$0xff]
  %v3045 = vld [vmem:[#allocation2 + $0x1120] sm:$0xff]
  %v3046 = vld [vmem:[#allocation2 + $0x1128] sm:$0xff]
  %v3047 = vld [vmem:[#allocation2 + $0x1130] sm:$0xff]
  %v3048 = vld [vmem:[#allocation2 + $0x1138] sm:$0xff]
  %v3049 = vld [vmem:[#allocation2 + $0x1140] sm:$0xff]
  %v3050 = vld [vmem:[#allocation2 + $0x1148] sm:$0xff]
  %v3051 = vld [vmem:[#allocation2 + $0x1150] sm:$0xff]
  %v3052 = vld [vmem:[#allocation2 + $0x1158] sm:$0xff]
  %v3053 = vld [vmem:[#allocation2 + $0x1160] sm:$0xff]
  %v3054 = vld [vmem:[#allocation2 + $0x1168] sm:$0xff]
  %v3055 = vld [vmem:[#allocation2 + $0x1170] sm:$0xff]
  %v3056 = vld [vmem:[#allocation2 + $0x1178] sm:$0xff]
  %v3057 = vld [vmem:[#allocation2 + $0x1180] sm:$0xff]
  %v3058 = vld [vmem:[#allocation2 + $0x1188] sm:$0xff]
  %v3059 = vld [vmem:[#allocation2 + $0x1190] sm:$0xff]
  %v3060 = vld [vmem:[#allocation2 + $0x1198] sm:$0xff]
  %v3061 = vld [vmem:[#allocation2 + $0x11a0] sm:$0xff]
  %v3062 = vld [vmem:[#allocation2 + $0x11a8] sm:$0xff]
  %v3063 = vld [vmem:[#allocation2 + $0x11b0] sm:$0xff]
  %v3064 = vld [vmem:[#allocation2 + $0x11b8] sm:$0xff]
  %v3065 = vld [vmem:[#allocation2 + $0x11c0] sm:$0xff]
  %v3066 = vld [vmem:[#allocation2 + $0x11c8] sm:$0xff]
  %v3067 = vld [vmem:[#allocation2 + $0x11d0] sm:$0xff]
  %v3068 = vld [vmem:[#allocation2 + $0x11d8] sm:$0xff]
  %v3069 = vld [vmem:[#allocation2 + $0x11e0] sm:$0xff]
  %v3070 = vld [vmem:[#allocation2 + $0x11e8] sm:$0xff]
  %v3071 = vld [vmem:[#allocation2 + $0x11f0] sm:$0xff]
  %v3072 = vld [vmem:[#allocation2 + $0x11f8] sm:$0xff]
  %3073 = vmatpush.msra.mxu0 %v2368
  %3074 = vmatpush.msra.mxu0 %v2367
  %3075 = vmatpush.msra.mxu0 %v2366
  %3076 = vmatpush.msra.mxu0 %v2365
  %3077 = vmatpush.msra.mxu0 %v2364
  %3078 = vmatpush.msra.mxu0 %v2363
  %3079 = vmatpush.msra.mxu0 %v2362
  %3080 = vmatpush.msra.mxu0 %v2361
  %3081 = vmatpush.msra.mxu0 %v2360
  %3082 = vmatpush.msra.mxu0 %v2359
  %3083 = vmatpush.msra.mxu0 %v2358
  %3084 = vmatpush.msra.mxu0 %v2357
  %3085 = vmatpush.msra.mxu0 %v2356
  %3086 = vmatpush.msra.mxu0 %v2355
  %3087 = vmatpush.msra.mxu0 %v2354
  %3088 = vmatpush.msra.mxu0 %v2353
  %3089 = vmatmul.f32.gmra.mxu0 %v2497
  %v3090 = vpop.f32.mrf.mxu0
  %v3091 = vadd.f32 0.0, %v3090
  %3092 = vmatmul.f32.gmra.mxu0 %v2506
  %v3093 = vpop.f32.mrf.mxu0
  %v3094 = vadd.f32 0.0, %v3093
  %3095 = vmatmul.f32.gmra.mxu0 %v2515
  %v3096 = vpop.f32.mrf.mxu0
  %v3097 = vadd.f32 0.0, %v3096
  %3098 = vmatmul.f32.gmra.mxu0 %v2524
  %v3099 = vpop.f32.mrf.mxu0
  %v3100 = vadd.f32 0.0, %v3099
  %3101 = vmatmul.f32.gmra.mxu0 %v2533
  %v3102 = vpop.f32.mrf.mxu0
  %v3103 = vadd.f32 0.0, %v3102
  %3104 = vmatmul.f32.gmra.mxu0 %v2542
  %v3105 = vpop.f32.mrf.mxu0
  %v3106 = vadd.f32 0.0, %v3105
  %3107 = vmatmul.f32.gmra.mxu0 %v2551
  %v3108 = vpop.f32.mrf.mxu0
  %v3109 = vadd.f32 0.0, %v3108
  %3110 = vmatmul.f32.gmra.mxu0 %v2560
  %v3111 = vpop.f32.mrf.mxu0
  %v3112 = vadd.f32 0.0, %v3111
  %3113 = vmatmul.f32.gmra.mxu0 %v2569
  %v3114 = vpop.f32.mrf.mxu0
  %v3115 = vadd.f32 0.0, %v3114
  %3116 = vmatmul.f32.gmra.mxu0 %v2578
  %v3117 = vpop.f32.mrf.mxu0
  %v3118 = vadd.f32 0.0, %v3117
  %3119 = vmatmul.f32.gmra.mxu0 %v2587
  %v3120 = vpop.f32.mrf.mxu0
  %v3121 = vadd.f32 0.0, %v3120
  %3122 = vmatmul.f32.gmra.mxu0 %v2596
  %v3123 = vpop.f32.mrf.mxu0
  %v3124 = vadd.f32 0.0, %v3123
  %3125 = vmatmul.f32.gmra.mxu0 %v2605
  %v3126 = vpop.f32.mrf.mxu0
  %v3127 = vadd.f32 0.0, %v3126
  %3128 = vmatmul.f32.gmra.mxu0 %v2614
  %v3129 = vpop.f32.mrf.mxu0
  %v3130 = vadd.f32 0.0, %v3129
  %3131 = vmatmul.f32.gmra.mxu0 %v2623
  %v3132 = vpop.f32.mrf.mxu0
  %v3133 = vadd.f32 0.0, %v3132
  %3134 = vmatmul.f32.gmra.mxu0 %v2632
  %v3135 = vpop.f32.mrf.mxu0
  %v3136 = vadd.f32 0.0, %v3135
  %3137 = vmatmul.f32.gmra.mxu0 %v2641
  %v3138 = vpop.f32.mrf.mxu0
  %v3139 = vadd.f32 0.0, %v3138
  %3140 = vmatmul.f32.gmra.mxu0 %v2650
  %v3141 = vpop.f32.mrf.mxu0
  %v3142 = vadd.f32 0.0, %v3141
  %3143 = vmatmul.f32.gmra.mxu0 %v2659
  %v3144 = vpop.f32.mrf.mxu0
  %v3145 = vadd.f32 0.0, %v3144
  %3146 = vmatmul.f32.gmra.mxu0 %v2668
  %v3147 = vpop.f32.mrf.mxu0
  %v3148 = vadd.f32 0.0, %v3147
  %3149 = vmatmul.f32.gmra.mxu0 %v2677
  %v3150 = vpop.f32.mrf.mxu0
  %v3151 = vadd.f32 0.0, %v3150
  %3152 = vmatmul.f32.gmra.mxu0 %v2686
  %v3153 = vpop.f32.mrf.mxu0
  %v3154 = vadd.f32 0.0, %v3153
  %3155 = vmatmul.f32.gmra.mxu0 %v2695
  %v3156 = vpop.f32.mrf.mxu0
  %v3157 = vadd.f32 0.0, %v3156
  %3158 = vmatmul.f32.gmra.mxu0 %v2704
  %v3159 = vpop.f32.mrf.mxu0
  %v3160 = vadd.f32 0.0, %v3159
  %3161 = vmatmul.f32.gmra.mxu0 %v2713
  %v3162 = vpop.f32.mrf.mxu0
  %v3163 = vadd.f32 0.0, %v3162
  %3164 = vmatmul.f32.gmra.mxu0 %v2722
  %v3165 = vpop.f32.mrf.mxu0
  %v3166 = vadd.f32 0.0, %v3165
  %3167 = vmatmul.f32.gmra.mxu0 %v2731
  %v3168 = vpop.f32.mrf.mxu0
  %v3169 = vadd.f32 0.0, %v3168
  %3170 = vmatmul.f32.gmra.mxu0 %v2740
  %v3171 = vpop.f32.mrf.mxu0
  %v3172 = vadd.f32 0.0, %v3171
  %3173 = vmatmul.f32.gmra.mxu0 %v2749
  %v3174 = vpop.f32.mrf.mxu0
  %v3175 = vadd.f32 0.0, %v3174
  %3176 = vmatmul.f32.gmra.mxu0 %v2758
  %v3177 = vpop.f32.mrf.mxu0
  %v3178 = vadd.f32 0.0, %v3177
  %3179 = vmatmul.f32.gmra.mxu0 %v2767
  %v3180 = vpop.f32.mrf.mxu0
  %v3181 = vadd.f32 0.0, %v3180
  %3182 = vmatmul.f32.gmra.mxu0 %v2776
  %v3183 = vpop.f32.mrf.mxu0
  %v3184 = vadd.f32 0.0, %v3183
  %3185 = vmatmul.f32.gmra.mxu0 %v2785
  %v3186 = vpop.f32.mrf.mxu0
  %v3187 = vadd.f32 0.0, %v3186
  %3188 = vmatmul.f32.gmra.mxu0 %v2794
  %v3189 = vpop.f32.mrf.mxu0
  %v3190 = vadd.f32 0.0, %v3189
  %3191 = vmatmul.f32.gmra.mxu0 %v2803
  %v3192 = vpop.f32.mrf.mxu0
  %v3193 = vadd.f32 0.0, %v3192
  %3194 = vmatmul.f32.gmra.mxu0 %v2812
  %v3195 = vpop.f32.mrf.mxu0
  %v3196 = vadd.f32 0.0, %v3195
  %3197 = vmatmul.f32.gmra.mxu0 %v2821
  %v3198 = vpop.f32.mrf.mxu0
  %v3199 = vadd.f32 0.0, %v3198
  %3200 = vmatmul.f32.gmra.mxu0 %v2830
  %v3201 = vpop.f32.mrf.mxu0
  %v3202 = vadd.f32 0.0, %v3201
  %3203 = vmatmul.f32.gmra.mxu0 %v2839
  %v3204 = vpop.f32.mrf.mxu0
  %v3205 = vadd.f32 0.0, %v3204
  %3206 = vmatmul.f32.gmra.mxu0 %v2848
  %v3207 = vpop.f32.mrf.mxu0
  %v3208 = vadd.f32 0.0, %v3207
  %3209 = vmatmul.f32.gmra.mxu0 %v2857
  %v3210 = vpop.f32.mrf.mxu0
  %v3211 = vadd.f32 0.0, %v3210
  %3212 = vmatmul.f32.gmra.mxu0 %v2866
  %v3213 = vpop.f32.mrf.mxu0
  %v3214 = vadd.f32 0.0, %v3213
  %3215 = vmatmul.f32.gmra.mxu0 %v2875
  %v3216 = vpop.f32.mrf.mxu0
  %v3217 = vadd.f32 0.0, %v3216
  %3218 = vmatmul.f32.gmra.mxu0 %v2884
  %v3219 = vpop.f32.mrf.mxu0
  %v3220 = vadd.f32 0.0, %v3219
  %3221 = vmatmul.f32.gmra.mxu0 %v2893
  %v3222 = vpop.f32.mrf.mxu0
  %v3223 = vadd.f32 0.0, %v3222
  %3224 = vmatmul.f32.gmra.mxu0 %v2902
  %v3225 = vpop.f32.mrf.mxu0
  %v3226 = vadd.f32 0.0, %v3225
  %3227 = vmatmul.f32.gmra.mxu0 %v2911
  %v3228 = vpop.f32.mrf.mxu0
  %v3229 = vadd.f32 0.0, %v3228
  %3230 = vmatmul.f32.gmra.mxu0 %v2920
  %v3231 = vpop.f32.mrf.mxu0
  %v3232 = vadd.f32 0.0, %v3231
  %3233 = vmatmul.f32.gmra.mxu0 %v2929
  %v3234 = vpop.f32.mrf.mxu0
  %v3235 = vadd.f32 0.0, %v3234
  %3236 = vmatmul.f32.gmra.mxu0 %v2938
  %v3237 = vpop.f32.mrf.mxu0
  %v3238 = vadd.f32 0.0, %v3237
  %3239 = vmatmul.f32.gmra.mxu0 %v2947
  %v3240 = vpop.f32.mrf.mxu0
  %v3241 = vadd.f32 0.0, %v3240
  %3242 = vmatmul.f32.gmra.mxu0 %v2956
  %v3243 = vpop.f32.mrf.mxu0
  %v3244 = vadd.f32 0.0, %v3243
  %3245 = vmatmul.f32.gmra.mxu0 %v2965
  %v3246 = vpop.f32.mrf.mxu0
  %v3247 = vadd.f32 0.0, %v3246
  %3248 = vmatmul.f32.gmra.mxu0 %v2974
  %v3249 = vpop.f32.mrf.mxu0
  %v3250 = vadd.f32 0.0, %v3249
  %3251 = vmatmul.f32.gmra.mxu0 %v2983
  %v3252 = vpop.f32.mrf.mxu0
  %v3253 = vadd.f32 0.0, %v3252
  %3254 = vmatmul.f32.gmra.mxu0 %v2992
  %v3255 = vpop.f32.mrf.mxu0
  %v3256 = vadd.f32 0.0, %v3255
  %3257 = vmatmul.f32.gmra.mxu0 %v3001
  %v3258 = vpop.f32.mrf.mxu0
  %v3259 = vadd.f32 0.0, %v3258
  %3260 = vmatmul.f32.gmra.mxu0 %v3010
  %v3261 = vpop.f32.mrf.mxu0
  %v3262 = vadd.f32 0.0, %v3261
  %3263 = vmatmul.f32.gmra.mxu0 %v3019
  %v3264 = vpop.f32.mrf.mxu0
  %v3265 = vadd.f32 0.0, %v3264
  %3266 = vmatmul.f32.gmra.mxu0 %v3028
  %v3267 = vpop.f32.mrf.mxu0
  %v3268 = vadd.f32 0.0, %v3267
  %3269 = vmatmul.f32.gmra.mxu0 %v3037
  %v3270 = vpop.f32.mrf.mxu0
  %v3271 = vadd.f32 0.0, %v3270
  %3272 = vmatmul.f32.gmra.mxu0 %v3046
  %v3273 = vpop.f32.mrf.mxu0
  %v3274 = vadd.f32 0.0, %v3273
  %3275 = vmatmul.f32.gmra.mxu0 %v3055
  %v3276 = vpop.f32.mrf.mxu0
  %v3277 = vadd.f32 0.0, %v3276
  %3278 = vmatmul.f32.gmra.mxu0 %v3064
  %v3279 = vpop.f32.mrf.mxu0
  %v3280 = vadd.f32 0.0, %v3279
  %3281 = vdwg.mxu0
  %3282 = vmatpush.msra.mxu0 %v2384
  %3283 = vmatpush.msra.mxu0 %v2383
  %3284 = vmatpush.msra.mxu0 %v2382
  %3285 = vmatpush.msra.mxu0 %v2381
  %3286 = vmatpush.msra.mxu0 %v2380
  %3287 = vmatpush.msra.mxu0 %v2379
  %3288 = vmatpush.msra.mxu0 %v2378
  %3289 = vmatpush.msra.mxu0 %v2377
  %3290 = vmatpush.msra.mxu0 %v2376
  %3291 = vmatpush.msra.mxu0 %v2375
  %3292 = vmatpush.msra.mxu0 %v2374
  %3293 = vmatpush.msra.mxu0 %v2373
  %3294 = vmatpush.msra.mxu0 %v2372
  %3295 = vmatpush.msra.mxu0 %v2371
  %3296 = vmatpush.msra.mxu0 %v2370
  %3297 = vmatpush.msra.mxu0 %v2369
  %3298 = vmatmul.f32.gmra.mxu0 %v2498
  %v3299 = vpop.f32.mrf.mxu0
  %v3300 = vadd.f32 %v3091, %v3299
  %3301 = vmatmul.f32.gmra.mxu0 %v2507
  %v3302 = vpop.f32.mrf.mxu0
  %v3303 = vadd.f32 %v3094, %v3302
  %3304 = vmatmul.f32.gmra.mxu0 %v2516
  %v3305 = vpop.f32.mrf.mxu0
  %v3306 = vadd.f32 %v3097, %v3305
  %3307 = vmatmul.f32.gmra.mxu0 %v2525
  %v3308 = vpop.f32.mrf.mxu0
  %v3309 = vadd.f32 %v3100, %v3308
  %3310 = vmatmul.f32.gmra.mxu0 %v2534
  %v3311 = vpop.f32.mrf.mxu0
  %v3312 = vadd.f32 %v3103, %v3311
  %3313 = vmatmul.f32.gmra.mxu0 %v2543
  %v3314 = vpop.f32.mrf.mxu0
  %v3315 = vadd.f32 %v3106, %v3314
  %3316 = vmatmul.f32.gmra.mxu0 %v2552
  %v3317 = vpop.f32.mrf.mxu0
  %v3318 = vadd.f32 %v3109, %v3317
  %3319 = vmatmul.f32.gmra.mxu0 %v2561
  %v3320 = vpop.f32.mrf.mxu0
  %v3321 = vadd.f32 %v3112, %v3320
  %3322 = vmatmul.f32.gmra.mxu0 %v2570
  %v3323 = vpop.f32.mrf.mxu0
  %v3324 = vadd.f32 %v3115, %v3323
  %3325 = vmatmul.f32.gmra.mxu0 %v2579
  %v3326 = vpop.f32.mrf.mxu0
  %v3327 = vadd.f32 %v3118, %v3326
  %3328 = vmatmul.f32.gmra.mxu0 %v2588
  %v3329 = vpop.f32.mrf.mxu0
  %v3330 = vadd.f32 %v3121, %v3329
  %3331 = vmatmul.f32.gmra.mxu0 %v2597
  %v3332 = vpop.f32.mrf.mxu0
  %v3333 = vadd.f32 %v3124, %v3332
  %3334 = vmatmul.f32.gmra.mxu0 %v2606
  %v3335 = vpop.f32.mrf.mxu0
  %v3336 = vadd.f32 %v3127, %v3335
  %3337 = vmatmul.f32.gmra.mxu0 %v2615
  %v3338 = vpop.f32.mrf.mxu0
  %v3339 = vadd.f32 %v3130, %v3338
  %3340 = vmatmul.f32.gmra.mxu0 %v2624
  %v3341 = vpop.f32.mrf.mxu0
  %v3342 = vadd.f32 %v3133, %v3341
  %3343 = vmatmul.f32.gmra.mxu0 %v2633
  %v3344 = vpop.f32.mrf.mxu0
  %v3345 = vadd.f32 %v3136, %v3344
  %3346 = vmatmul.f32.gmra.mxu0 %v2642
  %v3347 = vpop.f32.mrf.mxu0
  %v3348 = vadd.f32 %v3139, %v3347
  %3349 = vmatmul.f32.gmra.mxu0 %v2651
  %v3350 = vpop.f32.mrf.mxu0
  %v3351 = vadd.f32 %v3142, %v3350
  %3352 = vmatmul.f32.gmra.mxu0 %v2660
  %v3353 = vpop.f32.mrf.mxu0
  %v3354 = vadd.f32 %v3145, %v3353
  %3355 = vmatmul.f32.gmra.mxu0 %v2669
  %v3356 = vpop.f32.mrf.mxu0
  %v3357 = vadd.f32 %v3148, %v3356
  %3358 = vmatmul.f32.gmra.mxu0 %v2678
  %v3359 = vpop.f32.mrf.mxu0
  %v3360 = vadd.f32 %v3151, %v3359
  %3361 = vmatmul.f32.gmra.mxu0 %v2687
  %v3362 = vpop.f32.mrf.mxu0
  %v3363 = vadd.f32 %v3154, %v3362
  %3364 = vmatmul.f32.gmra.mxu0 %v2696
  %v3365 = vpop.f32.mrf.mxu0
  %v3366 = vadd.f32 %v3157, %v3365
  %3367 = vmatmul.f32.gmra.mxu0 %v2705
  %v3368 = vpop.f32.mrf.mxu0
  %v3369 = vadd.f32 %v3160, %v3368
  %3370 = vmatmul.f32.gmra.mxu0 %v2714
  %v3371 = vpop.f32.mrf.mxu0
  %v3372 = vadd.f32 %v3163, %v3371
  %3373 = vmatmul.f32.gmra.mxu0 %v2723
  %v3374 = vpop.f32.mrf.mxu0
  %v3375 = vadd.f32 %v3166, %v3374
  %3376 = vmatmul.f32.gmra.mxu0 %v2732
  %v3377 = vpop.f32.mrf.mxu0
  %v3378 = vadd.f32 %v3169, %v3377
  %3379 = vmatmul.f32.gmra.mxu0 %v2741
  %v3380 = vpop.f32.mrf.mxu0
  %v3381 = vadd.f32 %v3172, %v3380
  %3382 = vmatmul.f32.gmra.mxu0 %v2750
  %v3383 = vpop.f32.mrf.mxu0
  %v3384 = vadd.f32 %v3175, %v3383
  %3385 = vmatmul.f32.gmra.mxu0 %v2759
  %v3386 = vpop.f32.mrf.mxu0
  %v3387 = vadd.f32 %v3178, %v3386
  %3388 = vmatmul.f32.gmra.mxu0 %v2768
  %v3389 = vpop.f32.mrf.mxu0
  %v3390 = vadd.f32 %v3181, %v3389
  %3391 = vmatmul.f32.gmra.mxu0 %v2777
  %v3392 = vpop.f32.mrf.mxu0
  %v3393 = vadd.f32 %v3184, %v3392
  %3394 = vmatmul.f32.gmra.mxu0 %v2786
  %v3395 = vpop.f32.mrf.mxu0
  %v3396 = vadd.f32 %v3187, %v3395
  %3397 = vmatmul.f32.gmra.mxu0 %v2795
  %v3398 = vpop.f32.mrf.mxu0
  %v3399 = vadd.f32 %v3190, %v3398
  %3400 = vmatmul.f32.gmra.mxu0 %v2804
  %v3401 = vpop.f32.mrf.mxu0
  %v3402 = vadd.f32 %v3193, %v3401
  %3403 = vmatmul.f32.gmra.mxu0 %v2813
  %v3404 = vpop.f32.mrf.mxu0
  %v3405 = vadd.f32 %v3196, %v3404
  %3406 = vmatmul.f32.gmra.mxu0 %v2822
  %v3407 = vpop.f32.mrf.mxu0
  %v3408 = vadd.f32 %v3199, %v3407
  %3409 = vmatmul.f32.gmra.mxu0 %v2831
  %v3410 = vpop.f32.mrf.mxu0
  %v3411 = vadd.f32 %v3202, %v3410
  %3412 = vmatmul.f32.gmra.mxu0 %v2840
  %v3413 = vpop.f32.mrf.mxu0
  %v3414 = vadd.f32 %v3205, %v3413
  %3415 = vmatmul.f32.gmra.mxu0 %v2849
  %v3416 = vpop.f32.mrf.mxu0
  %v3417 = vadd.f32 %v3208, %v3416
  %3418 = vmatmul.f32.gmra.mxu0 %v2858
  %v3419 = vpop.f32.mrf.mxu0
  %v3420 = vadd.f32 %v3211, %v3419
  %3421 = vmatmul.f32.gmra.mxu0 %v2867
  %v3422 = vpop.f32.mrf.mxu0
  %v3423 = vadd.f32 %v3214, %v3422
  %3424 = vmatmul.f32.gmra.mxu0 %v2876
  %v3425 = vpop.f32.mrf.mxu0
  %v3426 = vadd.f32 %v3217, %v3425
  %3427 = vmatmul.f32.gmra.mxu0 %v2885
  %v3428 = vpop.f32.mrf.mxu0
  %v3429 = vadd.f32 %v3220, %v3428
  %3430 = vmatmul.f32.gmra.mxu0 %v2894
  %v3431 = vpop.f32.mrf.mxu0
  %v3432 = vadd.f32 %v3223, %v3431
  %3433 = vmatmul.f32.gmra.mxu0 %v2903
  %v3434 = vpop.f32.mrf.mxu0
  %v3435 = vadd.f32 %v3226, %v3434
  %3436 = vmatmul.f32.gmra.mxu0 %v2912
  %v3437 = vpop.f32.mrf.mxu0
  %v3438 = vadd.f32 %v3229, %v3437
  %3439 = vmatmul.f32.gmra.mxu0 %v2921
  %v3440 = vpop.f32.mrf.mxu0
  %v3441 = vadd.f32 %v3232, %v3440
  %3442 = vmatmul.f32.gmra.mxu0 %v2930
  %v3443 = vpop.f32.mrf.mxu0
  %v3444 = vadd.f32 %v3235, %v3443
  %3445 = vmatmul.f32.gmra.mxu0 %v2939
  %v3446 = vpop.f32.mrf.mxu0
  %v3447 = vadd.f32 %v3238, %v3446
  %3448 = vmatmul.f32.gmra.mxu0 %v2948
  %v3449 = vpop.f32.mrf.mxu0
  %v3450 = vadd.f32 %v3241, %v3449
  %3451 = vmatmul.f32.gmra.mxu0 %v2957
  %v3452 = vpop.f32.mrf.mxu0
  %v3453 = vadd.f32 %v3244, %v3452
  %3454 = vmatmul.f32.gmra.mxu0 %v2966
  %v3455 = vpop.f32.mrf.mxu0
  %v3456 = vadd.f32 %v3247, %v3455
  %3457 = vmatmul.f32.gmra.mxu0 %v2975
  %v3458 = vpop.f32.mrf.mxu0
  %v3459 = vadd.f32 %v3250, %v3458
  %3460 = vmatmul.f32.gmra.mxu0 %v2984
  %v3461 = vpop.f32.mrf.mxu0
  %v3462 = vadd.f32 %v3253, %v3461
  %3463 = vmatmul.f32.gmra.mxu0 %v2993
  %v3464 = vpop.f32.mrf.mxu0
  %v3465 = vadd.f32 %v3256, %v3464
  %3466 = vmatmul.f32.gmra.mxu0 %v3002
  %v3467 = vpop.f32.mrf.mxu0
  %v3468 = vadd.f32 %v3259, %v3467
  %3469 = vmatmul.f32.gmra.mxu0 %v3011
  %v3470 = vpop.f32.mrf.mxu0
  %v3471 = vadd.f32 %v3262, %v3470
  %3472 = vmatmul.f32.gmra.mxu0 %v3020
  %v3473 = vpop.f32.mrf.mxu0
  %v3474 = vadd.f32 %v3265, %v3473
  %3475 = vmatmul.f32.gmra.mxu0 %v3029
  %v3476 = vpop.f32.mrf.mxu0
  %v3477 = vadd.f32 %v3268, %v3476
  %3478 = vmatmul.f32.gmra.mxu0 %v3038
  %v3479 = vpop.f32.mrf.mxu0
  %v3480 = vadd.f32 %v3271, %v3479
  %3481 = vmatmul.f32.gmra.mxu0 %v3047
  %v3482 = vpop.f32.mrf.mxu0
  %v3483 = vadd.f32 %v3274, %v3482
  %3484 = vmatmul.f32.gmra.mxu0 %v3056
  %v3485 = vpop.f32.mrf.mxu0
  %v3486 = vadd.f32 %v3277, %v3485
  %3487 = vmatmul.f32.gmra.mxu0 %v3065
  %v3488 = vpop.f32.mrf.mxu0
  %v3489 = vadd.f32 %v3280, %v3488
  %3490 = vdwg.mxu0
  %3491 = vmatpush.msra.mxu0 %v2400
  %3492 = vmatpush.msra.mxu0 %v2399
  %3493 = vmatpush.msra.mxu0 %v2398
  %3494 = vmatpush.msra.mxu0 %v2397
  %3495 = vmatpush.msra.mxu0 %v2396
  %3496 = vmatpush.msra.mxu0 %v2395
  %3497 = vmatpush.msra.mxu0 %v2394
  %3498 = vmatpush.msra.mxu0 %v2393
  %3499 = vmatpush.msra.mxu0 %v2392
  %3500 = vmatpush.msra.mxu0 %v2391
  %3501 = vmatpush.msra.mxu0 %v2390
  %3502 = vmatpush.msra.mxu0 %v2389
  %3503 = vmatpush.msra.mxu0 %v2388
  %3504 = vmatpush.msra.mxu0 %v2387
  %3505 = vmatpush.msra.mxu0 %v2386
  %3506 = vmatpush.msra.mxu0 %v2385
  %3507 = vmatmul.f32.gmra.mxu0 %v2499
  %v3508 = vpop.f32.mrf.mxu0
  %v3509 = vadd.f32 %v3300, %v3508
  %3510 = vmatmul.f32.gmra.mxu0 %v2508
  %v3511 = vpop.f32.mrf.mxu0
  %v3512 = vadd.f32 %v3303, %v3511
  %3513 = vmatmul.f32.gmra.mxu0 %v2517
  %v3514 = vpop.f32.mrf.mxu0
  %v3515 = vadd.f32 %v3306, %v3514
  %3516 = vmatmul.f32.gmra.mxu0 %v2526
  %v3517 = vpop.f32.mrf.mxu0
  %v3518 = vadd.f32 %v3309, %v3517
  %3519 = vmatmul.f32.gmra.mxu0 %v2535
  %v3520 = vpop.f32.mrf.mxu0
  %v3521 = vadd.f32 %v3312, %v3520
  %3522 = vmatmul.f32.gmra.mxu0 %v2544
  %v3523 = vpop.f32.mrf.mxu0
  %v3524 = vadd.f32 %v3315, %v3523
  %3525 = vmatmul.f32.gmra.mxu0 %v2553
  %v3526 = vpop.f32.mrf.mxu0
  %v3527 = vadd.f32 %v3318, %v3526
  %3528 = vmatmul.f32.gmra.mxu0 %v2562
  %v3529 = vpop.f32.mrf.mxu0
  %v3530 = vadd.f32 %v3321, %v3529
  %3531 = vmatmul.f32.gmra.mxu0 %v2571
  %v3532 = vpop.f32.mrf.mxu0
  %v3533 = vadd.f32 %v3324, %v3532
  %3534 = vmatmul.f32.gmra.mxu0 %v2580
  %v3535 = vpop.f32.mrf.mxu0
  %v3536 = vadd.f32 %v3327, %v3535
  %3537 = vmatmul.f32.gmra.mxu0 %v2589
  %v3538 = vpop.f32.mrf.mxu0
  %v3539 = vadd.f32 %v3330, %v3538
  %3540 = vmatmul.f32.gmra.mxu0 %v2598
  %v3541 = vpop.f32.mrf.mxu0
  %v3542 = vadd.f32 %v3333, %v3541
  %3543 = vmatmul.f32.gmra.mxu0 %v2607
  %v3544 = vpop.f32.mrf.mxu0
  %v3545 = vadd.f32 %v3336, %v3544
  %3546 = vmatmul.f32.gmra.mxu0 %v2616
  %v3547 = vpop.f32.mrf.mxu0
  %v3548 = vadd.f32 %v3339, %v3547
  %3549 = vmatmul.f32.gmra.mxu0 %v2625
  %v3550 = vpop.f32.mrf.mxu0
  %v3551 = vadd.f32 %v3342, %v3550
  %3552 = vmatmul.f32.gmra.mxu0 %v2634
  %v3553 = vpop.f32.mrf.mxu0
  %v3554 = vadd.f32 %v3345, %v3553
  %3555 = vmatmul.f32.gmra.mxu0 %v2643
  %v3556 = vpop.f32.mrf.mxu0
  %v3557 = vadd.f32 %v3348, %v3556
  %3558 = vmatmul.f32.gmra.mxu0 %v2652
  %v3559 = vpop.f32.mrf.mxu0
  %v3560 = vadd.f32 %v3351, %v3559
  %3561 = vmatmul.f32.gmra.mxu0 %v2661
  %v3562 = vpop.f32.mrf.mxu0
  %v3563 = vadd.f32 %v3354, %v3562
  %3564 = vmatmul.f32.gmra.mxu0 %v2670
  %v3565 = vpop.f32.mrf.mxu0
  %v3566 = vadd.f32 %v3357, %v3565
  %3567 = vmatmul.f32.gmra.mxu0 %v2679
  %v3568 = vpop.f32.mrf.mxu0
  %v3569 = vadd.f32 %v3360, %v3568
  %3570 = vmatmul.f32.gmra.mxu0 %v2688
  %v3571 = vpop.f32.mrf.mxu0
  %v3572 = vadd.f32 %v3363, %v3571
  %3573 = vmatmul.f32.gmra.mxu0 %v2697
  %v3574 = vpop.f32.mrf.mxu0
  %v3575 = vadd.f32 %v3366, %v3574
  %3576 = vmatmul.f32.gmra.mxu0 %v2706
  %v3577 = vpop.f32.mrf.mxu0
  %v3578 = vadd.f32 %v3369, %v3577
  %3579 = vmatmul.f32.gmra.mxu0 %v2715
  %v3580 = vpop.f32.mrf.mxu0
  %v3581 = vadd.f32 %v3372, %v3580
  %3582 = vmatmul.f32.gmra.mxu0 %v2724
  %v3583 = vpop.f32.mrf.mxu0
  %v3584 = vadd.f32 %v3375, %v3583
  %3585 = vmatmul.f32.gmra.mxu0 %v2733
  %v3586 = vpop.f32.mrf.mxu0
  %v3587 = vadd.f32 %v3378, %v3586
  %3588 = vmatmul.f32.gmra.mxu0 %v2742
  %v3589 = vpop.f32.mrf.mxu0
  %v3590 = vadd.f32 %v3381, %v3589
  %3591 = vmatmul.f32.gmra.mxu0 %v2751
  %v3592 = vpop.f32.mrf.mxu0
  %v3593 = vadd.f32 %v3384, %v3592
  %3594 = vmatmul.f32.gmra.mxu0 %v2760
  %v3595 = vpop.f32.mrf.mxu0
  %v3596 = vadd.f32 %v3387, %v3595
  %3597 = vmatmul.f32.gmra.mxu0 %v2769
  %v3598 = vpop.f32.mrf.mxu0
  %v3599 = vadd.f32 %v3390, %v3598
  %3600 = vmatmul.f32.gmra.mxu0 %v2778
  %v3601 = vpop.f32.mrf.mxu0
  %v3602 = vadd.f32 %v3393, %v3601
  %3603 = vmatmul.f32.gmra.mxu0 %v2787
  %v3604 = vpop.f32.mrf.mxu0
  %v3605 = vadd.f32 %v3396, %v3604
  %3606 = vmatmul.f32.gmra.mxu0 %v2796
  %v3607 = vpop.f32.mrf.mxu0
  %v3608 = vadd.f32 %v3399, %v3607
  %3609 = vmatmul.f32.gmra.mxu0 %v2805
  %v3610 = vpop.f32.mrf.mxu0
  %v3611 = vadd.f32 %v3402, %v3610
  %3612 = vmatmul.f32.gmra.mxu0 %v2814
  %v3613 = vpop.f32.mrf.mxu0
  %v3614 = vadd.f32 %v3405, %v3613
  %3615 = vmatmul.f32.gmra.mxu0 %v2823
  %v3616 = vpop.f32.mrf.mxu0
  %v3617 = vadd.f32 %v3408, %v3616
  %3618 = vmatmul.f32.gmra.mxu0 %v2832
  %v3619 = vpop.f32.mrf.mxu0
  %v3620 = vadd.f32 %v3411, %v3619
  %3621 = vmatmul.f32.gmra.mxu0 %v2841
  %v3622 = vpop.f32.mrf.mxu0
  %v3623 = vadd.f32 %v3414, %v3622
  %3624 = vmatmul.f32.gmra.mxu0 %v2850
  %v3625 = vpop.f32.mrf.mxu0
  %v3626 = vadd.f32 %v3417, %v3625
  %3627 = vmatmul.f32.gmra.mxu0 %v2859
  %v3628 = vpop.f32.mrf.mxu0
  %v3629 = vadd.f32 %v3420, %v3628
  %3630 = vmatmul.f32.gmra.mxu0 %v2868
  %v3631 = vpop.f32.mrf.mxu0
  %v3632 = vadd.f32 %v3423, %v3631
  %3633 = vmatmul.f32.gmra.mxu0 %v2877
  %v3634 = vpop.f32.mrf.mxu0
  %v3635 = vadd.f32 %v3426, %v3634
  %3636 = vmatmul.f32.gmra.mxu0 %v2886
  %v3637 = vpop.f32.mrf.mxu0
  %v3638 = vadd.f32 %v3429, %v3637
  %3639 = vmatmul.f32.gmra.mxu0 %v2895
  %v3640 = vpop.f32.mrf.mxu0
  %v3641 = vadd.f32 %v3432, %v3640
  %3642 = vmatmul.f32.gmra.mxu0 %v2904
  %v3643 = vpop.f32.mrf.mxu0
  %v3644 = vadd.f32 %v3435, %v3643
  %3645 = vmatmul.f32.gmra.mxu0 %v2913
  %v3646 = vpop.f32.mrf.mxu0
  %v3647 = vadd.f32 %v3438, %v3646
  %3648 = vmatmul.f32.gmra.mxu0 %v2922
  %v3649 = vpop.f32.mrf.mxu0
  %v3650 = vadd.f32 %v3441, %v3649
  %3651 = vmatmul.f32.gmra.mxu0 %v2931
  %v3652 = vpop.f32.mrf.mxu0
  %v3653 = vadd.f32 %v3444, %v3652
  %3654 = vmatmul.f32.gmra.mxu0 %v2940
  %v3655 = vpop.f32.mrf.mxu0
  %v3656 = vadd.f32 %v3447, %v3655
  %3657 = vmatmul.f32.gmra.mxu0 %v2949
  %v3658 = vpop.f32.mrf.mxu0
  %v3659 = vadd.f32 %v3450, %v3658
  %3660 = vmatmul.f32.gmra.mxu0 %v2958
  %v3661 = vpop.f32.mrf.mxu0
  %v3662 = vadd.f32 %v3453, %v3661
  %3663 = vmatmul.f32.gmra.mxu0 %v2967
  %v3664 = vpop.f32.mrf.mxu0
  %v3665 = vadd.f32 %v3456, %v3664
  %3666 = vmatmul.f32.gmra.mxu0 %v2976
  %v3667 = vpop.f32.mrf.mxu0
  %v3668 = vadd.f32 %v3459, %v3667
  %3669 = vmatmul.f32.gmra.mxu0 %v2985
  %v3670 = vpop.f32.mrf.mxu0
  %v3671 = vadd.f32 %v3462, %v3670
  %3672 = vmatmul.f32.gmra.mxu0 %v2994
  %v3673 = vpop.f32.mrf.mxu0
  %v3674 = vadd.f32 %v3465, %v3673
  %3675 = vmatmul.f32.gmra.mxu0 %v3003
  %v3676 = vpop.f32.mrf.mxu0
  %v3677 = vadd.f32 %v3468, %v3676
  %3678 = vmatmul.f32.gmra.mxu0 %v3012
  %v3679 = vpop.f32.mrf.mxu0
  %v3680 = vadd.f32 %v3471, %v3679
  %3681 = vmatmul.f32.gmra.mxu0 %v3021
  %v3682 = vpop.f32.mrf.mxu0
  %v3683 = vadd.f32 %v3474, %v3682
  %3684 = vmatmul.f32.gmra.mxu0 %v3030
  %v3685 = vpop.f32.mrf.mxu0
  %v3686 = vadd.f32 %v3477, %v3685
  %3687 = vmatmul.f32.gmra.mxu0 %v3039
  %v3688 = vpop.f32.mrf.mxu0
  %v3689 = vadd.f32 %v3480, %v3688
  %3690 = vmatmul.f32.gmra.mxu0 %v3048
  %v3691 = vpop.f32.mrf.mxu0
  %v3692 = vadd.f32 %v3483, %v3691
  %3693 = vmatmul.f32.gmra.mxu0 %v3057
  %v3694 = vpop.f32.mrf.mxu0
  %v3695 = vadd.f32 %v3486, %v3694
  %3696 = vmatmul.f32.gmra.mxu0 %v3066
  %v3697 = vpop.f32.mrf.mxu0
  %v3698 = vadd.f32 %v3489, %v3697
  %3699 = vdwg.mxu0
  %3700 = vmatpush.msra.mxu0 %v2416
  %3701 = vmatpush.msra.mxu0 %v2415
  %3702 = vmatpush.msra.mxu0 %v2414
  %3703 = vmatpush.msra.mxu0 %v2413
  %3704 = vmatpush.msra.mxu0 %v2412
  %3705 = vmatpush.msra.mxu0 %v2411
  %3706 = vmatpush.msra.mxu0 %v2410
  %3707 = vmatpush.msra.mxu0 %v2409
  %3708 = vmatpush.msra.mxu0 %v2408
  %3709 = vmatpush.msra.mxu0 %v2407
  %3710 = vmatpush.msra.mxu0 %v2406
  %3711 = vmatpush.msra.mxu0 %v2405
  %3712 = vmatpush.msra.mxu0 %v2404
  %3713 = vmatpush.msra.mxu0 %v2403
  %3714 = vmatpush.msra.mxu0 %v2402
  %3715 = vmatpush.msra.mxu0 %v2401
  %3716 = vmatmul.f32.gmra.mxu0 %v2500
  %v3717 = vpop.f32.mrf.mxu0
  %v3718 = vadd.f32 %v3509, %v3717
  %3719 = vmatmul.f32.gmra.mxu0 %v2509
  %v3720 = vpop.f32.mrf.mxu0
  %v3721 = vadd.f32 %v3512, %v3720
  %3722 = vmatmul.f32.gmra.mxu0 %v2518
  %v3723 = vpop.f32.mrf.mxu0
  %v3724 = vadd.f32 %v3515, %v3723
  %3725 = vmatmul.f32.gmra.mxu0 %v2527
  %v3726 = vpop.f32.mrf.mxu0
  %v3727 = vadd.f32 %v3518, %v3726
  %3728 = vmatmul.f32.gmra.mxu0 %v2536
  %v3729 = vpop.f32.mrf.mxu0
  %v3730 = vadd.f32 %v3521, %v3729
  %3731 = vmatmul.f32.gmra.mxu0 %v2545
  %v3732 = vpop.f32.mrf.mxu0
  %v3733 = vadd.f32 %v3524, %v3732
  %3734 = vmatmul.f32.gmra.mxu0 %v2554
  %v3735 = vpop.f32.mrf.mxu0
  %v3736 = vadd.f32 %v3527, %v3735
  %3737 = vmatmul.f32.gmra.mxu0 %v2563
  %v3738 = vpop.f32.mrf.mxu0
  %v3739 = vadd.f32 %v3530, %v3738
  %3740 = vmatmul.f32.gmra.mxu0 %v2572
  %v3741 = vpop.f32.mrf.mxu0
  %v3742 = vadd.f32 %v3533, %v3741
  %3743 = vmatmul.f32.gmra.mxu0 %v2581
  %v3744 = vpop.f32.mrf.mxu0
  %v3745 = vadd.f32 %v3536, %v3744
  %3746 = vmatmul.f32.gmra.mxu0 %v2590
  %v3747 = vpop.f32.mrf.mxu0
  %v3748 = vadd.f32 %v3539, %v3747
  %3749 = vmatmul.f32.gmra.mxu0 %v2599
  %v3750 = vpop.f32.mrf.mxu0
  %v3751 = vadd.f32 %v3542, %v3750
  %3752 = vmatmul.f32.gmra.mxu0 %v2608
  %v3753 = vpop.f32.mrf.mxu0
  %v3754 = vadd.f32 %v3545, %v3753
  %3755 = vmatmul.f32.gmra.mxu0 %v2617
  %v3756 = vpop.f32.mrf.mxu0
  %v3757 = vadd.f32 %v3548, %v3756
  %3758 = vmatmul.f32.gmra.mxu0 %v2626
  %v3759 = vpop.f32.mrf.mxu0
  %v3760 = vadd.f32 %v3551, %v3759
  %3761 = vmatmul.f32.gmra.mxu0 %v2635
  %v3762 = vpop.f32.mrf.mxu0
  %v3763 = vadd.f32 %v3554, %v3762
  %3764 = vmatmul.f32.gmra.mxu0 %v2644
  %v3765 = vpop.f32.mrf.mxu0
  %v3766 = vadd.f32 %v3557, %v3765
  %3767 = vmatmul.f32.gmra.mxu0 %v2653
  %v3768 = vpop.f32.mrf.mxu0
  %v3769 = vadd.f32 %v3560, %v3768
  %3770 = vmatmul.f32.gmra.mxu0 %v2662
  %v3771 = vpop.f32.mrf.mxu0
  %v3772 = vadd.f32 %v3563, %v3771
  %3773 = vmatmul.f32.gmra.mxu0 %v2671
  %v3774 = vpop.f32.mrf.mxu0
  %v3775 = vadd.f32 %v3566, %v3774
  %3776 = vmatmul.f32.gmra.mxu0 %v2680
  %v3777 = vpop.f32.mrf.mxu0
  %v3778 = vadd.f32 %v3569, %v3777
  %3779 = vmatmul.f32.gmra.mxu0 %v2689
  %v3780 = vpop.f32.mrf.mxu0
  %v3781 = vadd.f32 %v3572, %v3780
  %3782 = vmatmul.f32.gmra.mxu0 %v2698
  %v3783 = vpop.f32.mrf.mxu0
  %v3784 = vadd.f32 %v3575, %v3783
  %3785 = vmatmul.f32.gmra.mxu0 %v2707
  %v3786 = vpop.f32.mrf.mxu0
  %v3787 = vadd.f32 %v3578, %v3786
  %3788 = vmatmul.f32.gmra.mxu0 %v2716
  %v3789 = vpop.f32.mrf.mxu0
  %v3790 = vadd.f32 %v3581, %v3789
  %3791 = vmatmul.f32.gmra.mxu0 %v2725
  %v3792 = vpop.f32.mrf.mxu0
  %v3793 = vadd.f32 %v3584, %v3792
  %3794 = vmatmul.f32.gmra.mxu0 %v2734
  %v3795 = vpop.f32.mrf.mxu0
  %v3796 = vadd.f32 %v3587, %v3795
  %3797 = vmatmul.f32.gmra.mxu0 %v2743
  %v3798 = vpop.f32.mrf.mxu0
  %v3799 = vadd.f32 %v3590, %v3798
  %3800 = vmatmul.f32.gmra.mxu0 %v2752
  %v3801 = vpop.f32.mrf.mxu0
  %v3802 = vadd.f32 %v3593, %v3801
  %3803 = vmatmul.f32.gmra.mxu0 %v2761
  %v3804 = vpop.f32.mrf.mxu0
  %v3805 = vadd.f32 %v3596, %v3804
  %3806 = vmatmul.f32.gmra.mxu0 %v2770
  %v3807 = vpop.f32.mrf.mxu0
  %v3808 = vadd.f32 %v3599, %v3807
  %3809 = vmatmul.f32.gmra.mxu0 %v2779
  %v3810 = vpop.f32.mrf.mxu0
  %v3811 = vadd.f32 %v3602, %v3810
  %3812 = vmatmul.f32.gmra.mxu0 %v2788
  %v3813 = vpop.f32.mrf.mxu0
  %v3814 = vadd.f32 %v3605, %v3813
  %3815 = vmatmul.f32.gmra.mxu0 %v2797
  %v3816 = vpop.f32.mrf.mxu0
  %v3817 = vadd.f32 %v3608, %v3816
  %3818 = vmatmul.f32.gmra.mxu0 %v2806
  %v3819 = vpop.f32.mrf.mxu0
  %v3820 = vadd.f32 %v3611, %v3819
  %3821 = vmatmul.f32.gmra.mxu0 %v2815
  %v3822 = vpop.f32.mrf.mxu0
  %v3823 = vadd.f32 %v3614, %v3822
  %3824 = vmatmul.f32.gmra.mxu0 %v2824
  %v3825 = vpop.f32.mrf.mxu0
  %v3826 = vadd.f32 %v3617, %v3825
  %3827 = vmatmul.f32.gmra.mxu0 %v2833
  %v3828 = vpop.f32.mrf.mxu0
  %v3829 = vadd.f32 %v3620, %v3828
  %3830 = vmatmul.f32.gmra.mxu0 %v2842
  %v3831 = vpop.f32.mrf.mxu0
  %v3832 = vadd.f32 %v3623, %v3831
  %3833 = vmatmul.f32.gmra.mxu0 %v2851
  %v3834 = vpop.f32.mrf.mxu0
  %v3835 = vadd.f32 %v3626, %v3834
  %3836 = vmatmul.f32.gmra.mxu0 %v2860
  %v3837 = vpop.f32.mrf.mxu0
  %v3838 = vadd.f32 %v3629, %v3837
  %3839 = vmatmul.f32.gmra.mxu0 %v2869
  %v3840 = vpop.f32.mrf.mxu0
  %v3841 = vadd.f32 %v3632, %v3840
  %3842 = vmatmul.f32.gmra.mxu0 %v2878
  %v3843 = vpop.f32.mrf.mxu0
  %v3844 = vadd.f32 %v3635, %v3843
  %3845 = vmatmul.f32.gmra.mxu0 %v2887
  %v3846 = vpop.f32.mrf.mxu0
  %v3847 = vadd.f32 %v3638, %v3846
  %3848 = vmatmul.f32.gmra.mxu0 %v2896
  %v3849 = vpop.f32.mrf.mxu0
  %v3850 = vadd.f32 %v3641, %v3849
  %3851 = vmatmul.f32.gmra.mxu0 %v2905
  %v3852 = vpop.f32.mrf.mxu0
  %v3853 = vadd.f32 %v3644, %v3852
  %3854 = vmatmul.f32.gmra.mxu0 %v2914
  %v3855 = vpop.f32.mrf.mxu0
  %v3856 = vadd.f32 %v3647, %v3855
  %3857 = vmatmul.f32.gmra.mxu0 %v2923
  %v3858 = vpop.f32.mrf.mxu0
  %v3859 = vadd.f32 %v3650, %v3858
  %3860 = vmatmul.f32.gmra.mxu0 %v2932
  %v3861 = vpop.f32.mrf.mxu0
  %v3862 = vadd.f32 %v3653, %v3861
  %3863 = vmatmul.f32.gmra.mxu0 %v2941
  %v3864 = vpop.f32.mrf.mxu0
  %v3865 = vadd.f32 %v3656, %v3864
  %3866 = vmatmul.f32.gmra.mxu0 %v2950
  %v3867 = vpop.f32.mrf.mxu0
  %v3868 = vadd.f32 %v3659, %v3867
  %3869 = vmatmul.f32.gmra.mxu0 %v2959
  %v3870 = vpop.f32.mrf.mxu0
  %v3871 = vadd.f32 %v3662, %v3870
  %3872 = vmatmul.f32.gmra.mxu0 %v2968
  %v3873 = vpop.f32.mrf.mxu0
  %v3874 = vadd.f32 %v3665, %v3873
  %3875 = vmatmul.f32.gmra.mxu0 %v2977
  %v3876 = vpop.f32.mrf.mxu0
  %v3877 = vadd.f32 %v3668, %v3876
  %3878 = vmatmul.f32.gmra.mxu0 %v2986
  %v3879 = vpop.f32.mrf.mxu0
  %v3880 = vadd.f32 %v3671, %v3879
  %3881 = vmatmul.f32.gmra.mxu0 %v2995
  %v3882 = vpop.f32.mrf.mxu0
  %v3883 = vadd.f32 %v3674, %v3882
  %3884 = vmatmul.f32.gmra.mxu0 %v3004
  %v3885 = vpop.f32.mrf.mxu0
  %v3886 = vadd.f32 %v3677, %v3885
  %3887 = vmatmul.f32.gmra.mxu0 %v3013
  %v3888 = vpop.f32.mrf.mxu0
  %v3889 = vadd.f32 %v3680, %v3888
  %3890 = vmatmul.f32.gmra.mxu0 %v3022
  %v3891 = vpop.f32.mrf.mxu0
  %v3892 = vadd.f32 %v3683, %v3891
  %3893 = vmatmul.f32.gmra.mxu0 %v3031
  %v3894 = vpop.f32.mrf.mxu0
  %v3895 = vadd.f32 %v3686, %v3894
  %3896 = vmatmul.f32.gmra.mxu0 %v3040
  %v3897 = vpop.f32.mrf.mxu0
  %v3898 = vadd.f32 %v3689, %v3897
  %3899 = vmatmul.f32.gmra.mxu0 %v3049
  %v3900 = vpop.f32.mrf.mxu0
  %v3901 = vadd.f32 %v3692, %v3900
  %3902 = vmatmul.f32.gmra.mxu0 %v3058
  %v3903 = vpop.f32.mrf.mxu0
  %v3904 = vadd.f32 %v3695, %v3903
  %3905 = vmatmul.f32.gmra.mxu0 %v3067
  %v3906 = vpop.f32.mrf.mxu0
  %v3907 = vadd.f32 %v3698, %v3906
  %3908 = vdwg.mxu0
  %3909 = vmatpush.msra.mxu0 %v2432
  %3910 = vmatpush.msra.mxu0 %v2431
  %3911 = vmatpush.msra.mxu0 %v2430
  %3912 = vmatpush.msra.mxu0 %v2429
  %3913 = vmatpush.msra.mxu0 %v2428
  %3914 = vmatpush.msra.mxu0 %v2427
  %3915 = vmatpush.msra.mxu0 %v2426
  %3916 = vmatpush.msra.mxu0 %v2425
  %3917 = vmatpush.msra.mxu0 %v2424
  %3918 = vmatpush.msra.mxu0 %v2423
  %3919 = vmatpush.msra.mxu0 %v2422
  %3920 = vmatpush.msra.mxu0 %v2421
  %3921 = vmatpush.msra.mxu0 %v2420
  %3922 = vmatpush.msra.mxu0 %v2419
  %3923 = vmatpush.msra.mxu0 %v2418
  %3924 = vmatpush.msra.mxu0 %v2417
  %3925 = vmatmul.f32.gmra.mxu0 %v2501
  %v3926 = vpop.f32.mrf.mxu0
  %v3927 = vadd.f32 %v3718, %v3926
  %3928 = vmatmul.f32.gmra.mxu0 %v2510
  %v3929 = vpop.f32.mrf.mxu0
  %v3930 = vadd.f32 %v3721, %v3929
  %3931 = vmatmul.f32.gmra.mxu0 %v2519
  %v3932 = vpop.f32.mrf.mxu0
  %v3933 = vadd.f32 %v3724, %v3932
  %3934 = vmatmul.f32.gmra.mxu0 %v2528
  %v3935 = vpop.f32.mrf.mxu0
  %v3936 = vadd.f32 %v3727, %v3935
  %3937 = vmatmul.f32.gmra.mxu0 %v2537
  %v3938 = vpop.f32.mrf.mxu0
  %v3939 = vadd.f32 %v3730, %v3938
  %3940 = vmatmul.f32.gmra.mxu0 %v2546
  %v3941 = vpop.f32.mrf.mxu0
  %v3942 = vadd.f32 %v3733, %v3941
  %3943 = vmatmul.f32.gmra.mxu0 %v2555
  %v3944 = vpop.f32.mrf.mxu0
  %v3945 = vadd.f32 %v3736, %v3944
  %3946 = vmatmul.f32.gmra.mxu0 %v2564
  %v3947 = vpop.f32.mrf.mxu0
  %v3948 = vadd.f32 %v3739, %v3947
  %3949 = vmatmul.f32.gmra.mxu0 %v2573
  %v3950 = vpop.f32.mrf.mxu0
  %v3951 = vadd.f32 %v3742, %v3950
  %3952 = vmatmul.f32.gmra.mxu0 %v2582
  %v3953 = vpop.f32.mrf.mxu0
  %v3954 = vadd.f32 %v3745, %v3953
  %3955 = vmatmul.f32.gmra.mxu0 %v2591
  %v3956 = vpop.f32.mrf.mxu0
  %v3957 = vadd.f32 %v3748, %v3956
  %3958 = vmatmul.f32.gmra.mxu0 %v2600
  %v3959 = vpop.f32.mrf.mxu0
  %v3960 = vadd.f32 %v3751, %v3959
  %3961 = vmatmul.f32.gmra.mxu0 %v2609
  %v3962 = vpop.f32.mrf.mxu0
  %v3963 = vadd.f32 %v3754, %v3962
  %3964 = vmatmul.f32.gmra.mxu0 %v2618
  %v3965 = vpop.f32.mrf.mxu0
  %v3966 = vadd.f32 %v3757, %v3965
  %3967 = vmatmul.f32.gmra.mxu0 %v2627
  %v3968 = vpop.f32.mrf.mxu0
  %v3969 = vadd.f32 %v3760, %v3968
  %3970 = vmatmul.f32.gmra.mxu0 %v2636
  %v3971 = vpop.f32.mrf.mxu0
  %v3972 = vadd.f32 %v3763, %v3971
  %3973 = vmatmul.f32.gmra.mxu0 %v2645
  %v3974 = vpop.f32.mrf.mxu0
  %v3975 = vadd.f32 %v3766, %v3974
  %3976 = vmatmul.f32.gmra.mxu0 %v2654
  %v3977 = vpop.f32.mrf.mxu0
  %v3978 = vadd.f32 %v3769, %v3977
  %3979 = vmatmul.f32.gmra.mxu0 %v2663
  %v3980 = vpop.f32.mrf.mxu0
  %v3981 = vadd.f32 %v3772, %v3980
  %3982 = vmatmul.f32.gmra.mxu0 %v2672
  %v3983 = vpop.f32.mrf.mxu0
  %v3984 = vadd.f32 %v3775, %v3983
  %3985 = vmatmul.f32.gmra.mxu0 %v2681
  %v3986 = vpop.f32.mrf.mxu0
  %v3987 = vadd.f32 %v3778, %v3986
  %3988 = vmatmul.f32.gmra.mxu0 %v2690
  %v3989 = vpop.f32.mrf.mxu0
  %v3990 = vadd.f32 %v3781, %v3989
  %3991 = vmatmul.f32.gmra.mxu0 %v2699
  %v3992 = vpop.f32.mrf.mxu0
  %v3993 = vadd.f32 %v3784, %v3992
  %3994 = vmatmul.f32.gmra.mxu0 %v2708
  %v3995 = vpop.f32.mrf.mxu0
  %v3996 = vadd.f32 %v3787, %v3995
  %3997 = vmatmul.f32.gmra.mxu0 %v2717
  %v3998 = vpop.f32.mrf.mxu0
  %v3999 = vadd.f32 %v3790, %v3998
  %4000 = vmatmul.f32.gmra.mxu0 %v2726
  %v4001 = vpop.f32.mrf.mxu0
  %v4002 = vadd.f32 %v3793, %v4001
  %4003 = vmatmul.f32.gmra.mxu0 %v2735
  %v4004 = vpop.f32.mrf.mxu0
  %v4005 = vadd.f32 %v3796, %v4004
  %4006 = vmatmul.f32.gmra.mxu0 %v2744
  %v4007 = vpop.f32.mrf.mxu0
  %v4008 = vadd.f32 %v3799, %v4007
  %4009 = vmatmul.f32.gmra.mxu0 %v2753
  %v4010 = vpop.f32.mrf.mxu0
  %v4011 = vadd.f32 %v3802, %v4010
  %4012 = vmatmul.f32.gmra.mxu0 %v2762
  %v4013 = vpop.f32.mrf.mxu0
  %v4014 = vadd.f32 %v3805, %v4013
  %4015 = vmatmul.f32.gmra.mxu0 %v2771
  %v4016 = vpop.f32.mrf.mxu0
  %v4017 = vadd.f32 %v3808, %v4016
  %4018 = vmatmul.f32.gmra.mxu0 %v2780
  %v4019 = vpop.f32.mrf.mxu0
  %v4020 = vadd.f32 %v3811, %v4019
  %4021 = vmatmul.f32.gmra.mxu0 %v2789
  %v4022 = vpop.f32.mrf.mxu0
  %v4023 = vadd.f32 %v3814, %v4022
  %4024 = vmatmul.f32.gmra.mxu0 %v2798
  %v4025 = vpop.f32.mrf.mxu0
  %v4026 = vadd.f32 %v3817, %v4025
  %4027 = vmatmul.f32.gmra.mxu0 %v2807
  %v4028 = vpop.f32.mrf.mxu0
  %v4029 = vadd.f32 %v3820, %v4028
  %4030 = vmatmul.f32.gmra.mxu0 %v2816
  %v4031 = vpop.f32.mrf.mxu0
  %v4032 = vadd.f32 %v3823, %v4031
  %4033 = vmatmul.f32.gmra.mxu0 %v2825
  %v4034 = vpop.f32.mrf.mxu0
  %v4035 = vadd.f32 %v3826, %v4034
  %4036 = vmatmul.f32.gmra.mxu0 %v2834
  %v4037 = vpop.f32.mrf.mxu0
  %v4038 = vadd.f32 %v3829, %v4037
  %4039 = vmatmul.f32.gmra.mxu0 %v2843
  %v4040 = vpop.f32.mrf.mxu0
  %v4041 = vadd.f32 %v3832, %v4040
  %4042 = vmatmul.f32.gmra.mxu0 %v2852
  %v4043 = vpop.f32.mrf.mxu0
  %v4044 = vadd.f32 %v3835, %v4043
  %4045 = vmatmul.f32.gmra.mxu0 %v2861
  %v4046 = vpop.f32.mrf.mxu0
  %v4047 = vadd.f32 %v3838, %v4046
  %4048 = vmatmul.f32.gmra.mxu0 %v2870
  %v4049 = vpop.f32.mrf.mxu0
  %v4050 = vadd.f32 %v3841, %v4049
  %4051 = vmatmul.f32.gmra.mxu0 %v2879
  %v4052 = vpop.f32.mrf.mxu0
  %v4053 = vadd.f32 %v3844, %v4052
  %4054 = vmatmul.f32.gmra.mxu0 %v2888
  %v4055 = vpop.f32.mrf.mxu0
  %v4056 = vadd.f32 %v3847, %v4055
  %4057 = vmatmul.f32.gmra.mxu0 %v2897
  %v4058 = vpop.f32.mrf.mxu0
  %v4059 = vadd.f32 %v3850, %v4058
  %4060 = vmatmul.f32.gmra.mxu0 %v2906
  %v4061 = vpop.f32.mrf.mxu0
  %v4062 = vadd.f32 %v3853, %v4061
  %4063 = vmatmul.f32.gmra.mxu0 %v2915
  %v4064 = vpop.f32.mrf.mxu0
  %v4065 = vadd.f32 %v3856, %v4064
  %4066 = vmatmul.f32.gmra.mxu0 %v2924
  %v4067 = vpop.f32.mrf.mxu0
  %v4068 = vadd.f32 %v3859, %v4067
  %4069 = vmatmul.f32.gmra.mxu0 %v2933
  %v4070 = vpop.f32.mrf.mxu0
  %v4071 = vadd.f32 %v3862, %v4070
  %4072 = vmatmul.f32.gmra.mxu0 %v2942
  %v4073 = vpop.f32.mrf.mxu0
  %v4074 = vadd.f32 %v3865, %v4073
  %4075 = vmatmul.f32.gmra.mxu0 %v2951
  %v4076 = vpop.f32.mrf.mxu0
  %v4077 = vadd.f32 %v3868, %v4076
  %4078 = vmatmul.f32.gmra.mxu0 %v2960
  %v4079 = vpop.f32.mrf.mxu0
  %v4080 = vadd.f32 %v3871, %v4079
  %4081 = vmatmul.f32.gmra.mxu0 %v2969
  %v4082 = vpop.f32.mrf.mxu0
  %v4083 = vadd.f32 %v3874, %v4082
  %4084 = vmatmul.f32.gmra.mxu0 %v2978
  %v4085 = vpop.f32.mrf.mxu0
  %v4086 = vadd.f32 %v3877, %v4085
  %4087 = vmatmul.f32.gmra.mxu0 %v2987
  %v4088 = vpop.f32.mrf.mxu0
  %v4089 = vadd.f32 %v3880, %v4088
  %4090 = vmatmul.f32.gmra.mxu0 %v2996
  %v4091 = vpop.f32.mrf.mxu0
  %v4092 = vadd.f32 %v3883, %v4091
  %4093 = vmatmul.f32.gmra.mxu0 %v3005
  %v4094 = vpop.f32.mrf.mxu0
  %v4095 = vadd.f32 %v3886, %v4094
  %4096 = vmatmul.f32.gmra.mxu0 %v3014
  %v4097 = vpop.f32.mrf.mxu0
  %v4098 = vadd.f32 %v3889, %v4097
  %4099 = vmatmul.f32.gmra.mxu0 %v3023
  %v4100 = vpop.f32.mrf.mxu0
  %v4101 = vadd.f32 %v3892, %v4100
  %4102 = vmatmul.f32.gmra.mxu0 %v3032
  %v4103 = vpop.f32.mrf.mxu0
  %v4104 = vadd.f32 %v3895, %v4103
  %4105 = vmatmul.f32.gmra.mxu0 %v3041
  %v4106 = vpop.f32.mrf.mxu0
  %v4107 = vadd.f32 %v3898, %v4106
  %4108 = vmatmul.f32.gmra.mxu0 %v3050
  %v4109 = vpop.f32.mrf.mxu0
  %v4110 = vadd.f32 %v3901, %v4109
  %4111 = vmatmul.f32.gmra.mxu0 %v3059
  %v4112 = vpop.f32.mrf.mxu0
  %v4113 = vadd.f32 %v3904, %v4112
  %4114 = vmatmul.f32.gmra.mxu0 %v3068
  %v4115 = vpop.f32.mrf.mxu0
  %v4116 = vadd.f32 %v3907, %v4115
  %4117 = vdwg.mxu0
  %4118 = vmatpush.msra.mxu0 %v2448
  %4119 = vmatpush.msra.mxu0 %v2447
  %4120 = vmatpush.msra.mxu0 %v2446
  %4121 = vmatpush.msra.mxu0 %v2445
  %4122 = vmatpush.msra.mxu0 %v2444
  %4123 = vmatpush.msra.mxu0 %v2443
  %4124 = vmatpush.msra.mxu0 %v2442
  %4125 = vmatpush.msra.mxu0 %v2441
  %4126 = vmatpush.msra.mxu0 %v2440
  %4127 = vmatpush.msra.mxu0 %v2439
  %4128 = vmatpush.msra.mxu0 %v2438
  %4129 = vmatpush.msra.mxu0 %v2437
  %4130 = vmatpush.msra.mxu0 %v2436
  %4131 = vmatpush.msra.mxu0 %v2435
  %4132 = vmatpush.msra.mxu0 %v2434
  %4133 = vmatpush.msra.mxu0 %v2433
  %4134 = vmatmul.f32.gmra.mxu0 %v2502
  %v4135 = vpop.f32.mrf.mxu0
  %v4136 = vadd.f32 %v3927, %v4135
  %4137 = vmatmul.f32.gmra.mxu0 %v2511
  %v4138 = vpop.f32.mrf.mxu0
  %v4139 = vadd.f32 %v3930, %v4138
  %4140 = vmatmul.f32.gmra.mxu0 %v2520
  %v4141 = vpop.f32.mrf.mxu0
  %v4142 = vadd.f32 %v3933, %v4141
  %4143 = vmatmul.f32.gmra.mxu0 %v2529
  %v4144 = vpop.f32.mrf.mxu0
  %v4145 = vadd.f32 %v3936, %v4144
  %4146 = vmatmul.f32.gmra.mxu0 %v2538
  %v4147 = vpop.f32.mrf.mxu0
  %v4148 = vadd.f32 %v3939, %v4147
  %4149 = vmatmul.f32.gmra.mxu0 %v2547
  %v4150 = vpop.f32.mrf.mxu0
  %v4151 = vadd.f32 %v3942, %v4150
  %4152 = vmatmul.f32.gmra.mxu0 %v2556
  %v4153 = vpop.f32.mrf.mxu0
  %v4154 = vadd.f32 %v3945, %v4153
  %4155 = vmatmul.f32.gmra.mxu0 %v2565
  %v4156 = vpop.f32.mrf.mxu0
  %v4157 = vadd.f32 %v3948, %v4156
  %4158 = vmatmul.f32.gmra.mxu0 %v2574
  %v4159 = vpop.f32.mrf.mxu0
  %v4160 = vadd.f32 %v3951, %v4159
  %4161 = vmatmul.f32.gmra.mxu0 %v2583
  %v4162 = vpop.f32.mrf.mxu0
  %v4163 = vadd.f32 %v3954, %v4162
  %4164 = vmatmul.f32.gmra.mxu0 %v2592
  %v4165 = vpop.f32.mrf.mxu0
  %v4166 = vadd.f32 %v3957, %v4165
  %4167 = vmatmul.f32.gmra.mxu0 %v2601
  %v4168 = vpop.f32.mrf.mxu0
  %v4169 = vadd.f32 %v3960, %v4168
  %4170 = vmatmul.f32.gmra.mxu0 %v2610
  %v4171 = vpop.f32.mrf.mxu0
  %v4172 = vadd.f32 %v3963, %v4171
  %4173 = vmatmul.f32.gmra.mxu0 %v2619
  %v4174 = vpop.f32.mrf.mxu0
  %v4175 = vadd.f32 %v3966, %v4174
  %4176 = vmatmul.f32.gmra.mxu0 %v2628
  %v4177 = vpop.f32.mrf.mxu0
  %v4178 = vadd.f32 %v3969, %v4177
  %4179 = vmatmul.f32.gmra.mxu0 %v2637
  %v4180 = vpop.f32.mrf.mxu0
  %v4181 = vadd.f32 %v3972, %v4180
  %4182 = vmatmul.f32.gmra.mxu0 %v2646
  %v4183 = vpop.f32.mrf.mxu0
  %v4184 = vadd.f32 %v3975, %v4183
  %4185 = vmatmul.f32.gmra.mxu0 %v2655
  %v4186 = vpop.f32.mrf.mxu0
  %v4187 = vadd.f32 %v3978, %v4186
  %4188 = vmatmul.f32.gmra.mxu0 %v2664
  %v4189 = vpop.f32.mrf.mxu0
  %v4190 = vadd.f32 %v3981, %v4189
  %4191 = vmatmul.f32.gmra.mxu0 %v2673
  %v4192 = vpop.f32.mrf.mxu0
  %v4193 = vadd.f32 %v3984, %v4192
  %4194 = vmatmul.f32.gmra.mxu0 %v2682
  %v4195 = vpop.f32.mrf.mxu0
  %v4196 = vadd.f32 %v3987, %v4195
  %4197 = vmatmul.f32.gmra.mxu0 %v2691
  %v4198 = vpop.f32.mrf.mxu0
  %v4199 = vadd.f32 %v3990, %v4198
  %4200 = vmatmul.f32.gmra.mxu0 %v2700
  %v4201 = vpop.f32.mrf.mxu0
  %v4202 = vadd.f32 %v3993, %v4201
  %4203 = vmatmul.f32.gmra.mxu0 %v2709
  %v4204 = vpop.f32.mrf.mxu0
  %v4205 = vadd.f32 %v3996, %v4204
  %4206 = vmatmul.f32.gmra.mxu0 %v2718
  %v4207 = vpop.f32.mrf.mxu0
  %v4208 = vadd.f32 %v3999, %v4207
  %4209 = vmatmul.f32.gmra.mxu0 %v2727
  %v4210 = vpop.f32.mrf.mxu0
  %v4211 = vadd.f32 %v4002, %v4210
  %4212 = vmatmul.f32.gmra.mxu0 %v2736
  %v4213 = vpop.f32.mrf.mxu0
  %v4214 = vadd.f32 %v4005, %v4213
  %4215 = vmatmul.f32.gmra.mxu0 %v2745
  %v4216 = vpop.f32.mrf.mxu0
  %v4217 = vadd.f32 %v4008, %v4216
  %4218 = vmatmul.f32.gmra.mxu0 %v2754
  %v4219 = vpop.f32.mrf.mxu0
  %v4220 = vadd.f32 %v4011, %v4219
  %4221 = vmatmul.f32.gmra.mxu0 %v2763
  %v4222 = vpop.f32.mrf.mxu0
  %v4223 = vadd.f32 %v4014, %v4222
  %4224 = vmatmul.f32.gmra.mxu0 %v2772
  %v4225 = vpop.f32.mrf.mxu0
  %v4226 = vadd.f32 %v4017, %v4225
  %4227 = vmatmul.f32.gmra.mxu0 %v2781
  %v4228 = vpop.f32.mrf.mxu0
  %v4229 = vadd.f32 %v4020, %v4228
  %4230 = vmatmul.f32.gmra.mxu0 %v2790
  %v4231 = vpop.f32.mrf.mxu0
  %v4232 = vadd.f32 %v4023, %v4231
  %4233 = vmatmul.f32.gmra.mxu0 %v2799
  %v4234 = vpop.f32.mrf.mxu0
  %v4235 = vadd.f32 %v4026, %v4234
  %4236 = vmatmul.f32.gmra.mxu0 %v2808
  %v4237 = vpop.f32.mrf.mxu0
  %v4238 = vadd.f32 %v4029, %v4237
  %4239 = vmatmul.f32.gmra.mxu0 %v2817
  %v4240 = vpop.f32.mrf.mxu0
  %v4241 = vadd.f32 %v4032, %v4240
  %4242 = vmatmul.f32.gmra.mxu0 %v2826
  %v4243 = vpop.f32.mrf.mxu0
  %v4244 = vadd.f32 %v4035, %v4243
  %4245 = vmatmul.f32.gmra.mxu0 %v2835
  %v4246 = vpop.f32.mrf.mxu0
  %v4247 = vadd.f32 %v4038, %v4246
  %4248 = vmatmul.f32.gmra.mxu0 %v2844
  %v4249 = vpop.f32.mrf.mxu0
  %v4250 = vadd.f32 %v4041, %v4249
  %4251 = vmatmul.f32.gmra.mxu0 %v2853
  %v4252 = vpop.f32.mrf.mxu0
  %v4253 = vadd.f32 %v4044, %v4252
  %4254 = vmatmul.f32.gmra.mxu0 %v2862
  %v4255 = vpop.f32.mrf.mxu0
  %v4256 = vadd.f32 %v4047, %v4255
  %4257 = vmatmul.f32.gmra.mxu0 %v2871
  %v4258 = vpop.f32.mrf.mxu0
  %v4259 = vadd.f32 %v4050, %v4258
  %4260 = vmatmul.f32.gmra.mxu0 %v2880
  %v4261 = vpop.f32.mrf.mxu0
  %v4262 = vadd.f32 %v4053, %v4261
  %4263 = vmatmul.f32.gmra.mxu0 %v2889
  %v4264 = vpop.f32.mrf.mxu0
  %v4265 = vadd.f32 %v4056, %v4264
  %4266 = vmatmul.f32.gmra.mxu0 %v2898
  %v4267 = vpop.f32.mrf.mxu0
  %v4268 = vadd.f32 %v4059, %v4267
  %4269 = vmatmul.f32.gmra.mxu0 %v2907
  %v4270 = vpop.f32.mrf.mxu0
  %v4271 = vadd.f32 %v4062, %v4270
  %4272 = vmatmul.f32.gmra.mxu0 %v2916
  %v4273 = vpop.f32.mrf.mxu0
  %v4274 = vadd.f32 %v4065, %v4273
  %4275 = vmatmul.f32.gmra.mxu0 %v2925
  %v4276 = vpop.f32.mrf.mxu0
  %v4277 = vadd.f32 %v4068, %v4276
  %4278 = vmatmul.f32.gmra.mxu0 %v2934
  %v4279 = vpop.f32.mrf.mxu0
  %v4280 = vadd.f32 %v4071, %v4279
  %4281 = vmatmul.f32.gmra.mxu0 %v2943
  %v4282 = vpop.f32.mrf.mxu0
  %v4283 = vadd.f32 %v4074, %v4282
  %4284 = vmatmul.f32.gmra.mxu0 %v2952
  %v4285 = vpop.f32.mrf.mxu0
  %v4286 = vadd.f32 %v4077, %v4285
  %4287 = vmatmul.f32.gmra.mxu0 %v2961
  %v4288 = vpop.f32.mrf.mxu0
  %v4289 = vadd.f32 %v4080, %v4288
  %4290 = vmatmul.f32.gmra.mxu0 %v2970
  %v4291 = vpop.f32.mrf.mxu0
  %v4292 = vadd.f32 %v4083, %v4291
  %4293 = vmatmul.f32.gmra.mxu0 %v2979
  %v4294 = vpop.f32.mrf.mxu0
  %v4295 = vadd.f32 %v4086, %v4294
  %4296 = vmatmul.f32.gmra.mxu0 %v2988
  %v4297 = vpop.f32.mrf.mxu0
  %v4298 = vadd.f32 %v4089, %v4297
  %4299 = vmatmul.f32.gmra.mxu0 %v2997
  %v4300 = vpop.f32.mrf.mxu0
  %v4301 = vadd.f32 %v4092, %v4300
  %4302 = vmatmul.f32.gmra.mxu0 %v3006
  %v4303 = vpop.f32.mrf.mxu0
  %v4304 = vadd.f32 %v4095, %v4303
  %4305 = vmatmul.f32.gmra.mxu0 %v3015
  %v4306 = vpop.f32.mrf.mxu0
  %v4307 = vadd.f32 %v4098, %v4306
  %4308 = vmatmul.f32.gmra.mxu0 %v3024
  %v4309 = vpop.f32.mrf.mxu0
  %v4310 = vadd.f32 %v4101, %v4309
  %4311 = vmatmul.f32.gmra.mxu0 %v3033
  %v4312 = vpop.f32.mrf.mxu0
  %v4313 = vadd.f32 %v4104, %v4312
  %4314 = vmatmul.f32.gmra.mxu0 %v3042
  %v4315 = vpop.f32.mrf.mxu0
  %v4316 = vadd.f32 %v4107, %v4315
  %4317 = vmatmul.f32.gmra.mxu0 %v3051
  %v4318 = vpop.f32.mrf.mxu0
  %v4319 = vadd.f32 %v4110, %v4318
  %4320 = vmatmul.f32.gmra.mxu0 %v3060
  %v4321 = vpop.f32.mrf.mxu0
  %v4322 = vadd.f32 %v4113, %v4321
  %4323 = vmatmul.f32.gmra.mxu0 %v3069
  %v4324 = vpop.f32.mrf.mxu0
  %v4325 = vadd.f32 %v4116, %v4324
  %4326 = vdwg.mxu0
  %4327 = vmatpush.msra.mxu0 %v2464
  %4328 = vmatpush.msra.mxu0 %v2463
  %4329 = vmatpush.msra.mxu0 %v2462
  %4330 = vmatpush.msra.mxu0 %v2461
  %4331 = vmatpush.msra.mxu0 %v2460
  %4332 = vmatpush.msra.mxu0 %v2459
  %4333 = vmatpush.msra.mxu0 %v2458
  %4334 = vmatpush.msra.mxu0 %v2457
  %4335 = vmatpush.msra.mxu0 %v2456
  %4336 = vmatpush.msra.mxu0 %v2455
  %4337 = vmatpush.msra.mxu0 %v2454
  %4338 = vmatpush.msra.mxu0 %v2453
  %4339 = vmatpush.msra.mxu0 %v2452
  %4340 = vmatpush.msra.mxu0 %v2451
  %4341 = vmatpush.msra.mxu0 %v2450
  %4342 = vmatpush.msra.mxu0 %v2449
  %4343 = vmatmul.f32.gmra.mxu0 %v2503
  %v4344 = vpop.f32.mrf.mxu0
  %v4345 = vadd.f32 %v4136, %v4344
  %4346 = vmatmul.f32.gmra.mxu0 %v2512
  %v4347 = vpop.f32.mrf.mxu0
  %v4348 = vadd.f32 %v4139, %v4347
  %4349 = vmatmul.f32.gmra.mxu0 %v2521
  %v4350 = vpop.f32.mrf.mxu0
  %v4351 = vadd.f32 %v4142, %v4350
  %4352 = vmatmul.f32.gmra.mxu0 %v2530
  %v4353 = vpop.f32.mrf.mxu0
  %v4354 = vadd.f32 %v4145, %v4353
  %4355 = vmatmul.f32.gmra.mxu0 %v2539
  %v4356 = vpop.f32.mrf.mxu0
  %v4357 = vadd.f32 %v4148, %v4356
  %4358 = vmatmul.f32.gmra.mxu0 %v2548
  %v4359 = vpop.f32.mrf.mxu0
  %v4360 = vadd.f32 %v4151, %v4359
  %4361 = vmatmul.f32.gmra.mxu0 %v2557
  %v4362 = vpop.f32.mrf.mxu0
  %v4363 = vadd.f32 %v4154, %v4362
  %4364 = vmatmul.f32.gmra.mxu0 %v2566
  %v4365 = vpop.f32.mrf.mxu0
  %v4366 = vadd.f32 %v4157, %v4365
  %4367 = vmatmul.f32.gmra.mxu0 %v2575
  %v4368 = vpop.f32.mrf.mxu0
  %v4369 = vadd.f32 %v4160, %v4368
  %4370 = vmatmul.f32.gmra.mxu0 %v2584
  %v4371 = vpop.f32.mrf.mxu0
  %v4372 = vadd.f32 %v4163, %v4371
  %4373 = vmatmul.f32.gmra.mxu0 %v2593
  %v4374 = vpop.f32.mrf.mxu0
  %v4375 = vadd.f32 %v4166, %v4374
  %4376 = vmatmul.f32.gmra.mxu0 %v2602
  %v4377 = vpop.f32.mrf.mxu0
  %v4378 = vadd.f32 %v4169, %v4377
  %4379 = vmatmul.f32.gmra.mxu0 %v2611
  %v4380 = vpop.f32.mrf.mxu0
  %v4381 = vadd.f32 %v4172, %v4380
  %4382 = vmatmul.f32.gmra.mxu0 %v2620
  %v4383 = vpop.f32.mrf.mxu0
  %v4384 = vadd.f32 %v4175, %v4383
  %4385 = vmatmul.f32.gmra.mxu0 %v2629
  %v4386 = vpop.f32.mrf.mxu0
  %v4387 = vadd.f32 %v4178, %v4386
  %4388 = vmatmul.f32.gmra.mxu0 %v2638
  %v4389 = vpop.f32.mrf.mxu0
  %v4390 = vadd.f32 %v4181, %v4389
  %4391 = vmatmul.f32.gmra.mxu0 %v2647
  %v4392 = vpop.f32.mrf.mxu0
  %v4393 = vadd.f32 %v4184, %v4392
  %4394 = vmatmul.f32.gmra.mxu0 %v2656
  %v4395 = vpop.f32.mrf.mxu0
  %v4396 = vadd.f32 %v4187, %v4395
  %4397 = vmatmul.f32.gmra.mxu0 %v2665
  %v4398 = vpop.f32.mrf.mxu0
  %v4399 = vadd.f32 %v4190, %v4398
  %4400 = vmatmul.f32.gmra.mxu0 %v2674
  %v4401 = vpop.f32.mrf.mxu0
  %v4402 = vadd.f32 %v4193, %v4401
  %4403 = vmatmul.f32.gmra.mxu0 %v2683
  %v4404 = vpop.f32.mrf.mxu0
  %v4405 = vadd.f32 %v4196, %v4404
  %4406 = vmatmul.f32.gmra.mxu0 %v2692
  %v4407 = vpop.f32.mrf.mxu0
  %v4408 = vadd.f32 %v4199, %v4407
  %4409 = vmatmul.f32.gmra.mxu0 %v2701
  %v4410 = vpop.f32.mrf.mxu0
  %v4411 = vadd.f32 %v4202, %v4410
  %4412 = vmatmul.f32.gmra.mxu0 %v2710
  %v4413 = vpop.f32.mrf.mxu0
  %v4414 = vadd.f32 %v4205, %v4413
  %4415 = vmatmul.f32.gmra.mxu0 %v2719
  %v4416 = vpop.f32.mrf.mxu0
  %v4417 = vadd.f32 %v4208, %v4416
  %4418 = vmatmul.f32.gmra.mxu0 %v2728
  %v4419 = vpop.f32.mrf.mxu0
  %v4420 = vadd.f32 %v4211, %v4419
  %4421 = vmatmul.f32.gmra.mxu0 %v2737
  %v4422 = vpop.f32.mrf.mxu0
  %v4423 = vadd.f32 %v4214, %v4422
  %4424 = vmatmul.f32.gmra.mxu0 %v2746
  %v4425 = vpop.f32.mrf.mxu0
  %v4426 = vadd.f32 %v4217, %v4425
  %4427 = vmatmul.f32.gmra.mxu0 %v2755
  %v4428 = vpop.f32.mrf.mxu0
  %v4429 = vadd.f32 %v4220, %v4428
  %4430 = vmatmul.f32.gmra.mxu0 %v2764
  %v4431 = vpop.f32.mrf.mxu0
  %v4432 = vadd.f32 %v4223, %v4431
  %4433 = vmatmul.f32.gmra.mxu0 %v2773
  %v4434 = vpop.f32.mrf.mxu0
  %v4435 = vadd.f32 %v4226, %v4434
  %4436 = vmatmul.f32.gmra.mxu0 %v2782
  %v4437 = vpop.f32.mrf.mxu0
  %v4438 = vadd.f32 %v4229, %v4437
  %4439 = vmatmul.f32.gmra.mxu0 %v2791
  %v4440 = vpop.f32.mrf.mxu0
  %v4441 = vadd.f32 %v4232, %v4440
  %4442 = vmatmul.f32.gmra.mxu0 %v2800
  %v4443 = vpop.f32.mrf.mxu0
  %v4444 = vadd.f32 %v4235, %v4443
  %4445 = vmatmul.f32.gmra.mxu0 %v2809
  %v4446 = vpop.f32.mrf.mxu0
  %v4447 = vadd.f32 %v4238, %v4446
  %4448 = vmatmul.f32.gmra.mxu0 %v2818
  %v4449 = vpop.f32.mrf.mxu0
  %v4450 = vadd.f32 %v4241, %v4449
  %4451 = vmatmul.f32.gmra.mxu0 %v2827
  %v4452 = vpop.f32.mrf.mxu0
  %v4453 = vadd.f32 %v4244, %v4452
  %4454 = vmatmul.f32.gmra.mxu0 %v2836
  %v4455 = vpop.f32.mrf.mxu0
  %v4456 = vadd.f32 %v4247, %v4455
  %4457 = vmatmul.f32.gmra.mxu0 %v2845
  %v4458 = vpop.f32.mrf.mxu0
  %v4459 = vadd.f32 %v4250, %v4458
  %4460 = vmatmul.f32.gmra.mxu0 %v2854
  %v4461 = vpop.f32.mrf.mxu0
  %v4462 = vadd.f32 %v4253, %v4461
  %4463 = vmatmul.f32.gmra.mxu0 %v2863
  %v4464 = vpop.f32.mrf.mxu0
  %v4465 = vadd.f32 %v4256, %v4464
  %4466 = vmatmul.f32.gmra.mxu0 %v2872
  %v4467 = vpop.f32.mrf.mxu0
  %v4468 = vadd.f32 %v4259, %v4467
  %4469 = vmatmul.f32.gmra.mxu0 %v2881
  %v4470 = vpop.f32.mrf.mxu0
  %v4471 = vadd.f32 %v4262, %v4470
  %4472 = vmatmul.f32.gmra.mxu0 %v2890
  %v4473 = vpop.f32.mrf.mxu0
  %v4474 = vadd.f32 %v4265, %v4473
  %4475 = vmatmul.f32.gmra.mxu0 %v2899
  %v4476 = vpop.f32.mrf.mxu0
  %v4477 = vadd.f32 %v4268, %v4476
  %4478 = vmatmul.f32.gmra.mxu0 %v2908
  %v4479 = vpop.f32.mrf.mxu0
  %v4480 = vadd.f32 %v4271, %v4479
  %4481 = vmatmul.f32.gmra.mxu0 %v2917
  %v4482 = vpop.f32.mrf.mxu0
  %v4483 = vadd.f32 %v4274, %v4482
  %4484 = vmatmul.f32.gmra.mxu0 %v2926
  %v4485 = vpop.f32.mrf.mxu0
  %v4486 = vadd.f32 %v4277, %v4485
  %4487 = vmatmul.f32.gmra.mxu0 %v2935
  %v4488 = vpop.f32.mrf.mxu0
  %v4489 = vadd.f32 %v4280, %v4488
  %4490 = vmatmul.f32.gmra.mxu0 %v2944
  %v4491 = vpop.f32.mrf.mxu0
  %v4492 = vadd.f32 %v4283, %v4491
  %4493 = vmatmul.f32.gmra.mxu0 %v2953
  %v4494 = vpop.f32.mrf.mxu0
  %v4495 = vadd.f32 %v4286, %v4494
  %4496 = vmatmul.f32.gmra.mxu0 %v2962
  %v4497 = vpop.f32.mrf.mxu0
  %v4498 = vadd.f32 %v4289, %v4497
  %4499 = vmatmul.f32.gmra.mxu0 %v2971
  %v4500 = vpop.f32.mrf.mxu0
  %v4501 = vadd.f32 %v4292, %v4500
  %4502 = vmatmul.f32.gmra.mxu0 %v2980
  %v4503 = vpop.f32.mrf.mxu0
  %v4504 = vadd.f32 %v4295, %v4503
  %4505 = vmatmul.f32.gmra.mxu0 %v2989
  %v4506 = vpop.f32.mrf.mxu0
  %v4507 = vadd.f32 %v4298, %v4506
  %4508 = vmatmul.f32.gmra.mxu0 %v2998
  %v4509 = vpop.f32.mrf.mxu0
  %v4510 = vadd.f32 %v4301, %v4509
  %4511 = vmatmul.f32.gmra.mxu0 %v3007
  %v4512 = vpop.f32.mrf.mxu0
  %v4513 = vadd.f32 %v4304, %v4512
  %4514 = vmatmul.f32.gmra.mxu0 %v3016
  %v4515 = vpop.f32.mrf.mxu0
  %v4516 = vadd.f32 %v4307, %v4515
  %4517 = vmatmul.f32.gmra.mxu0 %v3025
  %v4518 = vpop.f32.mrf.mxu0
  %v4519 = vadd.f32 %v4310, %v4518
  %4520 = vmatmul.f32.gmra.mxu0 %v3034
  %v4521 = vpop.f32.mrf.mxu0
  %v4522 = vadd.f32 %v4313, %v4521
  %4523 = vmatmul.f32.gmra.mxu0 %v3043
  %v4524 = vpop.f32.mrf.mxu0
  %v4525 = vadd.f32 %v4316, %v4524
  %4526 = vmatmul.f32.gmra.mxu0 %v3052
  %v4527 = vpop.f32.mrf.mxu0
  %v4528 = vadd.f32 %v4319, %v4527
  %4529 = vmatmul.f32.gmra.mxu0 %v3061
  %v4530 = vpop.f32.mrf.mxu0
  %v4531 = vadd.f32 %v4322, %v4530
  %4532 = vmatmul.f32.gmra.mxu0 %v3070
  %v4533 = vpop.f32.mrf.mxu0
  %v4534 = vadd.f32 %v4325, %v4533
  %4535 = vdwg.mxu0
  %4536 = vmatpush.msra.mxu0 %v2480
  %4537 = vmatpush.msra.mxu0 %v2479
  %4538 = vmatpush.msra.mxu0 %v2478
  %4539 = vmatpush.msra.mxu0 %v2477
  %4540 = vmatpush.msra.mxu0 %v2476
  %4541 = vmatpush.msra.mxu0 %v2475
  %4542 = vmatpush.msra.mxu0 %v2474
  %4543 = vmatpush.msra.mxu0 %v2473
  %4544 = vmatpush.msra.mxu0 %v2472
  %4545 = vmatpush.msra.mxu0 %v2471
  %4546 = vmatpush.msra.mxu0 %v2470
  %4547 = vmatpush.msra.mxu0 %v2469
  %4548 = vmatpush.msra.mxu0 %v2468
  %4549 = vmatpush.msra.mxu0 %v2467
  %4550 = vmatpush.msra.mxu0 %v2466
  %4551 = vmatpush.msra.mxu0 %v2465
  %4552 = vmatmul.f32.gmra.mxu0 %v2504
  %v4553 = vpop.f32.mrf.mxu0
  %v4554 = vadd.f32 %v4345, %v4553
  %4555 = vmatmul.f32.gmra.mxu0 %v2513
  %v4556 = vpop.f32.mrf.mxu0
  %v4557 = vadd.f32 %v4348, %v4556
  %4558 = vmatmul.f32.gmra.mxu0 %v2522
  %v4559 = vpop.f32.mrf.mxu0
  %v4560 = vadd.f32 %v4351, %v4559
  %4561 = vmatmul.f32.gmra.mxu0 %v2531
  %v4562 = vpop.f32.mrf.mxu0
  %v4563 = vadd.f32 %v4354, %v4562
  %4564 = vmatmul.f32.gmra.mxu0 %v2540
  %v4565 = vpop.f32.mrf.mxu0
  %v4566 = vadd.f32 %v4357, %v4565
  %4567 = vmatmul.f32.gmra.mxu0 %v2549
  %v4568 = vpop.f32.mrf.mxu0
  %v4569 = vadd.f32 %v4360, %v4568
  %4570 = vmatmul.f32.gmra.mxu0 %v2558
  %v4571 = vpop.f32.mrf.mxu0
  %v4572 = vadd.f32 %v4363, %v4571
  %4573 = vmatmul.f32.gmra.mxu0 %v2567
  %v4574 = vpop.f32.mrf.mxu0
  %v4575 = vadd.f32 %v4366, %v4574
  %4576 = vmatmul.f32.gmra.mxu0 %v2576
  %v4577 = vpop.f32.mrf.mxu0
  %v4578 = vadd.f32 %v4369, %v4577
  %4579 = vmatmul.f32.gmra.mxu0 %v2585
  %v4580 = vpop.f32.mrf.mxu0
  %v4581 = vadd.f32 %v4372, %v4580
  %4582 = vmatmul.f32.gmra.mxu0 %v2594
  %v4583 = vpop.f32.mrf.mxu0
  %v4584 = vadd.f32 %v4375, %v4583
  %4585 = vmatmul.f32.gmra.mxu0 %v2603
  %v4586 = vpop.f32.mrf.mxu0
  %v4587 = vadd.f32 %v4378, %v4586
  %4588 = vmatmul.f32.gmra.mxu0 %v2612
  %v4589 = vpop.f32.mrf.mxu0
  %v4590 = vadd.f32 %v4381, %v4589
  %4591 = vmatmul.f32.gmra.mxu0 %v2621
  %v4592 = vpop.f32.mrf.mxu0
  %v4593 = vadd.f32 %v4384, %v4592
  %4594 = vmatmul.f32.gmra.mxu0 %v2630
  %v4595 = vpop.f32.mrf.mxu0
  %v4596 = vadd.f32 %v4387, %v4595
  %4597 = vmatmul.f32.gmra.mxu0 %v2639
  %v4598 = vpop.f32.mrf.mxu0
  %v4599 = vadd.f32 %v4390, %v4598
  %4600 = vmatmul.f32.gmra.mxu0 %v2648
  %v4601 = vpop.f32.mrf.mxu0
  %v4602 = vadd.f32 %v4393, %v4601
  %4603 = vmatmul.f32.gmra.mxu0 %v2657
  %v4604 = vpop.f32.mrf.mxu0
  %v4605 = vadd.f32 %v4396, %v4604
  %4606 = vmatmul.f32.gmra.mxu0 %v2666
  %v4607 = vpop.f32.mrf.mxu0
  %v4608 = vadd.f32 %v4399, %v4607
  %4609 = vmatmul.f32.gmra.mxu0 %v2675
  %v4610 = vpop.f32.mrf.mxu0
  %v4611 = vadd.f32 %v4402, %v4610
  %4612 = vmatmul.f32.gmra.mxu0 %v2684
  %v4613 = vpop.f32.mrf.mxu0
  %v4614 = vadd.f32 %v4405, %v4613
  %4615 = vmatmul.f32.gmra.mxu0 %v2693
  %v4616 = vpop.f32.mrf.mxu0
  %v4617 = vadd.f32 %v4408, %v4616
  %4618 = vmatmul.f32.gmra.mxu0 %v2702
  %v4619 = vpop.f32.mrf.mxu0
  %v4620 = vadd.f32 %v4411, %v4619
  %4621 = vmatmul.f32.gmra.mxu0 %v2711
  %v4622 = vpop.f32.mrf.mxu0
  %v4623 = vadd.f32 %v4414, %v4622
  %4624 = vmatmul.f32.gmra.mxu0 %v2720
  %v4625 = vpop.f32.mrf.mxu0
  %v4626 = vadd.f32 %v4417, %v4625
  %4627 = vmatmul.f32.gmra.mxu0 %v2729
  %v4628 = vpop.f32.mrf.mxu0
  %v4629 = vadd.f32 %v4420, %v4628
  %4630 = vmatmul.f32.gmra.mxu0 %v2738
  %v4631 = vpop.f32.mrf.mxu0
  %v4632 = vadd.f32 %v4423, %v4631
  %4633 = vmatmul.f32.gmra.mxu0 %v2747
  %v4634 = vpop.f32.mrf.mxu0
  %v4635 = vadd.f32 %v4426, %v4634
  %4636 = vmatmul.f32.gmra.mxu0 %v2756
  %v4637 = vpop.f32.mrf.mxu0
  %v4638 = vadd.f32 %v4429, %v4637
  %4639 = vmatmul.f32.gmra.mxu0 %v2765
  %v4640 = vpop.f32.mrf.mxu0
  %v4641 = vadd.f32 %v4432, %v4640
  %4642 = vmatmul.f32.gmra.mxu0 %v2774
  %v4643 = vpop.f32.mrf.mxu0
  %v4644 = vadd.f32 %v4435, %v4643
  %4645 = vmatmul.f32.gmra.mxu0 %v2783
  %v4646 = vpop.f32.mrf.mxu0
  %v4647 = vadd.f32 %v4438, %v4646
  %4648 = vmatmul.f32.gmra.mxu0 %v2792
  %v4649 = vpop.f32.mrf.mxu0
  %v4650 = vadd.f32 %v4441, %v4649
  %4651 = vmatmul.f32.gmra.mxu0 %v2801
  %v4652 = vpop.f32.mrf.mxu0
  %v4653 = vadd.f32 %v4444, %v4652
  %4654 = vmatmul.f32.gmra.mxu0 %v2810
  %v4655 = vpop.f32.mrf.mxu0
  %v4656 = vadd.f32 %v4447, %v4655
  %4657 = vmatmul.f32.gmra.mxu0 %v2819
  %v4658 = vpop.f32.mrf.mxu0
  %v4659 = vadd.f32 %v4450, %v4658
  %4660 = vmatmul.f32.gmra.mxu0 %v2828
  %v4661 = vpop.f32.mrf.mxu0
  %v4662 = vadd.f32 %v4453, %v4661
  %4663 = vmatmul.f32.gmra.mxu0 %v2837
  %v4664 = vpop.f32.mrf.mxu0
  %v4665 = vadd.f32 %v4456, %v4664
  %4666 = vmatmul.f32.gmra.mxu0 %v2846
  %v4667 = vpop.f32.mrf.mxu0
  %v4668 = vadd.f32 %v4459, %v4667
  %4669 = vmatmul.f32.gmra.mxu0 %v2855
  %v4670 = vpop.f32.mrf.mxu0
  %v4671 = vadd.f32 %v4462, %v4670
  %4672 = vmatmul.f32.gmra.mxu0 %v2864
  %v4673 = vpop.f32.mrf.mxu0
  %v4674 = vadd.f32 %v4465, %v4673
  %4675 = vmatmul.f32.gmra.mxu0 %v2873
  %v4676 = vpop.f32.mrf.mxu0
  %v4677 = vadd.f32 %v4468, %v4676
  %4678 = vmatmul.f32.gmra.mxu0 %v2882
  %v4679 = vpop.f32.mrf.mxu0
  %v4680 = vadd.f32 %v4471, %v4679
  %4681 = vmatmul.f32.gmra.mxu0 %v2891
  %v4682 = vpop.f32.mrf.mxu0
  %v4683 = vadd.f32 %v4474, %v4682
  %4684 = vmatmul.f32.gmra.mxu0 %v2900
  %v4685 = vpop.f32.mrf.mxu0
  %v4686 = vadd.f32 %v4477, %v4685
  %4687 = vmatmul.f32.gmra.mxu0 %v2909
  %v4688 = vpop.f32.mrf.mxu0
  %v4689 = vadd.f32 %v4480, %v4688
  %4690 = vmatmul.f32.gmra.mxu0 %v2918
  %v4691 = vpop.f32.mrf.mxu0
  %v4692 = vadd.f32 %v4483, %v4691
  %4693 = vmatmul.f32.gmra.mxu0 %v2927
  %v4694 = vpop.f32.mrf.mxu0
  %v4695 = vadd.f32 %v4486, %v4694
  %4696 = vmatmul.f32.gmra.mxu0 %v2936
  %v4697 = vpop.f32.mrf.mxu0
  %v4698 = vadd.f32 %v4489, %v4697
  %4699 = vmatmul.f32.gmra.mxu0 %v2945
  %v4700 = vpop.f32.mrf.mxu0
  %v4701 = vadd.f32 %v4492, %v4700
  %4702 = vmatmul.f32.gmra.mxu0 %v2954
  %v4703 = vpop.f32.mrf.mxu0
  %v4704 = vadd.f32 %v4495, %v4703
  %4705 = vmatmul.f32.gmra.mxu0 %v2963
  %v4706 = vpop.f32.mrf.mxu0
  %v4707 = vadd.f32 %v4498, %v4706
  %4708 = vmatmul.f32.gmra.mxu0 %v2972
  %v4709 = vpop.f32.mrf.mxu0
  %v4710 = vadd.f32 %v4501, %v4709
  %4711 = vmatmul.f32.gmra.mxu0 %v2981
  %v4712 = vpop.f32.mrf.mxu0
  %v4713 = vadd.f32 %v4504, %v4712
  %4714 = vmatmul.f32.gmra.mxu0 %v2990
  %v4715 = vpop.f32.mrf.mxu0
  %v4716 = vadd.f32 %v4507, %v4715
  %4717 = vmatmul.f32.gmra.mxu0 %v2999
  %v4718 = vpop.f32.mrf.mxu0
  %v4719 = vadd.f32 %v4510, %v4718
  %4720 = vmatmul.f32.gmra.mxu0 %v3008
  %v4721 = vpop.f32.mrf.mxu0
  %v4722 = vadd.f32 %v4513, %v4721
  %4723 = vmatmul.f32.gmra.mxu0 %v3017
  %v4724 = vpop.f32.mrf.mxu0
  %v4725 = vadd.f32 %v4516, %v4724
  %4726 = vmatmul.f32.gmra.mxu0 %v3026
  %v4727 = vpop.f32.mrf.mxu0
  %v4728 = vadd.f32 %v4519, %v4727
  %4729 = vmatmul.f32.gmra.mxu0 %v3035
  %v4730 = vpop.f32.mrf.mxu0
  %v4731 = vadd.f32 %v4522, %v4730
  %4732 = vmatmul.f32.gmra.mxu0 %v3044
  %v4733 = vpop.f32.mrf.mxu0
  %v4734 = vadd.f32 %v4525, %v4733
  %4735 = vmatmul.f32.gmra.mxu0 %v3053
  %v4736 = vpop.f32.mrf.mxu0
  %v4737 = vadd.f32 %v4528, %v4736
  %4738 = vmatmul.f32.gmra.mxu0 %v3062
  %v4739 = vpop.f32.mrf.mxu0
  %v4740 = vadd.f32 %v4531, %v4739
  %4741 = vmatmul.f32.gmra.mxu0 %v3071
  %v4742 = vpop.f32.mrf.mxu0
  %v4743 = vadd.f32 %v4534, %v4742
  %4744 = vdwg.mxu0
  %4745 = vmatpush.msra.mxu0 %v2496
  %4746 = vmatpush.msra.mxu0 %v2495
  %4747 = vmatpush.msra.mxu0 %v2494
  %4748 = vmatpush.msra.mxu0 %v2493
  %4749 = vmatpush.msra.mxu0 %v2492
  %4750 = vmatpush.msra.mxu0 %v2491
  %4751 = vmatpush.msra.mxu0 %v2490
  %4752 = vmatpush.msra.mxu0 %v2489
  %4753 = vmatpush.msra.mxu0 %v2488
  %4754 = vmatpush.msra.mxu0 %v2487
  %4755 = vmatpush.msra.mxu0 %v2486
  %4756 = vmatpush.msra.mxu0 %v2485
  %4757 = vmatpush.msra.mxu0 %v2484
  %4758 = vmatpush.msra.mxu0 %v2483
  %4759 = vmatpush.msra.mxu0 %v2482
  %4760 = vmatpush.msra.mxu0 %v2481
  %4761 = vmatmul.f32.gmra.mxu0 %v2505
  %v4762 = vpop.f32.mrf.mxu0
  %v4763 = vadd.f32 %v4554, %v4762
  %4764 = vmatmul.f32.gmra.mxu0 %v2514
  %v4765 = vpop.f32.mrf.mxu0
  %v4766 = vadd.f32 %v4557, %v4765
  %4767 = vmatmul.f32.gmra.mxu0 %v2523
  %v4768 = vpop.f32.mrf.mxu0
  %v4769 = vadd.f32 %v4560, %v4768
  %4770 = vmatmul.f32.gmra.mxu0 %v2532
  %v4771 = vpop.f32.mrf.mxu0
  %v4772 = vadd.f32 %v4563, %v4771
  %4773 = vmatmul.f32.gmra.mxu0 %v2541
  %v4774 = vpop.f32.mrf.mxu0
  %v4775 = vadd.f32 %v4566, %v4774
  %4776 = vmatmul.f32.gmra.mxu0 %v2550
  %v4777 = vpop.f32.mrf.mxu0
  %v4778 = vadd.f32 %v4569, %v4777
  %4779 = vmatmul.f32.gmra.mxu0 %v2559
  %v4780 = vpop.f32.mrf.mxu0
  %v4781 = vadd.f32 %v4572, %v4780
  %4782 = vmatmul.f32.gmra.mxu0 %v2568
  %v4783 = vpop.f32.mrf.mxu0
  %v4784 = vadd.f32 %v4575, %v4783
  %4785 = vmatmul.f32.gmra.mxu0 %v2577
  %v4786 = vpop.f32.mrf.mxu0
  %v4787 = vadd.f32 %v4578, %v4786
  %4788 = vmatmul.f32.gmra.mxu0 %v2586
  %v4789 = vpop.f32.mrf.mxu0
  %v4790 = vadd.f32 %v4581, %v4789
  %4791 = vmatmul.f32.gmra.mxu0 %v2595
  %v4792 = vpop.f32.mrf.mxu0
  %v4793 = vadd.f32 %v4584, %v4792
  %4794 = vmatmul.f32.gmra.mxu0 %v2604
  %v4795 = vpop.f32.mrf.mxu0
  %v4796 = vadd.f32 %v4587, %v4795
  %4797 = vmatmul.f32.gmra.mxu0 %v2613
  %v4798 = vpop.f32.mrf.mxu0
  %v4799 = vadd.f32 %v4590, %v4798
  %4800 = vmatmul.f32.gmra.mxu0 %v2622
  %v4801 = vpop.f32.mrf.mxu0
  %v4802 = vadd.f32 %v4593, %v4801
  %4803 = vmatmul.f32.gmra.mxu0 %v2631
  %v4804 = vpop.f32.mrf.mxu0
  %v4805 = vadd.f32 %v4596, %v4804
  %4806 = vmatmul.f32.gmra.mxu0 %v2640
  %v4807 = vpop.f32.mrf.mxu0
  %v4808 = vadd.f32 %v4599, %v4807
  %4809 = vmatmul.f32.gmra.mxu0 %v2649
  %v4810 = vpop.f32.mrf.mxu0
  %v4811 = vadd.f32 %v4602, %v4810
  %4812 = vmatmul.f32.gmra.mxu0 %v2658
  %v4813 = vpop.f32.mrf.mxu0
  %v4814 = vadd.f32 %v4605, %v4813
  %4815 = vmatmul.f32.gmra.mxu0 %v2667
  %v4816 = vpop.f32.mrf.mxu0
  %v4817 = vadd.f32 %v4608, %v4816
  %4818 = vmatmul.f32.gmra.mxu0 %v2676
  %v4819 = vpop.f32.mrf.mxu0
  %v4820 = vadd.f32 %v4611, %v4819
  %4821 = vmatmul.f32.gmra.mxu0 %v2685
  %v4822 = vpop.f32.mrf.mxu0
  %v4823 = vadd.f32 %v4614, %v4822
  %4824 = vmatmul.f32.gmra.mxu0 %v2694
  %v4825 = vpop.f32.mrf.mxu0
  %v4826 = vadd.f32 %v4617, %v4825
  %4827 = vmatmul.f32.gmra.mxu0 %v2703
  %v4828 = vpop.f32.mrf.mxu0
  %v4829 = vadd.f32 %v4620, %v4828
  %4830 = vmatmul.f32.gmra.mxu0 %v2712
  %v4831 = vpop.f32.mrf.mxu0
  %v4832 = vadd.f32 %v4623, %v4831
  %4833 = vmatmul.f32.gmra.mxu0 %v2721
  %v4834 = vpop.f32.mrf.mxu0
  %v4835 = vadd.f32 %v4626, %v4834
  %4836 = vmatmul.f32.gmra.mxu0 %v2730
  %v4837 = vpop.f32.mrf.mxu0
  %v4838 = vadd.f32 %v4629, %v4837
  %4839 = vmatmul.f32.gmra.mxu0 %v2739
  %v4840 = vpop.f32.mrf.mxu0
  %v4841 = vadd.f32 %v4632, %v4840
  %4842 = vmatmul.f32.gmra.mxu0 %v2748
  %v4843 = vpop.f32.mrf.mxu0
  %v4844 = vadd.f32 %v4635, %v4843
  %4845 = vmatmul.f32.gmra.mxu0 %v2757
  %v4846 = vpop.f32.mrf.mxu0
  %v4847 = vadd.f32 %v4638, %v4846
  %4848 = vmatmul.f32.gmra.mxu0 %v2766
  %v4849 = vpop.f32.mrf.mxu0
  %v4850 = vadd.f32 %v4641, %v4849
  %4851 = vmatmul.f32.gmra.mxu0 %v2775
  %v4852 = vpop.f32.mrf.mxu0
  %v4853 = vadd.f32 %v4644, %v4852
  %4854 = vmatmul.f32.gmra.mxu0 %v2784
  %v4855 = vpop.f32.mrf.mxu0
  %v4856 = vadd.f32 %v4647, %v4855
  %4857 = vmatmul.f32.gmra.mxu0 %v2793
  %v4858 = vpop.f32.mrf.mxu0
  %v4859 = vadd.f32 %v4650, %v4858
  %4860 = vmatmul.f32.gmra.mxu0 %v2802
  %v4861 = vpop.f32.mrf.mxu0
  %v4862 = vadd.f32 %v4653, %v4861
  %4863 = vmatmul.f32.gmra.mxu0 %v2811
  %v4864 = vpop.f32.mrf.mxu0
  %v4865 = vadd.f32 %v4656, %v4864
  %4866 = vmatmul.f32.gmra.mxu0 %v2820
  %v4867 = vpop.f32.mrf.mxu0
  %v4868 = vadd.f32 %v4659, %v4867
  %4869 = vmatmul.f32.gmra.mxu0 %v2829
  %v4870 = vpop.f32.mrf.mxu0
  %v4871 = vadd.f32 %v4662, %v4870
  %4872 = vmatmul.f32.gmra.mxu0 %v2838
  %v4873 = vpop.f32.mrf.mxu0
  %v4874 = vadd.f32 %v4665, %v4873
  %4875 = vmatmul.f32.gmra.mxu0 %v2847
  %v4876 = vpop.f32.mrf.mxu0
  %v4877 = vadd.f32 %v4668, %v4876
  %4878 = vmatmul.f32.gmra.mxu0 %v2856
  %v4879 = vpop.f32.mrf.mxu0
  %v4880 = vadd.f32 %v4671, %v4879
  %4881 = vmatmul.f32.gmra.mxu0 %v2865
  %v4882 = vpop.f32.mrf.mxu0
  %v4883 = vadd.f32 %v4674, %v4882
  %4884 = vmatmul.f32.gmra.mxu0 %v2874
  %v4885 = vpop.f32.mrf.mxu0
  %v4886 = vadd.f32 %v4677, %v4885
  %4887 = vmatmul.f32.gmra.mxu0 %v2883
  %v4888 = vpop.f32.mrf.mxu0
  %v4889 = vadd.f32 %v4680, %v4888
  %4890 = vmatmul.f32.gmra.mxu0 %v2892
  %v4891 = vpop.f32.mrf.mxu0
  %v4892 = vadd.f32 %v4683, %v4891
  %4893 = vmatmul.f32.gmra.mxu0 %v2901
  %v4894 = vpop.f32.mrf.mxu0
  %v4895 = vadd.f32 %v4686, %v4894
  %4896 = vmatmul.f32.gmra.mxu0 %v2910
  %v4897 = vpop.f32.mrf.mxu0
  %v4898 = vadd.f32 %v4689, %v4897
  %4899 = vmatmul.f32.gmra.mxu0 %v2919
  %v4900 = vpop.f32.mrf.mxu0
  %v4901 = vadd.f32 %v4692, %v4900
  %4902 = vmatmul.f32.gmra.mxu0 %v2928
  %v4903 = vpop.f32.mrf.mxu0
  %v4904 = vadd.f32 %v4695, %v4903
  %4905 = vmatmul.f32.gmra.mxu0 %v2937
  %v4906 = vpop.f32.mrf.mxu0
  %v4907 = vadd.f32 %v4698, %v4906
  %4908 = vmatmul.f32.gmra.mxu0 %v2946
  %v4909 = vpop.f32.mrf.mxu0
  %v4910 = vadd.f32 %v4701, %v4909
  %4911 = vmatmul.f32.gmra.mxu0 %v2955
  %v4912 = vpop.f32.mrf.mxu0
  %v4913 = vadd.f32 %v4704, %v4912
  %4914 = vmatmul.f32.gmra.mxu0 %v2964
  %v4915 = vpop.f32.mrf.mxu0
  %v4916 = vadd.f32 %v4707, %v4915
  %4917 = vmatmul.f32.gmra.mxu0 %v2973
  %v4918 = vpop.f32.mrf.mxu0
  %v4919 = vadd.f32 %v4710, %v4918
  %4920 = vmatmul.f32.gmra.mxu0 %v2982
  %v4921 = vpop.f32.mrf.mxu0
  %v4922 = vadd.f32 %v4713, %v4921
  %4923 = vmatmul.f32.gmra.mxu0 %v2991
  %v4924 = vpop.f32.mrf.mxu0
  %v4925 = vadd.f32 %v4716, %v4924
  %4926 = vmatmul.f32.gmra.mxu0 %v3000
  %v4927 = vpop.f32.mrf.mxu0
  %v4928 = vadd.f32 %v4719, %v4927
  %4929 = vmatmul.f32.gmra.mxu0 %v3009
  %v4930 = vpop.f32.mrf.mxu0
  %v4931 = vadd.f32 %v4722, %v4930
  %4932 = vmatmul.f32.gmra.mxu0 %v3018
  %v4933 = vpop.f32.mrf.mxu0
  %v4934 = vadd.f32 %v4725, %v4933
  %4935 = vmatmul.f32.gmra.mxu0 %v3027
  %v4936 = vpop.f32.mrf.mxu0
  %v4937 = vadd.f32 %v4728, %v4936
  %4938 = vmatmul.f32.gmra.mxu0 %v3036
  %v4939 = vpop.f32.mrf.mxu0
  %v4940 = vadd.f32 %v4731, %v4939
  %4941 = vmatmul.f32.gmra.mxu0 %v3045
  %v4942 = vpop.f32.mrf.mxu0
  %v4943 = vadd.f32 %v4734, %v4942
  %4944 = vmatmul.f32.gmra.mxu0 %v3054
  %v4945 = vpop.f32.mrf.mxu0
  %v4946 = vadd.f32 %v4737, %v4945
  %4947 = vmatmul.f32.gmra.mxu0 %v3063
  %v4948 = vpop.f32.mrf.mxu0
  %v4949 = vadd.f32 %v4740, %v4948
  %4950 = vmatmul.f32.gmra.mxu0 %v3072
  %v4951 = vpop.f32.mrf.mxu0
  %v4952 = vadd.f32 %v4743, %v4951
  %4953 = vdwg.mxu0
  %v4954 = vld [vmem:[%s2] sm:$0x1]
  %v4955 = vld [vmem:[%s3] sm:$0x1]
  %v4956 = vadd.f32 %v4763, %v4766
  %v4957 = vadd.f32 %v4956, %v4769
  %v4958 = vadd.f32 %v4957, %v4772
  %v4959 = vadd.f32 %v4958, %v4775
  %v4960 = vadd.f32 %v4959, %v4778
  %v4961 = vadd.f32 %v4960, %v4781
  %v4962 = vadd.f32 %v4961, %v4784
  %v4963 = vadd.f32 %v4962, %v4787
  %v4964 = vadd.f32 %v4963, %v4790
  %v4965 = vadd.f32 %v4964, %v4793
  %v4966 = vadd.f32 %v4965, %v4796
  %v4967 = vadd.f32 %v4966, %v4799
  %v4968 = vadd.f32 %v4967, %v4802
  %v4969 = vadd.f32 %v4968, %v4805
  %v4970 = vadd.f32 %v4969, %v4808
  %v4971 = vadd.f32 %v4970, %v4811
  %v4972 = vadd.f32 %v4971, %v4814
  %v4973 = vadd.f32 %v4972, %v4817
  %v4974 = vadd.f32 %v4973, %v4820
  %v4975 = vadd.f32 %v4974, %v4823
  %v4976 = vadd.f32 %v4975, %v4826
  %v4977 = vadd.f32 %v4976, %v4829
  %v4978 = vadd.f32 %v4977, %v4832
  %v4979 = vadd.f32 %v4978, %v4835
  %v4980 = vadd.f32 %v4979, %v4838
  %v4981 = vadd.f32 %v4980, %v4841
  %v4982 = vadd.f32 %v4981, %v4844
  %v4983 = vadd.f32 %v4982, %v4847
  %v4984 = vadd.f32 %v4983, %v4850
  %v4985 = vadd.f32 %v4984, %v4853
  %v4986 = vadd.f32 %v4985, %v4856
  %v4987 = vadd.f32 %v4986, %v4859
  %v4988 = vadd.f32 %v4987, %v4862
  %v4989 = vadd.f32 %v4988, %v4865
  %v4990 = vadd.f32 %v4989, %v4868
  %v4991 = vadd.f32 %v4990, %v4871
  %v4992 = vadd.f32 %v4991, %v4874
  %v4993 = vadd.f32 %v4992, %v4877
  %v4994 = vadd.f32 %v4993, %v4880
  %v4995 = vadd.f32 %v4994, %v4883
  %v4996 = vadd.f32 %v4995, %v4886
  %v4997 = vadd.f32 %v4996, %v4889
  %v4998 = vadd.f32 %v4997, %v4892
  %v4999 = vadd.f32 %v4998, %v4895
  %v5000 = vadd.f32 %v4999, %v4898
  %v5001 = vadd.f32 %v5000, %v4901
  %v5002 = vadd.f32 %v5001, %v4904
  %v5003 = vadd.f32 %v5002, %v4907
  %v5004 = vadd.f32 %v5003, %v4910
  %v5005 = vadd.f32 %v5004, %v4913
  %v5006 = vadd.f32 %v5005, %v4916
  %v5007 = vadd.f32 %v5006, %v4919
  %v5008 = vadd.f32 %v5007, %v4922
  %v5009 = vadd.f32 %v5008, %v4925
  %v5010 = vadd.f32 %v5009, %v4928
  %v5011 = vadd.f32 %v5010, %v4931
  %v5012 = vadd.f32 %v5011, %v4934
  %v5013 = vadd.f32 %v5012, %v4937
  %v5014 = vadd.f32 %v5013, %v4940
  %v5015 = vadd.f32 %v5014, %v4943
  %v5016 = vadd.f32 %v5015, %v4946
  %v5017 = vadd.f32 %v5016, %v4949
  %v5018 = vadd.f32 %v5017, %v4952
  %v5019 = vrot.slane %v5018, 4
  %v5020 = vadd.f32 %v5018, %v5019
  %v5021 = vrot.slane %v5020, 2
  %v5022 = vadd.f32 %v5020, %v5021
  %v5023 = vrot.slane %v5022, 1
  %v5024 = vadd.f32 %v5022, %v5023
  %v5025 = vmul.f32 %v4763, %v4763
  %v5026 = vmul.f32 %v4766, %v4766
  %v5027 = vmul.f32 %v4769, %v4769
  %v5028 = vmul.f32 %v4772, %v4772
  %v5029 = vmul.f32 %v4775, %v4775
  %v5030 = vmul.f32 %v4778, %v4778
  %v5031 = vmul.f32 %v4781, %v4781
  %v5032 = vmul.f32 %v4784, %v4784
  %v5033 = vmul.f32 %v4787, %v4787
  %v5034 = vmul.f32 %v4790, %v4790
  %v5035 = vmul.f32 %v4793, %v4793
  %v5036 = vmul.f32 %v4796, %v4796
  %v5037 = vmul.f32 %v4799, %v4799
  %v5038 = vmul.f32 %v4802, %v4802
  %v5039 = vmul.f32 %v4805, %v4805
  %v5040 = vmul.f32 %v4808, %v4808
  %v5041 = vmul.f32 %v4811, %v4811
  %v5042 = vmul.f32 %v4814, %v4814
  %v5043 = vmul.f32 %v4817, %v4817
  %v5044 = vmul.f32 %v4820, %v4820
  %v5045 = vmul.f32 %v4823, %v4823
  %v5046 = vmul.f32 %v4826, %v4826
  %v5047 = vmul.f32 %v4829, %v4829
  %v5048 = vmul.f32 %v4832, %v4832
  %v5049 = vmul.f32 %v4835, %v4835
  %v5050 = vmul.f32 %v4838, %v4838
  %v5051 = vmul.f32 %v4841, %v4841
  %v5052 = vmul.f32 %v4844, %v4844
  %v5053 = vmul.f32 %v4847, %v4847
  %v5054 = vmul.f32 %v4850, %v4850
  %v5055 = vmul.f32 %v4853, %v4853
  %v5056 = vmul.f32 %v4856, %v4856
  %v5057 = vmul.f32 %v4859, %v4859
  %v5058 = vmul.f32 %v4862, %v4862
  %v5059 = vmul.f32 %v4865, %v4865
  %v5060 = vmul.f32 %v4868, %v4868
  %v5061 = vmul.f32 %v4871, %v4871
  %v5062 = vmul.f32 %v4874, %v4874
  %v5063 = vmul.f32 %v4877, %v4877
  %v5064 = vmul.f32 %v4880, %v4880
  %v5065 = vmul.f32 %v4883, %v4883
  %v5066 = vmul.f32 %v4886, %v4886
  %v5067 = vmul.f32 %v4889, %v4889
  %v5068 = vmul.f32 %v4892, %v4892
  %v5069 = vmul.f32 %v4895, %v4895
  %v5070 = vmul.f32 %v4898, %v4898
  %v5071 = vmul.f32 %v4901, %v4901
  %v5072 = vmul.f32 %v4904, %v4904
  %v5073 = vmul.f32 %v4907, %v4907
  %v5074 = vmul.f32 %v4910, %v4910
  %v5075 = vmul.f32 %v4913, %v4913
  %v5076 = vmul.f32 %v4916, %v4916
  %v5077 = vmul.f32 %v4919, %v4919
  %v5078 = vmul.f32 %v4922, %v4922
  %v5079 = vmul.f32 %v4925, %v4925
  %v5080 = vmul.f32 %v4928, %v4928
  %v5081 = vmul.f32 %v4931, %v4931
  %v5082 = vmul.f32 %v4934, %v4934
  %v5083 = vmul.f32 %v4937, %v4937
  %v5084 = vmul.f32 %v4940, %v4940
  %v5085 = vmul.f32 %v4943, %v4943
  %v5086 = vmul.f32 %v4946, %v4946
  %v5087 = vmul.f32 %v4949, %v4949
  %v5088 = vmul.f32 %v4952, %v4952
  %v5089 = vadd.f32 %v5025, %v5026
  %v5090 = vadd.f32 %v5089, %v5027
  %v5091 = vadd.f32 %v5090, %v5028
  %v5092 = vadd.f32 %v5091, %v5029
  %v5093 = vadd.f32 %v5092, %v5030
  %v5094 = vadd.f32 %v5093, %v5031
  %v5095 = vadd.f32 %v5094, %v5032
  %v5096 = vadd.f32 %v5095, %v5033
  %v5097 = vadd.f32 %v5096, %v5034
  %v5098 = vadd.f32 %v5097, %v5035
  %v5099 = vadd.f32 %v5098, %v5036
  %v5100 = vadd.f32 %v5099, %v5037
  %v5101 = vadd.f32 %v5100, %v5038
  %v5102 = vadd.f32 %v5101, %v5039
  %v5103 = vadd.f32 %v5102, %v5040
  %v5104 = vadd.f32 %v5103, %v5041
  %v5105 = vadd.f32 %v5104, %v5042
  %v5106 = vadd.f32 %v5105, %v5043
  %v5107 = vadd.f32 %v5106, %v5044
  %v5108 = vadd.f32 %v5107, %v5045
  %v5109 = vadd.f32 %v5108, %v5046
  %v5110 = vadd.f32 %v5109, %v5047
  %v5111 = vadd.f32 %v5110, %v5048
  %v5112 = vadd.f32 %v5111, %v5049
  %v5113 = vadd.f32 %v5112, %v5050
  %v5114 = vadd.f32 %v5113, %v5051
  %v5115 = vadd.f32 %v5114, %v5052
  %v5116 = vadd.f32 %v5115, %v5053
  %v5117 = vadd.f32 %v5116, %v5054
  %v5118 = vadd.f32 %v5117, %v5055
  %v5119 = vadd.f32 %v5118, %v5056
  %v5120 = vadd.f32 %v5119, %v5057
  %v5121 = vadd.f32 %v5120, %v5058
  %v5122 = vadd.f32 %v5121, %v5059
  %v5123 = vadd.f32 %v5122, %v5060
  %v5124 = vadd.f32 %v5123, %v5061
  %v5125 = vadd.f32 %v5124, %v5062
  %v5126 = vadd.f32 %v5125, %v5063
  %v5127 = vadd.f32 %v5126, %v5064
  %v5128 = vadd.f32 %v5127, %v5065
  %v5129 = vadd.f32 %v5128, %v5066
  %v5130 = vadd.f32 %v5129, %v5067
  %v5131 = vadd.f32 %v5130, %v5068
  %v5132 = vadd.f32 %v5131, %v5069
  %v5133 = vadd.f32 %v5132, %v5070
  %v5134 = vadd.f32 %v5133, %v5071
  %v5135 = vadd.f32 %v5134, %v5072
  %v5136 = vadd.f32 %v5135, %v5073
  %v5137 = vadd.f32 %v5136, %v5074
  %v5138 = vadd.f32 %v5137, %v5075
  %v5139 = vadd.f32 %v5138, %v5076
  %v5140 = vadd.f32 %v5139, %v5077
  %v5141 = vadd.f32 %v5140, %v5078
  %v5142 = vadd.f32 %v5141, %v5079
  %v5143 = vadd.f32 %v5142, %v5080
  %v5144 = vadd.f32 %v5143, %v5081
  %v5145 = vadd.f32 %v5144, %v5082
  %v5146 = vadd.f32 %v5145, %v5083
  %v5147 = vadd.f32 %v5146, %v5084
  %v5148 = vadd.f32 %v5147, %v5085
  %v5149 = vadd.f32 %v5148, %v5086
  %v5150 = vadd.f32 %v5149, %v5087
  %v5151 = vadd.f32 %v5150, %v5088
  %v5152 = vrot.slane %v5151, 4
  %v5153 = vadd.f32 %v5151, %v5152
  %v5154 = vrot.slane %v5153, 2
  %v5155 = vadd.f32 %v5153, %v5154
  %v5156 = vrot.slane %v5155, 1
  %v5157 = vadd.f32 %v5155, %v5156
  %v5158 = vmul.f32 %v5024, 0.001953125
  %v5159 = vmul.f32 %v5157, 0.001953125
  %v5160 = vmul.f32 %v5158, %v5158
  %v5161 = vsub.f32 %v5159, %v5160
  %v5162 = vadd.f32 %v5161, 1e-05
  %v5163 = vrsqrt.pop %v5162
  %v5164 = vmul.f32 %v5163, %v5162
  %v5165 = vmul.f32 %v5164, %v5163
  %v5166 = vmul.f32 0.5, %v5165
  %v5167 = vsub.f32 1.5, %v5166
  %v5168 = vmul.f32 %v5163, %v5167
  %vm5169 = vweird.f32 %v5162
  %vm5170 = vweird.f32 %v5163
  %vm5171 = vmor %vm5169, %vm5170
  %v5172 = vsel %vm5171, %v5163, %v5168
  %v5173 = vmul.f32 %v4954, %v5172
  %v5174 = vmul.f32 %v5158, %v5173
  %v5175 = vsub.f32 %v4955, %v5174
  %v5177 = vperm.slane %v5173, 0
  %v5179 = vmul.f32 %v4763, %v5177
  %v5180 = vmul.f32 %v4766, %v5177
  %v5181 = vmul.f32 %v4769, %v5177
  %v5182 = vmul.f32 %v4772, %v5177
  %v5183 = vmul.f32 %v4775, %v5177
  %v5184 = vmul.f32 %v4778, %v5177
  %v5185 = vmul.f32 %v4781, %v5177
  %v5186 = vmul.f32 %v4784, %v5177
  %v5187 = vmul.f32 %v4787, %v5177
  %v5188 = vmul.f32 %v4790, %v5177
  %v5189 = vmul.f32 %v4793, %v5177
  %v5190 = vmul.f32 %v4796, %v5177
  %v5191 = vmul.f32 %v4799, %v5177
  %v5192 = vmul.f32 %v4802, %v5177
  %v5193 = vmul.f32 %v4805, %v5177
  %v5194 = vmul.f32 %v4808, %v5177
  %v5195 = vmul.f32 %v4811, %v5177
  %v5196 = vmul.f32 %v4814, %v5177
  %v5197 = vmul.f32 %v4817, %v5177
  %v5198 = vmul.f32 %v4820, %v5177
  %v5199 = vmul.f32 %v4823, %v5177
  %v5200 = vmul.f32 %v4826, %v5177
  %v5201 = vmul.f32 %v4829, %v5177
  %v5202 = vmul.f32 %v4832, %v5177
  %v5203 = vmul.f32 %v4835, %v5177
  %v5204 = vmul.f32 %v4838, %v5177
  %v5205 = vmul.f32 %v4841, %v5177
  %v5206 = vmul.f32 %v4844, %v5177
  %v5207 = vmul.f32 %v4847, %v5177
  %v5208 = vmul.f32 %v4850, %v5177
  %v5209 = vmul.f32 %v4853, %v5177
  %v5210 = vmul.f32 %v4856, %v5177
  %v5211 = vmul.f32 %v4859, %v5177
  %v5212 = vmul.f32 %v4862, %v5177
  %v5213 = vmul.f32 %v4865, %v5177
  %v5214 = vmul.f32 %v4868, %v5177
  %v5215 = vmul.f32 %v4871, %v5177
  %v5216 = vmul.f32 %v4874, %v5177
  %v5217 = vmul.f32 %v4877, %v5177
  %v5218 = vmul.f32 %v4880, %v5177
  %v5219 = vmul.f32 %v4883, %v5177
  %v5220 = vmul.f32 %v4886, %v5177
  %v5221 = vmul.f32 %v4889, %v5177
  %v5222 = vmul.f32 %v4892, %v5177
  %v5223 = vmul.f32 %v4895, %v5177
  %v5224 = vmul.f32 %v4898, %v5177
  %v5225 = vmul.f32 %v4901, %v5177
  %v5226 = vmul.f32 %v4904, %v5177
  %v5227 = vmul.f32 %v4907, %v5177
  %v5228 = vmul.f32 %v4910, %v5177
  %v5229 = vmul.f32 %v4913, %v5177
  %v5230 = vmul.f32 %v4916, %v5177
  %v5231 = vmul.f32 %v4919, %v5177
  %v5232 = vmul.f32 %v4922, %v5177
  %v5233 = vmul.f32 %v4925, %v5177
  %v5234 = vmul.f32 %v4928, %v5177
  %v5235 = vmul.f32 %v4931, %v5177
  %v5236 = vmul.f32 %v4934, %v5177
  %v5237 = vmul.f32 %v4937, %v5177
  %v5238 = vmul.f32 %v4940, %v5177
  %v5239 = vmul.f32 %v4943, %v5177
  %v5240 = vmul.f32 %v4946, %v5177
  %v5241 = vmul.f32 %v4949, %v5177
  %v5242 = vmul.f32 %v4952, %v5177
  %v5244 = vperm.slane %v5175, 0
  %v5246 = vadd.f32 %v5179, %v5244
  %v5247 = vadd.f32 %v5180, %v5244
  %v5248 = vadd.f32 %v5181, %v5244
  %v5249 = vadd.f32 %v5182, %v5244
  %v5250 = vadd.f32 %v5183, %v5244
  %v5251 = vadd.f32 %v5184, %v5244
  %v5252 = vadd.f32 %v5185, %v5244
  %v5253 = vadd.f32 %v5186, %v5244
  %v5254 = vadd.f32 %v5187, %v5244
  %v5255 = vadd.f32 %v5188, %v5244
  %v5256 = vadd.f32 %v5189, %v5244
  %v5257 = vadd.f32 %v5190, %v5244
  %v5258 = vadd.f32 %v5191, %v5244
  %v5259 = vadd.f32 %v5192, %v5244
  %v5260 = vadd.f32 %v5193, %v5244
  %v5261 = vadd.f32 %v5194, %v5244
  %v5262 = vadd.f32 %v5195, %v5244
  %v5263 = vadd.f32 %v5196, %v5244
  %v5264 = vadd.f32 %v5197, %v5244
  %v5265 = vadd.f32 %v5198, %v5244
  %v5266 = vadd.f32 %v5199, %v5244
  %v5267 = vadd.f32 %v5200, %v5244
  %v5268 = vadd.f32 %v5201, %v5244
  %v5269 = vadd.f32 %v5202, %v5244
  %v5270 = vadd.f32 %v5203, %v5244
  %v5271 = vadd.f32 %v5204, %v5244
  %v5272 = vadd.f32 %v5205, %v5244
  %v5273 = vadd.f32 %v5206, %v5244
  %v5274 = vadd.f32 %v5207, %v5244
  %v5275 = vadd.f32 %v5208, %v5244
  %v5276 = vadd.f32 %v5209, %v5244
  %v5277 = vadd.f32 %v5210, %v5244
  %v5278 = vadd.f32 %v5211, %v5244
  %v5279 = vadd.f32 %v5212, %v5244
  %v5280 = vadd.f32 %v5213, %v5244
  %v5281 = vadd.f32 %v5214, %v5244
  %v5282 = vadd.f32 %v5215, %v5244
  %v5283 = vadd.f32 %v5216, %v5244
  %v5284 = vadd.f32 %v5217, %v5244
  %v5285 = vadd.f32 %v5218, %v5244
  %v5286 = vadd.f32 %v5219, %v5244
  %v5287 = vadd.f32 %v5220, %v5244
  %v5288 = vadd.f32 %v5221, %v5244
  %v5289 = vadd.f32 %v5222, %v5244
  %v5290 = vadd.f32 %v5223, %v5244
  %v5291 = vadd.f32 %v5224, %v5244
  %v5292 = vadd.f32 %v5225, %v5244
  %v5293 = vadd.f32 %v5226, %v5244
  %v5294 = vadd.f32 %v5227, %v5244
  %v5295 = vadd.f32 %v5228, %v5244
  %v5296 = vadd.f32 %v5229, %v5244
  %v5297 = vadd.f32 %v5230, %v5244
  %v5298 = vadd.f32 %v5231, %v5244
  %v5299 = vadd.f32 %v5232, %v5244
  %v5300 = vadd.f32 %v5233, %v5244
  %v5301 = vadd.f32 %v5234, %v5244
  %v5302 = vadd.f32 %v5235, %v5244
  %v5303 = vadd.f32 %v5236, %v5244
  %v5304 = vadd.f32 %v5237, %v5244
  %v5305 = vadd.f32 %v5238, %v5244
  %v5306 = vadd.f32 %v5239, %v5244
  %v5307 = vadd.f32 %v5240, %v5244
  %v5308 = vadd.f32 %v5241, %v5244
  %v5309 = vadd.f32 %v5242, %v5244
  %v5310 = vmax.f32 %v5246, 0.0
  %v5311 = vmax.f32 %v5247, 0.0
  %v5312 = vmax.f32 %v5248, 0.0
  %v5313 = vmax.f32 %v5249, 0.0
  %v5314 = vmax.f32 %v5250, 0.0
  %v5315 = vmax.f32 %v5251, 0.0
  %v5316 = vmax.f32 %v5252, 0.0
  %v5317 = vmax.f32 %v5253, 0.0
  %v5318 = vmax.f32 %v5254, 0.0
  %v5319 = vmax.f32 %v5255, 0.0
  %v5320 = vmax.f32 %v5256, 0.0
  %v5321 = vmax.f32 %v5257, 0.0
  %v5322 = vmax.f32 %v5258, 0.0
  %v5323 = vmax.f32 %v5259, 0.0
  %v5324 = vmax.f32 %v5260, 0.0
  %v5325 = vmax.f32 %v5261, 0.0
  %v5326 = vmax.f32 %v5262, 0.0
  %v5327 = vmax.f32 %v5263, 0.0
  %v5328 = vmax.f32 %v5264, 0.0
  %v5329 = vmax.f32 %v5265, 0.0
  %v5330 = vmax.f32 %v5266, 0.0
  %v5331 = vmax.f32 %v5267, 0.0
  %v5332 = vmax.f32 %v5268, 0.0
  %v5333 = vmax.f32 %v5269, 0.0
  %v5334 = vmax.f32 %v5270, 0.0
  %v5335 = vmax.f32 %v5271, 0.0
  %v5336 = vmax.f32 %v5272, 0.0
  %v5337 = vmax.f32 %v5273, 0.0
  %v5338 = vmax.f32 %v5274, 0.0
  %v5339 = vmax.f32 %v5275, 0.0
  %v5340 = vmax.f32 %v5276, 0.0
  %v5341 = vmax.f32 %v5277, 0.0
  %v5342 = vmax.f32 %v5278, 0.0
  %v5343 = vmax.f32 %v5279, 0.0
  %v5344 = vmax.f32 %v5280, 0.0
  %v5345 = vmax.f32 %v5281, 0.0
  %v5346 = vmax.f32 %v5282, 0.0
  %v5347 = vmax.f32 %v5283, 0.0
  %v5348 = vmax.f32 %v5284, 0.0
  %v5349 = vmax.f32 %v5285, 0.0
  %v5350 = vmax.f32 %v5286, 0.0
  %v5351 = vmax.f32 %v5287, 0.0
  %v5352 = vmax.f32 %v5288, 0.0
  %v5353 = vmax.f32 %v5289, 0.0
  %v5354 = vmax.f32 %v5290, 0.0
  %v5355 = vmax.f32 %v5291, 0.0
  %v5356 = vmax.f32 %v5292, 0.0
  %v5357 = vmax.f32 %v5293, 0.0
  %v5358 = vmax.f32 %v5294, 0.0
  %v5359 = vmax.f32 %v5295, 0.0
  %v5360 = vmax.f32 %v5296, 0.0
  %v5361 = vmax.f32 %v5297, 0.0
  %v5362 = vmax.f32 %v5298, 0.0
  %v5363 = vmax.f32 %v5299, 0.0
  %v5364 = vmax.f32 %v5300, 0.0
  %v5365 = vmax.f32 %v5301, 0.0
  %v5366 = vmax.f32 %v5302, 0.0
  %v5367 = vmax.f32 %v5303, 0.0
  %v5368 = vmax.f32 %v5304, 0.0
  %v5369 = vmax.f32 %v5305, 0.0
  %v5370 = vmax.f32 %v5306, 0.0
  %v5371 = vmax.f32 %v5307, 0.0
  %v5372 = vmax.f32 %v5308, 0.0
  %v5373 = vmax.f32 %v5309, 0.0
  %v5434 = vrot.slane %v5310, 7
  %v5435 = vrot.slane %v5311, 7
  %v5436 = vsel %vm722, %v5434, %v5435
  %v5437 = vrot.slane %v5312, 7
  %v5438 = vrot.slane %v5313, 7
  %v5439 = vsel %vm722, %v5437, %v5438
  %v5440 = vrot.slane %v5314, 7
  %v5441 = vrot.slane %v5315, 7
  %v5442 = vsel %vm722, %v5440, %v5441
  %v5443 = vrot.slane %v5316, 7
  %v5444 = vrot.slane %v5317, 7
  %v5445 = vsel %vm722, %v5443, %v5444
  %v5446 = vrot.slane %v5318, 7
  %v5447 = vrot.slane %v5319, 7
  %v5448 = vsel %vm722, %v5446, %v5447
  %v5449 = vrot.slane %v5320, 7
  %v5450 = vrot.slane %v5321, 7
  %v5451 = vsel %vm722, %v5449, %v5450
  %v5452 = vrot.slane %v5322, 7
  %v5453 = vrot.slane %v5323, 7
  %v5454 = vsel %vm722, %v5452, %v5453
  %v5455 = vrot.slane %v5324, 7
  %v5456 = vrot.slane %v5325, 7
  %v5457 = vsel %vm722, %v5455, %v5456
  %v5458 = vrot.slane %v5326, 7
  %v5459 = vrot.slane %v5327, 7
  %v5460 = vsel %vm722, %v5458, %v5459
  %v5461 = vrot.slane %v5328, 7
  %v5462 = vrot.slane %v5329, 7
  %v5463 = vsel %vm722, %v5461, %v5462
  %v5464 = vrot.slane %v5330, 7
  %v5465 = vrot.slane %v5331, 7
  %v5466 = vsel %vm722, %v5464, %v5465
  %v5467 = vrot.slane %v5332, 7
  %v5468 = vrot.slane %v5333, 7
  %v5469 = vsel %vm722, %v5467, %v5468
  %v5470 = vrot.slane %v5334, 7
  %v5471 = vrot.slane %v5335, 7
  %v5472 = vsel %vm722, %v5470, %v5471
  %v5473 = vrot.slane %v5336, 7
  %v5474 = vrot.slane %v5337, 7
  %v5475 = vsel %vm722, %v5473, %v5474
  %v5476 = vrot.slane %v5338, 7
  %v5477 = vrot.slane %v5339, 7
  %v5478 = vsel %vm722, %v5476, %v5477
  %v5479 = vrot.slane %v5342, 7
  %v5480 = vrot.slane %v5343, 7
  %v5481 = vsel %vm722, %v5479, %v5480
  %v5482 = vrot.slane %v5344, 7
  %v5483 = vrot.slane %v5345, 7
  %v5484 = vsel %vm722, %v5482, %v5483
  %v5485 = vrot.slane %v5346, 7
  %v5486 = vrot.slane %v5347, 7
  %v5487 = vsel %vm722, %v5485, %v5486
  %v5488 = vrot.slane %v5348, 7
  %v5489 = vrot.slane %v5349, 7
  %v5490 = vsel %vm722, %v5488, %v5489
  %v5491 = vrot.slane %v5350, 7
  %v5492 = vrot.slane %v5351, 7
  %v5493 = vsel %vm722, %v5491, %v5492
  %v5494 = vrot.slane %v5352, 7
  %v5495 = vrot.slane %v5353, 7
  %v5496 = vsel %vm722, %v5494, %v5495
  %v5497 = vrot.slane %v5354, 7
  %v5498 = vrot.slane %v5355, 7
  %v5499 = vsel %vm722, %v5497, %v5498
  %v5500 = vrot.slane %v5356, 7
  %v5501 = vrot.slane %v5357, 7
  %v5502 = vsel %vm722, %v5500, %v5501
  %v5503 = vrot.slane %v5358, 7
  %v5504 = vrot.slane %v5359, 7
  %v5505 = vsel %vm722, %v5503, %v5504
  %v5506 = vrot.slane %v5360, 7
  %v5507 = vrot.slane %v5361, 7
  %v5508 = vsel %vm722, %v5506, %v5507
  %v5509 = vrot.slane %v5362, 7
  %v5510 = vrot.slane %v5363, 7
  %v5511 = vsel %vm722, %v5509, %v5510
  %v5512 = vrot.slane %v5364, 7
  %v5513 = vrot.slane %v5365, 7
  %v5514 = vsel %vm722, %v5512, %v5513
  %v5515 = vrot.slane %v5366, 7
  %v5516 = vrot.slane %v5367, 7
  %v5517 = vsel %vm722, %v5515, %v5516
  %v5518 = vrot.slane %v5368, 7
  %v5519 = vrot.slane %v5369, 7
  %v5520 = vsel %vm722, %v5518, %v5519
  %v5521 = vrot.slane %v5370, 7
  %v5522 = vrot.slane %v5371, 7
  %v5523 = vsel %vm722, %v5521, %v5522
  %5584 = vst [vmem:[%s873] sm:$0xfe] %v5434
  %5585 = vst [vmem:[%s873 + $0x48] sm:$0xff] %v5436
  %5586 = vst [vmem:[%s873 + $0x90] sm:$0xfe] %v5437
  %5587 = vst [vmem:[%s873 + $0xd8] sm:$0xff] %v5439
  %5588 = vst [vmem:[%s873 + $0x120] sm:$0xfe] %v5440
  %5589 = vst [vmem:[%s873 + $0x168] sm:$0xff] %v5442
  %5590 = vst [vmem:[%s873 + $0x1b0] sm:$0xfe] %v5443
  %5591 = vst [vmem:[%s873 + $0x1f8] sm:$0xff] %v5445
  %5592 = vst [vmem:[%s873 + $0x240] sm:$0xfe] %v5446
  %5593 = vst [vmem:[%s873 + $0x288] sm:$0xff] %v5448
  %5594 = vst [vmem:[%s873 + $0x2d0] sm:$0xfe] %v5449
  %5595 = vst [vmem:[%s873 + $0x318] sm:$0xff] %v5451
  %5596 = vst [vmem:[%s873 + $0x360] sm:$0xfe] %v5452
  %5597 = vst [vmem:[%s873 + $0x3a8] sm:$0xff] %v5454
  %5598 = vst [vmem:[%s873 + $0x3f0] sm:$0xfe] %v5455
  %5599 = vst [vmem:[%s873 + $0x438] sm:$0xff] %v5457
  %5600 = vst [vmem:[%s873 + $0x480] sm:$0xfe] %v5458
  %5601 = vst [vmem:[%s873 + $0x4c8] sm:$0xff] %v5460
  %5602 = vst [vmem:[%s873 + $0x510] sm:$0xfe] %v5461
  %5603 = vst [vmem:[%s873 + $0x558] sm:$0xff] %v5463
  %5604 = vst [vmem:[%s873 + $0x5a0] sm:$0xfe] %v5464
  %5605 = vst [vmem:[%s873 + $0x5e8] sm:$0xff] %v5466
  %5606 = vst [vmem:[%s873 + $0x630] sm:$0xfe] %v5467
  %5607 = vst [vmem:[%s873 + $0x678] sm:$0xff] %v5469
  %5608 = vst [vmem:[%s873 + $0x6c0] sm:$0xfe] %v5470
  %5609 = vst [vmem:[%s873 + $0x708] sm:$0xff] %v5472
  %5610 = vst [vmem:[%s873 + $0x750] sm:$0xfe] %v5473
  %5611 = vst [vmem:[%s873 + $0x798] sm:$0xff] %v5475
  %5612 = vst [vmem:[%s873 + $0x7e0] sm:$0xfe] %v5476
  %5613 = vst [vmem:[%s873 + $0x828] sm:$0xff] %v5478
  %5614 = vst [vmem:[%s873 + $0x900] sm:$0xfe] %v5479
  %5615 = vst [vmem:[%s873 + $0x948] sm:$0xff] %v5481
  %5616 = vst [vmem:[%s873 + $0x990] sm:$0xfe] %v5482
  %5617 = vst [vmem:[%s873 + $0x9d8] sm:$0xff] %v5484
  %5618 = vst [vmem:[%s873 + $0xa20] sm:$0xfe] %v5485
  %5619 = vst [vmem:[%s873 + $0xa68] sm:$0xff] %v5487
  %5620 = vst [vmem:[%s873 + $0xab0] sm:$0xfe] %v5488
  %5621 = vst [vmem:[%s873 + $0xaf8] sm:$0xff] %v5490
  %5622 = vst [vmem:[%s873 + $0xb40] sm:$0xfe] %v5491
  %5623 = vst [vmem:[%s873 + $0xb88] sm:$0xff] %v5493
  %5624 = vst [vmem:[%s873 + $0xbd0] sm:$0xfe] %v5494
  %5625 = vst [vmem:[%s873 + $0xc18] sm:$0xff] %v5496
  %5626 = vst [vmem:[%s873 + $0xc60] sm:$0xfe] %v5497
  %5627 = vst [vmem:[%s873 + $0xca8] sm:$0xff] %v5499
  %5628 = vst [vmem:[%s873 + $0xcf0] sm:$0xfe] %v5500
  %5629 = vst [vmem:[%s873 + $0xd38] sm:$0xff] %v5502
  %5630 = vst [vmem:[%s873 + $0xd80] sm:$0xfe] %v5503
  %5631 = vst [vmem:[%s873 + $0xdc8] sm:$0xff] %v5505
  %5632 = vst [vmem:[%s873 + $0xe10] sm:$0xfe] %v5506
  %5633 = vst [vmem:[%s873 + $0xe58] sm:$0xff] %v5508
  %5634 = vst [vmem:[%s873 + $0xea0] sm:$0xfe] %v5509
  %5635 = vst [vmem:[%s873 + $0xee8] sm:$0xff] %v5511
  %5636 = vst [vmem:[%s873 + $0xf30] sm:$0xfe] %v5512
  %5637 = vst [vmem:[%s873 + $0xf78] sm:$0xff] %v5514
  %5638 = vst [vmem:[%s873 + $0xfc0] sm:$0xfe] %v5515
  %5639 = vst [vmem:[%s873 + $0x1008] sm:$0xff] %v5517
  %5640 = vst [vmem:[%s873 + $0x1050] sm:$0xfe] %v5518
  %5641 = vst [vmem:[%s873 + $0x1098] sm:$0xff] %v5520
  %5642 = vst [vmem:[%s873 + $0x10e0] sm:$0xfe] %v5521
  %5643 = vst [vmem:[%s873 + $0x1128] sm:$0xff] %v5523
  %5644 = vst [vmem:[%s873 + $0x8] sm:$0xff] %v5310
  %5645 = vst [vmem:[%s873 + $0x50] sm:$0xff] %v5311
  %5646 = vst [vmem:[%s873 + $0x98] sm:$0xff] %v5312
  %5647 = vst [vmem:[%s873 + $0xe0] sm:$0xff] %v5313
  %5648 = vst [vmem:[%s873 + $0x128] sm:$0xff] %v5314
  %5649 = vst [vmem:[%s873 + $0x170] sm:$0xff] %v5315
  %5650 = vst [vmem:[%s873 + $0x1b8] sm:$0xff] %v5316
  %5651 = vst [vmem:[%s873 + $0x200] sm:$0xff] %v5317
  %5652 = vst [vmem:[%s873 + $0x248] sm:$0xff] %v5318
  %5653 = vst [vmem:[%s873 + $0x290] sm:$0xff] %v5319
  %5654 = vst [vmem:[%s873 + $0x2d8] sm:$0xff] %v5320
  %5655 = vst [vmem:[%s873 + $0x320] sm:$0xff] %v5321
  %5656 = vst [vmem:[%s873 + $0x368] sm:$0xff] %v5322
  %5657 = vst [vmem:[%s873 + $0x3b0] sm:$0xff] %v5323
  %5658 = vst [vmem:[%s873 + $0x3f8] sm:$0xff] %v5324
  %5659 = vst [vmem:[%s873 + $0x440] sm:$0xff] %v5325
  %5660 = vst [vmem:[%s873 + $0x488] sm:$0xff] %v5326
  %5661 = vst [vmem:[%s873 + $0x4d0] sm:$0xff] %v5327
  %5662 = vst [vmem:[%s873 + $0x518] sm:$0xff] %v5328
  %5663 = vst [vmem:[%s873 + $0x560] sm:$0xff] %v5329
  %5664 = vst [vmem:[%s873 + $0x5a8] sm:$0xff] %v5330
  %5665 = vst [vmem:[%s873 + $0x5f0] sm:$0xff] %v5331
  %5666 = vst [vmem:[%s873 + $0x638] sm:$0xff] %v5332
  %5667 = vst [vmem:[%s873 + $0x680] sm:$0xff] %v5333
  %5668 = vst [vmem:[%s873 + $0x6c8] sm:$0xff] %v5334
  %5669 = vst [vmem:[%s873 + $0x710] sm:$0xff] %v5335
  %5670 = vst [vmem:[%s873 + $0x758] sm:$0xff] %v5336
  %5671 = vst [vmem:[%s873 + $0x7a0] sm:$0xff] %v5337
  %5672 = vst [vmem:[%s873 + $0x7e8] sm:$0xff] %v5338
  %5673 = vst [vmem:[%s873 + $0x830] sm:$0xff] %v5339
  %5674 = vst [vmem:[%s873 + $0x908] sm:$0xff] %v5342
  %5675 = vst [vmem:[%s873 + $0x950] sm:$0xff] %v5343
  %5676 = vst [vmem:[%s873 + $0x998] sm:$0xff] %v5344
  %5677 = vst [vmem:[%s873 + $0x9e0] sm:$0xff] %v5345
  %5678 = vst [vmem:[%s873 + $0xa28] sm:$0xff] %v5346
  %5679 = vst [vmem:[%s873 + $0xa70] sm:$0xff] %v5347
  %5680 = vst [vmem:[%s873 + $0xab8] sm:$0xff] %v5348
  %5681 = vst [vmem:[%s873 + $0xb00] sm:$0xff] %v5349
  %5682 = vst [vmem:[%s873 + $0xb48] sm:$0xff] %v5350
  %5683 = vst [vmem:[%s873 + $0xb90] sm:$0xff] %v5351
  %5684 = vst [vmem:[%s873 + $0xbd8] sm:$0xff] %v5352
  %5685 = vst [vmem:[%s873 + $0xc20] sm:$0xff] %v5353
  %5686 = vst [vmem:[%s873 + $0xc68] sm:$0xff] %v5354
  %5687 = vst [vmem:[%s873 + $0xcb0] sm:$0xff] %v5355
  %5688 = vst [vmem:[%s873 + $0xcf8] sm:$0xff] %v5356
  %5689 = vst [vmem:[%s873 + $0xd40] sm:$0xff] %v5357
  %5690 = vst [vmem:[%s873 + $0xd88] sm:$0xff] %v5358
  %5691 = vst [vmem:[%s873 + $0xdd0] sm:$0xff] %v5359
  %5692 = vst [vmem:[%s873 + $0xe18] sm:$0xff] %v5360
  %5693 = vst [vmem:[%s873 + $0xe60] sm:$0xff] %v5361
  %5694 = vst [vmem:[%s873 + $0xea8] sm:$0xff] %v5362
  %5695 = vst [vmem:[%s873 + $0xef0] sm:$0xff] %v5363
  %5696 = vst [vmem:[%s873 + $0xf38] sm:$0xff] %v5364
  %5697 = vst [vmem:[%s873 + $0xf80] sm:$0xff] %v5365
  %5698 = vst [vmem:[%s873 + $0xfc8] sm:$0xff] %v5366
  %5699 = vst [vmem:[%s873 + $0x1010] sm:$0xff] %v5367
  %5700 = vst [vmem:[%s873 + $0x1058] sm:$0xff] %v5368
  %5701 = vst [vmem:[%s873 + $0x10a0] sm:$0xff] %v5369
  %5702 = vst [vmem:[%s873 + $0x10e8] sm:$0xff] %v5370
  %5703 = vst [vmem:[%s873 + $0x1130] sm:$0xff] %v5371
  %vm5704 = vcmask 1046528
  %v5705 = vrot.slane %v5310, 1
  %v5706 = vrot.slane %v5311, 1
  %v5707 = vsel %vm5704, %v5705, %v5706
  %v5708 = vrot.slane %v5312, 1
  %v5709 = vrot.slane %v5313, 1
  %v5710 = vsel %vm5704, %v5708, %v5709
  %v5711 = vrot.slane %v5314, 1
  %v5712 = vrot.slane %v5315, 1
  %v5713 = vsel %vm5704, %v5711, %v5712
  %v5714 = vrot.slane %v5316, 1
  %v5715 = vrot.slane %v5317, 1
  %v5716 = vsel %vm5704, %v5714, %v5715
  %v5717 = vrot.slane %v5318, 1
  %v5718 = vrot.slane %v5319, 1
  %v5719 = vsel %vm5704, %v5717, %v5718
  %v5720 = vrot.slane %v5320, 1
  %v5721 = vrot.slane %v5321, 1
  %v5722 = vsel %vm5704, %v5720, %v5721
  %v5723 = vrot.slane %v5322, 1
  %v5724 = vrot.slane %v5323, 1
  %v5725 = vsel %vm5704, %v5723, %v5724
  %v5726 = vrot.slane %v5324, 1
  %v5727 = vrot.slane %v5325, 1
  %v5728 = vsel %vm5704, %v5726, %v5727
  %v5729 = vrot.slane %v5326, 1
  %v5730 = vrot.slane %v5327, 1
  %v5731 = vsel %vm5704, %v5729, %v5730
  %v5732 = vrot.slane %v5328, 1
  %v5733 = vrot.slane %v5329, 1
  %v5734 = vsel %vm5704, %v5732, %v5733
  %v5735 = vrot.slane %v5330, 1
  %v5736 = vrot.slane %v5331, 1
  %v5737 = vsel %vm5704, %v5735, %v5736
  %v5738 = vrot.slane %v5332, 1
  %v5739 = vrot.slane %v5333, 1
  %v5740 = vsel %vm5704, %v5738, %v5739
  %v5741 = vrot.slane %v5334, 1
  %v5742 = vrot.slane %v5335, 1
  %v5743 = vsel %vm5704, %v5741, %v5742
  %v5744 = vrot.slane %v5336, 1
  %v5745 = vrot.slane %v5337, 1
  %v5746 = vsel %vm5704, %v5744, %v5745
  %v5747 = vrot.slane %v5338, 1
  %v5748 = vrot.slane %v5339, 1
  %v5749 = vsel %vm5704, %v5747, %v5748
  %v5750 = vrot.slane %v5342, 1
  %v5751 = vrot.slane %v5343, 1
  %v5752 = vsel %vm5704, %v5750, %v5751
  %v5753 = vrot.slane %v5344, 1
  %v5754 = vrot.slane %v5345, 1
  %v5755 = vsel %vm5704, %v5753, %v5754
  %v5756 = vrot.slane %v5346, 1
  %v5757 = vrot.slane %v5347, 1
  %v5758 = vsel %vm5704, %v5756, %v5757
  %v5759 = vrot.slane %v5348, 1
  %v5760 = vrot.slane %v5349, 1
  %v5761 = vsel %vm5704, %v5759, %v5760
  %v5762 = vrot.slane %v5350, 1
  %v5763 = vrot.slane %v5351, 1
  %v5764 = vsel %vm5704, %v5762, %v5763
  %v5765 = vrot.slane %v5352, 1
  %v5766 = vrot.slane %v5353, 1
  %v5767 = vsel %vm5704, %v5765, %v5766
  %v5768 = vrot.slane %v5354, 1
  %v5769 = vrot.slane %v5355, 1
  %v5770 = vsel %vm5704, %v5768, %v5769
  %v5771 = vrot.slane %v5356, 1
  %v5772 = vrot.slane %v5357, 1
  %v5773 = vsel %vm5704, %v5771, %v5772
  %v5774 = vrot.slane %v5358, 1
  %v5775 = vrot.slane %v5359, 1
  %v5776 = vsel %vm5704, %v5774, %v5775
  %v5777 = vrot.slane %v5360, 1
  %v5778 = vrot.slane %v5361, 1
  %v5779 = vsel %vm5704, %v5777, %v5778
  %v5780 = vrot.slane %v5362, 1
  %v5781 = vrot.slane %v5363, 1
  %v5782 = vsel %vm5704, %v5780, %v5781
  %v5783 = vrot.slane %v5364, 1
  %v5784 = vrot.slane %v5365, 1
  %v5785 = vsel %vm5704, %v5783, %v5784
  %v5786 = vrot.slane %v5366, 1
  %v5787 = vrot.slane %v5367, 1
  %v5788 = vsel %vm5704, %v5786, %v5787
  %v5789 = vrot.slane %v5368, 1
  %v5790 = vrot.slane %v5369, 1
  %v5791 = vsel %vm5704, %v5789, %v5790
  %v5792 = vrot.slane %v5370, 1
  %v5793 = vrot.slane %v5371, 1
  %v5794 = vsel %vm5704, %v5792, %v5793
  %5855 = vst [vmem:[%s873 + $0x10] sm:$0xff] %v5707
  %5856 = vst [vmem:[%s873 + $0x58] sm:$0x7f] %v5706
  %5857 = vst [vmem:[%s873 + $0xa0] sm:$0xff] %v5710
  %5858 = vst [vmem:[%s873 + $0xe8] sm:$0x7f] %v5709
  %5859 = vst [vmem:[%s873 + $0x130] sm:$0xff] %v5713
  %5860 = vst [vmem:[%s873 + $0x178] sm:$0x7f] %v5712
  %5861 = vst [vmem:[%s873 + $0x1c0] sm:$0xff] %v5716
  %5862 = vst [vmem:[%s873 + $0x208] sm:$0x7f] %v5715
  %5863 = vst [vmem:[%s873 + $0x250] sm:$0xff] %v5719
  %5864 = vst [vmem:[%s873 + $0x298] sm:$0x7f] %v5718
  %5865 = vst [vmem:[%s873 + $0x2e0] sm:$0xff] %v5722
  %5866 = vst [vmem:[%s873 + $0x328] sm:$0x7f] %v5721
  %5867 = vst [vmem:[%s873 + $0x370] sm:$0xff] %v5725
  %5868 = vst [vmem:[%s873 + $0x3b8] sm:$0x7f] %v5724
  %5869 = vst [vmem:[%s873 + $0x400] sm:$0xff] %v5728
  %5870 = vst [vmem:[%s873 + $0x448] sm:$0x7f] %v5727
  %5871 = vst [vmem:[%s873 + $0x490] sm:$0xff] %v5731
  %5872 = vst [vmem:[%s873 + $0x4d8] sm:$0x7f] %v5730
  %5873 = vst [vmem:[%s873 + $0x520] sm:$0xff] %v5734
  %5874 = vst [vmem:[%s873 + $0x568] sm:$0x7f] %v5733
  %5875 = vst [vmem:[%s873 + $0x5b0] sm:$0xff] %v5737
  %5876 = vst [vmem:[%s873 + $0x5f8] sm:$0x7f] %v5736
  %5877 = vst [vmem:[%s873 + $0x640] sm:$0xff] %v5740
  %5878 = vst [vmem:[%s873 + $0x688] sm:$0x7f] %v5739
  %5879 = vst [vmem:[%s873 + $0x6d0] sm:$0xff] %v5743
  %5880 = vst [vmem:[%s873 + $0x718] sm:$0x7f] %v5742
  %5881 = vst [vmem:[%s873 + $0x760] sm:$0xff] %v5746
  %5882 = vst [vmem:[%s873 + $0x7a8] sm:$0x7f] %v5745
  %5883 = vst [vmem:[%s873 + $0x7f0] sm:$0xff] %v5749
  %5884 = vst [vmem:[%s873 + $0x838] sm:$0x7f] %v5748
  %5885 = vst [vmem:[%s873 + $0x910] sm:$0xff] %v5752
  %5886 = vst [vmem:[%s873 + $0x958] sm:$0x7f] %v5751
  %5887 = vst [vmem:[%s873 + $0x9a0] sm:$0xff] %v5755
  %5888 = vst [vmem:[%s873 + $0x9e8] sm:$0x7f] %v5754
  %5889 = vst [vmem:[%s873 + $0xa30] sm:$0xff] %v5758
  %5890 = vst [vmem:[%s873 + $0xa78] sm:$0x7f] %v5757
  %5891 = vst [vmem:[%s873 + $0xac0] sm:$0xff] %v5761
  %5892 = vst [vmem:[%s873 + $0xb08] sm:$0x7f] %v5760
  %5893 = vst [vmem:[%s873 + $0xb50] sm:$0xff] %v5764
  %5894 = vst [vmem:[%s873 + $0xb98] sm:$0x7f] %v5763
  %5895 = vst [vmem:[%s873 + $0xbe0] sm:$0xff] %v5767
  %5896 = vst [vmem:[%s873 + $0xc28] sm:$0x7f] %v5766
  %5897 = vst [vmem:[%s873 + $0xc70] sm:$0xff] %v5770
  %5898 = vst [vmem:[%s873 + $0xcb8] sm:$0x7f] %v5769
  %5899 = vst [vmem:[%s873 + $0xd00] sm:$0xff] %v5773
  %5900 = vst [vmem:[%s873 + $0xd48] sm:$0x7f] %v5772
  %5901 = vst [vmem:[%s873 + $0xd90] sm:$0xff] %v5776
  %5902 = vst [vmem:[%s873 + $0xdd8] sm:$0x7f] %v5775
  %5903 = vst [vmem:[%s873 + $0xe20] sm:$0xff] %v5779
  %5904 = vst [vmem:[%s873 + $0xe68] sm:$0x7f] %v5778
  %5905 = vst [vmem:[%s873 + $0xeb0] sm:$0xff] %v5782
  %5906 = vst [vmem:[%s873 + $0xef8] sm:$0x7f] %v5781
  %5907 = vst [vmem:[%s873 + $0xf40] sm:$0xff] %v5785
  %5908 = vst [vmem:[%s873 + $0xf88] sm:$0x7f] %v5784
  %5909 = vst [vmem:[%s873 + $0xfd0] sm:$0xff] %v5788
  %5910 = vst [vmem:[%s873 + $0x1018] sm:$0x7f] %v5787
  %5911 = vst [vmem:[%s873 + $0x1060] sm:$0xff] %v5791
  %5912 = vst [vmem:[%s873 + $0x10a8] sm:$0x7f] %v5790
  %5913 = vst [vmem:[%s873 + $0x10f0] sm:$0xff] %v5794
  %5914 = vst [vmem:[%s873 + $0x1138] sm:$0x7f] %v5793
  %v5919 = vrot.slane %v5340, 7
  %v5920 = vrot.slane %v5341, 7
  %v5921 = vsel %vm722, %v5919, %v5920
  %v5922 = vrot.slane %v5372, 7
  %v5923 = vrot.slane %v5373, 7
  %v5924 = vsel %vm722, %v5922, %v5923
  %5929 = vst [vmem:[#allocation2 + $0x18] sm:$0xfe] %v5434
  %5930 = vst [vmem:[#allocation2 + $0x60] sm:$0xff] %v5436
  %5931 = vst [vmem:[#allocation2 + $0xa8] sm:$0xfe] %v5437
  %5932 = vst [vmem:[#allocation2 + $0xf0] sm:$0xff] %v5439
  %5933 = vst [vmem:[#allocation2 + $0x138] sm:$0xfe] %v5440
  %5934 = vst [vmem:[#allocation2 + $0x180] sm:$0xff] %v5442
  %5935 = vst [vmem:[#allocation2 + $0x1c8] sm:$0xfe] %v5443
  %5936 = vst [vmem:[#allocation2 + $0x210] sm:$0xff] %v5445
  %5937 = vst [vmem:[#allocation2 + $0x258] sm:$0xfe] %v5446
  %5938 = vst [vmem:[#allocation2 + $0x2a0] sm:$0xff] %v5448
  %5939 = vst [vmem:[#allocation2 + $0x2e8] sm:$0xfe] %v5449
  %5940 = vst [vmem:[#allocation2 + $0x330] sm:$0xff] %v5451
  %5941 = vst [vmem:[#allocation2 + $0x378] sm:$0xfe] %v5452
  %5942 = vst [vmem:[#allocation2 + $0x3c0] sm:$0xff] %v5454
  %5943 = vst [vmem:[#allocation2 + $0x408] sm:$0xfe] %v5455
  %5944 = vst [vmem:[#allocation2 + $0x450] sm:$0xff] %v5457
  %5945 = vst [vmem:[#allocation2 + $0x498] sm:$0xfe] %v5458
  %5946 = vst [vmem:[#allocation2 + $0x4e0] sm:$0xff] %v5460
  %5947 = vst [vmem:[#allocation2 + $0x528] sm:$0xfe] %v5461
  %5948 = vst [vmem:[#allocation2 + $0x570] sm:$0xff] %v5463
  %5949 = vst [vmem:[#allocation2 + $0x5b8] sm:$0xfe] %v5464
  %5950 = vst [vmem:[#allocation2 + $0x600] sm:$0xff] %v5466
  %5951 = vst [vmem:[#allocation2 + $0x648] sm:$0xfe] %v5467
  %5952 = vst [vmem:[#allocation2 + $0x690] sm:$0xff] %v5469
  %5953 = vst [vmem:[#allocation2 + $0x6d8] sm:$0xfe] %v5470
  %5954 = vst [vmem:[#allocation2 + $0x720] sm:$0xff] %v5472
  %5955 = vst [vmem:[#allocation2 + $0x768] sm:$0xfe] %v5473
  %5956 = vst [vmem:[#allocation2 + $0x7b0] sm:$0xff] %v5475
  %5957 = vst [vmem:[#allocation2 + $0x7f8] sm:$0xfe] %v5476
  %5958 = vst [vmem:[#allocation2 + $0x840] sm:$0xff] %v5478
  %5959 = vst [vmem:[#allocation2 + $0x888] sm:$0xfe] %v5919
  %5960 = vst [vmem:[#allocation2 + $0x8d0] sm:$0xff] %v5921
  %5961 = vst [vmem:[#allocation2 + $0x918] sm:$0xfe] %v5479
  %5962 = vst [vmem:[#allocation2 + $0x960] sm:$0xff] %v5481
  %5963 = vst [vmem:[#allocation2 + $0x9a8] sm:$0xfe] %v5482
  %5964 = vst [vmem:[#allocation2 + $0x9f0] sm:$0xff] %v5484
  %5965 = vst [vmem:[#allocation2 + $0xa38] sm:$0xfe] %v5485
  %5966 = vst [vmem:[#allocation2 + $0xa80] sm:$0xff] %v5487
  %5967 = vst [vmem:[#allocation2 + $0xac8] sm:$0xfe] %v5488
  %5968 = vst [vmem:[#allocation2 + $0xb10] sm:$0xff] %v5490
  %5969 = vst [vmem:[#allocation2 + $0xb58] sm:$0xfe] %v5491
  %5970 = vst [vmem:[#allocation2 + $0xba0] sm:$0xff] %v5493
  %5971 = vst [vmem:[#allocation2 + $0xbe8] sm:$0xfe] %v5494
  %5972 = vst [vmem:[#allocation2 + $0xc30] sm:$0xff] %v5496
  %5973 = vst [vmem:[#allocation2 + $0xc78] sm:$0xfe] %v5497
  %5974 = vst [vmem:[#allocation2 + $0xcc0] sm:$0xff] %v5499
  %5975 = vst [vmem:[#allocation2 + $0xd08] sm:$0xfe] %v5500
  %5976 = vst [vmem:[#allocation2 + $0xd50] sm:$0xff] %v5502
  %5977 = vst [vmem:[#allocation2 + $0xd98] sm:$0xfe] %v5503
  %5978 = vst [vmem:[#allocation2 + $0xde0] sm:$0xff] %v5505
  %5979 = vst [vmem:[#allocation2 + $0xe28] sm:$0xfe] %v5506
  %5980 = vst [vmem:[#allocation2 + $0xe70] sm:$0xff] %v5508
  %5981 = vst [vmem:[#allocation2 + $0xeb8] sm:$0xfe] %v5509
  %5982 = vst [vmem:[#allocation2 + $0xf00] sm:$0xff] %v5511
  %5983 = vst [vmem:[#allocation2 + $0xf48] sm:$0xfe] %v5512
  %5984 = vst [vmem:[#allocation2 + $0xf90] sm:$0xff] %v5514
  %5985 = vst [vmem:[#allocation2 + $0xfd8] sm:$0xfe] %v5515
  %5986 = vst [vmem:[#allocation2 + $0x1020] sm:$0xff] %v5517
  %5987 = vst [vmem:[#allocation2 + $0x1068] sm:$0xfe] %v5518
  %5988 = vst [vmem:[#allocation2 + $0x10b0] sm:$0xff] %v5520
  %5989 = vst [vmem:[#allocation2 + $0x10f8] sm:$0xfe] %v5521
  %5990 = vst [vmem:[#allocation2 + $0x1140] sm:$0xff] %v5523
  %5991 = vst [vmem:[#allocation2 + $0x1188] sm:$0xfe] %v5922
  %5992 = vst [vmem:[#allocation2 + $0x11d0] sm:$0xff] %v5924
  %5993 = vst [vmem:[#allocation2 + $0x20] sm:$0xff] %v5310
  %5994 = vst [vmem:[#allocation2 + $0x68] sm:$0xff] %v5311
  %5995 = vst [vmem:[#allocation2 + $0xb0] sm:$0xff] %v5312
  %5996 = vst [vmem:[#allocation2 + $0xf8] sm:$0xff] %v5313
  %5997 = vst [vmem:[#allocation2 + $0x140] sm:$0xff] %v5314
  %5998 = vst [vmem:[#allocation2 + $0x188] sm:$0xff] %v5315
  %5999 = vst [vmem:[#allocation2 + $0x1d0] sm:$0xff] %v5316
  %6000 = vst [vmem:[#allocation2 + $0x218] sm:$0xff] %v5317
  %6001 = vst [vmem:[#allocation2 + $0x260] sm:$0xff] %v5318
  %6002 = vst [vmem:[#allocation2 + $0x2a8] sm:$0xff] %v5319
  %6003 = vst [vmem:[#allocation2 + $0x2f0] sm:$0xff] %v5320
  %6004 = vst [vmem:[#allocation2 + $0x338] sm:$0xff] %v5321
  %6005 = vst [vmem:[#allocation2 + $0x380] sm:$0xff] %v5322
  %6006 = vst [vmem:[#allocation2 + $0x3c8] sm:$0xff] %v5323
  %6007 = vst [vmem:[#allocation2 + $0x410] sm:$0xff] %v5324
  %6008 = vst [vmem:[#allocation2 + $0x458] sm:$0xff] %v5325
  %6009 = vst [vmem:[#allocation2 + $0x4a0] sm:$0xff] %v5326
  %6010 = vst [vmem:[#allocation2 + $0x4e8] sm:$0xff] %v5327
  %6011 = vst [vmem:[#allocation2 + $0x530] sm:$0xff] %v5328
  %6012 = vst [vmem:[#allocation2 + $0x578] sm:$0xff] %v5329
  %6013 = vst [vmem:[#allocation2 + $0x5c0] sm:$0xff] %v5330
  %6014 = vst [vmem:[#allocation2 + $0x608] sm:$0xff] %v5331
  %6015 = vst [vmem:[#allocation2 + $0x650] sm:$0xff] %v5332
  %6016 = vst [vmem:[#allocation2 + $0x698] sm:$0xff] %v5333
  %6017 = vst [vmem:[#allocation2 + $0x6e0] sm:$0xff] %v5334
  %6018 = vst [vmem:[#allocation2 + $0x728] sm:$0xff] %v5335
  %6019 = vst [vmem:[#allocation2 + $0x770] sm:$0xff] %v5336
  %6020 = vst [vmem:[#allocation2 + $0x7b8] sm:$0xff] %v5337
  %6021 = vst [vmem:[#allocation2 + $0x800] sm:$0xff] %v5338
  %6022 = vst [vmem:[#allocation2 + $0x848] sm:$0xff] %v5339
  %6023 = vst [vmem:[#allocation2 + $0x890] sm:$0xff] %v5340
  %6024 = vst [vmem:[#allocation2 + $0x8d8] sm:$0xff] %v5341
  %6025 = vst [vmem:[#allocation2 + $0x920] sm:$0xff] %v5342
  %6026 = vst [vmem:[#allocation2 + $0x968] sm:$0xff] %v5343
  %6027 = vst [vmem:[#allocation2 + $0x9b0] sm:$0xff] %v5344
  %6028 = vst [vmem:[#allocation2 + $0x9f8] sm:$0xff] %v5345
  %6029 = vst [vmem:[#allocation2 + $0xa40] sm:$0xff] %v5346
  %6030 = vst [vmem:[#allocation2 + $0xa88] sm:$0xff] %v5347
  %6031 = vst [vmem:[#allocation2 + $0xad0] sm:$0xff] %v5348
  %6032 = vst [vmem:[#allocation2 + $0xb18] sm:$0xff] %v5349
  %6033 = vst [vmem:[#allocation2 + $0xb60] sm:$0xff] %v5350
  %6034 = vst [vmem:[#allocation2 + $0xba8] sm:$0xff] %v5351
  %6035 = vst [vmem:[#allocation2 + $0xbf0] sm:$0xff] %v5352
  %6036 = vst [vmem:[#allocation2 + $0xc38] sm:$0xff] %v5353
  %6037 = vst [vmem:[#allocation2 + $0xc80] sm:$0xff] %v5354
  %6038 = vst [vmem:[#allocation2 + $0xcc8] sm:$0xff] %v5355
  %6039 = vst [vmem:[#allocation2 + $0xd10] sm:$0xff] %v5356
  %6040 = vst [vmem:[#allocation2 + $0xd58] sm:$0xff] %v5357
  %6041 = vst [vmem:[#allocation2 + $0xda0] sm:$0xff] %v5358
  %6042 = vst [vmem:[#allocation2 + $0xde8] sm:$0xff] %v5359
  %6043 = vst [vmem:[#allocation2 + $0xe30] sm:$0xff] %v5360
  %6044 = vst [vmem:[#allocation2 + $0xe78] sm:$0xff] %v5361
  %6045 = vst [vmem:[#allocation2 + $0xec0] sm:$0xff] %v5362
  %6046 = vst [vmem:[#allocation2 + $0xf08] sm:$0xff] %v5363
  %6047 = vst [vmem:[#allocation2 + $0xf50] sm:$0xff] %v5364
  %6048 = vst [vmem:[#allocation2 + $0xf98] sm:$0xff] %v5365
  %6049 = vst [vmem:[#allocation2 + $0xfe0] sm:$0xff] %v5366
  %6050 = vst [vmem:[#allocation2 + $0x1028] sm:$0xff] %v5367
  %6051 = vst [vmem:[#allocation2 + $0x1070] sm:$0xff] %v5368
  %6052 = vst [vmem:[#allocation2 + $0x10b8] sm:$0xff] %v5369
  %6053 = vst [vmem:[#allocation2 + $0x1100] sm:$0xff] %v5370
  %6054 = vst [vmem:[#allocation2 + $0x1148] sm:$0xff] %v5371
  %6055 = vst [vmem:[#allocation2 + $0x1190] sm:$0xff] %v5372
  %6056 = vst [vmem:[#allocation2 + $0x11d8] sm:$0xff] %v5373
  %v6057 = vrot.slane %v5340, 1
  %v6058 = vrot.slane %v5341, 1
  %v6059 = vsel %vm5704, %v6057, %v6058
  %v6060 = vrot.slane %v5372, 1
  %v6061 = vrot.slane %v5373, 1
  %v6062 = vsel %vm5704, %v6060, %v6061
  %6067 = vst [vmem:[#allocation2 + $0x28] sm:$0xff] %v5707
  %6068 = vst [vmem:[#allocation2 + $0x70] sm:$0x7f] %v5706
  %6069 = vst [vmem:[#allocation2 + $0xb8] sm:$0xff] %v5710
  %6070 = vst [vmem:[#allocation2 + $0x100] sm:$0x7f] %v5709
  %6071 = vst [vmem:[#allocation2 + $0x148] sm:$0xff] %v5713
  %6072 = vst [vmem:[#allocation2 + $0x190] sm:$0x7f] %v5712
  %6073 = vst [vmem:[#allocation2 + $0x1d8] sm:$0xff] %v5716
  %6074 = vst [vmem:[#allocation2 + $0x220] sm:$0x7f] %v5715
  %6075 = vst [vmem:[#allocation2 + $0x268] sm:$0xff] %v5719
  %6076 = vst [vmem:[#allocation2 + $0x2b0] sm:$0x7f] %v5718
  %6077 = vst [vmem:[#allocation2 + $0x2f8] sm:$0xff] %v5722
  %6078 = vst [vmem:[#allocation2 + $0x340] sm:$0x7f] %v5721
  %6079 = vst [vmem:[#allocation2 + $0x388] sm:$0xff] %v5725
  %6080 = vst [vmem:[#allocation2 + $0x3d0] sm:$0x7f] %v5724
  %6081 = vst [vmem:[#allocation2 + $0x418] sm:$0xff] %v5728
  %6082 = vst [vmem:[#allocation2 + $0x460] sm:$0x7f] %v5727
  %6083 = vst [vmem:[#allocation2 + $0x4a8] sm:$0xff] %v5731
  %6084 = vst [vmem:[#allocation2 + $0x4f0] sm:$0x7f] %v5730
  %6085 = vst [vmem:[#allocation2 + $0x538] sm:$0xff] %v5734
  %6086 = vst [vmem:[#allocation2 + $0x580] sm:$0x7f] %v5733
  %6087 = vst [vmem:[#allocation2 + $0x5c8] sm:$0xff] %v5737
  %6088 = vst [vmem:[#allocation2 + $0x610] sm:$0x7f] %v5736
  %6089 = vst [vmem:[#allocation2 + $0x658] sm:$0xff] %v5740
  %6090 = vst [vmem:[#allocation2 + $0x6a0] sm:$0x7f] %v5739
  %6091 = vst [vmem:[#allocation2 + $0x6e8] sm:$0xff] %v5743
  %6092 = vst [vmem:[#allocation2 + $0x730] sm:$0x7f] %v5742
  %6093 = vst [vmem:[#allocation2 + $0x778] sm:$0xff] %v5746
  %6094 = vst [vmem:[#allocation2 + $0x7c0] sm:$0x7f] %v5745
  %6095 = vst [vmem:[#allocation2 + $0x808] sm:$0xff] %v5749
  %6096 = vst [vmem:[#allocation2 + $0x850] sm:$0x7f] %v5748
  %6097 = vst [vmem:[#allocation2 + $0x898] sm:$0xff] %v6059
  %6098 = vst [vmem:[#allocation2 + $0x8e0] sm:$0x7f] %v6058
  %6099 = vst [vmem:[#allocation2 + $0x928] sm:$0xff] %v5752
  %6100 = vst [vmem:[#allocation2 + $0x970] sm:$0x7f] %v5751
  %6101 = vst [vmem:[#allocation2 + $0x9b8] sm:$0xff] %v5755
  %6102 = vst [vmem:[#allocation2 + $0xa00] sm:$0x7f] %v5754
  %6103 = vst [vmem:[#allocation2 + $0xa48] sm:$0xff] %v5758
  %6104 = vst [vmem:[#allocation2 + $0xa90] sm:$0x7f] %v5757
  %6105 = vst [vmem:[#allocation2 + $0xad8] sm:$0xff] %v5761
  %6106 = vst [vmem:[#allocation2 + $0xb20] sm:$0x7f] %v5760
  %6107 = vst [vmem:[#allocation2 + $0xb68] sm:$0xff] %v5764
  %6108 = vst [vmem:[#allocation2 + $0xbb0] sm:$0x7f] %v5763
  %6109 = vst [vmem:[#allocation2 + $0xbf8] sm:$0xff] %v5767
  %6110 = vst [vmem:[#allocation2 + $0xc40] sm:$0x7f] %v5766
  %6111 = vst [vmem:[#allocation2 + $0xc88] sm:$0xff] %v5770
  %6112 = vst [vmem:[#allocation2 + $0xcd0] sm:$0x7f] %v5769
  %6113 = vst [vmem:[#allocation2 + $0xd18] sm:$0xff] %v5773
  %6114 = vst [vmem:[#allocation2 + $0xd60] sm:$0x7f] %v5772
  %6115 = vst [vmem:[#allocation2 + $0xda8] sm:$0xff] %v5776
  %6116 = vst [vmem:[#allocation2 + $0xdf0] sm:$0x7f] %v5775
  %6117 = vst [vmem:[#allocation2 + $0xe38] sm:$0xff] %v5779
  %6118 = vst [vmem:[#allocation2 + $0xe80] sm:$0x7f] %v5778
  %6119 = vst [vmem:[#allocation2 + $0xec8] sm:$0xff] %v5782
  %6120 = vst [vmem:[#allocation2 + $0xf10] sm:$0x7f] %v5781
  %6121 = vst [vmem:[#allocation2 + $0xf58] sm:$0xff] %v5785
  %6122 = vst [vmem:[#allocation2 + $0xfa0] sm:$0x7f] %v5784
  %6123 = vst [vmem:[#allocation2 + $0xfe8] sm:$0xff] %v5788
  %6124 = vst [vmem:[#allocation2 + $0x1030] sm:$0x7f] %v5787
  %6125 = vst [vmem:[#allocation2 + $0x1078] sm:$0xff] %v5791
  %6126 = vst [vmem:[#allocation2 + $0x10c0] sm:$0x7f] %v5790
  %6127 = vst [vmem:[#allocation2 + $0x1108] sm:$0xff] %v5794
  %6128 = vst [vmem:[#allocation2 + $0x1150] sm:$0x7f] %v5793
  %6129 = vst [vmem:[#allocation2 + $0x1198] sm:$0xff] %v6062
  %6130 = vst [vmem:[#allocation2 + $0x11e0] sm:$0x7f] %v6061
  %6131 = vst [vmem:[#allocation2 + $0x30] sm:$0xfe] %v5437
  %6132 = vst [vmem:[#allocation2 + $0x78] sm:$0xff] %v5439
  %6133 = vst [vmem:[#allocation2 + $0xc0] sm:$0xfe] %v5440
  %6134 = vst [vmem:[#allocation2 + $0x108] sm:$0xff] %v5442
  %6135 = vst [vmem:[#allocation2 + $0x150] sm:$0xfe] %v5443
  %6136 = vst [vmem:[#allocation2 + $0x198] sm:$0xff] %v5445
  %6137 = vst [vmem:[#allocation2 + $0x1e0] sm:$0xfe] %v5446
  %6138 = vst [vmem:[#allocation2 + $0x228] sm:$0xff] %v5448
  %6139 = vst [vmem:[#allocation2 + $0x270] sm:$0xfe] %v5449
  %6140 = vst [vmem:[#allocation2 + $0x2b8] sm:$0xff] %v5451
  %6141 = vst [vmem:[#allocation2 + $0x300] sm:$0xfe] %v5452
  %6142 = vst [vmem:[#allocation2 + $0x348] sm:$0xff] %v5454
  %6143 = vst [vmem:[#allocation2 + $0x390] sm:$0xfe] %v5455
  %6144 = vst [vmem:[#allocation2 + $0x3d8] sm:$0xff] %v5457
  %6145 = vst [vmem:[#allocation2 + $0x420] sm:$0xfe] %v5458
  %6146 = vst [vmem:[#allocation2 + $0x468] sm:$0xff] %v5460
  %6147 = vst [vmem:[#allocation2 + $0x4b0] sm:$0xfe] %v5461
  %6148 = vst [vmem:[#allocation2 + $0x4f8] sm:$0xff] %v5463
  %6149 = vst [vmem:[#allocation2 + $0x540] sm:$0xfe] %v5464
  %6150 = vst [vmem:[#allocation2 + $0x588] sm:$0xff] %v5466
  %6151 = vst [vmem:[#allocation2 + $0x5d0] sm:$0xfe] %v5467
  %6152 = vst [vmem:[#allocation2 + $0x618] sm:$0xff] %v5469
  %6153 = vst [vmem:[#allocation2 + $0x660] sm:$0xfe] %v5470
  %6154 = vst [vmem:[#allocation2 + $0x6a8] sm:$0xff] %v5472
  %6155 = vst [vmem:[#allocation2 + $0x6f0] sm:$0xfe] %v5473
  %6156 = vst [vmem:[#allocation2 + $0x738] sm:$0xff] %v5475
  %6157 = vst [vmem:[#allocation2 + $0x780] sm:$0xfe] %v5476
  %6158 = vst [vmem:[#allocation2 + $0x7c8] sm:$0xff] %v5478
  %6159 = vst [vmem:[#allocation2 + $0x810] sm:$0xfe] %v5919
  %6160 = vst [vmem:[#allocation2 + $0x858] sm:$0xff] %v5921
  %6161 = vst [vmem:[#allocation2 + $0x930] sm:$0xfe] %v5482
  %6162 = vst [vmem:[#allocation2 + $0x978] sm:$0xff] %v5484
  %6163 = vst [vmem:[#allocation2 + $0x9c0] sm:$0xfe] %v5485
  %6164 = vst [vmem:[#allocation2 + $0xa08] sm:$0xff] %v5487
  %6165 = vst [vmem:[#allocation2 + $0xa50] sm:$0xfe] %v5488
  %6166 = vst [vmem:[#allocation2 + $0xa98] sm:$0xff] %v5490
  %6167 = vst [vmem:[#allocation2 + $0xae0] sm:$0xfe] %v5491
  %6168 = vst [vmem:[#allocation2 + $0xb28] sm:$0xff] %v5493
  %6169 = vst [vmem:[#allocation2 + $0xb70] sm:$0xfe] %v5494
  %6170 = vst [vmem:[#allocation2 + $0xbb8] sm:$0xff] %v5496
  %6171 = vst [vmem:[#allocation2 + $0xc00] sm:$0xfe] %v5497
  %6172 = vst [vmem:[#allocation2 + $0xc48] sm:$0xff] %v5499
  %6173 = vst [vmem:[#allocation2 + $0xc90] sm:$0xfe] %v5500
  %6174 = vst [vmem:[#allocation2 + $0xcd8] sm:$0xff] %v5502
  %6175 = vst [vmem:[#allocation2 + $0xd20] sm:$0xfe] %v5503
  %6176 = vst [vmem:[#allocation2 + $0xd68] sm:$0xff] %v5505
  %6177 = vst [vmem:[#allocation2 + $0xdb0] sm:$0xfe] %v5506
  %6178 = vst [vmem:[#allocation2 + $0xdf8] sm:$0xff] %v5508
  %6179 = vst [vmem:[#allocation2 + $0xe40] sm:$0xfe] %v5509
  %6180 = vst [vmem:[#allocation2 + $0xe88] sm:$0xff] %v5511
  %6181 = vst [vmem:[#allocation2 + $0xed0] sm:$0xfe] %v5512
  %6182 = vst [vmem:[#allocation2 + $0xf18] sm:$0xff] %v5514
  %6183 = vst [vmem:[#allocation2 + $0xf60] sm:$0xfe] %v5515
  %6184 = vst [vmem:[#allocation2 + $0xfa8] sm:$0xff] %v5517
  %6185 = vst [vmem:[#allocation2 + $0xff0] sm:$0xfe] %v5518
  %6186 = vst [vmem:[#allocation2 + $0x1038] sm:$0xff] %v5520
  %6187 = vst [vmem:[#allocation2 + $0x1080] sm:$0xfe] %v5521
  %6188 = vst [vmem:[#allocation2 + $0x10c8] sm:$0xff] %v5523
  %6189 = vst [vmem:[#allocation2 + $0x1110] sm:$0xfe] %v5922
  %6190 = vst [vmem:[#allocation2 + $0x1158] sm:$0xff] %v5924
  %6191 = vst [vmem:[#allocation2 + $0x38] sm:$0xff] %v5312
  %6192 = vst [vmem:[#allocation2 + $0x80] sm:$0xff] %v5313
  %6193 = vst [vmem:[#allocation2 + $0xc8] sm:$0xff] %v5314
  %6194 = vst [vmem:[#allocation2 + $0x110] sm:$0xff] %v5315
  %6195 = vst [vmem:[#allocation2 + $0x158] sm:$0xff] %v5316
  %6196 = vst [vmem:[#allocation2 + $0x1a0] sm:$0xff] %v5317
  %6197 = vst [vmem:[#allocation2 + $0x1e8] sm:$0xff] %v5318
  %6198 = vst [vmem:[#allocation2 + $0x230] sm:$0xff] %v5319
  %6199 = vst [vmem:[#allocation2 + $0x278] sm:$0xff] %v5320
  %6200 = vst [vmem:[#allocation2 + $0x2c0] sm:$0xff] %v5321
  %6201 = vst [vmem:[#allocation2 + $0x308] sm:$0xff] %v5322
  %6202 = vst [vmem:[#allocation2 + $0x350] sm:$0xff] %v5323
  %6203 = vst [vmem:[#allocation2 + $0x398] sm:$0xff] %v5324
  %6204 = vst [vmem:[#allocation2 + $0x3e0] sm:$0xff] %v5325
  %6205 = vst [vmem:[#allocation2 + $0x428] sm:$0xff] %v5326
  %6206 = vst [vmem:[#allocation2 + $0x470] sm:$0xff] %v5327
  %6207 = vst [vmem:[#allocation2 + $0x4b8] sm:$0xff] %v5328
  %6208 = vst [vmem:[#allocation2 + $0x500] sm:$0xff] %v5329
  %6209 = vst [vmem:[#allocation2 + $0x548] sm:$0xff] %v5330
  %6210 = vst [vmem:[#allocation2 + $0x590] sm:$0xff] %v5331
  %6211 = vst [vmem:[#allocation2 + $0x5d8] sm:$0xff] %v5332
  %6212 = vst [vmem:[#allocation2 + $0x620] sm:$0xff] %v5333
  %6213 = vst [vmem:[#allocation2 + $0x668] sm:$0xff] %v5334
  %6214 = vst [vmem:[#allocation2 + $0x6b0] sm:$0xff] %v5335
  %6215 = vst [vmem:[#allocation2 + $0x6f8] sm:$0xff] %v5336
  %6216 = vst [vmem:[#allocation2 + $0x740] sm:$0xff] %v5337
  %6217 = vst [vmem:[#allocation2 + $0x788] sm:$0xff] %v5338
  %6218 = vst [vmem:[#allocation2 + $0x7d0] sm:$0xff] %v5339
  %6219 = vst [vmem:[#allocation2 + $0x818] sm:$0xff] %v5340
  %6220 = vst [vmem:[#allocation2 + $0x860] sm:$0xff] %v5341
  %6221 = vst [vmem:[#allocation2 + $0x938] sm:$0xff] %v5344
  %6222 = vst [vmem:[#allocation2 + $0x980] sm:$0xff] %v5345
  %6223 = vst [vmem:[#allocation2 + $0x9c8] sm:$0xff] %v5346
  %6224 = vst [vmem:[#allocation2 + $0xa10] sm:$0xff] %v5347
  %6225 = vst [vmem:[#allocation2 + $0xa58] sm:$0xff] %v5348
  %6226 = vst [vmem:[#allocation2 + $0xaa0] sm:$0xff] %v5349
  %6227 = vst [vmem:[#allocation2 + $0xae8] sm:$0xff] %v5350
  %6228 = vst [vmem:[#allocation2 + $0xb30] sm:$0xff] %v5351
  %6229 = vst [vmem:[#allocation2 + $0xb78] sm:$0xff] %v5352
  %6230 = vst [vmem:[#allocation2 + $0xbc0] sm:$0xff] %v5353
  %6231 = vst [vmem:[#allocation2 + $0xc08] sm:$0xff] %v5354
  %6232 = vst [vmem:[#allocation2 + $0xc50] sm:$0xff] %v5355
  %6233 = vst [vmem:[#allocation2 + $0xc98] sm:$0xff] %v5356
  %6234 = vst [vmem:[#allocation2 + $0xce0] sm:$0xff] %v5357
  %6235 = vst [vmem:[#allocation2 + $0xd28] sm:$0xff] %v5358
  %6236 = vst [vmem:[#allocation2 + $0xd70] sm:$0xff] %v5359
  %6237 = vst [vmem:[#allocation2 + $0xdb8] sm:$0xff] %v5360
  %6238 = vst [vmem:[#allocation2 + $0xe00] sm:$0xff] %v5361
  %6239 = vst [vmem:[#allocation2 + $0xe48] sm:$0xff] %v5362
  %6240 = vst [vmem:[#allocation2 + $0xe90] sm:$0xff] %v5363
  %6241 = vst [vmem:[#allocation2 + $0xed8] sm:$0xff] %v5364
  %6242 = vst [vmem:[#allocation2 + $0xf20] sm:$0xff] %v5365
  %6243 = vst [vmem:[#allocation2 + $0xf68] sm:$0xff] %v5366
  %6244 = vst [vmem:[#allocation2 + $0xfb0] sm:$0xff] %v5367
  %6245 = vst [vmem:[#allocation2 + $0xff8] sm:$0xff] %v5368
  %6246 = vst [vmem:[#allocation2 + $0x1040] sm:$0xff] %v5369
  %6247 = vst [vmem:[#allocation2 + $0x1088] sm:$0xff] %v5370
  %6248 = vst [vmem:[#allocation2 + $0x10d0] sm:$0xff] %v5371
  %6249 = vst [vmem:[#allocation2 + $0x1118] sm:$0xff] %v5372
  %6250 = vst [vmem:[#allocation2 + $0x1160] sm:$0xff] %v5373
  %6251 = vst [vmem:[#allocation2 + $0x40] sm:$0xff] %v5710
  %6252 = vst [vmem:[#allocation2 + $0x88] sm:$0x7f] %v5709
  %6253 = vst [vmem:[#allocation2 + $0xd0] sm:$0xff] %v5713
  %6254 = vst [vmem:[#allocation2 + $0x118] sm:$0x7f] %v5712
  %6255 = vst [vmem:[#allocation2 + $0x160] sm:$0xff] %v5716
  %6256 = vst [vmem:[#allocation2 + $0x1a8] sm:$0x7f] %v5715
  %6257 = vst [vmem:[#allocation2 + $0x1f0] sm:$0xff] %v5719
  %6258 = vst [vmem:[#allocation2 + $0x238] sm:$0x7f] %v5718
  %6259 = vst [vmem:[#allocation2 + $0x280] sm:$0xff] %v5722
  %6260 = vst [vmem:[#allocation2 + $0x2c8] sm:$0x7f] %v5721
  %6261 = vst [vmem:[#allocation2 + $0x310] sm:$0xff] %v5725
  %6262 = vst [vmem:[#allocation2 + $0x358] sm:$0x7f] %v5724
  %6263 = vst [vmem:[#allocation2 + $0x3a0] sm:$0xff] %v5728
  %6264 = vst [vmem:[#allocation2 + $0x3e8] sm:$0x7f] %v5727
  %6265 = vst [vmem:[#allocation2 + $0x430] sm:$0xff] %v5731
  %6266 = vst [vmem:[#allocation2 + $0x478] sm:$0x7f] %v5730
  %6267 = vst [vmem:[#allocation2 + $0x4c0] sm:$0xff] %v5734
  %6268 = vst [vmem:[#allocation2 + $0x508] sm:$0x7f] %v5733
  %6269 = vst [vmem:[#allocation2 + $0x550] sm:$0xff] %v5737
  %6270 = vst [vmem:[#allocation2 + $0x598] sm:$0x7f] %v5736
  %6271 = vst [vmem:[#allocation2 + $0x5e0] sm:$0xff] %v5740
  %6272 = vst [vmem:[#allocation2 + $0x628] sm:$0x7f] %v5739
  %6273 = vst [vmem:[#allocation2 + $0x670] sm:$0xff] %v5743
  %6274 = vst [vmem:[#allocation2 + $0x6b8] sm:$0x7f] %v5742
  %6275 = vst [vmem:[#allocation2 + $0x700] sm:$0xff] %v5746
  %6276 = vst [vmem:[#allocation2 + $0x748] sm:$0x7f] %v5745
  %6277 = vst [vmem:[#allocation2 + $0x790] sm:$0xff] %v5749
  %6278 = vst [vmem:[#allocation2 + $0x7d8] sm:$0x7f] %v5748
  %6279 = vst [vmem:[#allocation2 + $0x820] sm:$0xff] %v6059
  %6280 = vst [vmem:[#allocation2 + $0x868] sm:$0x7f] %v6058
  %6281 = vst [vmem:[#allocation2 + $0x940] sm:$0xff] %v5755
  %6282 = vst [vmem:[#allocation2 + $0x988] sm:$0x7f] %v5754
  %6283 = vst [vmem:[#allocation2 + $0x9d0] sm:$0xff] %v5758
  %6284 = vst [vmem:[#allocation2 + $0xa18] sm:$0x7f] %v5757
  %6285 = vst [vmem:[#allocation2 + $0xa60] sm:$0xff] %v5761
  %6286 = vst [vmem:[#allocation2 + $0xaa8] sm:$0x7f] %v5760
  %6287 = vst [vmem:[#allocation2 + $0xaf0] sm:$0xff] %v5764
  %6288 = vst [vmem:[#allocation2 + $0xb38] sm:$0x7f] %v5763
  %6289 = vst [vmem:[#allocation2 + $0xb80] sm:$0xff] %v5767
  %6290 = vst [vmem:[#allocation2 + $0xbc8] sm:$0x7f] %v5766
  %6291 = vst [vmem:[#allocation2 + $0xc10] sm:$0xff] %v5770
  %6292 = vst [vmem:[#allocation2 + $0xc58] sm:$0x7f] %v5769
  %6293 = vst [vmem:[#allocation2 + $0xca0] sm:$0xff] %v5773
  %6294 = vst [vmem:[#allocation2 + $0xce8] sm:$0x7f] %v5772
  %6295 = vst [vmem:[#allocation2 + $0xd30] sm:$0xff] %v5776
  %6296 = vst [vmem:[#allocation2 + $0xd78] sm:$0x7f] %v5775
  %6297 = vst [vmem:[#allocation2 + $0xdc0] sm:$0xff] %v5779
  %6298 = vst [vmem:[#allocation2 + $0xe08] sm:$0x7f] %v5778
  %6299 = vst [vmem:[#allocation2 + $0xe50] sm:$0xff] %v5782
  %6300 = vst [vmem:[#allocation2 + $0xe98] sm:$0x7f] %v5781
  %6301 = vst [vmem:[#allocation2 + $0xee0] sm:$0xff] %v5785
  %6302 = vst [vmem:[#allocation2 + $0xf28] sm:$0x7f] %v5784
  %6303 = vst [vmem:[#allocation2 + $0xf70] sm:$0xff] %v5788
  %6304 = vst [vmem:[#allocation2 + $0xfb8] sm:$0x7f] %v5787
  %6305 = vst [vmem:[#allocation2 + $0x1000] sm:$0xff] %v5791
  %6306 = vst [vmem:[#allocation2 + $0x1048] sm:$0x7f] %v5790
  %6307 = vst [vmem:[#allocation2 + $0x1090] sm:$0xff] %v5794
  %6308 = vst [vmem:[#allocation2 + $0x10d8] sm:$0x7f] %v5793
  %6309 = vst [vmem:[#allocation2 + $0x1120] sm:$0xff] %v6062
  %6310 = vst [vmem:[#allocation2 + $0x1168] sm:$0x7f] %v6061
  %v6311 = vld [vmem:[%s4] sm:$0xff]
  %v6312 = vld [vmem:[%s4 + $0x8] sm:$0xff]
  %v6313 = vld [vmem:[%s4 + $0x10] sm:$0xff]
  %v6314 = vld [vmem:[%s4 + $0x18] sm:$0xff]
  %v6315 = vld [vmem:[%s4 + $0x20] sm:$0xff]
  %v6316 = vld [vmem:[%s4 + $0x28] sm:$0xff]
  %v6317 = vld [vmem:[%s4 + $0x30] sm:$0xff]
  %v6318 = vld [vmem:[%s4 + $0x38] sm:$0xff]
  %v6319 = vld [vmem:[%s4 + $0x40] sm:$0xff]
  %v6320 = vld [vmem:[%s4 + $0x48] sm:$0xff]
  %v6321 = vld [vmem:[%s4 + $0x50] sm:$0xff]
  %v6322 = vld [vmem:[%s4 + $0x58] sm:$0xff]
  %v6323 = vld [vmem:[%s4 + $0x60] sm:$0xff]
  %v6324 = vld [vmem:[%s4 + $0x68] sm:$0xff]
  %v6325 = vld [vmem:[%s4 + $0x70] sm:$0xff]
  %v6326 = vld [vmem:[%s4 + $0x78] sm:$0xff]
  %v6327 = vld [vmem:[%s4 + $0x80] sm:$0xff]
  %v6328 = vld [vmem:[%s4 + $0x88] sm:$0xff]
  %v6329 = vld [vmem:[%s4 + $0x90] sm:$0xff]
  %v6330 = vld [vmem:[%s4 + $0x98] sm:$0xff]
  %v6331 = vld [vmem:[%s4 + $0xa0] sm:$0xff]
  %v6332 = vld [vmem:[%s4 + $0xa8] sm:$0xff]
  %v6333 = vld [vmem:[%s4 + $0xb0] sm:$0xff]
  %v6334 = vld [vmem:[%s4 + $0xb8] sm:$0xff]
  %v6335 = vld [vmem:[%s4 + $0xc0] sm:$0xff]
  %v6336 = vld [vmem:[%s4 + $0xc8] sm:$0xff]
  %v6337 = vld [vmem:[%s4 + $0xd0] sm:$0xff]
  %v6338 = vld [vmem:[%s4 + $0xd8] sm:$0xff]
  %v6339 = vld [vmem:[%s4 + $0xe0] sm:$0xff]
  %v6340 = vld [vmem:[%s4 + $0xe8] sm:$0xff]
  %v6341 = vld [vmem:[%s4 + $0xf0] sm:$0xff]
  %v6342 = vld [vmem:[%s4 + $0xf8] sm:$0xff]
  %v6343 = vld [vmem:[%s4 + $0x100] sm:$0xff]
  %v6344 = vld [vmem:[%s4 + $0x108] sm:$0xff]
  %v6345 = vld [vmem:[%s4 + $0x110] sm:$0xff]
  %v6346 = vld [vmem:[%s4 + $0x118] sm:$0xff]
  %v6347 = vld [vmem:[%s4 + $0x120] sm:$0xff]
  %v6348 = vld [vmem:[%s4 + $0x128] sm:$0xff]
  %v6349 = vld [vmem:[%s4 + $0x130] sm:$0xff]
  %v6350 = vld [vmem:[%s4 + $0x138] sm:$0xff]
  %v6351 = vld [vmem:[%s4 + $0x140] sm:$0xff]
  %v6352 = vld [vmem:[%s4 + $0x148] sm:$0xff]
  %v6353 = vld [vmem:[%s4 + $0x150] sm:$0xff]
  %v6354 = vld [vmem:[%s4 + $0x158] sm:$0xff]
  %v6355 = vld [vmem:[%s4 + $0x160] sm:$0xff]
  %v6356 = vld [vmem:[%s4 + $0x168] sm:$0xff]
  %v6357 = vld [vmem:[%s4 + $0x170] sm:$0xff]
  %v6358 = vld [vmem:[%s4 + $0x178] sm:$0xff]
  %v6359 = vld [vmem:[%s4 + $0x180] sm:$0xff]
  %v6360 = vld [vmem:[%s4 + $0x188] sm:$0xff]
  %v6361 = vld [vmem:[%s4 + $0x190] sm:$0xff]
  %v6362 = vld [vmem:[%s4 + $0x198] sm:$0xff]
  %v6363 = vld [vmem:[%s4 + $0x1a0] sm:$0xff]
  %v6364 = vld [vmem:[%s4 + $0x1a8] sm:$0xff]
  %v6365 = vld [vmem:[%s4 + $0x1b0] sm:$0xff]
  %v6366 = vld [vmem:[%s4 + $0x1b8] sm:$0xff]
  %v6367 = vld [vmem:[%s4 + $0x1c0] sm:$0xff]
  %v6368 = vld [vmem:[%s4 + $0x1c8] sm:$0xff]
  %v6369 = vld [vmem:[%s4 + $0x1d0] sm:$0xff]
  %v6370 = vld [vmem:[%s4 + $0x1d8] sm:$0xff]
  %v6371 = vld [vmem:[%s4 + $0x1e0] sm:$0xff]
  %v6372 = vld [vmem:[%s4 + $0x1e8] sm:$0xff]
  %v6373 = vld [vmem:[%s4 + $0x1f0] sm:$0xff]
  %v6374 = vld [vmem:[%s4 + $0x1f8] sm:$0xff]
  %v6375 = vld [vmem:[%s4 + $0x200] sm:$0xff]
  %v6376 = vld [vmem:[%s4 + $0x208] sm:$0xff]
  %v6377 = vld [vmem:[%s4 + $0x210] sm:$0xff]
  %v6378 = vld [vmem:[%s4 + $0x218] sm:$0xff]
  %v6379 = vld [vmem:[%s4 + $0x220] sm:$0xff]
  %v6380 = vld [vmem:[%s4 + $0x228] sm:$0xff]
  %v6381 = vld [vmem:[%s4 + $0x230] sm:$0xff]
  %v6382 = vld [vmem:[%s4 + $0x238] sm:$0xff]
  %v6383 = vld [vmem:[%s4 + $0x240] sm:$0xff]
  %v6384 = vld [vmem:[%s4 + $0x248] sm:$0xff]
  %v6385 = vld [vmem:[%s4 + $0x250] sm:$0xff]
  %v6386 = vld [vmem:[%s4 + $0x258] sm:$0xff]
  %v6387 = vld [vmem:[%s4 + $0x260] sm:$0xff]
  %v6388 = vld [vmem:[%s4 + $0x268] sm:$0xff]
  %v6389 = vld [vmem:[%s4 + $0x270] sm:$0xff]
  %v6390 = vld [vmem:[%s4 + $0x278] sm:$0xff]
  %v6391 = vld [vmem:[%s4 + $0x280] sm:$0xff]
  %v6392 = vld [vmem:[%s4 + $0x288] sm:$0xff]
  %v6393 = vld [vmem:[%s4 + $0x290] sm:$0xff]
  %v6394 = vld [vmem:[%s4 + $0x298] sm:$0xff]
  %v6395 = vld [vmem:[%s4 + $0x2a0] sm:$0xff]
  %v6396 = vld [vmem:[%s4 + $0x2a8] sm:$0xff]
  %v6397 = vld [vmem:[%s4 + $0x2b0] sm:$0xff]
  %v6398 = vld [vmem:[%s4 + $0x2b8] sm:$0xff]
  %v6399 = vld [vmem:[%s4 + $0x2c0] sm:$0xff]
  %v6400 = vld [vmem:[%s4 + $0x2c8] sm:$0xff]
  %v6401 = vld [vmem:[%s4 + $0x2d0] sm:$0xff]
  %v6402 = vld [vmem:[%s4 + $0x2d8] sm:$0xff]
  %v6403 = vld [vmem:[%s4 + $0x2e0] sm:$0xff]
  %v6404 = vld [vmem:[%s4 + $0x2e8] sm:$0xff]
  %v6405 = vld [vmem:[%s4 + $0x2f0] sm:$0xff]
  %v6406 = vld [vmem:[%s4 + $0x2f8] sm:$0xff]
  %v6407 = vld [vmem:[%s4 + $0x300] sm:$0xff]
  %v6408 = vld [vmem:[%s4 + $0x308] sm:$0xff]
  %v6409 = vld [vmem:[%s4 + $0x310] sm:$0xff]
  %v6410 = vld [vmem:[%s4 + $0x318] sm:$0xff]
  %v6411 = vld [vmem:[%s4 + $0x320] sm:$0xff]
  %v6412 = vld [vmem:[%s4 + $0x328] sm:$0xff]
  %v6413 = vld [vmem:[%s4 + $0x330] sm:$0xff]
  %v6414 = vld [vmem:[%s4 + $0x338] sm:$0xff]
  %v6415 = vld [vmem:[%s4 + $0x340] sm:$0xff]
  %v6416 = vld [vmem:[%s4 + $0x348] sm:$0xff]
  %v6417 = vld [vmem:[%s4 + $0x350] sm:$0xff]
  %v6418 = vld [vmem:[%s4 + $0x358] sm:$0xff]
  %v6419 = vld [vmem:[%s4 + $0x360] sm:$0xff]
  %v6420 = vld [vmem:[%s4 + $0x368] sm:$0xff]
  %v6421 = vld [vmem:[%s4 + $0x370] sm:$0xff]
  %v6422 = vld [vmem:[%s4 + $0x378] sm:$0xff]
  %v6423 = vld [vmem:[%s4 + $0x380] sm:$0xff]
  %v6424 = vld [vmem:[%s4 + $0x388] sm:$0xff]
  %v6425 = vld [vmem:[%s4 + $0x390] sm:$0xff]
  %v6426 = vld [vmem:[%s4 + $0x398] sm:$0xff]
  %v6427 = vld [vmem:[%s4 + $0x3a0] sm:$0xff]
  %v6428 = vld [vmem:[%s4 + $0x3a8] sm:$0xff]
  %v6429 = vld [vmem:[%s4 + $0x3b0] sm:$0xff]
  %v6430 = vld [vmem:[%s4 + $0x3b8] sm:$0xff]
  %v6431 = vld [vmem:[%s4 + $0x3c0] sm:$0xff]
  %v6432 = vld [vmem:[%s4 + $0x3c8] sm:$0xff]
  %v6433 = vld [vmem:[%s4 + $0x3d0] sm:$0xff]
  %v6434 = vld [vmem:[%s4 + $0x3d8] sm:$0xff]
  %v6435 = vld [vmem:[%s4 + $0x3e0] sm:$0xff]
  %v6436 = vld [vmem:[%s4 + $0x3e8] sm:$0xff]
  %v6437 = vld [vmem:[%s4 + $0x3f0] sm:$0xff]
  %v6438 = vld [vmem:[%s4 + $0x3f8] sm:$0xff]
  %v6439 = vld [vmem:[%s4 + $0x400] sm:$0xff]
  %v6440 = vld [vmem:[%s4 + $0x408] sm:$0xff]
  %v6441 = vld [vmem:[%s4 + $0x410] sm:$0xff]
  %v6442 = vld [vmem:[%s4 + $0x418] sm:$0xff]
  %v6443 = vld [vmem:[%s4 + $0x420] sm:$0xff]
  %v6444 = vld [vmem:[%s4 + $0x428] sm:$0xff]
  %v6445 = vld [vmem:[%s4 + $0x430] sm:$0xff]
  %v6446 = vld [vmem:[%s4 + $0x438] sm:$0xff]
  %v6447 = vld [vmem:[%s4 + $0x440] sm:$0xff]
  %v6448 = vld [vmem:[%s4 + $0x448] sm:$0xff]
  %v6449 = vld [vmem:[%s4 + $0x450] sm:$0xff]
  %v6450 = vld [vmem:[%s4 + $0x458] sm:$0xff]
  %v6451 = vld [vmem:[%s4 + $0x460] sm:$0xff]
  %v6452 = vld [vmem:[%s4 + $0x468] sm:$0xff]
  %v6453 = vld [vmem:[%s4 + $0x470] sm:$0xff]
  %v6454 = vld [vmem:[%s4 + $0x478] sm:$0xff]
  %v6455 = vld [vmem:[#allocation2] sm:$0xff]
  %v6456 = vld [vmem:[#allocation2 + $0x8] sm:$0xff]
  %v6457 = vld [vmem:[#allocation2 + $0x10] sm:$0xff]
  %v6458 = vld [vmem:[#allocation2 + $0x18] sm:$0xff]
  %v6459 = vld [vmem:[#allocation2 + $0x20] sm:$0xff]
  %v6460 = vld [vmem:[#allocation2 + $0x28] sm:$0xff]
  %v6461 = vld [vmem:[#allocation2 + $0x30] sm:$0xff]
  %v6462 = vld [vmem:[#allocation2 + $0x38] sm:$0xff]
  %v6463 = vld [vmem:[#allocation2 + $0x40] sm:$0xff]
  %v6464 = vld [vmem:[#allocation2 + $0x48] sm:$0xff]
  %v6465 = vld [vmem:[#allocation2 + $0x50] sm:$0xff]
  %v6466 = vld [vmem:[#allocation2 + $0x58] sm:$0xff]
  %v6467 = vld [vmem:[#allocation2 + $0x60] sm:$0xff]
  %v6468 = vld [vmem:[#allocation2 + $0x68] sm:$0xff]
  %v6469 = vld [vmem:[#allocation2 + $0x70] sm:$0xff]
  %v6470 = vld [vmem:[#allocation2 + $0x78] sm:$0xff]
  %v6471 = vld [vmem:[#allocation2 + $0x80] sm:$0xff]
  %v6472 = vld [vmem:[#allocation2 + $0x88] sm:$0xff]
  %v6473 = vld [vmem:[#allocation2 + $0x90] sm:$0xff]
  %v6474 = vld [vmem:[#allocation2 + $0x98] sm:$0xff]
  %v6475 = vld [vmem:[#allocation2 + $0xa0] sm:$0xff]
  %v6476 = vld [vmem:[#allocation2 + $0xa8] sm:$0xff]
  %v6477 = vld [vmem:[#allocation2 + $0xb0] sm:$0xff]
  %v6478 = vld [vmem:[#allocation2 + $0xb8] sm:$0xff]
  %v6479 = vld [vmem:[#allocation2 + $0xc0] sm:$0xff]
  %v6480 = vld [vmem:[#allocation2 + $0xc8] sm:$0xff]
  %v6481 = vld [vmem:[#allocation2 + $0xd0] sm:$0xff]
  %v6482 = vld [vmem:[#allocation2 + $0xd8] sm:$0xff]
  %v6483 = vld [vmem:[#allocation2 + $0xe0] sm:$0xff]
  %v6484 = vld [vmem:[#allocation2 + $0xe8] sm:$0xff]
  %v6485 = vld [vmem:[#allocation2 + $0xf0] sm:$0xff]
  %v6486 = vld [vmem:[#allocation2 + $0xf8] sm:$0xff]
  %v6487 = vld [vmem:[#allocation2 + $0x100] sm:$0xff]
  %v6488 = vld [vmem:[#allocation2 + $0x108] sm:$0xff]
  %v6489 = vld [vmem:[#allocation2 + $0x110] sm:$0xff]
  %v6490 = vld [vmem:[#allocation2 + $0x118] sm:$0xff]
  %v6491 = vld [vmem:[#allocation2 + $0x120] sm:$0xff]
  %v6492 = vld [vmem:[#allocation2 + $0x128] sm:$0xff]
  %v6493 = vld [vmem:[#allocation2 + $0x130] sm:$0xff]
  %v6494 = vld [vmem:[#allocation2 + $0x138] sm:$0xff]
  %v6495 = vld [vmem:[#allocation2 + $0x140] sm:$0xff]
  %v6496 = vld [vmem:[#allocation2 + $0x148] sm:$0xff]
  %v6497 = vld [vmem:[#allocation2 + $0x150] sm:$0xff]
  %v6498 = vld [vmem:[#allocation2 + $0x158] sm:$0xff]
  %v6499 = vld [vmem:[#allocation2 + $0x160] sm:$0xff]
  %v6500 = vld [vmem:[#allocation2 + $0x168] sm:$0xff]
  %v6501 = vld [vmem:[#allocation2 + $0x170] sm:$0xff]
  %v6502 = vld [vmem:[#allocation2 + $0x178] sm:$0xff]
  %v6503 = vld [vmem:[#allocation2 + $0x180] sm:$0xff]
  %v6504 = vld [vmem:[#allocation2 + $0x188] sm:$0xff]
  %v6505 = vld [vmem:[#allocation2 + $0x190] sm:$0xff]
  %v6506 = vld [vmem:[#allocation2 + $0x198] sm:$0xff]
  %v6507 = vld [vmem:[#allocation2 + $0x1a0] sm:$0xff]
  %v6508 = vld [vmem:[#allocation2 + $0x1a8] sm:$0xff]
  %v6509 = vld [vmem:[#allocation2 + $0x1b0] sm:$0xff]
  %v6510 = vld [vmem:[#allocation2 + $0x1b8] sm:$0xff]
  %v6511 = vld [vmem:[#allocation2 + $0x1c0] sm:$0xff]
  %v6512 = vld [vmem:[#allocation2 + $0x1c8] sm:$0xff]
  %v6513 = vld [vmem:[#allocation2 + $0x1d0] sm:$0xff]
  %v6514 = vld [vmem:[#allocation2 + $0x1d8] sm:$0xff]
  %v6515 = vld [vmem:[#allocation2 + $0x1e0] sm:$0xff]
  %v6516 = vld [vmem:[#allocation2 + $0x1e8] sm:$0xff]
  %v6517 = vld [vmem:[#allocation2 + $0x1f0] sm:$0xff]
  %v6518 = vld [vmem:[#allocation2 + $0x1f8] sm:$0xff]
  %v6519 = vld [vmem:[#allocation2 + $0x200] sm:$0xff]
  %v6520 = vld [vmem:[#allocation2 + $0x208] sm:$0xff]
  %v6521 = vld [vmem:[#allocation2 + $0x210] sm:$0xff]
  %v6522 = vld [vmem:[#allocation2 + $0x218] sm:$0xff]
  %v6523 = vld [vmem:[#allocation2 + $0x220] sm:$0xff]
  %v6524 = vld [vmem:[#allocation2 + $0x228] sm:$0xff]
  %v6525 = vld [vmem:[#allocation2 + $0x230] sm:$0xff]
  %v6526 = vld [vmem:[#allocation2 + $0x238] sm:$0xff]
  %v6527 = vld [vmem:[#allocation2 + $0x240] sm:$0xff]
  %v6528 = vld [vmem:[#allocation2 + $0x248] sm:$0xff]
  %v6529 = vld [vmem:[#allocation2 + $0x250] sm:$0xff]
  %v6530 = vld [vmem:[#allocation2 + $0x258] sm:$0xff]
  %v6531 = vld [vmem:[#allocation2 + $0x260] sm:$0xff]
  %v6532 = vld [vmem:[#allocation2 + $0x268] sm:$0xff]
  %v6533 = vld [vmem:[#allocation2 + $0x270] sm:$0xff]
  %v6534 = vld [vmem:[#allocation2 + $0x278] sm:$0xff]
  %v6535 = vld [vmem:[#allocation2 + $0x280] sm:$0xff]
  %v6536 = vld [vmem:[#allocation2 + $0x288] sm:$0xff]
  %v6537 = vld [vmem:[#allocation2 + $0x290] sm:$0xff]
  %v6538 = vld [vmem:[#allocation2 + $0x298] sm:$0xff]
  %v6539 = vld [vmem:[#allocation2 + $0x2a0] sm:$0xff]
  %v6540 = vld [vmem:[#allocation2 + $0x2a8] sm:$0xff]
  %v6541 = vld [vmem:[#allocation2 + $0x2b0] sm:$0xff]
  %v6542 = vld [vmem:[#allocation2 + $0x2b8] sm:$0xff]
  %v6543 = vld [vmem:[#allocation2 + $0x2c0] sm:$0xff]
  %v6544 = vld [vmem:[#allocation2 + $0x2c8] sm:$0xff]
  %v6545 = vld [vmem:[#allocation2 + $0x2d0] sm:$0xff]
  %v6546 = vld [vmem:[#allocation2 + $0x2d8] sm:$0xff]
  %v6547 = vld [vmem:[#allocation2 + $0x2e0] sm:$0xff]
  %v6548 = vld [vmem:[#allocation2 + $0x2e8] sm:$0xff]
  %v6549 = vld [vmem:[#allocation2 + $0x2f0] sm:$0xff]
  %v6550 = vld [vmem:[#allocation2 + $0x2f8] sm:$0xff]
  %v6551 = vld [vmem:[#allocation2 + $0x300] sm:$0xff]
  %v6552 = vld [vmem:[#allocation2 + $0x308] sm:$0xff]
  %v6553 = vld [vmem:[#allocation2 + $0x310] sm:$0xff]
  %v6554 = vld [vmem:[#allocation2 + $0x318] sm:$0xff]
  %v6555 = vld [vmem:[#allocation2 + $0x320] sm:$0xff]
  %v6556 = vld [vmem:[#allocation2 + $0x328] sm:$0xff]
  %v6557 = vld [vmem:[#allocation2 + $0x330] sm:$0xff]
  %v6558 = vld [vmem:[#allocation2 + $0x338] sm:$0xff]
  %v6559 = vld [vmem:[#allocation2 + $0x340] sm:$0xff]
  %v6560 = vld [vmem:[#allocation2 + $0x348] sm:$0xff]
  %v6561 = vld [vmem:[#allocation2 + $0x350] sm:$0xff]
  %v6562 = vld [vmem:[#allocation2 + $0x358] sm:$0xff]
  %v6563 = vld [vmem:[#allocation2 + $0x360] sm:$0xff]
  %v6564 = vld [vmem:[#allocation2 + $0x368] sm:$0xff]
  %v6565 = vld [vmem:[#allocation2 + $0x370] sm:$0xff]
  %v6566 = vld [vmem:[#allocation2 + $0x378] sm:$0xff]
  %v6567 = vld [vmem:[#allocation2 + $0x380] sm:$0xff]
  %v6568 = vld [vmem:[#allocation2 + $0x388] sm:$0xff]
  %v6569 = vld [vmem:[#allocation2 + $0x390] sm:$0xff]
  %v6570 = vld [vmem:[#allocation2 + $0x398] sm:$0xff]
  %v6571 = vld [vmem:[#allocation2 + $0x3a0] sm:$0xff]
  %v6572 = vld [vmem:[#allocation2 + $0x3a8] sm:$0xff]
  %v6573 = vld [vmem:[#allocation2 + $0x3b0] sm:$0xff]
  %v6574 = vld [vmem:[#allocation2 + $0x3b8] sm:$0xff]
  %v6575 = vld [vmem:[#allocation2 + $0x3c0] sm:$0xff]
  %v6576 = vld [vmem:[#allocation2 + $0x3c8] sm:$0xff]
  %v6577 = vld [vmem:[#allocation2 + $0x3d0] sm:$0xff]
  %v6578 = vld [vmem:[#allocation2 + $0x3d8] sm:$0xff]
  %v6579 = vld [vmem:[#allocation2 + $0x3e0] sm:$0xff]
  %v6580 = vld [vmem:[#allocation2 + $0x3e8] sm:$0xff]
  %v6581 = vld [vmem:[#allocation2 + $0x3f0] sm:$0xff]
  %v6582 = vld [vmem:[#allocation2 + $0x3f8] sm:$0xff]
  %v6583 = vld [vmem:[#allocation2 + $0x400] sm:$0xff]
  %v6584 = vld [vmem:[#allocation2 + $0x408] sm:$0xff]
  %v6585 = vld [vmem:[#allocation2 + $0x410] sm:$0xff]
  %v6586 = vld [vmem:[#allocation2 + $0x418] sm:$0xff]
  %v6587 = vld [vmem:[#allocation2 + $0x420] sm:$0xff]
  %v6588 = vld [vmem:[#allocation2 + $0x428] sm:$0xff]
  %v6589 = vld [vmem:[#allocation2 + $0x430] sm:$0xff]
  %v6590 = vld [vmem:[#allocation2 + $0x438] sm:$0xff]
  %v6591 = vld [vmem:[#allocation2 + $0x440] sm:$0xff]
  %v6592 = vld [vmem:[#allocation2 + $0x448] sm:$0xff]
  %v6593 = vld [vmem:[#allocation2 + $0x450] sm:$0xff]
  %v6594 = vld [vmem:[#allocation2 + $0x458] sm:$0xff]
  %v6595 = vld [vmem:[#allocation2 + $0x460] sm:$0xff]
  %v6596 = vld [vmem:[#allocation2 + $0x468] sm:$0xff]
  %v6597 = vld [vmem:[#allocation2 + $0x470] sm:$0xff]
  %v6598 = vld [vmem:[#allocation2 + $0x478] sm:$0xff]
  %v6599 = vld [vmem:[#allocation2 + $0x480] sm:$0xff]
  %v6600 = vld [vmem:[#allocation2 + $0x488] sm:$0xff]
  %v6601 = vld [vmem:[#allocation2 + $0x490] sm:$0xff]
  %v6602 = vld [vmem:[#allocation2 + $0x498] sm:$0xff]
  %v6603 = vld [vmem:[#allocation2 + $0x4a0] sm:$0xff]
  %v6604 = vld [vmem:[#allocation2 + $0x4a8] sm:$0xff]
  %v6605 = vld [vmem:[#allocation2 + $0x4b0] sm:$0xff]
  %v6606 = vld [vmem:[#allocation2 + $0x4b8] sm:$0xff]
  %v6607 = vld [vmem:[#allocation2 + $0x4c0] sm:$0xff]
  %v6608 = vld [vmem:[#allocation2 + $0x4c8] sm:$0xff]
  %v6609 = vld [vmem:[#allocation2 + $0x4d0] sm:$0xff]
  %v6610 = vld [vmem:[#allocation2 + $0x4d8] sm:$0xff]
  %v6611 = vld [vmem:[#allocation2 + $0x4e0] sm:$0xff]
  %v6612 = vld [vmem:[#allocation2 + $0x4e8] sm:$0xff]
  %v6613 = vld [vmem:[#allocation2 + $0x4f0] sm:$0xff]
  %v6614 = vld [vmem:[#allocation2 + $0x4f8] sm:$0xff]
  %v6615 = vld [vmem:[#allocation2 + $0x500] sm:$0xff]
  %v6616 = vld [vmem:[#allocation2 + $0x508] sm:$0xff]
  %v6617 = vld [vmem:[#allocation2 + $0x510] sm:$0xff]
  %v6618 = vld [vmem:[#allocation2 + $0x518] sm:$0xff]
  %v6619 = vld [vmem:[#allocation2 + $0x520] sm:$0xff]
  %v6620 = vld [vmem:[#allocation2 + $0x528] sm:$0xff]
  %v6621 = vld [vmem:[#allocation2 + $0x530] sm:$0xff]
  %v6622 = vld [vmem:[#allocation2 + $0x538] sm:$0xff]
  %v6623 = vld [vmem:[#allocation2 + $0x540] sm:$0xff]
  %v6624 = vld [vmem:[#allocation2 + $0x548] sm:$0xff]
  %v6625 = vld [vmem:[#allocation2 + $0x550] sm:$0xff]
  %v6626 = vld [vmem:[#allocation2 + $0x558] sm:$0xff]
  %v6627 = vld [vmem:[#allocation2 + $0x560] sm:$0xff]
  %v6628 = vld [vmem:[#allocation2 + $0x568] sm:$0xff]
  %v6629 = vld [vmem:[#allocation2 + $0x570] sm:$0xff]
  %v6630 = vld [vmem:[#allocation2 + $0x578] sm:$0xff]
  %v6631 = vld [vmem:[#allocation2 + $0x580] sm:$0xff]
  %v6632 = vld [vmem:[#allocation2 + $0x588] sm:$0xff]
  %v6633 = vld [vmem:[#allocation2 + $0x590] sm:$0xff]
  %v6634 = vld [vmem:[#allocation2 + $0x598] sm:$0xff]
  %v6635 = vld [vmem:[#allocation2 + $0x5a0] sm:$0xff]
  %v6636 = vld [vmem:[#allocation2 + $0x5a8] sm:$0xff]
  %v6637 = vld [vmem:[#allocation2 + $0x5b0] sm:$0xff]
  %v6638 = vld [vmem:[#allocation2 + $0x5b8] sm:$0xff]
  %v6639 = vld [vmem:[#allocation2 + $0x5c0] sm:$0xff]
  %v6640 = vld [vmem:[#allocation2 + $0x5c8] sm:$0xff]
  %v6641 = vld [vmem:[#allocation2 + $0x5d0] sm:$0xff]
  %v6642 = vld [vmem:[#allocation2 + $0x5d8] sm:$0xff]
  %v6643 = vld [vmem:[#allocation2 + $0x5e0] sm:$0xff]
  %v6644 = vld [vmem:[#allocation2 + $0x5e8] sm:$0xff]
  %v6645 = vld [vmem:[#allocation2 + $0x5f0] sm:$0xff]
  %v6646 = vld [vmem:[#allocation2 + $0x5f8] sm:$0xff]
  %v6647 = vld [vmem:[#allocation2 + $0x600] sm:$0xff]
  %v6648 = vld [vmem:[#allocation2 + $0x608] sm:$0xff]
  %v6649 = vld [vmem:[#allocation2 + $0x610] sm:$0xff]
  %v6650 = vld [vmem:[#allocation2 + $0x618] sm:$0xff]
  %v6651 = vld [vmem:[#allocation2 + $0x620] sm:$0xff]
  %v6652 = vld [vmem:[#allocation2 + $0x628] sm:$0xff]
  %v6653 = vld [vmem:[#allocation2 + $0x630] sm:$0xff]
  %v6654 = vld [vmem:[#allocation2 + $0x638] sm:$0xff]
  %v6655 = vld [vmem:[#allocation2 + $0x640] sm:$0xff]
  %v6656 = vld [vmem:[#allocation2 + $0x648] sm:$0xff]
  %v6657 = vld [vmem:[#allocation2 + $0x650] sm:$0xff]
  %v6658 = vld [vmem:[#allocation2 + $0x658] sm:$0xff]
  %v6659 = vld [vmem:[#allocation2 + $0x660] sm:$0xff]
  %v6660 = vld [vmem:[#allocation2 + $0x668] sm:$0xff]
  %v6661 = vld [vmem:[#allocation2 + $0x670] sm:$0xff]
  %v6662 = vld [vmem:[#allocation2 + $0x678] sm:$0xff]
  %v6663 = vld [vmem:[#allocation2 + $0x680] sm:$0xff]
  %v6664 = vld [vmem:[#allocation2 + $0x688] sm:$0xff]
  %v6665 = vld [vmem:[#allocation2 + $0x690] sm:$0xff]
  %v6666 = vld [vmem:[#allocation2 + $0x698] sm:$0xff]
  %v6667 = vld [vmem:[#allocation2 + $0x6a0] sm:$0xff]
  %v6668 = vld [vmem:[#allocation2 + $0x6a8] sm:$0xff]
  %v6669 = vld [vmem:[#allocation2 + $0x6b0] sm:$0xff]
  %v6670 = vld [vmem:[#allocation2 + $0x6b8] sm:$0xff]
  %v6671 = vld [vmem:[#allocation2 + $0x6c0] sm:$0xff]
  %v6672 = vld [vmem:[#allocation2 + $0x6c8] sm:$0xff]
  %v6673 = vld [vmem:[#allocation2 + $0x6d0] sm:$0xff]
  %v6674 = vld [vmem:[#allocation2 + $0x6d8] sm:$0xff]
  %v6675 = vld [vmem:[#allocation2 + $0x6e0] sm:$0xff]
  %v6676 = vld [vmem:[#allocation2 + $0x6e8] sm:$0xff]
  %v6677 = vld [vmem:[#allocation2 + $0x6f0] sm:$0xff]
  %v6678 = vld [vmem:[#allocation2 + $0x6f8] sm:$0xff]
  %v6679 = vld [vmem:[#allocation2 + $0x700] sm:$0xff]
  %v6680 = vld [vmem:[#allocation2 + $0x708] sm:$0xff]
  %v6681 = vld [vmem:[#allocation2 + $0x710] sm:$0xff]
  %v6682 = vld [vmem:[#allocation2 + $0x718] sm:$0xff]
  %v6683 = vld [vmem:[#allocation2 + $0x720] sm:$0xff]
  %v6684 = vld [vmem:[#allocation2 + $0x728] sm:$0xff]
  %v6685 = vld [vmem:[#allocation2 + $0x730] sm:$0xff]
  %v6686 = vld [vmem:[#allocation2 + $0x738] sm:$0xff]
  %v6687 = vld [vmem:[#allocation2 + $0x740] sm:$0xff]
  %v6688 = vld [vmem:[#allocation2 + $0x748] sm:$0xff]
  %v6689 = vld [vmem:[#allocation2 + $0x750] sm:$0xff]
  %v6690 = vld [vmem:[#allocation2 + $0x758] sm:$0xff]
  %v6691 = vld [vmem:[#allocation2 + $0x760] sm:$0xff]
  %v6692 = vld [vmem:[#allocation2 + $0x768] sm:$0xff]
  %v6693 = vld [vmem:[#allocation2 + $0x770] sm:$0xff]
  %v6694 = vld [vmem:[#allocation2 + $0x778] sm:$0xff]
  %v6695 = vld [vmem:[#allocation2 + $0x780] sm:$0xff]
  %v6696 = vld [vmem:[#allocation2 + $0x788] sm:$0xff]
  %v6697 = vld [vmem:[#allocation2 + $0x790] sm:$0xff]
  %v6698 = vld [vmem:[#allocation2 + $0x798] sm:$0xff]
  %v6699 = vld [vmem:[#allocation2 + $0x7a0] sm:$0xff]
  %v6700 = vld [vmem:[#allocation2 + $0x7a8] sm:$0xff]
  %v6701 = vld [vmem:[#allocation2 + $0x7b0] sm:$0xff]
  %v6702 = vld [vmem:[#allocation2 + $0x7b8] sm:$0xff]
  %v6703 = vld [vmem:[#allocation2 + $0x7c0] sm:$0xff]
  %v6704 = vld [vmem:[#allocation2 + $0x7c8] sm:$0xff]
  %v6705 = vld [vmem:[#allocation2 + $0x7d0] sm:$0xff]
  %v6706 = vld [vmem:[#allocation2 + $0x7d8] sm:$0xff]
  %v6707 = vld [vmem:[#allocation2 + $0x7e0] sm:$0xff]
  %v6708 = vld [vmem:[#allocation2 + $0x7e8] sm:$0xff]
  %v6709 = vld [vmem:[#allocation2 + $0x7f0] sm:$0xff]
  %v6710 = vld [vmem:[#allocation2 + $0x7f8] sm:$0xff]
  %v6711 = vld [vmem:[#allocation2 + $0x800] sm:$0xff]
  %v6712 = vld [vmem:[#allocation2 + $0x808] sm:$0xff]
  %v6713 = vld [vmem:[#allocation2 + $0x810] sm:$0xff]
  %v6714 = vld [vmem:[#allocation2 + $0x818] sm:$0xff]
  %v6715 = vld [vmem:[#allocation2 + $0x820] sm:$0xff]
  %v6716 = vld [vmem:[#allocation2 + $0x828] sm:$0xff]
  %v6717 = vld [vmem:[#allocation2 + $0x830] sm:$0xff]
  %v6718 = vld [vmem:[#allocation2 + $0x838] sm:$0xff]
  %v6719 = vld [vmem:[#allocation2 + $0x840] sm:$0xff]
  %v6720 = vld [vmem:[#allocation2 + $0x848] sm:$0xff]
  %v6721 = vld [vmem:[#allocation2 + $0x850] sm:$0xff]
  %v6722 = vld [vmem:[#allocation2 + $0x858] sm:$0xff]
  %v6723 = vld [vmem:[#allocation2 + $0x860] sm:$0xff]
  %v6724 = vld [vmem:[#allocation2 + $0x868] sm:$0xff]
  %v6725 = vld [vmem:[#allocation2 + $0x870] sm:$0xff]
  %v6726 = vld [vmem:[#allocation2 + $0x878] sm:$0xff]
  %v6727 = vld [vmem:[#allocation2 + $0x880] sm:$0xff]
  %v6728 = vld [vmem:[#allocation2 + $0x888] sm:$0xff]
  %v6729 = vld [vmem:[#allocation2 + $0x890] sm:$0xff]
  %v6730 = vld [vmem:[#allocation2 + $0x898] sm:$0xff]
  %v6731 = vld [vmem:[#allocation2 + $0x8a0] sm:$0xff]
  %v6732 = vld [vmem:[#allocation2 + $0x8a8] sm:$0xff]
  %v6733 = vld [vmem:[#allocation2 + $0x8b0] sm:$0xff]
  %v6734 = vld [vmem:[#allocation2 + $0x8b8] sm:$0xff]
  %v6735 = vld [vmem:[#allocation2 + $0x8c0] sm:$0xff]
  %v6736 = vld [vmem:[#allocation2 + $0x8c8] sm:$0xff]
  %v6737 = vld [vmem:[#allocation2 + $0x8d0] sm:$0xff]
  %v6738 = vld [vmem:[#allocation2 + $0x8d8] sm:$0xff]
  %v6739 = vld [vmem:[#allocation2 + $0x8e0] sm:$0xff]
  %v6740 = vld [vmem:[#allocation2 + $0x8e8] sm:$0xff]
  %v6741 = vld [vmem:[#allocation2 + $0x8f0] sm:$0xff]
  %v6742 = vld [vmem:[#allocation2 + $0x8f8] sm:$0xff]
  %v6743 = vld [vmem:[#allocation2 + $0x900] sm:$0xff]
  %v6744 = vld [vmem:[#allocation2 + $0x908] sm:$0xff]
  %v6745 = vld [vmem:[#allocation2 + $0x910] sm:$0xff]
  %v6746 = vld [vmem:[#allocation2 + $0x918] sm:$0xff]
  %v6747 = vld [vmem:[#allocation2 + $0x920] sm:$0xff]
  %v6748 = vld [vmem:[#allocation2 + $0x928] sm:$0xff]
  %v6749 = vld [vmem:[#allocation2 + $0x930] sm:$0xff]
  %v6750 = vld [vmem:[#allocation2 + $0x938] sm:$0xff]
  %v6751 = vld [vmem:[#allocation2 + $0x940] sm:$0xff]
  %v6752 = vld [vmem:[#allocation2 + $0x948] sm:$0xff]
  %v6753 = vld [vmem:[#allocation2 + $0x950] sm:$0xff]
  %v6754 = vld [vmem:[#allocation2 + $0x958] sm:$0xff]
  %v6755 = vld [vmem:[#allocation2 + $0x960] sm:$0xff]
  %v6756 = vld [vmem:[#allocation2 + $0x968] sm:$0xff]
  %v6757 = vld [vmem:[#allocation2 + $0x970] sm:$0xff]
  %v6758 = vld [vmem:[#allocation2 + $0x978] sm:$0xff]
  %v6759 = vld [vmem:[#allocation2 + $0x980] sm:$0xff]
  %v6760 = vld [vmem:[#allocation2 + $0x988] sm:$0xff]
  %v6761 = vld [vmem:[#allocation2 + $0x990] sm:$0xff]
  %v6762 = vld [vmem:[#allocation2 + $0x998] sm:$0xff]
  %v6763 = vld [vmem:[#allocation2 + $0x9a0] sm:$0xff]
  %v6764 = vld [vmem:[#allocation2 + $0x9a8] sm:$0xff]
  %v6765 = vld [vmem:[#allocation2 + $0x9b0] sm:$0xff]
  %v6766 = vld [vmem:[#allocation2 + $0x9b8] sm:$0xff]
  %v6767 = vld [vmem:[#allocation2 + $0x9c0] sm:$0xff]
  %v6768 = vld [vmem:[#allocation2 + $0x9c8] sm:$0xff]
  %v6769 = vld [vmem:[#allocation2 + $0x9d0] sm:$0xff]
  %v6770 = vld [vmem:[#allocation2 + $0x9d8] sm:$0xff]
  %v6771 = vld [vmem:[#allocation2 + $0x9e0] sm:$0xff]
  %v6772 = vld [vmem:[#allocation2 + $0x9e8] sm:$0xff]
  %v6773 = vld [vmem:[#allocation2 + $0x9f0] sm:$0xff]
  %v6774 = vld [vmem:[#allocation2 + $0x9f8] sm:$0xff]
  %v6775 = vld [vmem:[#allocation2 + $0xa00] sm:$0xff]
  %v6776 = vld [vmem:[#allocation2 + $0xa08] sm:$0xff]
  %v6777 = vld [vmem:[#allocation2 + $0xa10] sm:$0xff]
  %v6778 = vld [vmem:[#allocation2 + $0xa18] sm:$0xff]
  %v6779 = vld [vmem:[#allocation2 + $0xa20] sm:$0xff]
  %v6780 = vld [vmem:[#allocation2 + $0xa28] sm:$0xff]
  %v6781 = vld [vmem:[#allocation2 + $0xa30] sm:$0xff]
  %v6782 = vld [vmem:[#allocation2 + $0xa38] sm:$0xff]
  %v6783 = vld [vmem:[#allocation2 + $0xa40] sm:$0xff]
  %v6784 = vld [vmem:[#allocation2 + $0xa48] sm:$0xff]
  %v6785 = vld [vmem:[#allocation2 + $0xa50] sm:$0xff]
  %v6786 = vld [vmem:[#allocation2 + $0xa58] sm:$0xff]
  %v6787 = vld [vmem:[#allocation2 + $0xa60] sm:$0xff]
  %v6788 = vld [vmem:[#allocation2 + $0xa68] sm:$0xff]
  %v6789 = vld [vmem:[#allocation2 + $0xa70] sm:$0xff]
  %v6790 = vld [vmem:[#allocation2 + $0xa78] sm:$0xff]
  %v6791 = vld [vmem:[#allocation2 + $0xa80] sm:$0xff]
  %v6792 = vld [vmem:[#allocation2 + $0xa88] sm:$0xff]
  %v6793 = vld [vmem:[#allocation2 + $0xa90] sm:$0xff]
  %v6794 = vld [vmem:[#allocation2 + $0xa98] sm:$0xff]
  %v6795 = vld [vmem:[#allocation2 + $0xaa0] sm:$0xff]
  %v6796 = vld [vmem:[#allocation2 + $0xaa8] sm:$0xff]
  %v6797 = vld [vmem:[#allocation2 + $0xab0] sm:$0xff]
  %v6798 = vld [vmem:[#allocation2 + $0xab8] sm:$0xff]
  %v6799 = vld [vmem:[#allocation2 + $0xac0] sm:$0xff]
  %v6800 = vld [vmem:[#allocation2 + $0xac8] sm:$0xff]
  %v6801 = vld [vmem:[#allocation2 + $0xad0] sm:$0xff]
  %v6802 = vld [vmem:[#allocation2 + $0xad8] sm:$0xff]
  %v6803 = vld [vmem:[#allocation2 + $0xae0] sm:$0xff]
  %v6804 = vld [vmem:[#allocation2 + $0xae8] sm:$0xff]
  %v6805 = vld [vmem:[#allocation2 + $0xaf0] sm:$0xff]
  %v6806 = vld [vmem:[#allocation2 + $0xaf8] sm:$0xff]
  %v6807 = vld [vmem:[#allocation2 + $0xb00] sm:$0xff]
  %v6808 = vld [vmem:[#allocation2 + $0xb08] sm:$0xff]
  %v6809 = vld [vmem:[#allocation2 + $0xb10] sm:$0xff]
  %v6810 = vld [vmem:[#allocation2 + $0xb18] sm:$0xff]
  %v6811 = vld [vmem:[#allocation2 + $0xb20] sm:$0xff]
  %v6812 = vld [vmem:[#allocation2 + $0xb28] sm:$0xff]
  %v6813 = vld [vmem:[#allocation2 + $0xb30] sm:$0xff]
  %v6814 = vld [vmem:[#allocation2 + $0xb38] sm:$0xff]
  %v6815 = vld [vmem:[#allocation2 + $0xb40] sm:$0xff]
  %v6816 = vld [vmem:[#allocation2 + $0xb48] sm:$0xff]
  %v6817 = vld [vmem:[#allocation2 + $0xb50] sm:$0xff]
  %v6818 = vld [vmem:[#allocation2 + $0xb58] sm:$0xff]
  %v6819 = vld [vmem:[#allocation2 + $0xb60] sm:$0xff]
  %v6820 = vld [vmem:[#allocation2 + $0xb68] sm:$0xff]
  %v6821 = vld [vmem:[#allocation2 + $0xb70] sm:$0xff]
  %v6822 = vld [vmem:[#allocation2 + $0xb78] sm:$0xff]
  %v6823 = vld [vmem:[#allocation2 + $0xb80] sm:$0xff]
  %v6824 = vld [vmem:[#allocation2 + $0xb88] sm:$0xff]
  %v6825 = vld [vmem:[#allocation2 + $0xb90] sm:$0xff]
  %v6826 = vld [vmem:[#allocation2 + $0xb98] sm:$0xff]
  %v6827 = vld [vmem:[#allocation2 + $0xba0] sm:$0xff]
  %v6828 = vld [vmem:[#allocation2 + $0xba8] sm:$0xff]
  %v6829 = vld [vmem:[#allocation2 + $0xbb0] sm:$0xff]
  %v6830 = vld [vmem:[#allocation2 + $0xbb8] sm:$0xff]
  %v6831 = vld [vmem:[#allocation2 + $0xbc0] sm:$0xff]
  %v6832 = vld [vmem:[#allocation2 + $0xbc8] sm:$0xff]
  %v6833 = vld [vmem:[#allocation2 + $0xbd0] sm:$0xff]
  %v6834 = vld [vmem:[#allocation2 + $0xbd8] sm:$0xff]
  %v6835 = vld [vmem:[#allocation2 + $0xbe0] sm:$0xff]
  %v6836 = vld [vmem:[#allocation2 + $0xbe8] sm:$0xff]
  %v6837 = vld [vmem:[#allocation2 + $0xbf0] sm:$0xff]
  %v6838 = vld [vmem:[#allocation2 + $0xbf8] sm:$0xff]
  %v6839 = vld [vmem:[#allocation2 + $0xc00] sm:$0xff]
  %v6840 = vld [vmem:[#allocation2 + $0xc08] sm:$0xff]
  %v6841 = vld [vmem:[#allocation2 + $0xc10] sm:$0xff]
  %v6842 = vld [vmem:[#allocation2 + $0xc18] sm:$0xff]
  %v6843 = vld [vmem:[#allocation2 + $0xc20] sm:$0xff]
  %v6844 = vld [vmem:[#allocation2 + $0xc28] sm:$0xff]
  %v6845 = vld [vmem:[#allocation2 + $0xc30] sm:$0xff]
  %v6846 = vld [vmem:[#allocation2 + $0xc38] sm:$0xff]
  %v6847 = vld [vmem:[#allocation2 + $0xc40] sm:$0xff]
  %v6848 = vld [vmem:[#allocation2 + $0xc48] sm:$0xff]
  %v6849 = vld [vmem:[#allocation2 + $0xc50] sm:$0xff]
  %v6850 = vld [vmem:[#allocation2 + $0xc58] sm:$0xff]
  %v6851 = vld [vmem:[#allocation2 + $0xc60] sm:$0xff]
  %v6852 = vld [vmem:[#allocation2 + $0xc68] sm:$0xff]
  %v6853 = vld [vmem:[#allocation2 + $0xc70] sm:$0xff]
  %v6854 = vld [vmem:[#allocation2 + $0xc78] sm:$0xff]
  %v6855 = vld [vmem:[#allocation2 + $0xc80] sm:$0xff]
  %v6856 = vld [vmem:[#allocation2 + $0xc88] sm:$0xff]
  %v6857 = vld [vmem:[#allocation2 + $0xc90] sm:$0xff]
  %v6858 = vld [vmem:[#allocation2 + $0xc98] sm:$0xff]
  %v6859 = vld [vmem:[#allocation2 + $0xca0] sm:$0xff]
  %v6860 = vld [vmem:[#allocation2 + $0xca8] sm:$0xff]
  %v6861 = vld [vmem:[#allocation2 + $0xcb0] sm:$0xff]
  %v6862 = vld [vmem:[#allocation2 + $0xcb8] sm:$0xff]
  %v6863 = vld [vmem:[#allocation2 + $0xcc0] sm:$0xff]
  %v6864 = vld [vmem:[#allocation2 + $0xcc8] sm:$0xff]
  %v6865 = vld [vmem:[#allocation2 + $0xcd0] sm:$0xff]
  %v6866 = vld [vmem:[#allocation2 + $0xcd8] sm:$0xff]
  %v6867 = vld [vmem:[#allocation2 + $0xce0] sm:$0xff]
  %v6868 = vld [vmem:[#allocation2 + $0xce8] sm:$0xff]
  %v6869 = vld [vmem:[#allocation2 + $0xcf0] sm:$0xff]
  %v6870 = vld [vmem:[#allocation2 + $0xcf8] sm:$0xff]
  %v6871 = vld [vmem:[#allocation2 + $0xd00] sm:$0xff]
  %v6872 = vld [vmem:[#allocation2 + $0xd08] sm:$0xff]
  %v6873 = vld [vmem:[#allocation2 + $0xd10] sm:$0xff]
  %v6874 = vld [vmem:[#allocation2 + $0xd18] sm:$0xff]
  %v6875 = vld [vmem:[#allocation2 + $0xd20] sm:$0xff]
  %v6876 = vld [vmem:[#allocation2 + $0xd28] sm:$0xff]
  %v6877 = vld [vmem:[#allocation2 + $0xd30] sm:$0xff]
  %v6878 = vld [vmem:[#allocation2 + $0xd38] sm:$0xff]
  %v6879 = vld [vmem:[#allocation2 + $0xd40] sm:$0xff]
  %v6880 = vld [vmem:[#allocation2 + $0xd48] sm:$0xff]
  %v6881 = vld [vmem:[#allocation2 + $0xd50] sm:$0xff]
  %v6882 = vld [vmem:[#allocation2 + $0xd58] sm:$0xff]
  %v6883 = vld [vmem:[#allocation2 + $0xd60] sm:$0xff]
  %v6884 = vld [vmem:[#allocation2 + $0xd68] sm:$0xff]
  %v6885 = vld [vmem:[#allocation2 + $0xd70] sm:$0xff]
  %v6886 = vld [vmem:[#allocation2 + $0xd78] sm:$0xff]
  %v6887 = vld [vmem:[#allocation2 + $0xd80] sm:$0xff]
  %v6888 = vld [vmem:[#allocation2 + $0xd88] sm:$0xff]
  %v6889 = vld [vmem:[#allocation2 + $0xd90] sm:$0xff]
  %v6890 = vld [vmem:[#allocation2 + $0xd98] sm:$0xff]
  %v6891 = vld [vmem:[#allocation2 + $0xda0] sm:$0xff]
  %v6892 = vld [vmem:[#allocation2 + $0xda8] sm:$0xff]
  %v6893 = vld [vmem:[#allocation2 + $0xdb0] sm:$0xff]
  %v6894 = vld [vmem:[#allocation2 + $0xdb8] sm:$0xff]
  %v6895 = vld [vmem:[#allocation2 + $0xdc0] sm:$0xff]
  %v6896 = vld [vmem:[#allocation2 + $0xdc8] sm:$0xff]
  %v6897 = vld [vmem:[#allocation2 + $0xdd0] sm:$0xff]
  %v6898 = vld [vmem:[#allocation2 + $0xdd8] sm:$0xff]
  %v6899 = vld [vmem:[#allocation2 + $0xde0] sm:$0xff]
  %v6900 = vld [vmem:[#allocation2 + $0xde8] sm:$0xff]
  %v6901 = vld [vmem:[#allocation2 + $0xdf0] sm:$0xff]
  %v6902 = vld [vmem:[#allocation2 + $0xdf8] sm:$0xff]
  %v6903 = vld [vmem:[#allocation2 + $0xe00] sm:$0xff]
  %v6904 = vld [vmem:[#allocation2 + $0xe08] sm:$0xff]
  %v6905 = vld [vmem:[#allocation2 + $0xe10] sm:$0xff]
  %v6906 = vld [vmem:[#allocation2 + $0xe18] sm:$0xff]
  %v6907 = vld [vmem:[#allocation2 + $0xe20] sm:$0xff]
  %v6908 = vld [vmem:[#allocation2 + $0xe28] sm:$0xff]
  %v6909 = vld [vmem:[#allocation2 + $0xe30] sm:$0xff]
  %v6910 = vld [vmem:[#allocation2 + $0xe38] sm:$0xff]
  %v6911 = vld [vmem:[#allocation2 + $0xe40] sm:$0xff]
  %v6912 = vld [vmem:[#allocation2 + $0xe48] sm:$0xff]
  %v6913 = vld [vmem:[#allocation2 + $0xe50] sm:$0xff]
  %v6914 = vld [vmem:[#allocation2 + $0xe58] sm:$0xff]
  %v6915 = vld [vmem:[#allocation2 + $0xe60] sm:$0xff]
  %v6916 = vld [vmem:[#allocation2 + $0xe68] sm:$0xff]
  %v6917 = vld [vmem:[#allocation2 + $0xe70] sm:$0xff]
  %v6918 = vld [vmem:[#allocation2 + $0xe78] sm:$0xff]
  %v6919 = vld [vmem:[#allocation2 + $0xe80] sm:$0xff]
  %v6920 = vld [vmem:[#allocation2 + $0xe88] sm:$0xff]
  %v6921 = vld [vmem:[#allocation2 + $0xe90] sm:$0xff]
  %v6922 = vld [vmem:[#allocation2 + $0xe98] sm:$0xff]
  %v6923 = vld [vmem:[#allocation2 + $0xea0] sm:$0xff]
  %v6924 = vld [vmem:[#allocation2 + $0xea8] sm:$0xff]
  %v6925 = vld [vmem:[#allocation2 + $0xeb0] sm:$0xff]
  %v6926 = vld [vmem:[#allocation2 + $0xeb8] sm:$0xff]
  %v6927 = vld [vmem:[#allocation2 + $0xec0] sm:$0xff]
  %v6928 = vld [vmem:[#allocation2 + $0xec8] sm:$0xff]
  %v6929 = vld [vmem:[#allocation2 + $0xed0] sm:$0xff]
  %v6930 = vld [vmem:[#allocation2 + $0xed8] sm:$0xff]
  %v6931 = vld [vmem:[#allocation2 + $0xee0] sm:$0xff]
  %v6932 = vld [vmem:[#allocation2 + $0xee8] sm:$0xff]
  %v6933 = vld [vmem:[#allocation2 + $0xef0] sm:$0xff]
  %v6934 = vld [vmem:[#allocation2 + $0xef8] sm:$0xff]
  %v6935 = vld [vmem:[#allocation2 + $0xf00] sm:$0xff]
  %v6936 = vld [vmem:[#allocation2 + $0xf08] sm:$0xff]
  %v6937 = vld [vmem:[#allocation2 + $0xf10] sm:$0xff]
  %v6938 = vld [vmem:[#allocation2 + $0xf18] sm:$0xff]
  %v6939 = vld [vmem:[#allocation2 + $0xf20] sm:$0xff]
  %v6940 = vld [vmem:[#allocation2 + $0xf28] sm:$0xff]
  %v6941 = vld [vmem:[#allocation2 + $0xf30] sm:$0xff]
  %v6942 = vld [vmem:[#allocation2 + $0xf38] sm:$0xff]
  %v6943 = vld [vmem:[#allocation2 + $0xf40] sm:$0xff]
  %v6944 = vld [vmem:[#allocation2 + $0xf48] sm:$0xff]
  %v6945 = vld [vmem:[#allocation2 + $0xf50] sm:$0xff]
  %v6946 = vld [vmem:[#allocation2 + $0xf58] sm:$0xff]
  %v6947 = vld [vmem:[#allocation2 + $0xf60] sm:$0xff]
  %v6948 = vld [vmem:[#allocation2 + $0xf68] sm:$0xff]
  %v6949 = vld [vmem:[#allocation2 + $0xf70] sm:$0xff]
  %v6950 = vld [vmem:[#allocation2 + $0xf78] sm:$0xff]
  %v6951 = vld [vmem:[#allocation2 + $0xf80] sm:$0xff]
  %v6952 = vld [vmem:[#allocation2 + $0xf88] sm:$0xff]
  %v6953 = vld [vmem:[#allocation2 + $0xf90] sm:$0xff]
  %v6954 = vld [vmem:[#allocation2 + $0xf98] sm:$0xff]
  %v6955 = vld [vmem:[#allocation2 + $0xfa0] sm:$0xff]
  %v6956 = vld [vmem:[#allocation2 + $0xfa8] sm:$0xff]
  %v6957 = vld [vmem:[#allocation2 + $0xfb0] sm:$0xff]
  %v6958 = vld [vmem:[#allocation2 + $0xfb8] sm:$0xff]
  %v6959 = vld [vmem:[#allocation2 + $0xfc0] sm:$0xff]
  %v6960 = vld [vmem:[#allocation2 + $0xfc8] sm:$0xff]
  %v6961 = vld [vmem:[#allocation2 + $0xfd0] sm:$0xff]
  %v6962 = vld [vmem:[#allocation2 + $0xfd8] sm:$0xff]
  %v6963 = vld [vmem:[#allocation2 + $0xfe0] sm:$0xff]
  %v6964 = vld [vmem:[#allocation2 + $0xfe8] sm:$0xff]
  %v6965 = vld [vmem:[#allocation2 + $0xff0] sm:$0xff]
  %v6966 = vld [vmem:[#allocation2 + $0xff8] sm:$0xff]
  %v6967 = vld [vmem:[#allocation2 + $0x1000] sm:$0xff]
  %v6968 = vld [vmem:[#allocation2 + $0x1008] sm:$0xff]
  %v6969 = vld [vmem:[#allocation2 + $0x1010] sm:$0xff]
  %v6970 = vld [vmem:[#allocation2 + $0x1018] sm:$0xff]
  %v6971 = vld [vmem:[#allocation2 + $0x1020] sm:$0xff]
  %v6972 = vld [vmem:[#allocation2 + $0x1028] sm:$0xff]
  %v6973 = vld [vmem:[#allocation2 + $0x1030] sm:$0xff]
  %v6974 = vld [vmem:[#allocation2 + $0x1038] sm:$0xff]
  %v6975 = vld [vmem:[#allocation2 + $0x1040] sm:$0xff]
  %v6976 = vld [vmem:[#allocation2 + $0x1048] sm:$0xff]
  %v6977 = vld [vmem:[#allocation2 + $0x1050] sm:$0xff]
  %v6978 = vld [vmem:[#allocation2 + $0x1058] sm:$0xff]
  %v6979 = vld [vmem:[#allocation2 + $0x1060] sm:$0xff]
  %v6980 = vld [vmem:[#allocation2 + $0x1068] sm:$0xff]
  %v6981 = vld [vmem:[#allocation2 + $0x1070] sm:$0xff]
  %v6982 = vld [vmem:[#allocation2 + $0x1078] sm:$0xff]
  %v6983 = vld [vmem:[#allocation2 + $0x1080] sm:$0xff]
  %v6984 = vld [vmem:[#allocation2 + $0x1088] sm:$0xff]
  %v6985 = vld [vmem:[#allocation2 + $0x1090] sm:$0xff]
  %v6986 = vld [vmem:[#allocation2 + $0x1098] sm:$0xff]
  %v6987 = vld [vmem:[#allocation2 + $0x10a0] sm:$0xff]
  %v6988 = vld [vmem:[#allocation2 + $0x10a8] sm:$0xff]
  %v6989 = vld [vmem:[#allocation2 + $0x10b0] sm:$0xff]
  %v6990 = vld [vmem:[#allocation2 + $0x10b8] sm:$0xff]
  %v6991 = vld [vmem:[#allocation2 + $0x10c0] sm:$0xff]
  %v6992 = vld [vmem:[#allocation2 + $0x10c8] sm:$0xff]
  %v6993 = vld [vmem:[#allocation2 + $0x10d0] sm:$0xff]
  %v6994 = vld [vmem:[#allocation2 + $0x10d8] sm:$0xff]
  %v6995 = vld [vmem:[#allocation2 + $0x10e0] sm:$0xff]
  %v6996 = vld [vmem:[#allocation2 + $0x10e8] sm:$0xff]
  %v6997 = vld [vmem:[#allocation2 + $0x10f0] sm:$0xff]
  %v6998 = vld [vmem:[#allocation2 + $0x10f8] sm:$0xff]
  %v6999 = vld [vmem:[#allocation2 + $0x1100] sm:$0xff]
  %v7000 = vld [vmem:[#allocation2 + $0x1108] sm:$0xff]
  %v7001 = vld [vmem:[#allocation2 + $0x1110] sm:$0xff]
  %v7002 = vld [vmem:[#allocation2 + $0x1118] sm:$0xff]
  %v7003 = vld [vmem:[#allocation2 + $0x1120] sm:$0xff]
  %v7004 = vld [vmem:[#allocation2 + $0x1128] sm:$0xff]
  %v7005 = vld [vmem:[#allocation2 + $0x1130] sm:$0xff]
  %v7006 = vld [vmem:[#allocation2 + $0x1138] sm:$0xff]
  %v7007 = vld [vmem:[#allocation2 + $0x1140] sm:$0xff]
  %v7008 = vld [vmem:[#allocation2 + $0x1148] sm:$0xff]
  %v7009 = vld [vmem:[#allocation2 + $0x1150] sm:$0xff]
  %v7010 = vld [vmem:[#allocation2 + $0x1158] sm:$0xff]
  %v7011 = vld [vmem:[#allocation2 + $0x1160] sm:$0xff]
  %v7012 = vld [vmem:[#allocation2 + $0x1168] sm:$0xff]
  %v7013 = vld [vmem:[#allocation2 + $0x1170] sm:$0xff]
  %v7014 = vld [vmem:[#allocation2 + $0x1178] sm:$0xff]
  %v7015 = vld [vmem:[#allocation2 + $0x1180] sm:$0xff]
  %v7016 = vld [vmem:[#allocation2 + $0x1188] sm:$0xff]
  %v7017 = vld [vmem:[#allocation2 + $0x1190] sm:$0xff]
  %v7018 = vld [vmem:[#allocation2 + $0x1198] sm:$0xff]
  %v7019 = vld [vmem:[#allocation2 + $0x11a0] sm:$0xff]
  %v7020 = vld [vmem:[#allocation2 + $0x11a8] sm:$0xff]
  %v7021 = vld [vmem:[#allocation2 + $0x11b0] sm:$0xff]
  %v7022 = vld [vmem:[#allocation2 + $0x11b8] sm:$0xff]
  %v7023 = vld [vmem:[#allocation2 + $0x11c0] sm:$0xff]
  %v7024 = vld [vmem:[#allocation2 + $0x11c8] sm:$0xff]
  %v7025 = vld [vmem:[#allocation2 + $0x11d0] sm:$0xff]
  %v7026 = vld [vmem:[#allocation2 + $0x11d8] sm:$0xff]
  %v7027 = vld [vmem:[#allocation2 + $0x11e0] sm:$0xff]
  %v7028 = vld [vmem:[#allocation2 + $0x11e8] sm:$0xff]
  %v7029 = vld [vmem:[#allocation2 + $0x11f0] sm:$0xff]
  %v7030 = vld [vmem:[#allocation2 + $0x11f8] sm:$0xff]
  %7031 = vmatpush.msra.mxu0 %v6326
  %7032 = vmatpush.msra.mxu0 %v6325
  %7033 = vmatpush.msra.mxu0 %v6324
  %7034 = vmatpush.msra.mxu0 %v6323
  %7035 = vmatpush.msra.mxu0 %v6322
  %7036 = vmatpush.msra.mxu0 %v6321
  %7037 = vmatpush.msra.mxu0 %v6320
  %7038 = vmatpush.msra.mxu0 %v6319
  %7039 = vmatpush.msra.mxu0 %v6318
  %7040 = vmatpush.msra.mxu0 %v6317
  %7041 = vmatpush.msra.mxu0 %v6316
  %7042 = vmatpush.msra.mxu0 %v6315
  %7043 = vmatpush.msra.mxu0 %v6314
  %7044 = vmatpush.msra.mxu0 %v6313
  %7045 = vmatpush.msra.mxu0 %v6312
  %7046 = vmatpush.msra.mxu0 %v6311
  %7047 = vmatmul.f32.gmra.mxu0 %v6455
  %v7048 = vpop.f32.mrf.mxu0
  %v7049 = vadd.f32 0.0, %v7048
  %7050 = vmatmul.f32.gmra.mxu0 %v6464
  %v7051 = vpop.f32.mrf.mxu0
  %v7052 = vadd.f32 0.0, %v7051
  %7053 = vmatmul.f32.gmra.mxu0 %v6473
  %v7054 = vpop.f32.mrf.mxu0
  %v7055 = vadd.f32 0.0, %v7054
  %7056 = vmatmul.f32.gmra.mxu0 %v6482
  %v7057 = vpop.f32.mrf.mxu0
  %v7058 = vadd.f32 0.0, %v7057
  %7059 = vmatmul.f32.gmra.mxu0 %v6491
  %v7060 = vpop.f32.mrf.mxu0
  %v7061 = vadd.f32 0.0, %v7060
  %7062 = vmatmul.f32.gmra.mxu0 %v6500
  %v7063 = vpop.f32.mrf.mxu0
  %v7064 = vadd.f32 0.0, %v7063
  %7065 = vmatmul.f32.gmra.mxu0 %v6509
  %v7066 = vpop.f32.mrf.mxu0
  %v7067 = vadd.f32 0.0, %v7066
  %7068 = vmatmul.f32.gmra.mxu0 %v6518
  %v7069 = vpop.f32.mrf.mxu0
  %v7070 = vadd.f32 0.0, %v7069
  %7071 = vmatmul.f32.gmra.mxu0 %v6527
  %v7072 = vpop.f32.mrf.mxu0
  %v7073 = vadd.f32 0.0, %v7072
  %7074 = vmatmul.f32.gmra.mxu0 %v6536
  %v7075 = vpop.f32.mrf.mxu0
  %v7076 = vadd.f32 0.0, %v7075
  %7077 = vmatmul.f32.gmra.mxu0 %v6545
  %v7078 = vpop.f32.mrf.mxu0
  %v7079 = vadd.f32 0.0, %v7078
  %7080 = vmatmul.f32.gmra.mxu0 %v6554
  %v7081 = vpop.f32.mrf.mxu0
  %v7082 = vadd.f32 0.0, %v7081
  %7083 = vmatmul.f32.gmra.mxu0 %v6563
  %v7084 = vpop.f32.mrf.mxu0
  %v7085 = vadd.f32 0.0, %v7084
  %7086 = vmatmul.f32.gmra.mxu0 %v6572
  %v7087 = vpop.f32.mrf.mxu0
  %v7088 = vadd.f32 0.0, %v7087
  %7089 = vmatmul.f32.gmra.mxu0 %v6581
  %v7090 = vpop.f32.mrf.mxu0
  %v7091 = vadd.f32 0.0, %v7090
  %7092 = vmatmul.f32.gmra.mxu0 %v6590
  %v7093 = vpop.f32.mrf.mxu0
  %v7094 = vadd.f32 0.0, %v7093
  %7095 = vmatmul.f32.gmra.mxu0 %v6599
  %v7096 = vpop.f32.mrf.mxu0
  %v7097 = vadd.f32 0.0, %v7096
  %7098 = vmatmul.f32.gmra.mxu0 %v6608
  %v7099 = vpop.f32.mrf.mxu0
  %v7100 = vadd.f32 0.0, %v7099
  %7101 = vmatmul.f32.gmra.mxu0 %v6617
  %v7102 = vpop.f32.mrf.mxu0
  %v7103 = vadd.f32 0.0, %v7102
  %7104 = vmatmul.f32.gmra.mxu0 %v6626
  %v7105 = vpop.f32.mrf.mxu0
  %v7106 = vadd.f32 0.0, %v7105
  %7107 = vmatmul.f32.gmra.mxu0 %v6635
  %v7108 = vpop.f32.mrf.mxu0
  %v7109 = vadd.f32 0.0, %v7108
  %7110 = vmatmul.f32.gmra.mxu0 %v6644
  %v7111 = vpop.f32.mrf.mxu0
  %v7112 = vadd.f32 0.0, %v7111
  %7113 = vmatmul.f32.gmra.mxu0 %v6653
  %v7114 = vpop.f32.mrf.mxu0
  %v7115 = vadd.f32 0.0, %v7114
  %7116 = vmatmul.f32.gmra.mxu0 %v6662
  %v7117 = vpop.f32.mrf.mxu0
  %v7118 = vadd.f32 0.0, %v7117
  %7119 = vmatmul.f32.gmra.mxu0 %v6671
  %v7120 = vpop.f32.mrf.mxu0
  %v7121 = vadd.f32 0.0, %v7120
  %7122 = vmatmul.f32.gmra.mxu0 %v6680
  %v7123 = vpop.f32.mrf.mxu0
  %v7124 = vadd.f32 0.0, %v7123
  %7125 = vmatmul.f32.gmra.mxu0 %v6689
  %v7126 = vpop.f32.mrf.mxu0
  %v7127 = vadd.f32 0.0, %v7126
  %7128 = vmatmul.f32.gmra.mxu0 %v6698
  %v7129 = vpop.f32.mrf.mxu0
  %v7130 = vadd.f32 0.0, %v7129
  %7131 = vmatmul.f32.gmra.mxu0 %v6707
  %v7132 = vpop.f32.mrf.mxu0
  %v7133 = vadd.f32 0.0, %v7132
  %7134 = vmatmul.f32.gmra.mxu0 %v6716
  %v7135 = vpop.f32.mrf.mxu0
  %v7136 = vadd.f32 0.0, %v7135
  %7137 = vmatmul.f32.gmra.mxu0 %v6725
  %v7138 = vpop.f32.mrf.mxu0
  %v7139 = vadd.f32 0.0, %v7138
  %7140 = vmatmul.f32.gmra.mxu0 %v6734
  %v7141 = vpop.f32.mrf.mxu0
  %v7142 = vadd.f32 0.0, %v7141
  %7143 = vmatmul.f32.gmra.mxu0 %v6743
  %v7144 = vpop.f32.mrf.mxu0
  %v7145 = vadd.f32 0.0, %v7144
  %7146 = vmatmul.f32.gmra.mxu0 %v6752
  %v7147 = vpop.f32.mrf.mxu0
  %v7148 = vadd.f32 0.0, %v7147
  %7149 = vmatmul.f32.gmra.mxu0 %v6761
  %v7150 = vpop.f32.mrf.mxu0
  %v7151 = vadd.f32 0.0, %v7150
  %7152 = vmatmul.f32.gmra.mxu0 %v6770
  %v7153 = vpop.f32.mrf.mxu0
  %v7154 = vadd.f32 0.0, %v7153
  %7155 = vmatmul.f32.gmra.mxu0 %v6779
  %v7156 = vpop.f32.mrf.mxu0
  %v7157 = vadd.f32 0.0, %v7156
  %7158 = vmatmul.f32.gmra.mxu0 %v6788
  %v7159 = vpop.f32.mrf.mxu0
  %v7160 = vadd.f32 0.0, %v7159
  %7161 = vmatmul.f32.gmra.mxu0 %v6797
  %v7162 = vpop.f32.mrf.mxu0
  %v7163 = vadd.f32 0.0, %v7162
  %7164 = vmatmul.f32.gmra.mxu0 %v6806
  %v7165 = vpop.f32.mrf.mxu0
  %v7166 = vadd.f32 0.0, %v7165
  %7167 = vmatmul.f32.gmra.mxu0 %v6815
  %v7168 = vpop.f32.mrf.mxu0
  %v7169 = vadd.f32 0.0, %v7168
  %7170 = vmatmul.f32.gmra.mxu0 %v6824
  %v7171 = vpop.f32.mrf.mxu0
  %v7172 = vadd.f32 0.0, %v7171
  %7173 = vmatmul.f32.gmra.mxu0 %v6833
  %v7174 = vpop.f32.mrf.mxu0
  %v7175 = vadd.f32 0.0, %v7174
  %7176 = vmatmul.f32.gmra.mxu0 %v6842
  %v7177 = vpop.f32.mrf.mxu0
  %v7178 = vadd.f32 0.0, %v7177
  %7179 = vmatmul.f32.gmra.mxu0 %v6851
  %v7180 = vpop.f32.mrf.mxu0
  %v7181 = vadd.f32 0.0, %v7180
  %7182 = vmatmul.f32.gmra.mxu0 %v6860
  %v7183 = vpop.f32.mrf.mxu0
  %v7184 = vadd.f32 0.0, %v7183
  %7185 = vmatmul.f32.gmra.mxu0 %v6869
  %v7186 = vpop.f32.mrf.mxu0
  %v7187 = vadd.f32 0.0, %v7186
  %7188 = vmatmul.f32.gmra.mxu0 %v6878
  %v7189 = vpop.f32.mrf.mxu0
  %v7190 = vadd.f32 0.0, %v7189
  %7191 = vmatmul.f32.gmra.mxu0 %v6887
  %v7192 = vpop.f32.mrf.mxu0
  %v7193 = vadd.f32 0.0, %v7192
  %7194 = vmatmul.f32.gmra.mxu0 %v6896
  %v7195 = vpop.f32.mrf.mxu0
  %v7196 = vadd.f32 0.0, %v7195
  %7197 = vmatmul.f32.gmra.mxu0 %v6905
  %v7198 = vpop.f32.mrf.mxu0
  %v7199 = vadd.f32 0.0, %v7198
  %7200 = vmatmul.f32.gmra.mxu0 %v6914
  %v7201 = vpop.f32.mrf.mxu0
  %v7202 = vadd.f32 0.0, %v7201
  %7203 = vmatmul.f32.gmra.mxu0 %v6923
  %v7204 = vpop.f32.mrf.mxu0
  %v7205 = vadd.f32 0.0, %v7204
  %7206 = vmatmul.f32.gmra.mxu0 %v6932
  %v7207 = vpop.f32.mrf.mxu0
  %v7208 = vadd.f32 0.0, %v7207
  %7209 = vmatmul.f32.gmra.mxu0 %v6941
  %v7210 = vpop.f32.mrf.mxu0
  %v7211 = vadd.f32 0.0, %v7210
  %7212 = vmatmul.f32.gmra.mxu0 %v6950
  %v7213 = vpop.f32.mrf.mxu0
  %v7214 = vadd.f32 0.0, %v7213
  %7215 = vmatmul.f32.gmra.mxu0 %v6959
  %v7216 = vpop.f32.mrf.mxu0
  %v7217 = vadd.f32 0.0, %v7216
  %7218 = vmatmul.f32.gmra.mxu0 %v6968
  %v7219 = vpop.f32.mrf.mxu0
  %v7220 = vadd.f32 0.0, %v7219
  %7221 = vmatmul.f32.gmra.mxu0 %v6977
  %v7222 = vpop.f32.mrf.mxu0
  %v7223 = vadd.f32 0.0, %v7222
  %7224 = vmatmul.f32.gmra.mxu0 %v6986
  %v7225 = vpop.f32.mrf.mxu0
  %v7226 = vadd.f32 0.0, %v7225
  %7227 = vmatmul.f32.gmra.mxu0 %v6995
  %v7228 = vpop.f32.mrf.mxu0
  %v7229 = vadd.f32 0.0, %v7228
  %7230 = vmatmul.f32.gmra.mxu0 %v7004
  %v7231 = vpop.f32.mrf.mxu0
  %v7232 = vadd.f32 0.0, %v7231
  %7233 = vmatmul.f32.gmra.mxu0 %v7013
  %v7234 = vpop.f32.mrf.mxu0
  %v7235 = vadd.f32 0.0, %v7234
  %7236 = vmatmul.f32.gmra.mxu0 %v7022
  %v7237 = vpop.f32.mrf.mxu0
  %v7238 = vadd.f32 0.0, %v7237
  %7239 = vdwg.mxu0
  %7240 = vmatpush.msra.mxu0 %v6342
  %7241 = vmatpush.msra.mxu0 %v6341
  %7242 = vmatpush.msra.mxu0 %v6340
  %7243 = vmatpush.msra.mxu0 %v6339
  %7244 = vmatpush.msra.mxu0 %v6338
  %7245 = vmatpush.msra.mxu0 %v6337
  %7246 = vmatpush.msra.mxu0 %v6336
  %7247 = vmatpush.msra.mxu0 %v6335
  %7248 = vmatpush.msra.mxu0 %v6334
  %7249 = vmatpush.msra.mxu0 %v6333
  %7250 = vmatpush.msra.mxu0 %v6332
  %7251 = vmatpush.msra.mxu0 %v6331
  %7252 = vmatpush.msra.mxu0 %v6330
  %7253 = vmatpush.msra.mxu0 %v6329
  %7254 = vmatpush.msra.mxu0 %v6328
  %7255 = vmatpush.msra.mxu0 %v6327
  %7256 = vmatmul.f32.gmra.mxu0 %v6456
  %v7257 = vpop.f32.mrf.mxu0
  %v7258 = vadd.f32 %v7049, %v7257
  %7259 = vmatmul.f32.gmra.mxu0 %v6465
  %v7260 = vpop.f32.mrf.mxu0
  %v7261 = vadd.f32 %v7052, %v7260
  %7262 = vmatmul.f32.gmra.mxu0 %v6474
  %v7263 = vpop.f32.mrf.mxu0
  %v7264 = vadd.f32 %v7055, %v7263
  %7265 = vmatmul.f32.gmra.mxu0 %v6483
  %v7266 = vpop.f32.mrf.mxu0
  %v7267 = vadd.f32 %v7058, %v7266
  %7268 = vmatmul.f32.gmra.mxu0 %v6492
  %v7269 = vpop.f32.mrf.mxu0
  %v7270 = vadd.f32 %v7061, %v7269
  %7271 = vmatmul.f32.gmra.mxu0 %v6501
  %v7272 = vpop.f32.mrf.mxu0
  %v7273 = vadd.f32 %v7064, %v7272
  %7274 = vmatmul.f32.gmra.mxu0 %v6510
  %v7275 = vpop.f32.mrf.mxu0
  %v7276 = vadd.f32 %v7067, %v7275
  %7277 = vmatmul.f32.gmra.mxu0 %v6519
  %v7278 = vpop.f32.mrf.mxu0
  %v7279 = vadd.f32 %v7070, %v7278
  %7280 = vmatmul.f32.gmra.mxu0 %v6528
  %v7281 = vpop.f32.mrf.mxu0
  %v7282 = vadd.f32 %v7073, %v7281
  %7283 = vmatmul.f32.gmra.mxu0 %v6537
  %v7284 = vpop.f32.mrf.mxu0
  %v7285 = vadd.f32 %v7076, %v7284
  %7286 = vmatmul.f32.gmra.mxu0 %v6546
  %v7287 = vpop.f32.mrf.mxu0
  %v7288 = vadd.f32 %v7079, %v7287
  %7289 = vmatmul.f32.gmra.mxu0 %v6555
  %v7290 = vpop.f32.mrf.mxu0
  %v7291 = vadd.f32 %v7082, %v7290
  %7292 = vmatmul.f32.gmra.mxu0 %v6564
  %v7293 = vpop.f32.mrf.mxu0
  %v7294 = vadd.f32 %v7085, %v7293
  %7295 = vmatmul.f32.gmra.mxu0 %v6573
  %v7296 = vpop.f32.mrf.mxu0
  %v7297 = vadd.f32 %v7088, %v7296
  %7298 = vmatmul.f32.gmra.mxu0 %v6582
  %v7299 = vpop.f32.mrf.mxu0
  %v7300 = vadd.f32 %v7091, %v7299
  %7301 = vmatmul.f32.gmra.mxu0 %v6591
  %v7302 = vpop.f32.mrf.mxu0
  %v7303 = vadd.f32 %v7094, %v7302
  %7304 = vmatmul.f32.gmra.mxu0 %v6600
  %v7305 = vpop.f32.mrf.mxu0
  %v7306 = vadd.f32 %v7097, %v7305
  %7307 = vmatmul.f32.gmra.mxu0 %v6609
  %v7308 = vpop.f32.mrf.mxu0
  %v7309 = vadd.f32 %v7100, %v7308
  %7310 = vmatmul.f32.gmra.mxu0 %v6618
  %v7311 = vpop.f32.mrf.mxu0
  %v7312 = vadd.f32 %v7103, %v7311
  %7313 = vmatmul.f32.gmra.mxu0 %v6627
  %v7314 = vpop.f32.mrf.mxu0
  %v7315 = vadd.f32 %v7106, %v7314
  %7316 = vmatmul.f32.gmra.mxu0 %v6636
  %v7317 = vpop.f32.mrf.mxu0
  %v7318 = vadd.f32 %v7109, %v7317
  %7319 = vmatmul.f32.gmra.mxu0 %v6645
  %v7320 = vpop.f32.mrf.mxu0
  %v7321 = vadd.f32 %v7112, %v7320
  %7322 = vmatmul.f32.gmra.mxu0 %v6654
  %v7323 = vpop.f32.mrf.mxu0
  %v7324 = vadd.f32 %v7115, %v7323
  %7325 = vmatmul.f32.gmra.mxu0 %v6663
  %v7326 = vpop.f32.mrf.mxu0
  %v7327 = vadd.f32 %v7118, %v7326
  %7328 = vmatmul.f32.gmra.mxu0 %v6672
  %v7329 = vpop.f32.mrf.mxu0
  %v7330 = vadd.f32 %v7121, %v7329
  %7331 = vmatmul.f32.gmra.mxu0 %v6681
  %v7332 = vpop.f32.mrf.mxu0
  %v7333 = vadd.f32 %v7124, %v7332
  %7334 = vmatmul.f32.gmra.mxu0 %v6690
  %v7335 = vpop.f32.mrf.mxu0
  %v7336 = vadd.f32 %v7127, %v7335
  %7337 = vmatmul.f32.gmra.mxu0 %v6699
  %v7338 = vpop.f32.mrf.mxu0
  %v7339 = vadd.f32 %v7130, %v7338
  %7340 = vmatmul.f32.gmra.mxu0 %v6708
  %v7341 = vpop.f32.mrf.mxu0
  %v7342 = vadd.f32 %v7133, %v7341
  %7343 = vmatmul.f32.gmra.mxu0 %v6717
  %v7344 = vpop.f32.mrf.mxu0
  %v7345 = vadd.f32 %v7136, %v7344
  %7346 = vmatmul.f32.gmra.mxu0 %v6726
  %v7347 = vpop.f32.mrf.mxu0
  %v7348 = vadd.f32 %v7139, %v7347
  %7349 = vmatmul.f32.gmra.mxu0 %v6735
  %v7350 = vpop.f32.mrf.mxu0
  %v7351 = vadd.f32 %v7142, %v7350
  %7352 = vmatmul.f32.gmra.mxu0 %v6744
  %v7353 = vpop.f32.mrf.mxu0
  %v7354 = vadd.f32 %v7145, %v7353
  %7355 = vmatmul.f32.gmra.mxu0 %v6753
  %v7356 = vpop.f32.mrf.mxu0
  %v7357 = vadd.f32 %v7148, %v7356
  %7358 = vmatmul.f32.gmra.mxu0 %v6762
  %v7359 = vpop.f32.mrf.mxu0
  %v7360 = vadd.f32 %v7151, %v7359
  %7361 = vmatmul.f32.gmra.mxu0 %v6771
  %v7362 = vpop.f32.mrf.mxu0
  %v7363 = vadd.f32 %v7154, %v7362
  %7364 = vmatmul.f32.gmra.mxu0 %v6780
  %v7365 = vpop.f32.mrf.mxu0
  %v7366 = vadd.f32 %v7157, %v7365
  %7367 = vmatmul.f32.gmra.mxu0 %v6789
  %v7368 = vpop.f32.mrf.mxu0
  %v7369 = vadd.f32 %v7160, %v7368
  %7370 = vmatmul.f32.gmra.mxu0 %v6798
  %v7371 = vpop.f32.mrf.mxu0
  %v7372 = vadd.f32 %v7163, %v7371
  %7373 = vmatmul.f32.gmra.mxu0 %v6807
  %v7374 = vpop.f32.mrf.mxu0
  %v7375 = vadd.f32 %v7166, %v7374
  %7376 = vmatmul.f32.gmra.mxu0 %v6816
  %v7377 = vpop.f32.mrf.mxu0
  %v7378 = vadd.f32 %v7169, %v7377
  %7379 = vmatmul.f32.gmra.mxu0 %v6825
  %v7380 = vpop.f32.mrf.mxu0
  %v7381 = vadd.f32 %v7172, %v7380
  %7382 = vmatmul.f32.gmra.mxu0 %v6834
  %v7383 = vpop.f32.mrf.mxu0
  %v7384 = vadd.f32 %v7175, %v7383
  %7385 = vmatmul.f32.gmra.mxu0 %v6843
  %v7386 = vpop.f32.mrf.mxu0
  %v7387 = vadd.f32 %v7178, %v7386
  %7388 = vmatmul.f32.gmra.mxu0 %v6852
  %v7389 = vpop.f32.mrf.mxu0
  %v7390 = vadd.f32 %v7181, %v7389
  %7391 = vmatmul.f32.gmra.mxu0 %v6861
  %v7392 = vpop.f32.mrf.mxu0
  %v7393 = vadd.f32 %v7184, %v7392
  %7394 = vmatmul.f32.gmra.mxu0 %v6870
  %v7395 = vpop.f32.mrf.mxu0
  %v7396 = vadd.f32 %v7187, %v7395
  %7397 = vmatmul.f32.gmra.mxu0 %v6879
  %v7398 = vpop.f32.mrf.mxu0
  %v7399 = vadd.f32 %v7190, %v7398
  %7400 = vmatmul.f32.gmra.mxu0 %v6888
  %v7401 = vpop.f32.mrf.mxu0
  %v7402 = vadd.f32 %v7193, %v7401
  %7403 = vmatmul.f32.gmra.mxu0 %v6897
  %v7404 = vpop.f32.mrf.mxu0
  %v7405 = vadd.f32 %v7196, %v7404
  %7406 = vmatmul.f32.gmra.mxu0 %v6906
  %v7407 = vpop.f32.mrf.mxu0
  %v7408 = vadd.f32 %v7199, %v7407
  %7409 = vmatmul.f32.gmra.mxu0 %v6915
  %v7410 = vpop.f32.mrf.mxu0
  %v7411 = vadd.f32 %v7202, %v7410
  %7412 = vmatmul.f32.gmra.mxu0 %v6924
  %v7413 = vpop.f32.mrf.mxu0
  %v7414 = vadd.f32 %v7205, %v7413
  %7415 = vmatmul.f32.gmra.mxu0 %v6933
  %v7416 = vpop.f32.mrf.mxu0
  %v7417 = vadd.f32 %v7208, %v7416
  %7418 = vmatmul.f32.gmra.mxu0 %v6942
  %v7419 = vpop.f32.mrf.mxu0
  %v7420 = vadd.f32 %v7211, %v7419
  %7421 = vmatmul.f32.gmra.mxu0 %v6951
  %v7422 = vpop.f32.mrf.mxu0
  %v7423 = vadd.f32 %v7214, %v7422
  %7424 = vmatmul.f32.gmra.mxu0 %v6960
  %v7425 = vpop.f32.mrf.mxu0
  %v7426 = vadd.f32 %v7217, %v7425
  %7427 = vmatmul.f32.gmra.mxu0 %v6969
  %v7428 = vpop.f32.mrf.mxu0
  %v7429 = vadd.f32 %v7220, %v7428
  %7430 = vmatmul.f32.gmra.mxu0 %v6978
  %v7431 = vpop.f32.mrf.mxu0
  %v7432 = vadd.f32 %v7223, %v7431
  %7433 = vmatmul.f32.gmra.mxu0 %v6987
  %v7434 = vpop.f32.mrf.mxu0
  %v7435 = vadd.f32 %v7226, %v7434
  %7436 = vmatmul.f32.gmra.mxu0 %v6996
  %v7437 = vpop.f32.mrf.mxu0
  %v7438 = vadd.f32 %v7229, %v7437
  %7439 = vmatmul.f32.gmra.mxu0 %v7005
  %v7440 = vpop.f32.mrf.mxu0
  %v7441 = vadd.f32 %v7232, %v7440
  %7442 = vmatmul.f32.gmra.mxu0 %v7014
  %v7443 = vpop.f32.mrf.mxu0
  %v7444 = vadd.f32 %v7235, %v7443
  %7445 = vmatmul.f32.gmra.mxu0 %v7023
  %v7446 = vpop.f32.mrf.mxu0
  %v7447 = vadd.f32 %v7238, %v7446
  %7448 = vdwg.mxu0
  %7449 = vmatpush.msra.mxu0 %v6358
  %7450 = vmatpush.msra.mxu0 %v6357
  %7451 = vmatpush.msra.mxu0 %v6356
  %7452 = vmatpush.msra.mxu0 %v6355
  %7453 = vmatpush.msra.mxu0 %v6354
  %7454 = vmatpush.msra.mxu0 %v6353
  %7455 = vmatpush.msra.mxu0 %v6352
  %7456 = vmatpush.msra.mxu0 %v6351
  %7457 = vmatpush.msra.mxu0 %v6350
  %7458 = vmatpush.msra.mxu0 %v6349
  %7459 = vmatpush.msra.mxu0 %v6348
  %7460 = vmatpush.msra.mxu0 %v6347
  %7461 = vmatpush.msra.mxu0 %v6346
  %7462 = vmatpush.msra.mxu0 %v6345
  %7463 = vmatpush.msra.mxu0 %v6344
  %7464 = vmatpush.msra.mxu0 %v6343
  %7465 = vmatmul.f32.gmra.mxu0 %v6457
  %v7466 = vpop.f32.mrf.mxu0
  %v7467 = vadd.f32 %v7258, %v7466
  %7468 = vmatmul.f32.gmra.mxu0 %v6466
  %v7469 = vpop.f32.mrf.mxu0
  %v7470 = vadd.f32 %v7261, %v7469
  %7471 = vmatmul.f32.gmra.mxu0 %v6475
  %v7472 = vpop.f32.mrf.mxu0
  %v7473 = vadd.f32 %v7264, %v7472
  %7474 = vmatmul.f32.gmra.mxu0 %v6484
  %v7475 = vpop.f32.mrf.mxu0
  %v7476 = vadd.f32 %v7267, %v7475
  %7477 = vmatmul.f32.gmra.mxu0 %v6493
  %v7478 = vpop.f32.mrf.mxu0
  %v7479 = vadd.f32 %v7270, %v7478
  %7480 = vmatmul.f32.gmra.mxu0 %v6502
  %v7481 = vpop.f32.mrf.mxu0
  %v7482 = vadd.f32 %v7273, %v7481
  %7483 = vmatmul.f32.gmra.mxu0 %v6511
  %v7484 = vpop.f32.mrf.mxu0
  %v7485 = vadd.f32 %v7276, %v7484
  %7486 = vmatmul.f32.gmra.mxu0 %v6520
  %v7487 = vpop.f32.mrf.mxu0
  %v7488 = vadd.f32 %v7279, %v7487
  %7489 = vmatmul.f32.gmra.mxu0 %v6529
  %v7490 = vpop.f32.mrf.mxu0
  %v7491 = vadd.f32 %v7282, %v7490
  %7492 = vmatmul.f32.gmra.mxu0 %v6538
  %v7493 = vpop.f32.mrf.mxu0
  %v7494 = vadd.f32 %v7285, %v7493
  %7495 = vmatmul.f32.gmra.mxu0 %v6547
  %v7496 = vpop.f32.mrf.mxu0
  %v7497 = vadd.f32 %v7288, %v7496
  %7498 = vmatmul.f32.gmra.mxu0 %v6556
  %v7499 = vpop.f32.mrf.mxu0
  %v7500 = vadd.f32 %v7291, %v7499
  %7501 = vmatmul.f32.gmra.mxu0 %v6565
  %v7502 = vpop.f32.mrf.mxu0
  %v7503 = vadd.f32 %v7294, %v7502
  %7504 = vmatmul.f32.gmra.mxu0 %v6574
  %v7505 = vpop.f32.mrf.mxu0
  %v7506 = vadd.f32 %v7297, %v7505
  %7507 = vmatmul.f32.gmra.mxu0 %v6583
  %v7508 = vpop.f32.mrf.mxu0
  %v7509 = vadd.f32 %v7300, %v7508
  %7510 = vmatmul.f32.gmra.mxu0 %v6592
  %v7511 = vpop.f32.mrf.mxu0
  %v7512 = vadd.f32 %v7303, %v7511
  %7513 = vmatmul.f32.gmra.mxu0 %v6601
  %v7514 = vpop.f32.mrf.mxu0
  %v7515 = vadd.f32 %v7306, %v7514
  %7516 = vmatmul.f32.gmra.mxu0 %v6610
  %v7517 = vpop.f32.mrf.mxu0
  %v7518 = vadd.f32 %v7309, %v7517
  %7519 = vmatmul.f32.gmra.mxu0 %v6619
  %v7520 = vpop.f32.mrf.mxu0
  %v7521 = vadd.f32 %v7312, %v7520
  %7522 = vmatmul.f32.gmra.mxu0 %v6628
  %v7523 = vpop.f32.mrf.mxu0
  %v7524 = vadd.f32 %v7315, %v7523
  %7525 = vmatmul.f32.gmra.mxu0 %v6637
  %v7526 = vpop.f32.mrf.mxu0
  %v7527 = vadd.f32 %v7318, %v7526
  %7528 = vmatmul.f32.gmra.mxu0 %v6646
  %v7529 = vpop.f32.mrf.mxu0
  %v7530 = vadd.f32 %v7321, %v7529
  %7531 = vmatmul.f32.gmra.mxu0 %v6655
  %v7532 = vpop.f32.mrf.mxu0
  %v7533 = vadd.f32 %v7324, %v7532
  %7534 = vmatmul.f32.gmra.mxu0 %v6664
  %v7535 = vpop.f32.mrf.mxu0
  %v7536 = vadd.f32 %v7327, %v7535
  %7537 = vmatmul.f32.gmra.mxu0 %v6673
  %v7538 = vpop.f32.mrf.mxu0
  %v7539 = vadd.f32 %v7330, %v7538
  %7540 = vmatmul.f32.gmra.mxu0 %v6682
  %v7541 = vpop.f32.mrf.mxu0
  %v7542 = vadd.f32 %v7333, %v7541
  %7543 = vmatmul.f32.gmra.mxu0 %v6691
  %v7544 = vpop.f32.mrf.mxu0
  %v7545 = vadd.f32 %v7336, %v7544
  %7546 = vmatmul.f32.gmra.mxu0 %v6700
  %v7547 = vpop.f32.mrf.mxu0
  %v7548 = vadd.f32 %v7339, %v7547
  %7549 = vmatmul.f32.gmra.mxu0 %v6709
  %v7550 = vpop.f32.mrf.mxu0
  %v7551 = vadd.f32 %v7342, %v7550
  %7552 = vmatmul.f32.gmra.mxu0 %v6718
  %v7553 = vpop.f32.mrf.mxu0
  %v7554 = vadd.f32 %v7345, %v7553
  %7555 = vmatmul.f32.gmra.mxu0 %v6727
  %v7556 = vpop.f32.mrf.mxu0
  %v7557 = vadd.f32 %v7348, %v7556
  %7558 = vmatmul.f32.gmra.mxu0 %v6736
  %v7559 = vpop.f32.mrf.mxu0
  %v7560 = vadd.f32 %v7351, %v7559
  %7561 = vmatmul.f32.gmra.mxu0 %v6745
  %v7562 = vpop.f32.mrf.mxu0
  %v7563 = vadd.f32 %v7354, %v7562
  %7564 = vmatmul.f32.gmra.mxu0 %v6754
  %v7565 = vpop.f32.mrf.mxu0
  %v7566 = vadd.f32 %v7357, %v7565
  %7567 = vmatmul.f32.gmra.mxu0 %v6763
  %v7568 = vpop.f32.mrf.mxu0
  %v7569 = vadd.f32 %v7360, %v7568
  %7570 = vmatmul.f32.gmra.mxu0 %v6772
  %v7571 = vpop.f32.mrf.mxu0
  %v7572 = vadd.f32 %v7363, %v7571
  %7573 = vmatmul.f32.gmra.mxu0 %v6781
  %v7574 = vpop.f32.mrf.mxu0
  %v7575 = vadd.f32 %v7366, %v7574
  %7576 = vmatmul.f32.gmra.mxu0 %v6790
  %v7577 = vpop.f32.mrf.mxu0
  %v7578 = vadd.f32 %v7369, %v7577
  %7579 = vmatmul.f32.gmra.mxu0 %v6799
  %v7580 = vpop.f32.mrf.mxu0
  %v7581 = vadd.f32 %v7372, %v7580
  %7582 = vmatmul.f32.gmra.mxu0 %v6808
  %v7583 = vpop.f32.mrf.mxu0
  %v7584 = vadd.f32 %v7375, %v7583
  %7585 = vmatmul.f32.gmra.mxu0 %v6817
  %v7586 = vpop.f32.mrf.mxu0
  %v7587 = vadd.f32 %v7378, %v7586
  %7588 = vmatmul.f32.gmra.mxu0 %v6826
  %v7589 = vpop.f32.mrf.mxu0
  %v7590 = vadd.f32 %v7381, %v7589
  %7591 = vmatmul.f32.gmra.mxu0 %v6835
  %v7592 = vpop.f32.mrf.mxu0
  %v7593 = vadd.f32 %v7384, %v7592
  %7594 = vmatmul.f32.gmra.mxu0 %v6844
  %v7595 = vpop.f32.mrf.mxu0
  %v7596 = vadd.f32 %v7387, %v7595
  %7597 = vmatmul.f32.gmra.mxu0 %v6853
  %v7598 = vpop.f32.mrf.mxu0
  %v7599 = vadd.f32 %v7390, %v7598
  %7600 = vmatmul.f32.gmra.mxu0 %v6862
  %v7601 = vpop.f32.mrf.mxu0
  %v7602 = vadd.f32 %v7393, %v7601
  %7603 = vmatmul.f32.gmra.mxu0 %v6871
  %v7604 = vpop.f32.mrf.mxu0
  %v7605 = vadd.f32 %v7396, %v7604
  %7606 = vmatmul.f32.gmra.mxu0 %v6880
  %v7607 = vpop.f32.mrf.mxu0
  %v7608 = vadd.f32 %v7399, %v7607
  %7609 = vmatmul.f32.gmra.mxu0 %v6889
  %v7610 = vpop.f32.mrf.mxu0
  %v7611 = vadd.f32 %v7402, %v7610
  %7612 = vmatmul.f32.gmra.mxu0 %v6898
  %v7613 = vpop.f32.mrf.mxu0
  %v7614 = vadd.f32 %v7405, %v7613
  %7615 = vmatmul.f32.gmra.mxu0 %v6907
  %v7616 = vpop.f32.mrf.mxu0
  %v7617 = vadd.f32 %v7408, %v7616
  %7618 = vmatmul.f32.gmra.mxu0 %v6916
  %v7619 = vpop.f32.mrf.mxu0
  %v7620 = vadd.f32 %v7411, %v7619
  %7621 = vmatmul.f32.gmra.mxu0 %v6925
  %v7622 = vpop.f32.mrf.mxu0
  %v7623 = vadd.f32 %v7414, %v7622
  %7624 = vmatmul.f32.gmra.mxu0 %v6934
  %v7625 = vpop.f32.mrf.mxu0
  %v7626 = vadd.f32 %v7417, %v7625
  %7627 = vmatmul.f32.gmra.mxu0 %v6943
  %v7628 = vpop.f32.mrf.mxu0
  %v7629 = vadd.f32 %v7420, %v7628
  %7630 = vmatmul.f32.gmra.mxu0 %v6952
  %v7631 = vpop.f32.mrf.mxu0
  %v7632 = vadd.f32 %v7423, %v7631
  %7633 = vmatmul.f32.gmra.mxu0 %v6961
  %v7634 = vpop.f32.mrf.mxu0
  %v7635 = vadd.f32 %v7426, %v7634
  %7636 = vmatmul.f32.gmra.mxu0 %v6970
  %v7637 = vpop.f32.mrf.mxu0
  %v7638 = vadd.f32 %v7429, %v7637
  %7639 = vmatmul.f32.gmra.mxu0 %v6979
  %v7640 = vpop.f32.mrf.mxu0
  %v7641 = vadd.f32 %v7432, %v7640
  %7642 = vmatmul.f32.gmra.mxu0 %v6988
  %v7643 = vpop.f32.mrf.mxu0
  %v7644 = vadd.f32 %v7435, %v7643
  %7645 = vmatmul.f32.gmra.mxu0 %v6997
  %v7646 = vpop.f32.mrf.mxu0
  %v7647 = vadd.f32 %v7438, %v7646
  %7648 = vmatmul.f32.gmra.mxu0 %v7006
  %v7649 = vpop.f32.mrf.mxu0
  %v7650 = vadd.f32 %v7441, %v7649
  %7651 = vmatmul.f32.gmra.mxu0 %v7015
  %v7652 = vpop.f32.mrf.mxu0
  %v7653 = vadd.f32 %v7444, %v7652
  %7654 = vmatmul.f32.gmra.mxu0 %v7024
  %v7655 = vpop.f32.mrf.mxu0
  %v7656 = vadd.f32 %v7447, %v7655
  %7657 = vdwg.mxu0
  %7658 = vmatpush.msra.mxu0 %v6374
  %7659 = vmatpush.msra.mxu0 %v6373
  %7660 = vmatpush.msra.mxu0 %v6372
  %7661 = vmatpush.msra.mxu0 %v6371
  %7662 = vmatpush.msra.mxu0 %v6370
  %7663 = vmatpush.msra.mxu0 %v6369
  %7664 = vmatpush.msra.mxu0 %v6368
  %7665 = vmatpush.msra.mxu0 %v6367
  %7666 = vmatpush.msra.mxu0 %v6366
  %7667 = vmatpush.msra.mxu0 %v6365
  %7668 = vmatpush.msra.mxu0 %v6364
  %7669 = vmatpush.msra.mxu0 %v6363
  %7670 = vmatpush.msra.mxu0 %v6362
  %7671 = vmatpush.msra.mxu0 %v6361
  %7672 = vmatpush.msra.mxu0 %v6360
  %7673 = vmatpush.msra.mxu0 %v6359
  %7674 = vmatmul.f32.gmra.mxu0 %v6458
  %v7675 = vpop.f32.mrf.mxu0
  %v7676 = vadd.f32 %v7467, %v7675
  %7677 = vmatmul.f32.gmra.mxu0 %v6467
  %v7678 = vpop.f32.mrf.mxu0
  %v7679 = vadd.f32 %v7470, %v7678
  %7680 = vmatmul.f32.gmra.mxu0 %v6476
  %v7681 = vpop.f32.mrf.mxu0
  %v7682 = vadd.f32 %v7473, %v7681
  %7683 = vmatmul.f32.gmra.mxu0 %v6485
  %v7684 = vpop.f32.mrf.mxu0
  %v7685 = vadd.f32 %v7476, %v7684
  %7686 = vmatmul.f32.gmra.mxu0 %v6494
  %v7687 = vpop.f32.mrf.mxu0
  %v7688 = vadd.f32 %v7479, %v7687
  %7689 = vmatmul.f32.gmra.mxu0 %v6503
  %v7690 = vpop.f32.mrf.mxu0
  %v7691 = vadd.f32 %v7482, %v7690
  %7692 = vmatmul.f32.gmra.mxu0 %v6512
  %v7693 = vpop.f32.mrf.mxu0
  %v7694 = vadd.f32 %v7485, %v7693
  %7695 = vmatmul.f32.gmra.mxu0 %v6521
  %v7696 = vpop.f32.mrf.mxu0
  %v7697 = vadd.f32 %v7488, %v7696
  %7698 = vmatmul.f32.gmra.mxu0 %v6530
  %v7699 = vpop.f32.mrf.mxu0
  %v7700 = vadd.f32 %v7491, %v7699
  %7701 = vmatmul.f32.gmra.mxu0 %v6539
  %v7702 = vpop.f32.mrf.mxu0
  %v7703 = vadd.f32 %v7494, %v7702
  %7704 = vmatmul.f32.gmra.mxu0 %v6548
  %v7705 = vpop.f32.mrf.mxu0
  %v7706 = vadd.f32 %v7497, %v7705
  %7707 = vmatmul.f32.gmra.mxu0 %v6557
  %v7708 = vpop.f32.mrf.mxu0
  %v7709 = vadd.f32 %v7500, %v7708
  %7710 = vmatmul.f32.gmra.mxu0 %v6566
  %v7711 = vpop.f32.mrf.mxu0
  %v7712 = vadd.f32 %v7503, %v7711
  %7713 = vmatmul.f32.gmra.mxu0 %v6575
  %v7714 = vpop.f32.mrf.mxu0
  %v7715 = vadd.f32 %v7506, %v7714
  %7716 = vmatmul.f32.gmra.mxu0 %v6584
  %v7717 = vpop.f32.mrf.mxu0
  %v7718 = vadd.f32 %v7509, %v7717
  %7719 = vmatmul.f32.gmra.mxu0 %v6593
  %v7720 = vpop.f32.mrf.mxu0
  %v7721 = vadd.f32 %v7512, %v7720
  %7722 = vmatmul.f32.gmra.mxu0 %v6602
  %v7723 = vpop.f32.mrf.mxu0
  %v7724 = vadd.f32 %v7515, %v7723
  %7725 = vmatmul.f32.gmra.mxu0 %v6611
  %v7726 = vpop.f32.mrf.mxu0
  %v7727 = vadd.f32 %v7518, %v7726
  %7728 = vmatmul.f32.gmra.mxu0 %v6620
  %v7729 = vpop.f32.mrf.mxu0
  %v7730 = vadd.f32 %v7521, %v7729
  %7731 = vmatmul.f32.gmra.mxu0 %v6629
  %v7732 = vpop.f32.mrf.mxu0
  %v7733 = vadd.f32 %v7524, %v7732
  %7734 = vmatmul.f32.gmra.mxu0 %v6638
  %v7735 = vpop.f32.mrf.mxu0
  %v7736 = vadd.f32 %v7527, %v7735
  %7737 = vmatmul.f32.gmra.mxu0 %v6647
  %v7738 = vpop.f32.mrf.mxu0
  %v7739 = vadd.f32 %v7530, %v7738
  %7740 = vmatmul.f32.gmra.mxu0 %v6656
  %v7741 = vpop.f32.mrf.mxu0
  %v7742 = vadd.f32 %v7533, %v7741
  %7743 = vmatmul.f32.gmra.mxu0 %v6665
  %v7744 = vpop.f32.mrf.mxu0
  %v7745 = vadd.f32 %v7536, %v7744
  %7746 = vmatmul.f32.gmra.mxu0 %v6674
  %v7747 = vpop.f32.mrf.mxu0
  %v7748 = vadd.f32 %v7539, %v7747
  %7749 = vmatmul.f32.gmra.mxu0 %v6683
  %v7750 = vpop.f32.mrf.mxu0
  %v7751 = vadd.f32 %v7542, %v7750
  %7752 = vmatmul.f32.gmra.mxu0 %v6692
  %v7753 = vpop.f32.mrf.mxu0
  %v7754 = vadd.f32 %v7545, %v7753
  %7755 = vmatmul.f32.gmra.mxu0 %v6701
  %v7756 = vpop.f32.mrf.mxu0
  %v7757 = vadd.f32 %v7548, %v7756
  %7758 = vmatmul.f32.gmra.mxu0 %v6710
  %v7759 = vpop.f32.mrf.mxu0
  %v7760 = vadd.f32 %v7551, %v7759
  %7761 = vmatmul.f32.gmra.mxu0 %v6719
  %v7762 = vpop.f32.mrf.mxu0
  %v7763 = vadd.f32 %v7554, %v7762
  %7764 = vmatmul.f32.gmra.mxu0 %v6728
  %v7765 = vpop.f32.mrf.mxu0
  %v7766 = vadd.f32 %v7557, %v7765
  %7767 = vmatmul.f32.gmra.mxu0 %v6737
  %v7768 = vpop.f32.mrf.mxu0
  %v7769 = vadd.f32 %v7560, %v7768
  %7770 = vmatmul.f32.gmra.mxu0 %v6746
  %v7771 = vpop.f32.mrf.mxu0
  %v7772 = vadd.f32 %v7563, %v7771
  %7773 = vmatmul.f32.gmra.mxu0 %v6755
  %v7774 = vpop.f32.mrf.mxu0
  %v7775 = vadd.f32 %v7566, %v7774
  %7776 = vmatmul.f32.gmra.mxu0 %v6764
  %v7777 = vpop.f32.mrf.mxu0
  %v7778 = vadd.f32 %v7569, %v7777
  %7779 = vmatmul.f32.gmra.mxu0 %v6773
  %v7780 = vpop.f32.mrf.mxu0
  %v7781 = vadd.f32 %v7572, %v7780
  %7782 = vmatmul.f32.gmra.mxu0 %v6782
  %v7783 = vpop.f32.mrf.mxu0
  %v7784 = vadd.f32 %v7575, %v7783
  %7785 = vmatmul.f32.gmra.mxu0 %v6791
  %v7786 = vpop.f32.mrf.mxu0
  %v7787 = vadd.f32 %v7578, %v7786
  %7788 = vmatmul.f32.gmra.mxu0 %v6800
  %v7789 = vpop.f32.mrf.mxu0
  %v7790 = vadd.f32 %v7581, %v7789
  %7791 = vmatmul.f32.gmra.mxu0 %v6809
  %v7792 = vpop.f32.mrf.mxu0
  %v7793 = vadd.f32 %v7584, %v7792
  %7794 = vmatmul.f32.gmra.mxu0 %v6818
  %v7795 = vpop.f32.mrf.mxu0
  %v7796 = vadd.f32 %v7587, %v7795
  %7797 = vmatmul.f32.gmra.mxu0 %v6827
  %v7798 = vpop.f32.mrf.mxu0
  %v7799 = vadd.f32 %v7590, %v7798
  %7800 = vmatmul.f32.gmra.mxu0 %v6836
  %v7801 = vpop.f32.mrf.mxu0
  %v7802 = vadd.f32 %v7593, %v7801
  %7803 = vmatmul.f32.gmra.mxu0 %v6845
  %v7804 = vpop.f32.mrf.mxu0
  %v7805 = vadd.f32 %v7596, %v7804
  %7806 = vmatmul.f32.gmra.mxu0 %v6854
  %v7807 = vpop.f32.mrf.mxu0
  %v7808 = vadd.f32 %v7599, %v7807
  %7809 = vmatmul.f32.gmra.mxu0 %v6863
  %v7810 = vpop.f32.mrf.mxu0
  %v7811 = vadd.f32 %v7602, %v7810
  %7812 = vmatmul.f32.gmra.mxu0 %v6872
  %v7813 = vpop.f32.mrf.mxu0
  %v7814 = vadd.f32 %v7605, %v7813
  %7815 = vmatmul.f32.gmra.mxu0 %v6881
  %v7816 = vpop.f32.mrf.mxu0
  %v7817 = vadd.f32 %v7608, %v7816
  %7818 = vmatmul.f32.gmra.mxu0 %v6890
  %v7819 = vpop.f32.mrf.mxu0
  %v7820 = vadd.f32 %v7611, %v7819
  %7821 = vmatmul.f32.gmra.mxu0 %v6899
  %v7822 = vpop.f32.mrf.mxu0
  %v7823 = vadd.f32 %v7614, %v7822
  %7824 = vmatmul.f32.gmra.mxu0 %v6908
  %v7825 = vpop.f32.mrf.mxu0
  %v7826 = vadd.f32 %v7617, %v7825
  %7827 = vmatmul.f32.gmra.mxu0 %v6917
  %v7828 = vpop.f32.mrf.mxu0
  %v7829 = vadd.f32 %v7620, %v7828
  %7830 = vmatmul.f32.gmra.mxu0 %v6926
  %v7831 = vpop.f32.mrf.mxu0
  %v7832 = vadd.f32 %v7623, %v7831
  %7833 = vmatmul.f32.gmra.mxu0 %v6935
  %v7834 = vpop.f32.mrf.mxu0
  %v7835 = vadd.f32 %v7626, %v7834
  %7836 = vmatmul.f32.gmra.mxu0 %v6944
  %v7837 = vpop.f32.mrf.mxu0
  %v7838 = vadd.f32 %v7629, %v7837
  %7839 = vmatmul.f32.gmra.mxu0 %v6953
  %v7840 = vpop.f32.mrf.mxu0
  %v7841 = vadd.f32 %v7632, %v7840
  %7842 = vmatmul.f32.gmra.mxu0 %v6962
  %v7843 = vpop.f32.mrf.mxu0
  %v7844 = vadd.f32 %v7635, %v7843
  %7845 = vmatmul.f32.gmra.mxu0 %v6971
  %v7846 = vpop.f32.mrf.mxu0
  %v7847 = vadd.f32 %v7638, %v7846
  %7848 = vmatmul.f32.gmra.mxu0 %v6980
  %v7849 = vpop.f32.mrf.mxu0
  %v7850 = vadd.f32 %v7641, %v7849
  %7851 = vmatmul.f32.gmra.mxu0 %v6989
  %v7852 = vpop.f32.mrf.mxu0
  %v7853 = vadd.f32 %v7644, %v7852
  %7854 = vmatmul.f32.gmra.mxu0 %v6998
  %v7855 = vpop.f32.mrf.mxu0
  %v7856 = vadd.f32 %v7647, %v7855
  %7857 = vmatmul.f32.gmra.mxu0 %v7007
  %v7858 = vpop.f32.mrf.mxu0
  %v7859 = vadd.f32 %v7650, %v7858
  %7860 = vmatmul.f32.gmra.mxu0 %v7016
  %v7861 = vpop.f32.mrf.mxu0
  %v7862 = vadd.f32 %v7653, %v7861
  %7863 = vmatmul.f32.gmra.mxu0 %v7025
  %v7864 = vpop.f32.mrf.mxu0
  %v7865 = vadd.f32 %v7656, %v7864
  %7866 = vdwg.mxu0
  %7867 = vmatpush.msra.mxu0 %v6390
  %7868 = vmatpush.msra.mxu0 %v6389
  %7869 = vmatpush.msra.mxu0 %v6388
  %7870 = vmatpush.msra.mxu0 %v6387
  %7871 = vmatpush.msra.mxu0 %v6386
  %7872 = vmatpush.msra.mxu0 %v6385
  %7873 = vmatpush.msra.mxu0 %v6384
  %7874 = vmatpush.msra.mxu0 %v6383
  %7875 = vmatpush.msra.mxu0 %v6382
  %7876 = vmatpush.msra.mxu0 %v6381
  %7877 = vmatpush.msra.mxu0 %v6380
  %7878 = vmatpush.msra.mxu0 %v6379
  %7879 = vmatpush.msra.mxu0 %v6378
  %7880 = vmatpush.msra.mxu0 %v6377
  %7881 = vmatpush.msra.mxu0 %v6376
  %7882 = vmatpush.msra.mxu0 %v6375
  %7883 = vmatmul.f32.gmra.mxu0 %v6459
  %v7884 = vpop.f32.mrf.mxu0
  %v7885 = vadd.f32 %v7676, %v7884
  %7886 = vmatmul.f32.gmra.mxu0 %v6468
  %v7887 = vpop.f32.mrf.mxu0
  %v7888 = vadd.f32 %v7679, %v7887
  %7889 = vmatmul.f32.gmra.mxu0 %v6477
  %v7890 = vpop.f32.mrf.mxu0
  %v7891 = vadd.f32 %v7682, %v7890
  %7892 = vmatmul.f32.gmra.mxu0 %v6486
  %v7893 = vpop.f32.mrf.mxu0
  %v7894 = vadd.f32 %v7685, %v7893
  %7895 = vmatmul.f32.gmra.mxu0 %v6495
  %v7896 = vpop.f32.mrf.mxu0
  %v7897 = vadd.f32 %v7688, %v7896
  %7898 = vmatmul.f32.gmra.mxu0 %v6504
  %v7899 = vpop.f32.mrf.mxu0
  %v7900 = vadd.f32 %v7691, %v7899
  %7901 = vmatmul.f32.gmra.mxu0 %v6513
  %v7902 = vpop.f32.mrf.mxu0
  %v7903 = vadd.f32 %v7694, %v7902
  %7904 = vmatmul.f32.gmra.mxu0 %v6522
  %v7905 = vpop.f32.mrf.mxu0
  %v7906 = vadd.f32 %v7697, %v7905
  %7907 = vmatmul.f32.gmra.mxu0 %v6531
  %v7908 = vpop.f32.mrf.mxu0
  %v7909 = vadd.f32 %v7700, %v7908
  %7910 = vmatmul.f32.gmra.mxu0 %v6540
  %v7911 = vpop.f32.mrf.mxu0
  %v7912 = vadd.f32 %v7703, %v7911
  %7913 = vmatmul.f32.gmra.mxu0 %v6549
  %v7914 = vpop.f32.mrf.mxu0
  %v7915 = vadd.f32 %v7706, %v7914
  %7916 = vmatmul.f32.gmra.mxu0 %v6558
  %v7917 = vpop.f32.mrf.mxu0
  %v7918 = vadd.f32 %v7709, %v7917
  %7919 = vmatmul.f32.gmra.mxu0 %v6567
  %v7920 = vpop.f32.mrf.mxu0
  %v7921 = vadd.f32 %v7712, %v7920
  %7922 = vmatmul.f32.gmra.mxu0 %v6576
  %v7923 = vpop.f32.mrf.mxu0
  %v7924 = vadd.f32 %v7715, %v7923
  %7925 = vmatmul.f32.gmra.mxu0 %v6585
  %v7926 = vpop.f32.mrf.mxu0
  %v7927 = vadd.f32 %v7718, %v7926
  %7928 = vmatmul.f32.gmra.mxu0 %v6594
  %v7929 = vpop.f32.mrf.mxu0
  %v7930 = vadd.f32 %v7721, %v7929
  %7931 = vmatmul.f32.gmra.mxu0 %v6603
  %v7932 = vpop.f32.mrf.mxu0
  %v7933 = vadd.f32 %v7724, %v7932
  %7934 = vmatmul.f32.gmra.mxu0 %v6612
  %v7935 = vpop.f32.mrf.mxu0
  %v7936 = vadd.f32 %v7727, %v7935
  %7937 = vmatmul.f32.gmra.mxu0 %v6621
  %v7938 = vpop.f32.mrf.mxu0
  %v7939 = vadd.f32 %v7730, %v7938
  %7940 = vmatmul.f32.gmra.mxu0 %v6630
  %v7941 = vpop.f32.mrf.mxu0
  %v7942 = vadd.f32 %v7733, %v7941
  %7943 = vmatmul.f32.gmra.mxu0 %v6639
  %v7944 = vpop.f32.mrf.mxu0
  %v7945 = vadd.f32 %v7736, %v7944
  %7946 = vmatmul.f32.gmra.mxu0 %v6648
  %v7947 = vpop.f32.mrf.mxu0
  %v7948 = vadd.f32 %v7739, %v7947
  %7949 = vmatmul.f32.gmra.mxu0 %v6657
  %v7950 = vpop.f32.mrf.mxu0
  %v7951 = vadd.f32 %v7742, %v7950
  %7952 = vmatmul.f32.gmra.mxu0 %v6666
  %v7953 = vpop.f32.mrf.mxu0
  %v7954 = vadd.f32 %v7745, %v7953
  %7955 = vmatmul.f32.gmra.mxu0 %v6675
  %v7956 = vpop.f32.mrf.mxu0
  %v7957 = vadd.f32 %v7748, %v7956
  %7958 = vmatmul.f32.gmra.mxu0 %v6684
  %v7959 = vpop.f32.mrf.mxu0
  %v7960 = vadd.f32 %v7751, %v7959
  %7961 = vmatmul.f32.gmra.mxu0 %v6693
  %v7962 = vpop.f32.mrf.mxu0
  %v7963 = vadd.f32 %v7754, %v7962
  %7964 = vmatmul.f32.gmra.mxu0 %v6702
  %v7965 = vpop.f32.mrf.mxu0
  %v7966 = vadd.f32 %v7757, %v7965
  %7967 = vmatmul.f32.gmra.mxu0 %v6711
  %v7968 = vpop.f32.mrf.mxu0
  %v7969 = vadd.f32 %v7760, %v7968
  %7970 = vmatmul.f32.gmra.mxu0 %v6720
  %v7971 = vpop.f32.mrf.mxu0
  %v7972 = vadd.f32 %v7763, %v7971
  %7973 = vmatmul.f32.gmra.mxu0 %v6729
  %v7974 = vpop.f32.mrf.mxu0
  %v7975 = vadd.f32 %v7766, %v7974
  %7976 = vmatmul.f32.gmra.mxu0 %v6738
  %v7977 = vpop.f32.mrf.mxu0
  %v7978 = vadd.f32 %v7769, %v7977
  %7979 = vmatmul.f32.gmra.mxu0 %v6747
  %v7980 = vpop.f32.mrf.mxu0
  %v7981 = vadd.f32 %v7772, %v7980
  %7982 = vmatmul.f32.gmra.mxu0 %v6756
  %v7983 = vpop.f32.mrf.mxu0
  %v7984 = vadd.f32 %v7775, %v7983
  %7985 = vmatmul.f32.gmra.mxu0 %v6765
  %v7986 = vpop.f32.mrf.mxu0
  %v7987 = vadd.f32 %v7778, %v7986
  %7988 = vmatmul.f32.gmra.mxu0 %v6774
  %v7989 = vpop.f32.mrf.mxu0
  %v7990 = vadd.f32 %v7781, %v7989
  %7991 = vmatmul.f32.gmra.mxu0 %v6783
  %v7992 = vpop.f32.mrf.mxu0
  %v7993 = vadd.f32 %v7784, %v7992
  %7994 = vmatmul.f32.gmra.mxu0 %v6792
  %v7995 = vpop.f32.mrf.mxu0
  %v7996 = vadd.f32 %v7787, %v7995
  %7997 = vmatmul.f32.gmra.mxu0 %v6801
  %v7998 = vpop.f32.mrf.mxu0
  %v7999 = vadd.f32 %v7790, %v7998
  %8000 = vmatmul.f32.gmra.mxu0 %v6810
  %v8001 = vpop.f32.mrf.mxu0
  %v8002 = vadd.f32 %v7793, %v8001
  %8003 = vmatmul.f32.gmra.mxu0 %v6819
  %v8004 = vpop.f32.mrf.mxu0
  %v8005 = vadd.f32 %v7796, %v8004
  %8006 = vmatmul.f32.gmra.mxu0 %v6828
  %v8007 = vpop.f32.mrf.mxu0
  %v8008 = vadd.f32 %v7799, %v8007
  %8009 = vmatmul.f32.gmra.mxu0 %v6837
  %v8010 = vpop.f32.mrf.mxu0
  %v8011 = vadd.f32 %v7802, %v8010
  %8012 = vmatmul.f32.gmra.mxu0 %v6846
  %v8013 = vpop.f32.mrf.mxu0
  %v8014 = vadd.f32 %v7805, %v8013
  %8015 = vmatmul.f32.gmra.mxu0 %v6855
  %v8016 = vpop.f32.mrf.mxu0
  %v8017 = vadd.f32 %v7808, %v8016
  %8018 = vmatmul.f32.gmra.mxu0 %v6864
  %v8019 = vpop.f32.mrf.mxu0
  %v8020 = vadd.f32 %v7811, %v8019
  %8021 = vmatmul.f32.gmra.mxu0 %v6873
  %v8022 = vpop.f32.mrf.mxu0
  %v8023 = vadd.f32 %v7814, %v8022
  %8024 = vmatmul.f32.gmra.mxu0 %v6882
  %v8025 = vpop.f32.mrf.mxu0
  %v8026 = vadd.f32 %v7817, %v8025
  %8027 = vmatmul.f32.gmra.mxu0 %v6891
  %v8028 = vpop.f32.mrf.mxu0
  %v8029 = vadd.f32 %v7820, %v8028
  %8030 = vmatmul.f32.gmra.mxu0 %v6900
  %v8031 = vpop.f32.mrf.mxu0
  %v8032 = vadd.f32 %v7823, %v8031
  %8033 = vmatmul.f32.gmra.mxu0 %v6909
  %v8034 = vpop.f32.mrf.mxu0
  %v8035 = vadd.f32 %v7826, %v8034
  %8036 = vmatmul.f32.gmra.mxu0 %v6918
  %v8037 = vpop.f32.mrf.mxu0
  %v8038 = vadd.f32 %v7829, %v8037
  %8039 = vmatmul.f32.gmra.mxu0 %v6927
  %v8040 = vpop.f32.mrf.mxu0
  %v8041 = vadd.f32 %v7832, %v8040
  %8042 = vmatmul.f32.gmra.mxu0 %v6936
  %v8043 = vpop.f32.mrf.mxu0
  %v8044 = vadd.f32 %v7835, %v8043
  %8045 = vmatmul.f32.gmra.mxu0 %v6945
  %v8046 = vpop.f32.mrf.mxu0
  %v8047 = vadd.f32 %v7838, %v8046
  %8048 = vmatmul.f32.gmra.mxu0 %v6954
  %v8049 = vpop.f32.mrf.mxu0
  %v8050 = vadd.f32 %v7841, %v8049
  %8051 = vmatmul.f32.gmra.mxu0 %v6963
  %v8052 = vpop.f32.mrf.mxu0
  %v8053 = vadd.f32 %v7844, %v8052
  %8054 = vmatmul.f32.gmra.mxu0 %v6972
  %v8055 = vpop.f32.mrf.mxu0
  %v8056 = vadd.f32 %v7847, %v8055
  %8057 = vmatmul.f32.gmra.mxu0 %v6981
  %v8058 = vpop.f32.mrf.mxu0
  %v8059 = vadd.f32 %v7850, %v8058
  %8060 = vmatmul.f32.gmra.mxu0 %v6990
  %v8061 = vpop.f32.mrf.mxu0
  %v8062 = vadd.f32 %v7853, %v8061
  %8063 = vmatmul.f32.gmra.mxu0 %v6999
  %v8064 = vpop.f32.mrf.mxu0
  %v8065 = vadd.f32 %v7856, %v8064
  %8066 = vmatmul.f32.gmra.mxu0 %v7008
  %v8067 = vpop.f32.mrf.mxu0
  %v8068 = vadd.f32 %v7859, %v8067
  %8069 = vmatmul.f32.gmra.mxu0 %v7017
  %v8070 = vpop.f32.mrf.mxu0
  %v8071 = vadd.f32 %v7862, %v8070
  %8072 = vmatmul.f32.gmra.mxu0 %v7026
  %v8073 = vpop.f32.mrf.mxu0
  %v8074 = vadd.f32 %v7865, %v8073
  %8075 = vdwg.mxu0
  %8076 = vmatpush.msra.mxu0 %v6406
  %8077 = vmatpush.msra.mxu0 %v6405
  %8078 = vmatpush.msra.mxu0 %v6404
  %8079 = vmatpush.msra.mxu0 %v6403
  %8080 = vmatpush.msra.mxu0 %v6402
  %8081 = vmatpush.msra.mxu0 %v6401
  %8082 = vmatpush.msra.mxu0 %v6400
  %8083 = vmatpush.msra.mxu0 %v6399
  %8084 = vmatpush.msra.mxu0 %v6398
  %8085 = vmatpush.msra.mxu0 %v6397
  %8086 = vmatpush.msra.mxu0 %v6396
  %8087 = vmatpush.msra.mxu0 %v6395
  %8088 = vmatpush.msra.mxu0 %v6394
  %8089 = vmatpush.msra.mxu0 %v6393
  %8090 = vmatpush.msra.mxu0 %v6392
  %8091 = vmatpush.msra.mxu0 %v6391
  %8092 = vmatmul.f32.gmra.mxu0 %v6460
  %v8093 = vpop.f32.mrf.mxu0
  %v8094 = vadd.f32 %v7885, %v8093
  %8095 = vmatmul.f32.gmra.mxu0 %v6469
  %v8096 = vpop.f32.mrf.mxu0
  %v8097 = vadd.f32 %v7888, %v8096
  %8098 = vmatmul.f32.gmra.mxu0 %v6478
  %v8099 = vpop.f32.mrf.mxu0
  %v8100 = vadd.f32 %v7891, %v8099
  %8101 = vmatmul.f32.gmra.mxu0 %v6487
  %v8102 = vpop.f32.mrf.mxu0
  %v8103 = vadd.f32 %v7894, %v8102
  %8104 = vmatmul.f32.gmra.mxu0 %v6496
  %v8105 = vpop.f32.mrf.mxu0
  %v8106 = vadd.f32 %v7897, %v8105
  %8107 = vmatmul.f32.gmra.mxu0 %v6505
  %v8108 = vpop.f32.mrf.mxu0
  %v8109 = vadd.f32 %v7900, %v8108
  %8110 = vmatmul.f32.gmra.mxu0 %v6514
  %v8111 = vpop.f32.mrf.mxu0
  %v8112 = vadd.f32 %v7903, %v8111
  %8113 = vmatmul.f32.gmra.mxu0 %v6523
  %v8114 = vpop.f32.mrf.mxu0
  %v8115 = vadd.f32 %v7906, %v8114
  %8116 = vmatmul.f32.gmra.mxu0 %v6532
  %v8117 = vpop.f32.mrf.mxu0
  %v8118 = vadd.f32 %v7909, %v8117
  %8119 = vmatmul.f32.gmra.mxu0 %v6541
  %v8120 = vpop.f32.mrf.mxu0
  %v8121 = vadd.f32 %v7912, %v8120
  %8122 = vmatmul.f32.gmra.mxu0 %v6550
  %v8123 = vpop.f32.mrf.mxu0
  %v8124 = vadd.f32 %v7915, %v8123
  %8125 = vmatmul.f32.gmra.mxu0 %v6559
  %v8126 = vpop.f32.mrf.mxu0
  %v8127 = vadd.f32 %v7918, %v8126
  %8128 = vmatmul.f32.gmra.mxu0 %v6568
  %v8129 = vpop.f32.mrf.mxu0
  %v8130 = vadd.f32 %v7921, %v8129
  %8131 = vmatmul.f32.gmra.mxu0 %v6577
  %v8132 = vpop.f32.mrf.mxu0
  %v8133 = vadd.f32 %v7924, %v8132
  %8134 = vmatmul.f32.gmra.mxu0 %v6586
  %v8135 = vpop.f32.mrf.mxu0
  %v8136 = vadd.f32 %v7927, %v8135
  %8137 = vmatmul.f32.gmra.mxu0 %v6595
  %v8138 = vpop.f32.mrf.mxu0
  %v8139 = vadd.f32 %v7930, %v8138
  %8140 = vmatmul.f32.gmra.mxu0 %v6604
  %v8141 = vpop.f32.mrf.mxu0
  %v8142 = vadd.f32 %v7933, %v8141
  %8143 = vmatmul.f32.gmra.mxu0 %v6613
  %v8144 = vpop.f32.mrf.mxu0
  %v8145 = vadd.f32 %v7936, %v8144
  %8146 = vmatmul.f32.gmra.mxu0 %v6622
  %v8147 = vpop.f32.mrf.mxu0
  %v8148 = vadd.f32 %v7939, %v8147
  %8149 = vmatmul.f32.gmra.mxu0 %v6631
  %v8150 = vpop.f32.mrf.mxu0
  %v8151 = vadd.f32 %v7942, %v8150
  %8152 = vmatmul.f32.gmra.mxu0 %v6640
  %v8153 = vpop.f32.mrf.mxu0
  %v8154 = vadd.f32 %v7945, %v8153
  %8155 = vmatmul.f32.gmra.mxu0 %v6649
  %v8156 = vpop.f32.mrf.mxu0
  %v8157 = vadd.f32 %v7948, %v8156
  %8158 = vmatmul.f32.gmra.mxu0 %v6658
  %v8159 = vpop.f32.mrf.mxu0
  %v8160 = vadd.f32 %v7951, %v8159
  %8161 = vmatmul.f32.gmra.mxu0 %v6667
  %v8162 = vpop.f32.mrf.mxu0
  %v8163 = vadd.f32 %v7954, %v8162
  %8164 = vmatmul.f32.gmra.mxu0 %v6676
  %v8165 = vpop.f32.mrf.mxu0
  %v8166 = vadd.f32 %v7957, %v8165
  %8167 = vmatmul.f32.gmra.mxu0 %v6685
  %v8168 = vpop.f32.mrf.mxu0
  %v8169 = vadd.f32 %v7960, %v8168
  %8170 = vmatmul.f32.gmra.mxu0 %v6694
  %v8171 = vpop.f32.mrf.mxu0
  %v8172 = vadd.f32 %v7963, %v8171
  %8173 = vmatmul.f32.gmra.mxu0 %v6703
  %v8174 = vpop.f32.mrf.mxu0
  %v8175 = vadd.f32 %v7966, %v8174
  %8176 = vmatmul.f32.gmra.mxu0 %v6712
  %v8177 = vpop.f32.mrf.mxu0
  %v8178 = vadd.f32 %v7969, %v8177
  %8179 = vmatmul.f32.gmra.mxu0 %v6721
  %v8180 = vpop.f32.mrf.mxu0
  %v8181 = vadd.f32 %v7972, %v8180
  %8182 = vmatmul.f32.gmra.mxu0 %v6730
  %v8183 = vpop.f32.mrf.mxu0
  %v8184 = vadd.f32 %v7975, %v8183
  %8185 = vmatmul.f32.gmra.mxu0 %v6739
  %v8186 = vpop.f32.mrf.mxu0
  %v8187 = vadd.f32 %v7978, %v8186
  %8188 = vmatmul.f32.gmra.mxu0 %v6748
  %v8189 = vpop.f32.mrf.mxu0
  %v8190 = vadd.f32 %v7981, %v8189
  %8191 = vmatmul.f32.gmra.mxu0 %v6757
  %v8192 = vpop.f32.mrf.mxu0
  %v8193 = vadd.f32 %v7984, %v8192
  %8194 = vmatmul.f32.gmra.mxu0 %v6766
  %v8195 = vpop.f32.mrf.mxu0
  %v8196 = vadd.f32 %v7987, %v8195
  %8197 = vmatmul.f32.gmra.mxu0 %v6775
  %v8198 = vpop.f32.mrf.mxu0
  %v8199 = vadd.f32 %v7990, %v8198
  %8200 = vmatmul.f32.gmra.mxu0 %v6784
  %v8201 = vpop.f32.mrf.mxu0
  %v8202 = vadd.f32 %v7993, %v8201
  %8203 = vmatmul.f32.gmra.mxu0 %v6793
  %v8204 = vpop.f32.mrf.mxu0
  %v8205 = vadd.f32 %v7996, %v8204
  %8206 = vmatmul.f32.gmra.mxu0 %v6802
  %v8207 = vpop.f32.mrf.mxu0
  %v8208 = vadd.f32 %v7999, %v8207
  %8209 = vmatmul.f32.gmra.mxu0 %v6811
  %v8210 = vpop.f32.mrf.mxu0
  %v8211 = vadd.f32 %v8002, %v8210
  %8212 = vmatmul.f32.gmra.mxu0 %v6820
  %v8213 = vpop.f32.mrf.mxu0
  %v8214 = vadd.f32 %v8005, %v8213
  %8215 = vmatmul.f32.gmra.mxu0 %v6829
  %v8216 = vpop.f32.mrf.mxu0
  %v8217 = vadd.f32 %v8008, %v8216
  %8218 = vmatmul.f32.gmra.mxu0 %v6838
  %v8219 = vpop.f32.mrf.mxu0
  %v8220 = vadd.f32 %v8011, %v8219
  %8221 = vmatmul.f32.gmra.mxu0 %v6847
  %v8222 = vpop.f32.mrf.mxu0
  %v8223 = vadd.f32 %v8014, %v8222
  %8224 = vmatmul.f32.gmra.mxu0 %v6856
  %v8225 = vpop.f32.mrf.mxu0
  %v8226 = vadd.f32 %v8017, %v8225
  %8227 = vmatmul.f32.gmra.mxu0 %v6865
  %v8228 = vpop.f32.mrf.mxu0
  %v8229 = vadd.f32 %v8020, %v8228
  %8230 = vmatmul.f32.gmra.mxu0 %v6874
  %v8231 = vpop.f32.mrf.mxu0
  %v8232 = vadd.f32 %v8023, %v8231
  %8233 = vmatmul.f32.gmra.mxu0 %v6883
  %v8234 = vpop.f32.mrf.mxu0
  %v8235 = vadd.f32 %v8026, %v8234
  %8236 = vmatmul.f32.gmra.mxu0 %v6892
  %v8237 = vpop.f32.mrf.mxu0
  %v8238 = vadd.f32 %v8029, %v8237
  %8239 = vmatmul.f32.gmra.mxu0 %v6901
  %v8240 = vpop.f32.mrf.mxu0
  %v8241 = vadd.f32 %v8032, %v8240
  %8242 = vmatmul.f32.gmra.mxu0 %v6910
  %v8243 = vpop.f32.mrf.mxu0
  %v8244 = vadd.f32 %v8035, %v8243
  %8245 = vmatmul.f32.gmra.mxu0 %v6919
  %v8246 = vpop.f32.mrf.mxu0
  %v8247 = vadd.f32 %v8038, %v8246
  %8248 = vmatmul.f32.gmra.mxu0 %v6928
  %v8249 = vpop.f32.mrf.mxu0
  %v8250 = vadd.f32 %v8041, %v8249
  %8251 = vmatmul.f32.gmra.mxu0 %v6937
  %v8252 = vpop.f32.mrf.mxu0
  %v8253 = vadd.f32 %v8044, %v8252
  %8254 = vmatmul.f32.gmra.mxu0 %v6946
  %v8255 = vpop.f32.mrf.mxu0
  %v8256 = vadd.f32 %v8047, %v8255
  %8257 = vmatmul.f32.gmra.mxu0 %v6955
  %v8258 = vpop.f32.mrf.mxu0
  %v8259 = vadd.f32 %v8050, %v8258
  %8260 = vmatmul.f32.gmra.mxu0 %v6964
  %v8261 = vpop.f32.mrf.mxu0
  %v8262 = vadd.f32 %v8053, %v8261
  %8263 = vmatmul.f32.gmra.mxu0 %v6973
  %v8264 = vpop.f32.mrf.mxu0
  %v8265 = vadd.f32 %v8056, %v8264
  %8266 = vmatmul.f32.gmra.mxu0 %v6982
  %v8267 = vpop.f32.mrf.mxu0
  %v8268 = vadd.f32 %v8059, %v8267
  %8269 = vmatmul.f32.gmra.mxu0 %v6991
  %v8270 = vpop.f32.mrf.mxu0
  %v8271 = vadd.f32 %v8062, %v8270
  %8272 = vmatmul.f32.gmra.mxu0 %v7000
  %v8273 = vpop.f32.mrf.mxu0
  %v8274 = vadd.f32 %v8065, %v8273
  %8275 = vmatmul.f32.gmra.mxu0 %v7009
  %v8276 = vpop.f32.mrf.mxu0
  %v8277 = vadd.f32 %v8068, %v8276
  %8278 = vmatmul.f32.gmra.mxu0 %v7018
  %v8279 = vpop.f32.mrf.mxu0
  %v8280 = vadd.f32 %v8071, %v8279
  %8281 = vmatmul.f32.gmra.mxu0 %v7027
  %v8282 = vpop.f32.mrf.mxu0
  %v8283 = vadd.f32 %v8074, %v8282
  %8284 = vdwg.mxu0
  %8285 = vmatpush.msra.mxu0 %v6422
  %8286 = vmatpush.msra.mxu0 %v6421
  %8287 = vmatpush.msra.mxu0 %v6420
  %8288 = vmatpush.msra.mxu0 %v6419
  %8289 = vmatpush.msra.mxu0 %v6418
  %8290 = vmatpush.msra.mxu0 %v6417
  %8291 = vmatpush.msra.mxu0 %v6416
  %8292 = vmatpush.msra.mxu0 %v6415
  %8293 = vmatpush.msra.mxu0 %v6414
  %8294 = vmatpush.msra.mxu0 %v6413
  %8295 = vmatpush.msra.mxu0 %v6412
  %8296 = vmatpush.msra.mxu0 %v6411
  %8297 = vmatpush.msra.mxu0 %v6410
  %8298 = vmatpush.msra.mxu0 %v6409
  %8299 = vmatpush.msra.mxu0 %v6408
  %8300 = vmatpush.msra.mxu0 %v6407
  %8301 = vmatmul.f32.gmra.mxu0 %v6461
  %v8302 = vpop.f32.mrf.mxu0
  %v8303 = vadd.f32 %v8094, %v8302
  %8304 = vmatmul.f32.gmra.mxu0 %v6470
  %v8305 = vpop.f32.mrf.mxu0
  %v8306 = vadd.f32 %v8097, %v8305
  %8307 = vmatmul.f32.gmra.mxu0 %v6479
  %v8308 = vpop.f32.mrf.mxu0
  %v8309 = vadd.f32 %v8100, %v8308
  %8310 = vmatmul.f32.gmra.mxu0 %v6488
  %v8311 = vpop.f32.mrf.mxu0
  %v8312 = vadd.f32 %v8103, %v8311
  %8313 = vmatmul.f32.gmra.mxu0 %v6497
  %v8314 = vpop.f32.mrf.mxu0
  %v8315 = vadd.f32 %v8106, %v8314
  %8316 = vmatmul.f32.gmra.mxu0 %v6506
  %v8317 = vpop.f32.mrf.mxu0
  %v8318 = vadd.f32 %v8109, %v8317
  %8319 = vmatmul.f32.gmra.mxu0 %v6515
  %v8320 = vpop.f32.mrf.mxu0
  %v8321 = vadd.f32 %v8112, %v8320
  %8322 = vmatmul.f32.gmra.mxu0 %v6524
  %v8323 = vpop.f32.mrf.mxu0
  %v8324 = vadd.f32 %v8115, %v8323
  %8325 = vmatmul.f32.gmra.mxu0 %v6533
  %v8326 = vpop.f32.mrf.mxu0
  %v8327 = vadd.f32 %v8118, %v8326
  %8328 = vmatmul.f32.gmra.mxu0 %v6542
  %v8329 = vpop.f32.mrf.mxu0
  %v8330 = vadd.f32 %v8121, %v8329
  %8331 = vmatmul.f32.gmra.mxu0 %v6551
  %v8332 = vpop.f32.mrf.mxu0
  %v8333 = vadd.f32 %v8124, %v8332
  %8334 = vmatmul.f32.gmra.mxu0 %v6560
  %v8335 = vpop.f32.mrf.mxu0
  %v8336 = vadd.f32 %v8127, %v8335
  %8337 = vmatmul.f32.gmra.mxu0 %v6569
  %v8338 = vpop.f32.mrf.mxu0
  %v8339 = vadd.f32 %v8130, %v8338
  %8340 = vmatmul.f32.gmra.mxu0 %v6578
  %v8341 = vpop.f32.mrf.mxu0
  %v8342 = vadd.f32 %v8133, %v8341
  %8343 = vmatmul.f32.gmra.mxu0 %v6587
  %v8344 = vpop.f32.mrf.mxu0
  %v8345 = vadd.f32 %v8136, %v8344
  %8346 = vmatmul.f32.gmra.mxu0 %v6596
  %v8347 = vpop.f32.mrf.mxu0
  %v8348 = vadd.f32 %v8139, %v8347
  %8349 = vmatmul.f32.gmra.mxu0 %v6605
  %v8350 = vpop.f32.mrf.mxu0
  %v8351 = vadd.f32 %v8142, %v8350
  %8352 = vmatmul.f32.gmra.mxu0 %v6614
  %v8353 = vpop.f32.mrf.mxu0
  %v8354 = vadd.f32 %v8145, %v8353
  %8355 = vmatmul.f32.gmra.mxu0 %v6623
  %v8356 = vpop.f32.mrf.mxu0
  %v8357 = vadd.f32 %v8148, %v8356
  %8358 = vmatmul.f32.gmra.mxu0 %v6632
  %v8359 = vpop.f32.mrf.mxu0
  %v8360 = vadd.f32 %v8151, %v8359
  %8361 = vmatmul.f32.gmra.mxu0 %v6641
  %v8362 = vpop.f32.mrf.mxu0
  %v8363 = vadd.f32 %v8154, %v8362
  %8364 = vmatmul.f32.gmra.mxu0 %v6650
  %v8365 = vpop.f32.mrf.mxu0
  %v8366 = vadd.f32 %v8157, %v8365
  %8367 = vmatmul.f32.gmra.mxu0 %v6659
  %v8368 = vpop.f32.mrf.mxu0
  %v8369 = vadd.f32 %v8160, %v8368
  %8370 = vmatmul.f32.gmra.mxu0 %v6668
  %v8371 = vpop.f32.mrf.mxu0
  %v8372 = vadd.f32 %v8163, %v8371
  %8373 = vmatmul.f32.gmra.mxu0 %v6677
  %v8374 = vpop.f32.mrf.mxu0
  %v8375 = vadd.f32 %v8166, %v8374
  %8376 = vmatmul.f32.gmra.mxu0 %v6686
  %v8377 = vpop.f32.mrf.mxu0
  %v8378 = vadd.f32 %v8169, %v8377
  %8379 = vmatmul.f32.gmra.mxu0 %v6695
  %v8380 = vpop.f32.mrf.mxu0
  %v8381 = vadd.f32 %v8172, %v8380
  %8382 = vmatmul.f32.gmra.mxu0 %v6704
  %v8383 = vpop.f32.mrf.mxu0
  %v8384 = vadd.f32 %v8175, %v8383
  %8385 = vmatmul.f32.gmra.mxu0 %v6713
  %v8386 = vpop.f32.mrf.mxu0
  %v8387 = vadd.f32 %v8178, %v8386
  %8388 = vmatmul.f32.gmra.mxu0 %v6722
  %v8389 = vpop.f32.mrf.mxu0
  %v8390 = vadd.f32 %v8181, %v8389
  %8391 = vmatmul.f32.gmra.mxu0 %v6731
  %v8392 = vpop.f32.mrf.mxu0
  %v8393 = vadd.f32 %v8184, %v8392
  %8394 = vmatmul.f32.gmra.mxu0 %v6740
  %v8395 = vpop.f32.mrf.mxu0
  %v8396 = vadd.f32 %v8187, %v8395
  %8397 = vmatmul.f32.gmra.mxu0 %v6749
  %v8398 = vpop.f32.mrf.mxu0
  %v8399 = vadd.f32 %v8190, %v8398
  %8400 = vmatmul.f32.gmra.mxu0 %v6758
  %v8401 = vpop.f32.mrf.mxu0
  %v8402 = vadd.f32 %v8193, %v8401
  %8403 = vmatmul.f32.gmra.mxu0 %v6767
  %v8404 = vpop.f32.mrf.mxu0
  %v8405 = vadd.f32 %v8196, %v8404
  %8406 = vmatmul.f32.gmra.mxu0 %v6776
  %v8407 = vpop.f32.mrf.mxu0
  %v8408 = vadd.f32 %v8199, %v8407
  %8409 = vmatmul.f32.gmra.mxu0 %v6785
  %v8410 = vpop.f32.mrf.mxu0
  %v8411 = vadd.f32 %v8202, %v8410
  %8412 = vmatmul.f32.gmra.mxu0 %v6794
  %v8413 = vpop.f32.mrf.mxu0
  %v8414 = vadd.f32 %v8205, %v8413
  %8415 = vmatmul.f32.gmra.mxu0 %v6803
  %v8416 = vpop.f32.mrf.mxu0
  %v8417 = vadd.f32 %v8208, %v8416
  %8418 = vmatmul.f32.gmra.mxu0 %v6812
  %v8419 = vpop.f32.mrf.mxu0
  %v8420 = vadd.f32 %v8211, %v8419
  %8421 = vmatmul.f32.gmra.mxu0 %v6821
  %v8422 = vpop.f32.mrf.mxu0
  %v8423 = vadd.f32 %v8214, %v8422
  %8424 = vmatmul.f32.gmra.mxu0 %v6830
  %v8425 = vpop.f32.mrf.mxu0
  %v8426 = vadd.f32 %v8217, %v8425
  %8427 = vmatmul.f32.gmra.mxu0 %v6839
  %v8428 = vpop.f32.mrf.mxu0
  %v8429 = vadd.f32 %v8220, %v8428
  %8430 = vmatmul.f32.gmra.mxu0 %v6848
  %v8431 = vpop.f32.mrf.mxu0
  %v8432 = vadd.f32 %v8223, %v8431
  %8433 = vmatmul.f32.gmra.mxu0 %v6857
  %v8434 = vpop.f32.mrf.mxu0
  %v8435 = vadd.f32 %v8226, %v8434
  %8436 = vmatmul.f32.gmra.mxu0 %v6866
  %v8437 = vpop.f32.mrf.mxu0
  %v8438 = vadd.f32 %v8229, %v8437
  %8439 = vmatmul.f32.gmra.mxu0 %v6875
  %v8440 = vpop.f32.mrf.mxu0
  %v8441 = vadd.f32 %v8232, %v8440
  %8442 = vmatmul.f32.gmra.mxu0 %v6884
  %v8443 = vpop.f32.mrf.mxu0
  %v8444 = vadd.f32 %v8235, %v8443
  %8445 = vmatmul.f32.gmra.mxu0 %v6893
  %v8446 = vpop.f32.mrf.mxu0
  %v8447 = vadd.f32 %v8238, %v8446
  %8448 = vmatmul.f32.gmra.mxu0 %v6902
  %v8449 = vpop.f32.mrf.mxu0
  %v8450 = vadd.f32 %v8241, %v8449
  %8451 = vmatmul.f32.gmra.mxu0 %v6911
  %v8452 = vpop.f32.mrf.mxu0
  %v8453 = vadd.f32 %v8244, %v8452
  %8454 = vmatmul.f32.gmra.mxu0 %v6920
  %v8455 = vpop.f32.mrf.mxu0
  %v8456 = vadd.f32 %v8247, %v8455
  %8457 = vmatmul.f32.gmra.mxu0 %v6929
  %v8458 = vpop.f32.mrf.mxu0
  %v8459 = vadd.f32 %v8250, %v8458
  %8460 = vmatmul.f32.gmra.mxu0 %v6938
  %v8461 = vpop.f32.mrf.mxu0
  %v8462 = vadd.f32 %v8253, %v8461
  %8463 = vmatmul.f32.gmra.mxu0 %v6947
  %v8464 = vpop.f32.mrf.mxu0
  %v8465 = vadd.f32 %v8256, %v8464
  %8466 = vmatmul.f32.gmra.mxu0 %v6956
  %v8467 = vpop.f32.mrf.mxu0
  %v8468 = vadd.f32 %v8259, %v8467
  %8469 = vmatmul.f32.gmra.mxu0 %v6965
  %v8470 = vpop.f32.mrf.mxu0
  %v8471 = vadd.f32 %v8262, %v8470
  %8472 = vmatmul.f32.gmra.mxu0 %v6974
  %v8473 = vpop.f32.mrf.mxu0
  %v8474 = vadd.f32 %v8265, %v8473
  %8475 = vmatmul.f32.gmra.mxu0 %v6983
  %v8476 = vpop.f32.mrf.mxu0
  %v8477 = vadd.f32 %v8268, %v8476
  %8478 = vmatmul.f32.gmra.mxu0 %v6992
  %v8479 = vpop.f32.mrf.mxu0
  %v8480 = vadd.f32 %v8271, %v8479
  %8481 = vmatmul.f32.gmra.mxu0 %v7001
  %v8482 = vpop.f32.mrf.mxu0
  %v8483 = vadd.f32 %v8274, %v8482
  %8484 = vmatmul.f32.gmra.mxu0 %v7010
  %v8485 = vpop.f32.mrf.mxu0
  %v8486 = vadd.f32 %v8277, %v8485
  %8487 = vmatmul.f32.gmra.mxu0 %v7019
  %v8488 = vpop.f32.mrf.mxu0
  %v8489 = vadd.f32 %v8280, %v8488
  %8490 = vmatmul.f32.gmra.mxu0 %v7028
  %v8491 = vpop.f32.mrf.mxu0
  %v8492 = vadd.f32 %v8283, %v8491
  %8493 = vdwg.mxu0
  %8494 = vmatpush.msra.mxu0 %v6438
  %8495 = vmatpush.msra.mxu0 %v6437
  %8496 = vmatpush.msra.mxu0 %v6436
  %8497 = vmatpush.msra.mxu0 %v6435
  %8498 = vmatpush.msra.mxu0 %v6434
  %8499 = vmatpush.msra.mxu0 %v6433
  %8500 = vmatpush.msra.mxu0 %v6432
  %8501 = vmatpush.msra.mxu0 %v6431
  %8502 = vmatpush.msra.mxu0 %v6430
  %8503 = vmatpush.msra.mxu0 %v6429
  %8504 = vmatpush.msra.mxu0 %v6428
  %8505 = vmatpush.msra.mxu0 %v6427
  %8506 = vmatpush.msra.mxu0 %v6426
  %8507 = vmatpush.msra.mxu0 %v6425
  %8508 = vmatpush.msra.mxu0 %v6424
  %8509 = vmatpush.msra.mxu0 %v6423
  %8510 = vmatmul.f32.gmra.mxu0 %v6462
  %v8511 = vpop.f32.mrf.mxu0
  %v8512 = vadd.f32 %v8303, %v8511
  %8513 = vmatmul.f32.gmra.mxu0 %v6471
  %v8514 = vpop.f32.mrf.mxu0
  %v8515 = vadd.f32 %v8306, %v8514
  %8516 = vmatmul.f32.gmra.mxu0 %v6480
  %v8517 = vpop.f32.mrf.mxu0
  %v8518 = vadd.f32 %v8309, %v8517
  %8519 = vmatmul.f32.gmra.mxu0 %v6489
  %v8520 = vpop.f32.mrf.mxu0
  %v8521 = vadd.f32 %v8312, %v8520
  %8522 = vmatmul.f32.gmra.mxu0 %v6498
  %v8523 = vpop.f32.mrf.mxu0
  %v8524 = vadd.f32 %v8315, %v8523
  %8525 = vmatmul.f32.gmra.mxu0 %v6507
  %v8526 = vpop.f32.mrf.mxu0
  %v8527 = vadd.f32 %v8318, %v8526
  %8528 = vmatmul.f32.gmra.mxu0 %v6516
  %v8529 = vpop.f32.mrf.mxu0
  %v8530 = vadd.f32 %v8321, %v8529
  %8531 = vmatmul.f32.gmra.mxu0 %v6525
  %v8532 = vpop.f32.mrf.mxu0
  %v8533 = vadd.f32 %v8324, %v8532
  %8534 = vmatmul.f32.gmra.mxu0 %v6534
  %v8535 = vpop.f32.mrf.mxu0
  %v8536 = vadd.f32 %v8327, %v8535
  %8537 = vmatmul.f32.gmra.mxu0 %v6543
  %v8538 = vpop.f32.mrf.mxu0
  %v8539 = vadd.f32 %v8330, %v8538
  %8540 = vmatmul.f32.gmra.mxu0 %v6552
  %v8541 = vpop.f32.mrf.mxu0
  %v8542 = vadd.f32 %v8333, %v8541
  %8543 = vmatmul.f32.gmra.mxu0 %v6561
  %v8544 = vpop.f32.mrf.mxu0
  %v8545 = vadd.f32 %v8336, %v8544
  %8546 = vmatmul.f32.gmra.mxu0 %v6570
  %v8547 = vpop.f32.mrf.mxu0
  %v8548 = vadd.f32 %v8339, %v8547
  %8549 = vmatmul.f32.gmra.mxu0 %v6579
  %v8550 = vpop.f32.mrf.mxu0
  %v8551 = vadd.f32 %v8342, %v8550
  %8552 = vmatmul.f32.gmra.mxu0 %v6588
  %v8553 = vpop.f32.mrf.mxu0
  %v8554 = vadd.f32 %v8345, %v8553
  %8555 = vmatmul.f32.gmra.mxu0 %v6597
  %v8556 = vpop.f32.mrf.mxu0
  %v8557 = vadd.f32 %v8348, %v8556
  %8558 = vmatmul.f32.gmra.mxu0 %v6606
  %v8559 = vpop.f32.mrf.mxu0
  %v8560 = vadd.f32 %v8351, %v8559
  %8561 = vmatmul.f32.gmra.mxu0 %v6615
  %v8562 = vpop.f32.mrf.mxu0
  %v8563 = vadd.f32 %v8354, %v8562
  %8564 = vmatmul.f32.gmra.mxu0 %v6624
  %v8565 = vpop.f32.mrf.mxu0
  %v8566 = vadd.f32 %v8357, %v8565
  %8567 = vmatmul.f32.gmra.mxu0 %v6633
  %v8568 = vpop.f32.mrf.mxu0
  %v8569 = vadd.f32 %v8360, %v8568
  %8570 = vmatmul.f32.gmra.mxu0 %v6642
  %v8571 = vpop.f32.mrf.mxu0
  %v8572 = vadd.f32 %v8363, %v8571
  %8573 = vmatmul.f32.gmra.mxu0 %v6651
  %v8574 = vpop.f32.mrf.mxu0
  %v8575 = vadd.f32 %v8366, %v8574
  %8576 = vmatmul.f32.gmra.mxu0 %v6660
  %v8577 = vpop.f32.mrf.mxu0
  %v8578 = vadd.f32 %v8369, %v8577
  %8579 = vmatmul.f32.gmra.mxu0 %v6669
  %v8580 = vpop.f32.mrf.mxu0
  %v8581 = vadd.f32 %v8372, %v8580
  %8582 = vmatmul.f32.gmra.mxu0 %v6678
  %v8583 = vpop.f32.mrf.mxu0
  %v8584 = vadd.f32 %v8375, %v8583
  %8585 = vmatmul.f32.gmra.mxu0 %v6687
  %v8586 = vpop.f32.mrf.mxu0
  %v8587 = vadd.f32 %v8378, %v8586
  %8588 = vmatmul.f32.gmra.mxu0 %v6696
  %v8589 = vpop.f32.mrf.mxu0
  %v8590 = vadd.f32 %v8381, %v8589
  %8591 = vmatmul.f32.gmra.mxu0 %v6705
  %v8592 = vpop.f32.mrf.mxu0
  %v8593 = vadd.f32 %v8384, %v8592
  %8594 = vmatmul.f32.gmra.mxu0 %v6714
  %v8595 = vpop.f32.mrf.mxu0
  %v8596 = vadd.f32 %v8387, %v8595
  %8597 = vmatmul.f32.gmra.mxu0 %v6723
  %v8598 = vpop.f32.mrf.mxu0
  %v8599 = vadd.f32 %v8390, %v8598
  %8600 = vmatmul.f32.gmra.mxu0 %v6732
  %v8601 = vpop.f32.mrf.mxu0
  %v8602 = vadd.f32 %v8393, %v8601
  %8603 = vmatmul.f32.gmra.mxu0 %v6741
  %v8604 = vpop.f32.mrf.mxu0
  %v8605 = vadd.f32 %v8396, %v8604
  %8606 = vmatmul.f32.gmra.mxu0 %v6750
  %v8607 = vpop.f32.mrf.mxu0
  %v8608 = vadd.f32 %v8399, %v8607
  %8609 = vmatmul.f32.gmra.mxu0 %v6759
  %v8610 = vpop.f32.mrf.mxu0
  %v8611 = vadd.f32 %v8402, %v8610
  %8612 = vmatmul.f32.gmra.mxu0 %v6768
  %v8613 = vpop.f32.mrf.mxu0
  %v8614 = vadd.f32 %v8405, %v8613
  %8615 = vmatmul.f32.gmra.mxu0 %v6777
  %v8616 = vpop.f32.mrf.mxu0
  %v8617 = vadd.f32 %v8408, %v8616
  %8618 = vmatmul.f32.gmra.mxu0 %v6786
  %v8619 = vpop.f32.mrf.mxu0
  %v8620 = vadd.f32 %v8411, %v8619
  %8621 = vmatmul.f32.gmra.mxu0 %v6795
  %v8622 = vpop.f32.mrf.mxu0
  %v8623 = vadd.f32 %v8414, %v8622
  %8624 = vmatmul.f32.gmra.mxu0 %v6804
  %v8625 = vpop.f32.mrf.mxu0
  %v8626 = vadd.f32 %v8417, %v8625
  %8627 = vmatmul.f32.gmra.mxu0 %v6813
  %v8628 = vpop.f32.mrf.mxu0
  %v8629 = vadd.f32 %v8420, %v8628
  %8630 = vmatmul.f32.gmra.mxu0 %v6822
  %v8631 = vpop.f32.mrf.mxu0
  %v8632 = vadd.f32 %v8423, %v8631
  %8633 = vmatmul.f32.gmra.mxu0 %v6831
  %v8634 = vpop.f32.mrf.mxu0
  %v8635 = vadd.f32 %v8426, %v8634
  %8636 = vmatmul.f32.gmra.mxu0 %v6840
  %v8637 = vpop.f32.mrf.mxu0
  %v8638 = vadd.f32 %v8429, %v8637
  %8639 = vmatmul.f32.gmra.mxu0 %v6849
  %v8640 = vpop.f32.mrf.mxu0
  %v8641 = vadd.f32 %v8432, %v8640
  %8642 = vmatmul.f32.gmra.mxu0 %v6858
  %v8643 = vpop.f32.mrf.mxu0
  %v8644 = vadd.f32 %v8435, %v8643
  %8645 = vmatmul.f32.gmra.mxu0 %v6867
  %v8646 = vpop.f32.mrf.mxu0
  %v8647 = vadd.f32 %v8438, %v8646
  %8648 = vmatmul.f32.gmra.mxu0 %v6876
  %v8649 = vpop.f32.mrf.mxu0
  %v8650 = vadd.f32 %v8441, %v8649
  %8651 = vmatmul.f32.gmra.mxu0 %v6885
  %v8652 = vpop.f32.mrf.mxu0
  %v8653 = vadd.f32 %v8444, %v8652
  %8654 = vmatmul.f32.gmra.mxu0 %v6894
  %v8655 = vpop.f32.mrf.mxu0
  %v8656 = vadd.f32 %v8447, %v8655
  %8657 = vmatmul.f32.gmra.mxu0 %v6903
  %v8658 = vpop.f32.mrf.mxu0
  %v8659 = vadd.f32 %v8450, %v8658
  %8660 = vmatmul.f32.gmra.mxu0 %v6912
  %v8661 = vpop.f32.mrf.mxu0
  %v8662 = vadd.f32 %v8453, %v8661
  %8663 = vmatmul.f32.gmra.mxu0 %v6921
  %v8664 = vpop.f32.mrf.mxu0
  %v8665 = vadd.f32 %v8456, %v8664
  %8666 = vmatmul.f32.gmra.mxu0 %v6930
  %v8667 = vpop.f32.mrf.mxu0
  %v8668 = vadd.f32 %v8459, %v8667
  %8669 = vmatmul.f32.gmra.mxu0 %v6939
  %v8670 = vpop.f32.mrf.mxu0
  %v8671 = vadd.f32 %v8462, %v8670
  %8672 = vmatmul.f32.gmra.mxu0 %v6948
  %v8673 = vpop.f32.mrf.mxu0
  %v8674 = vadd.f32 %v8465, %v8673
  %8675 = vmatmul.f32.gmra.mxu0 %v6957
  %v8676 = vpop.f32.mrf.mxu0
  %v8677 = vadd.f32 %v8468, %v8676
  %8678 = vmatmul.f32.gmra.mxu0 %v6966
  %v8679 = vpop.f32.mrf.mxu0
  %v8680 = vadd.f32 %v8471, %v8679
  %8681 = vmatmul.f32.gmra.mxu0 %v6975
  %v8682 = vpop.f32.mrf.mxu0
  %v8683 = vadd.f32 %v8474, %v8682
  %8684 = vmatmul.f32.gmra.mxu0 %v6984
  %v8685 = vpop.f32.mrf.mxu0
  %v8686 = vadd.f32 %v8477, %v8685
  %8687 = vmatmul.f32.gmra.mxu0 %v6993
  %v8688 = vpop.f32.mrf.mxu0
  %v8689 = vadd.f32 %v8480, %v8688
  %8690 = vmatmul.f32.gmra.mxu0 %v7002
  %v8691 = vpop.f32.mrf.mxu0
  %v8692 = vadd.f32 %v8483, %v8691
  %8693 = vmatmul.f32.gmra.mxu0 %v7011
  %v8694 = vpop.f32.mrf.mxu0
  %v8695 = vadd.f32 %v8486, %v8694
  %8696 = vmatmul.f32.gmra.mxu0 %v7020
  %v8697 = vpop.f32.mrf.mxu0
  %v8698 = vadd.f32 %v8489, %v8697
  %8699 = vmatmul.f32.gmra.mxu0 %v7029
  %v8700 = vpop.f32.mrf.mxu0
  %v8701 = vadd.f32 %v8492, %v8700
  %8702 = vdwg.mxu0
  %8703 = vmatpush.msra.mxu0 %v6454
  %8704 = vmatpush.msra.mxu0 %v6453
  %8705 = vmatpush.msra.mxu0 %v6452
  %8706 = vmatpush.msra.mxu0 %v6451
  %8707 = vmatpush.msra.mxu0 %v6450
  %8708 = vmatpush.msra.mxu0 %v6449
  %8709 = vmatpush.msra.mxu0 %v6448
  %8710 = vmatpush.msra.mxu0 %v6447
  %8711 = vmatpush.msra.mxu0 %v6446
  %8712 = vmatpush.msra.mxu0 %v6445
  %8713 = vmatpush.msra.mxu0 %v6444
  %8714 = vmatpush.msra.mxu0 %v6443
  %8715 = vmatpush.msra.mxu0 %v6442
  %8716 = vmatpush.msra.mxu0 %v6441
  %8717 = vmatpush.msra.mxu0 %v6440
  %8718 = vmatpush.msra.mxu0 %v6439
  %8719 = vmatmul.f32.gmra.mxu0 %v6463
  %v8720 = vpop.f32.mrf.mxu0
  %v8721 = vadd.f32 %v8512, %v8720
  %8722 = vmatmul.f32.gmra.mxu0 %v6472
  %v8723 = vpop.f32.mrf.mxu0
  %v8724 = vadd.f32 %v8515, %v8723
  %8725 = vmatmul.f32.gmra.mxu0 %v6481
  %v8726 = vpop.f32.mrf.mxu0
  %v8727 = vadd.f32 %v8518, %v8726
  %8728 = vmatmul.f32.gmra.mxu0 %v6490
  %v8729 = vpop.f32.mrf.mxu0
  %v8730 = vadd.f32 %v8521, %v8729
  %8731 = vmatmul.f32.gmra.mxu0 %v6499
  %v8732 = vpop.f32.mrf.mxu0
  %v8733 = vadd.f32 %v8524, %v8732
  %8734 = vmatmul.f32.gmra.mxu0 %v6508
  %v8735 = vpop.f32.mrf.mxu0
  %v8736 = vadd.f32 %v8527, %v8735
  %8737 = vmatmul.f32.gmra.mxu0 %v6517
  %v8738 = vpop.f32.mrf.mxu0
  %v8739 = vadd.f32 %v8530, %v8738
  %8740 = vmatmul.f32.gmra.mxu0 %v6526
  %v8741 = vpop.f32.mrf.mxu0
  %v8742 = vadd.f32 %v8533, %v8741
  %8743 = vmatmul.f32.gmra.mxu0 %v6535
  %v8744 = vpop.f32.mrf.mxu0
  %v8745 = vadd.f32 %v8536, %v8744
  %8746 = vmatmul.f32.gmra.mxu0 %v6544
  %v8747 = vpop.f32.mrf.mxu0
  %v8748 = vadd.f32 %v8539, %v8747
  %8749 = vmatmul.f32.gmra.mxu0 %v6553
  %v8750 = vpop.f32.mrf.mxu0
  %v8751 = vadd.f32 %v8542, %v8750
  %8752 = vmatmul.f32.gmra.mxu0 %v6562
  %v8753 = vpop.f32.mrf.mxu0
  %v8754 = vadd.f32 %v8545, %v8753
  %8755 = vmatmul.f32.gmra.mxu0 %v6571
  %v8756 = vpop.f32.mrf.mxu0
  %v8757 = vadd.f32 %v8548, %v8756
  %8758 = vmatmul.f32.gmra.mxu0 %v6580
  %v8759 = vpop.f32.mrf.mxu0
  %v8760 = vadd.f32 %v8551, %v8759
  %8761 = vmatmul.f32.gmra.mxu0 %v6589
  %v8762 = vpop.f32.mrf.mxu0
  %v8763 = vadd.f32 %v8554, %v8762
  %8764 = vmatmul.f32.gmra.mxu0 %v6598
  %v8765 = vpop.f32.mrf.mxu0
  %v8766 = vadd.f32 %v8557, %v8765
  %8767 = vmatmul.f32.gmra.mxu0 %v6607
  %v8768 = vpop.f32.mrf.mxu0
  %v8769 = vadd.f32 %v8560, %v8768
  %8770 = vmatmul.f32.gmra.mxu0 %v6616
  %v8771 = vpop.f32.mrf.mxu0
  %v8772 = vadd.f32 %v8563, %v8771
  %8773 = vmatmul.f32.gmra.mxu0 %v6625
  %v8774 = vpop.f32.mrf.mxu0
  %v8775 = vadd.f32 %v8566, %v8774
  %8776 = vmatmul.f32.gmra.mxu0 %v6634
  %v8777 = vpop.f32.mrf.mxu0
  %v8778 = vadd.f32 %v8569, %v8777
  %8779 = vmatmul.f32.gmra.mxu0 %v6643
  %v8780 = vpop.f32.mrf.mxu0
  %v8781 = vadd.f32 %v8572, %v8780
  %8782 = vmatmul.f32.gmra.mxu0 %v6652
  %v8783 = vpop.f32.mrf.mxu0
  %v8784 = vadd.f32 %v8575, %v8783
  %8785 = vmatmul.f32.gmra.mxu0 %v6661
  %v8786 = vpop.f32.mrf.mxu0
  %v8787 = vadd.f32 %v8578, %v8786
  %8788 = vmatmul.f32.gmra.mxu0 %v6670
  %v8789 = vpop.f32.mrf.mxu0
  %v8790 = vadd.f32 %v8581, %v8789
  %8791 = vmatmul.f32.gmra.mxu0 %v6679
  %v8792 = vpop.f32.mrf.mxu0
  %v8793 = vadd.f32 %v8584, %v8792
  %8794 = vmatmul.f32.gmra.mxu0 %v6688
  %v8795 = vpop.f32.mrf.mxu0
  %v8796 = vadd.f32 %v8587, %v8795
  %8797 = vmatmul.f32.gmra.mxu0 %v6697
  %v8798 = vpop.f32.mrf.mxu0
  %v8799 = vadd.f32 %v8590, %v8798
  %8800 = vmatmul.f32.gmra.mxu0 %v6706
  %v8801 = vpop.f32.mrf.mxu0
  %v8802 = vadd.f32 %v8593, %v8801
  %8803 = vmatmul.f32.gmra.mxu0 %v6715
  %v8804 = vpop.f32.mrf.mxu0
  %v8805 = vadd.f32 %v8596, %v8804
  %8806 = vmatmul.f32.gmra.mxu0 %v6724
  %v8807 = vpop.f32.mrf.mxu0
  %v8808 = vadd.f32 %v8599, %v8807
  %8809 = vmatmul.f32.gmra.mxu0 %v6733
  %v8810 = vpop.f32.mrf.mxu0
  %v8811 = vadd.f32 %v8602, %v8810
  %8812 = vmatmul.f32.gmra.mxu0 %v6742
  %v8813 = vpop.f32.mrf.mxu0
  %v8814 = vadd.f32 %v8605, %v8813
  %8815 = vmatmul.f32.gmra.mxu0 %v6751
  %v8816 = vpop.f32.mrf.mxu0
  %v8817 = vadd.f32 %v8608, %v8816
  %8818 = vmatmul.f32.gmra.mxu0 %v6760
  %v8819 = vpop.f32.mrf.mxu0
  %v8820 = vadd.f32 %v8611, %v8819
  %8821 = vmatmul.f32.gmra.mxu0 %v6769
  %v8822 = vpop.f32.mrf.mxu0
  %v8823 = vadd.f32 %v8614, %v8822
  %8824 = vmatmul.f32.gmra.mxu0 %v6778
  %v8825 = vpop.f32.mrf.mxu0
  %v8826 = vadd.f32 %v8617, %v8825
  %8827 = vmatmul.f32.gmra.mxu0 %v6787
  %v8828 = vpop.f32.mrf.mxu0
  %v8829 = vadd.f32 %v8620, %v8828
  %8830 = vmatmul.f32.gmra.mxu0 %v6796
  %v8831 = vpop.f32.mrf.mxu0
  %v8832 = vadd.f32 %v8623, %v8831
  %8833 = vmatmul.f32.gmra.mxu0 %v6805
  %v8834 = vpop.f32.mrf.mxu0
  %v8835 = vadd.f32 %v8626, %v8834
  %8836 = vmatmul.f32.gmra.mxu0 %v6814
  %v8837 = vpop.f32.mrf.mxu0
  %v8838 = vadd.f32 %v8629, %v8837
  %8839 = vmatmul.f32.gmra.mxu0 %v6823
  %v8840 = vpop.f32.mrf.mxu0
  %v8841 = vadd.f32 %v8632, %v8840
  %8842 = vmatmul.f32.gmra.mxu0 %v6832
  %v8843 = vpop.f32.mrf.mxu0
  %v8844 = vadd.f32 %v8635, %v8843
  %8845 = vmatmul.f32.gmra.mxu0 %v6841
  %v8846 = vpop.f32.mrf.mxu0
  %v8847 = vadd.f32 %v8638, %v8846
  %8848 = vmatmul.f32.gmra.mxu0 %v6850
  %v8849 = vpop.f32.mrf.mxu0
  %v8850 = vadd.f32 %v8641, %v8849
  %8851 = vmatmul.f32.gmra.mxu0 %v6859
  %v8852 = vpop.f32.mrf.mxu0
  %v8853 = vadd.f32 %v8644, %v8852
  %8854 = vmatmul.f32.gmra.mxu0 %v6868
  %v8855 = vpop.f32.mrf.mxu0
  %v8856 = vadd.f32 %v8647, %v8855
  %8857 = vmatmul.f32.gmra.mxu0 %v6877
  %v8858 = vpop.f32.mrf.mxu0
  %v8859 = vadd.f32 %v8650, %v8858
  %8860 = vmatmul.f32.gmra.mxu0 %v6886
  %v8861 = vpop.f32.mrf.mxu0
  %v8862 = vadd.f32 %v8653, %v8861
  %8863 = vmatmul.f32.gmra.mxu0 %v6895
  %v8864 = vpop.f32.mrf.mxu0
  %v8865 = vadd.f32 %v8656, %v8864
  %8866 = vmatmul.f32.gmra.mxu0 %v6904
  %v8867 = vpop.f32.mrf.mxu0
  %v8868 = vadd.f32 %v8659, %v8867
  %8869 = vmatmul.f32.gmra.mxu0 %v6913
  %v8870 = vpop.f32.mrf.mxu0
  %v8871 = vadd.f32 %v8662, %v8870
  %8872 = vmatmul.f32.gmra.mxu0 %v6922
  %v8873 = vpop.f32.mrf.mxu0
  %v8874 = vadd.f32 %v8665, %v8873
  %8875 = vmatmul.f32.gmra.mxu0 %v6931
  %v8876 = vpop.f32.mrf.mxu0
  %v8877 = vadd.f32 %v8668, %v8876
  %8878 = vmatmul.f32.gmra.mxu0 %v6940
  %v8879 = vpop.f32.mrf.mxu0
  %v8880 = vadd.f32 %v8671, %v8879
  %8881 = vmatmul.f32.gmra.mxu0 %v6949
  %v8882 = vpop.f32.mrf.mxu0
  %v8883 = vadd.f32 %v8674, %v8882
  %8884 = vmatmul.f32.gmra.mxu0 %v6958
  %v8885 = vpop.f32.mrf.mxu0
  %v8886 = vadd.f32 %v8677, %v8885
  %8887 = vmatmul.f32.gmra.mxu0 %v6967
  %v8888 = vpop.f32.mrf.mxu0
  %v8889 = vadd.f32 %v8680, %v8888
  %8890 = vmatmul.f32.gmra.mxu0 %v6976
  %v8891 = vpop.f32.mrf.mxu0
  %v8892 = vadd.f32 %v8683, %v8891
  %8893 = vmatmul.f32.gmra.mxu0 %v6985
  %v8894 = vpop.f32.mrf.mxu0
  %v8895 = vadd.f32 %v8686, %v8894
  %8896 = vmatmul.f32.gmra.mxu0 %v6994
  %v8897 = vpop.f32.mrf.mxu0
  %v8898 = vadd.f32 %v8689, %v8897
  %8899 = vmatmul.f32.gmra.mxu0 %v7003
  %v8900 = vpop.f32.mrf.mxu0
  %v8901 = vadd.f32 %v8692, %v8900
  %8902 = vmatmul.f32.gmra.mxu0 %v7012
  %v8903 = vpop.f32.mrf.mxu0
  %v8904 = vadd.f32 %v8695, %v8903
  %8905 = vmatmul.f32.gmra.mxu0 %v7021
  %v8906 = vpop.f32.mrf.mxu0
  %v8907 = vadd.f32 %v8698, %v8906
  %8908 = vmatmul.f32.gmra.mxu0 %v7030
  %v8909 = vpop.f32.mrf.mxu0
  %v8910 = vadd.f32 %v8701, %v8909
  %8911 = vdwg.mxu0
  %v8912 = vld [vmem:[%s5] sm:$0x1]
  %v8913 = vld [vmem:[%s6] sm:$0x1]
  %v8914 = vadd.f32 %v8721, %v8724
  %v8915 = vadd.f32 %v8914, %v8727
  %v8916 = vadd.f32 %v8915, %v8730
  %v8917 = vadd.f32 %v8916, %v8733
  %v8918 = vadd.f32 %v8917, %v8736
  %v8919 = vadd.f32 %v8918, %v8739
  %v8920 = vadd.f32 %v8919, %v8742
  %v8921 = vadd.f32 %v8920, %v8745
  %v8922 = vadd.f32 %v8921, %v8748
  %v8923 = vadd.f32 %v8922, %v8751
  %v8924 = vadd.f32 %v8923, %v8754
  %v8925 = vadd.f32 %v8924, %v8757
  %v8926 = vadd.f32 %v8925, %v8760
  %v8927 = vadd.f32 %v8926, %v8763
  %v8928 = vadd.f32 %v8927, %v8766
  %v8929 = vadd.f32 %v8928, %v8769
  %v8930 = vadd.f32 %v8929, %v8772
  %v8931 = vadd.f32 %v8930, %v8775
  %v8932 = vadd.f32 %v8931, %v8778
  %v8933 = vadd.f32 %v8932, %v8781
  %v8934 = vadd.f32 %v8933, %v8784
  %v8935 = vadd.f32 %v8934, %v8787
  %v8936 = vadd.f32 %v8935, %v8790
  %v8937 = vadd.f32 %v8936, %v8793
  %v8938 = vadd.f32 %v8937, %v8796
  %v8939 = vadd.f32 %v8938, %v8799
  %v8940 = vadd.f32 %v8939, %v8802
  %v8941 = vadd.f32 %v8940, %v8805
  %v8942 = vadd.f32 %v8941, %v8808
  %v8943 = vadd.f32 %v8942, %v8811
  %v8944 = vadd.f32 %v8943, %v8814
  %v8945 = vadd.f32 %v8944, %v8817
  %v8946 = vadd.f32 %v8945, %v8820
  %v8947 = vadd.f32 %v8946, %v8823
  %v8948 = vadd.f32 %v8947, %v8826
  %v8949 = vadd.f32 %v8948, %v8829
  %v8950 = vadd.f32 %v8949, %v8832
  %v8951 = vadd.f32 %v8950, %v8835
  %v8952 = vadd.f32 %v8951, %v8838
  %v8953 = vadd.f32 %v8952, %v8841
  %v8954 = vadd.f32 %v8953, %v8844
  %v8955 = vadd.f32 %v8954, %v8847
  %v8956 = vadd.f32 %v8955, %v8850
  %v8957 = vadd.f32 %v8956, %v8853
  %v8958 = vadd.f32 %v8957, %v8856
  %v8959 = vadd.f32 %v8958, %v8859
  %v8960 = vadd.f32 %v8959, %v8862
  %v8961 = vadd.f32 %v8960, %v8865
  %v8962 = vadd.f32 %v8961, %v8868
  %v8963 = vadd.f32 %v8962, %v8871
  %v8964 = vadd.f32 %v8963, %v8874
  %v8965 = vadd.f32 %v8964, %v8877
  %v8966 = vadd.f32 %v8965, %v8880
  %v8967 = vadd.f32 %v8966, %v8883
  %v8968 = vadd.f32 %v8967, %v8886
  %v8969 = vadd.f32 %v8968, %v8889
  %v8970 = vadd.f32 %v8969, %v8892
  %v8971 = vadd.f32 %v8970, %v8895
  %v8972 = vadd.f32 %v8971, %v8898
  %v8973 = vadd.f32 %v8972, %v8901
  %v8974 = vadd.f32 %v8973, %v8904
  %v8975 = vadd.f32 %v8974, %v8907
  %v8976 = vadd.f32 %v8975, %v8910
  %v8977 = vrot.slane %v8976, 4
  %v8978 = vadd.f32 %v8976, %v8977
  %v8979 = vrot.slane %v8978, 2
  %v8980 = vadd.f32 %v8978, %v8979
  %v8981 = vrot.slane %v8980, 1
  %v8982 = vadd.f32 %v8980, %v8981
  %v8983 = vmul.f32 %v8721, %v8721
  %v8984 = vmul.f32 %v8724, %v8724
  %v8985 = vmul.f32 %v8727, %v8727
  %v8986 = vmul.f32 %v8730, %v8730
  %v8987 = vmul.f32 %v8733, %v8733
  %v8988 = vmul.f32 %v8736, %v8736
  %v8989 = vmul.f32 %v8739, %v8739
  %v8990 = vmul.f32 %v8742, %v8742
  %v8991 = vmul.f32 %v8745, %v8745
  %v8992 = vmul.f32 %v8748, %v8748
  %v8993 = vmul.f32 %v8751, %v8751
  %v8994 = vmul.f32 %v8754, %v8754
  %v8995 = vmul.f32 %v8757, %v8757
  %v8996 = vmul.f32 %v8760, %v8760
  %v8997 = vmul.f32 %v8763, %v8763
  %v8998 = vmul.f32 %v8766, %v8766
  %v8999 = vmul.f32 %v8769, %v8769
  %v9000 = vmul.f32 %v8772, %v8772
  %v9001 = vmul.f32 %v8775, %v8775
  %v9002 = vmul.f32 %v8778, %v8778
  %v9003 = vmul.f32 %v8781, %v8781
  %v9004 = vmul.f32 %v8784, %v8784
  %v9005 = vmul.f32 %v8787, %v8787
  %v9006 = vmul.f32 %v8790, %v8790
  %v9007 = vmul.f32 %v8793, %v8793
  %v9008 = vmul.f32 %v8796, %v8796
  %v9009 = vmul.f32 %v8799, %v8799
  %v9010 = vmul.f32 %v8802, %v8802
  %v9011 = vmul.f32 %v8805, %v8805
  %v9012 = vmul.f32 %v8808, %v8808
  %v9013 = vmul.f32 %v8811, %v8811
  %v9014 = vmul.f32 %v8814, %v8814
  %v9015 = vmul.f32 %v8817, %v8817
  %v9016 = vmul.f32 %v8820, %v8820
  %v9017 = vmul.f32 %v8823, %v8823
  %v9018 = vmul.f32 %v8826, %v8826
  %v9019 = vmul.f32 %v8829, %v8829
  %v9020 = vmul.f32 %v8832, %v8832
  %v9021 = vmul.f32 %v8835, %v8835
  %v9022 = vmul.f32 %v8838, %v8838
  %v9023 = vmul.f32 %v8841, %v8841
  %v9024 = vmul.f32 %v8844, %v8844
  %v9025 = vmul.f32 %v8847, %v8847
  %v9026 = vmul.f32 %v8850, %v8850
  %v9027 = vmul.f32 %v8853, %v8853
  %v9028 = vmul.f32 %v8856, %v8856
  %v9029 = vmul.f32 %v8859, %v8859
  %v9030 = vmul.f32 %v8862, %v8862
  %v9031 = vmul.f32 %v8865, %v8865
  %v9032 = vmul.f32 %v8868, %v8868
  %v9033 = vmul.f32 %v8871, %v8871
  %v9034 = vmul.f32 %v8874, %v8874
  %v9035 = vmul.f32 %v8877, %v8877
  %v9036 = vmul.f32 %v8880, %v8880
  %v9037 = vmul.f32 %v8883, %v8883
  %v9038 = vmul.f32 %v8886, %v8886
  %v9039 = vmul.f32 %v8889, %v8889
  %v9040 = vmul.f32 %v8892, %v8892
  %v9041 = vmul.f32 %v8895, %v8895
  %v9042 = vmul.f32 %v8898, %v8898
  %v9043 = vmul.f32 %v8901, %v8901
  %v9044 = vmul.f32 %v8904, %v8904
  %v9045 = vmul.f32 %v8907, %v8907
  %v9046 = vmul.f32 %v8910, %v8910
  %v9047 = vadd.f32 %v8983, %v8984
  %v9048 = vadd.f32 %v9047, %v8985
  %v9049 = vadd.f32 %v9048, %v8986
  %v9050 = vadd.f32 %v9049, %v8987
  %v9051 = vadd.f32 %v9050, %v8988
  %v9052 = vadd.f32 %v9051, %v8989
  %v9053 = vadd.f32 %v9052, %v8990
  %v9054 = vadd.f32 %v9053, %v8991
  %v9055 = vadd.f32 %v9054, %v8992
  %v9056 = vadd.f32 %v9055, %v8993
  %v9057 = vadd.f32 %v9056, %v8994
  %v9058 = vadd.f32 %v9057, %v8995
  %v9059 = vadd.f32 %v9058, %v8996
  %v9060 = vadd.f32 %v9059, %v8997
  %v9061 = vadd.f32 %v9060, %v8998
  %v9062 = vadd.f32 %v9061, %v8999
  %v9063 = vadd.f32 %v9062, %v9000
  %v9064 = vadd.f32 %v9063, %v9001
  %v9065 = vadd.f32 %v9064, %v9002
  %v9066 = vadd.f32 %v9065, %v9003
  %v9067 = vadd.f32 %v9066, %v9004
  %v9068 = vadd.f32 %v9067, %v9005
  %v9069 = vadd.f32 %v9068, %v9006
  %v9070 = vadd.f32 %v9069, %v9007
  %v9071 = vadd.f32 %v9070, %v9008
  %v9072 = vadd.f32 %v9071, %v9009
  %v9073 = vadd.f32 %v9072, %v9010
  %v9074 = vadd.f32 %v9073, %v9011
  %v9075 = vadd.f32 %v9074, %v9012
  %v9076 = vadd.f32 %v9075, %v9013
  %v9077 = vadd.f32 %v9076, %v9014
  %v9078 = vadd.f32 %v9077, %v9015
  %v9079 = vadd.f32 %v9078, %v9016
  %v9080 = vadd.f32 %v9079, %v9017
  %v9081 = vadd.f32 %v9080, %v9018
  %v9082 = vadd.f32 %v9081, %v9019
  %v9083 = vadd.f32 %v9082, %v9020
  %v9084 = vadd.f32 %v9083, %v9021
  %v9085 = vadd.f32 %v9084, %v9022
  %v9086 = vadd.f32 %v9085, %v9023
  %v9087 = vadd.f32 %v9086, %v9024
  %v9088 = vadd.f32 %v9087, %v9025
  %v9089 = vadd.f32 %v9088, %v9026
  %v9090 = vadd.f32 %v9089, %v9027
  %v9091 = vadd.f32 %v9090, %v9028
  %v9092 = vadd.f32 %v9091, %v9029
  %v9093 = vadd.f32 %v9092, %v9030
  %v9094 = vadd.f32 %v9093, %v9031
  %v9095 = vadd.f32 %v9094, %v9032
  %v9096 = vadd.f32 %v9095, %v9033
  %v9097 = vadd.f32 %v9096, %v9034
  %v9098 = vadd.f32 %v9097, %v9035
  %v9099 = vadd.f32 %v9098, %v9036
  %v9100 = vadd.f32 %v9099, %v9037
  %v9101 = vadd.f32 %v9100, %v9038
  %v9102 = vadd.f32 %v9101, %v9039
  %v9103 = vadd.f32 %v9102, %v9040
  %v9104 = vadd.f32 %v9103, %v9041
  %v9105 = vadd.f32 %v9104, %v9042
  %v9106 = vadd.f32 %v9105, %v9043
  %v9107 = vadd.f32 %v9106, %v9044
  %v9108 = vadd.f32 %v9107, %v9045
  %v9109 = vadd.f32 %v9108, %v9046
  %v9110 = vrot.slane %v9109, 4
  %v9111 = vadd.f32 %v9109, %v9110
  %v9112 = vrot.slane %v9111, 2
  %v9113 = vadd.f32 %v9111, %v9112
  %v9114 = vrot.slane %v9113, 1
  %v9115 = vadd.f32 %v9113, %v9114
  %v9116 = vmul.f32 %v8982, 0.001953125
  %v9117 = vmul.f32 %v9115, 0.001953125
  %v9118 = vmul.f32 %v9116, %v9116
  %v9119 = vsub.f32 %v9117, %v9118
  %v9120 = vadd.f32 %v9119, 1e-05
  %v9121 = vrsqrt.pop %v9120
  %v9122 = vmul.f32 %v9121, %v9120
  %v9123 = vmul.f32 %v9122, %v9121
  %v9124 = vmul.f32 0.5, %v9123
  %v9125 = vsub.f32 1.5, %v9124
  %v9126 = vmul.f32 %v9121, %v9125
  %vm9127 = vweird.f32 %v9120
  %vm9128 = vweird.f32 %v9121
  %vm9129 = vmor %vm9127, %vm9128
  %v9130 = vsel %vm9129, %v9121, %v9126
  %v9131 = vmul.f32 %v8912, %v9130
  %v9132 = vmul.f32 %v9116, %v9131
  %v9133 = vsub.f32 %v8913, %v9132
  %v9135 = vperm.slane %v9131, 0
  %v9137 = vmul.f32 %v8721, %v9135
  %v9138 = vmul.f32 %v8724, %v9135
  %v9139 = vmul.f32 %v8727, %v9135
  %v9140 = vmul.f32 %v8730, %v9135
  %v9141 = vmul.f32 %v8733, %v9135
  %v9142 = vmul.f32 %v8736, %v9135
  %v9143 = vmul.f32 %v8739, %v9135
  %v9144 = vmul.f32 %v8742, %v9135
  %v9145 = vmul.f32 %v8745, %v9135
  %v9146 = vmul.f32 %v8748, %v9135
  %v9147 = vmul.f32 %v8751, %v9135
  %v9148 = vmul.f32 %v8754, %v9135
  %v9149 = vmul.f32 %v8757, %v9135
  %v9150 = vmul.f32 %v8760, %v9135
  %v9151 = vmul.f32 %v8763, %v9135
  %v9152 = vmul.f32 %v8766, %v9135
  %v9153 = vmul.f32 %v8769, %v9135
  %v9154 = vmul.f32 %v8772, %v9135
  %v9155 = vmul.f32 %v8775, %v9135
  %v9156 = vmul.f32 %v8778, %v9135
  %v9157 = vmul.f32 %v8781, %v9135
  %v9158 = vmul.f32 %v8784, %v9135
  %v9159 = vmul.f32 %v8787, %v9135
  %v9160 = vmul.f32 %v8790, %v9135
  %v9161 = vmul.f32 %v8793, %v9135
  %v9162 = vmul.f32 %v8796, %v9135
  %v9163 = vmul.f32 %v8799, %v9135
  %v9164 = vmul.f32 %v8802, %v9135
  %v9165 = vmul.f32 %v8805, %v9135
  %v9166 = vmul.f32 %v8808, %v9135
  %v9167 = vmul.f32 %v8811, %v9135
  %v9168 = vmul.f32 %v8814, %v9135
  %v9169 = vmul.f32 %v8817, %v9135
  %v9170 = vmul.f32 %v8820, %v9135
  %v9171 = vmul.f32 %v8823, %v9135
  %v9172 = vmul.f32 %v8826, %v9135
  %v9173 = vmul.f32 %v8829, %v9135
  %v9174 = vmul.f32 %v8832, %v9135
  %v9175 = vmul.f32 %v8835, %v9135
  %v9176 = vmul.f32 %v8838, %v9135
  %v9177 = vmul.f32 %v8841, %v9135
  %v9178 = vmul.f32 %v8844, %v9135
  %v9179 = vmul.f32 %v8847, %v9135
  %v9180 = vmul.f32 %v8850, %v9135
  %v9181 = vmul.f32 %v8853, %v9135
  %v9182 = vmul.f32 %v8856, %v9135
  %v9183 = vmul.f32 %v8859, %v9135
  %v9184 = vmul.f32 %v8862, %v9135
  %v9185 = vmul.f32 %v8865, %v9135
  %v9186 = vmul.f32 %v8868, %v9135
  %v9187 = vmul.f32 %v8871, %v9135
  %v9188 = vmul.f32 %v8874, %v9135
  %v9189 = vmul.f32 %v8877, %v9135
  %v9190 = vmul.f32 %v8880, %v9135
  %v9191 = vmul.f32 %v8883, %v9135
  %v9192 = vmul.f32 %v8886, %v9135
  %v9193 = vmul.f32 %v8889, %v9135
  %v9194 = vmul.f32 %v8892, %v9135
  %v9195 = vmul.f32 %v8895, %v9135
  %v9196 = vmul.f32 %v8898, %v9135
  %v9197 = vmul.f32 %v8901, %v9135
  %v9198 = vmul.f32 %v8904, %v9135
  %v9199 = vmul.f32 %v8907, %v9135
  %v9200 = vmul.f32 %v8910, %v9135
  %v9202 = vperm.slane %v9133, 0
  %v9204 = vadd.f32 %v9137, %v9202
  %v9205 = vadd.f32 %v9138, %v9202
  %v9206 = vadd.f32 %v9139, %v9202
  %v9207 = vadd.f32 %v9140, %v9202
  %v9208 = vadd.f32 %v9141, %v9202
  %v9209 = vadd.f32 %v9142, %v9202
  %v9210 = vadd.f32 %v9143, %v9202
  %v9211 = vadd.f32 %v9144, %v9202
  %v9212 = vadd.f32 %v9145, %v9202
  %v9213 = vadd.f32 %v9146, %v9202
  %v9214 = vadd.f32 %v9147, %v9202
  %v9215 = vadd.f32 %v9148, %v9202
  %v9216 = vadd.f32 %v9149, %v9202
  %v9217 = vadd.f32 %v9150, %v9202
  %v9218 = vadd.f32 %v9151, %v9202
  %v9219 = vadd.f32 %v9152, %v9202
  %v9220 = vadd.f32 %v9153, %v9202
  %v9221 = vadd.f32 %v9154, %v9202
  %v9222 = vadd.f32 %v9155, %v9202
  %v9223 = vadd.f32 %v9156, %v9202
  %v9224 = vadd.f32 %v9157, %v9202
  %v9225 = vadd.f32 %v9158, %v9202
  %v9226 = vadd.f32 %v9159, %v9202
  %v9227 = vadd.f32 %v9160, %v9202
  %v9228 = vadd.f32 %v9161, %v9202
  %v9229 = vadd.f32 %v9162, %v9202
  %v9230 = vadd.f32 %v9163, %v9202
  %v9231 = vadd.f32 %v9164, %v9202
  %v9232 = vadd.f32 %v9165, %v9202
  %v9233 = vadd.f32 %v9166, %v9202
  %v9234 = vadd.f32 %v9167, %v9202
  %v9235 = vadd.f32 %v9168, %v9202
  %v9236 = vadd.f32 %v9169, %v9202
  %v9237 = vadd.f32 %v9170, %v9202
  %v9238 = vadd.f32 %v9171, %v9202
  %v9239 = vadd.f32 %v9172, %v9202
  %v9240 = vadd.f32 %v9173, %v9202
  %v9241 = vadd.f32 %v9174, %v9202
  %v9242 = vadd.f32 %v9175, %v9202
  %v9243 = vadd.f32 %v9176, %v9202
  %v9244 = vadd.f32 %v9177, %v9202
  %v9245 = vadd.f32 %v9178, %v9202
  %v9246 = vadd.f32 %v9179, %v9202
  %v9247 = vadd.f32 %v9180, %v9202
  %v9248 = vadd.f32 %v9181, %v9202
  %v9249 = vadd.f32 %v9182, %v9202
  %v9250 = vadd.f32 %v9183, %v9202
  %v9251 = vadd.f32 %v9184, %v9202
  %v9252 = vadd.f32 %v9185, %v9202
  %v9253 = vadd.f32 %v9186, %v9202
  %v9254 = vadd.f32 %v9187, %v9202
  %v9255 = vadd.f32 %v9188, %v9202
  %v9256 = vadd.f32 %v9189, %v9202
  %v9257 = vadd.f32 %v9190, %v9202
  %v9258 = vadd.f32 %v9191, %v9202
  %v9259 = vadd.f32 %v9192, %v9202
  %v9260 = vadd.f32 %v9193, %v9202
  %v9261 = vadd.f32 %v9194, %v9202
  %v9262 = vadd.f32 %v9195, %v9202
  %v9263 = vadd.f32 %v9196, %v9202
  %v9264 = vadd.f32 %v9197, %v9202
  %v9265 = vadd.f32 %v9198, %v9202
  %v9266 = vadd.f32 %v9199, %v9202
  %v9267 = vadd.f32 %v9200, %v9202
  %v9268 = vld [vmem:[%s0] sm:$0xff]
  %v9269 = vld [vmem:[%s0 + $0x8] sm:$0xff]
  %v9270 = vld [vmem:[%s0 + $0x10] sm:$0xff]
  %v9271 = vld [vmem:[%s0 + $0x18] sm:$0xff]
  %v9272 = vld [vmem:[%s0 + $0x20] sm:$0xff]
  %v9273 = vld [vmem:[%s0 + $0x28] sm:$0xff]
  %v9274 = vld [vmem:[%s0 + $0x30] sm:$0xff]
  %v9275 = vld [vmem:[%s0 + $0x38] sm:$0xff]
  %v9276 = vld [vmem:[%s0 + $0x40] sm:$0xff]
  %v9277 = vld [vmem:[%s0 + $0x48] sm:$0xff]
  %v9278 = vld [vmem:[%s0 + $0x50] sm:$0xff]
  %v9279 = vld [vmem:[%s0 + $0x58] sm:$0xff]
  %v9280 = vld [vmem:[%s0 + $0x60] sm:$0xff]
  %v9281 = vld [vmem:[%s0 + $0x68] sm:$0xff]
  %v9282 = vld [vmem:[%s0 + $0x70] sm:$0xff]
  %v9283 = vld [vmem:[%s0 + $0x78] sm:$0xff]
  %v9284 = vld [vmem:[%s0 + $0x80] sm:$0xff]
  %v9285 = vld [vmem:[%s0 + $0x88] sm:$0xff]
  %v9286 = vld [vmem:[%s0 + $0x90] sm:$0xff]
  %v9287 = vld [vmem:[%s0 + $0x98] sm:$0xff]
  %v9288 = vld [vmem:[%s0 + $0xa0] sm:$0xff]
  %v9289 = vld [vmem:[%s0 + $0xa8] sm:$0xff]
  %v9290 = vld [vmem:[%s0 + $0xb0] sm:$0xff]
  %v9291 = vld [vmem:[%s0 + $0xb8] sm:$0xff]
  %v9292 = vld [vmem:[%s0 + $0xc0] sm:$0xff]
  %v9293 = vld [vmem:[%s0 + $0xc8] sm:$0xff]
  %v9294 = vld [vmem:[%s0 + $0xd0] sm:$0xff]
  %v9295 = vld [vmem:[%s0 + $0xd8] sm:$0xff]
  %v9296 = vld [vmem:[%s0 + $0xe0] sm:$0xff]
  %v9297 = vld [vmem:[%s0 + $0xe8] sm:$0xff]
  %v9298 = vld [vmem:[%s0 + $0xf0] sm:$0xff]
  %v9299 = vld [vmem:[%s0 + $0xf8] sm:$0xff]
  %v9300 = vld [vmem:[%s0 + $0x100] sm:$0xff]
  %v9301 = vld [vmem:[%s0 + $0x108] sm:$0xff]
  %v9302 = vld [vmem:[%s0 + $0x110] sm:$0xff]
  %v9303 = vld [vmem:[%s0 + $0x118] sm:$0xff]
  %v9304 = vld [vmem:[%s0 + $0x120] sm:$0xff]
  %v9305 = vld [vmem:[%s0 + $0x128] sm:$0xff]
  %v9306 = vld [vmem:[%s0 + $0x130] sm:$0xff]
  %v9307 = vld [vmem:[%s0 + $0x138] sm:$0xff]
  %v9308 = vld [vmem:[%s0 + $0x140] sm:$0xff]
  %v9309 = vld [vmem:[%s0 + $0x148] sm:$0xff]
  %v9310 = vld [vmem:[%s0 + $0x150] sm:$0xff]
  %v9311 = vld [vmem:[%s0 + $0x158] sm:$0xff]
  %v9312 = vld [vmem:[%s0 + $0x160] sm:$0xff]
  %v9313 = vld [vmem:[%s0 + $0x168] sm:$0xff]
  %v9314 = vld [vmem:[%s0 + $0x170] sm:$0xff]
  %v9315 = vld [vmem:[%s0 + $0x178] sm:$0xff]
  %v9316 = vld [vmem:[%s0 + $0x180] sm:$0xff]
  %v9317 = vld [vmem:[%s0 + $0x188] sm:$0xff]
  %v9318 = vld [vmem:[%s0 + $0x190] sm:$0xff]
  %v9319 = vld [vmem:[%s0 + $0x198] sm:$0xff]
  %v9320 = vld [vmem:[%s0 + $0x1a0] sm:$0xff]
  %v9321 = vld [vmem:[%s0 + $0x1a8] sm:$0xff]
  %v9322 = vld [vmem:[%s0 + $0x1b0] sm:$0xff]
  %v9323 = vld [vmem:[%s0 + $0x1b8] sm:$0xff]
  %v9324 = vld [vmem:[%s0 + $0x1c0] sm:$0xff]
  %v9325 = vld [vmem:[%s0 + $0x1c8] sm:$0xff]
  %v9326 = vld [vmem:[%s0 + $0x1d0] sm:$0xff]
  %v9327 = vld [vmem:[%s0 + $0x1d8] sm:$0xff]
  %v9328 = vld [vmem:[%s0 + $0x1e0] sm:$0xff]
  %v9329 = vld [vmem:[%s0 + $0x1e8] sm:$0xff]
  %v9330 = vld [vmem:[%s0 + $0x1f0] sm:$0xff]
  %v9331 = vld [vmem:[%s0 + $0x1f8] sm:$0xff]
  %v9332 = vadd.f32 %v9204, %v9268
  %v9333 = vadd.f32 %v9205, %v9269
  %v9334 = vadd.f32 %v9206, %v9270
  %v9335 = vadd.f32 %v9207, %v9271
  %v9336 = vadd.f32 %v9208, %v9272
  %v9337 = vadd.f32 %v9209, %v9273
  %v9338 = vadd.f32 %v9210, %v9274
  %v9339 = vadd.f32 %v9211, %v9275
  %v9340 = vadd.f32 %v9212, %v9276
  %v9341 = vadd.f32 %v9213, %v9277
  %v9342 = vadd.f32 %v9214, %v9278
  %v9343 = vadd.f32 %v9215, %v9279
  %v9344 = vadd.f32 %v9216, %v9280
  %v9345 = vadd.f32 %v9217, %v9281
  %v9346 = vadd.f32 %v9218, %v9282
  %v9347 = vadd.f32 %v9219, %v9283
  %v9348 = vadd.f32 %v9220, %v9284
  %v9349 = vadd.f32 %v9221, %v9285
  %v9350 = vadd.f32 %v9222, %v9286
  %v9351 = vadd.f32 %v9223, %v9287
  %v9352 = vadd.f32 %v9224, %v9288
  %v9353 = vadd.f32 %v9225, %v9289
  %v9354 = vadd.f32 %v9226, %v9290
  %v9355 = vadd.f32 %v9227, %v9291
  %v9356 = vadd.f32 %v9228, %v9292
  %v9357 = vadd.f32 %v9229, %v9293
  %v9358 = vadd.f32 %v9230, %v9294
  %v9359 = vadd.f32 %v9231, %v9295
  %v9360 = vadd.f32 %v9232, %v9296
  %v9361 = vadd.f32 %v9233, %v9297
  %v9362 = vadd.f32 %v9234, %v9298
  %v9363 = vadd.f32 %v9235, %v9299
  %v9364 = vadd.f32 %v9236, %v9300
  %v9365 = vadd.f32 %v9237, %v9301
  %v9366 = vadd.f32 %v9238, %v9302
  %v9367 = vadd.f32 %v9239, %v9303
  %v9368 = vadd.f32 %v9240, %v9304
  %v9369 = vadd.f32 %v9241, %v9305
  %v9370 = vadd.f32 %v9242, %v9306
  %v9371 = vadd.f32 %v9243, %v9307
  %v9372 = vadd.f32 %v9244, %v9308
  %v9373 = vadd.f32 %v9245, %v9309
  %v9374 = vadd.f32 %v9246, %v9310
  %v9375 = vadd.f32 %v9247, %v9311
  %v9376 = vadd.f32 %v9248, %v9312
  %v9377 = vadd.f32 %v9249, %v9313
  %v9378 = vadd.f32 %v9250, %v9314
  %v9379 = vadd.f32 %v9251, %v9315
  %v9380 = vadd.f32 %v9252, %v9316
  %v9381 = vadd.f32 %v9253, %v9317
  %v9382 = vadd.f32 %v9254, %v9318
  %v9383 = vadd.f32 %v9255, %v9319
  %v9384 = vadd.f32 %v9256, %v9320
  %v9385 = vadd.f32 %v9257, %v9321
  %v9386 = vadd.f32 %v9258, %v9322
  %v9387 = vadd.f32 %v9259, %v9323
  %v9388 = vadd.f32 %v9260, %v9324
  %v9389 = vadd.f32 %v9261, %v9325
  %v9390 = vadd.f32 %v9262, %v9326
  %v9391 = vadd.f32 %v9263, %v9327
  %v9392 = vadd.f32 %v9264, %v9328
  %v9393 = vadd.f32 %v9265, %v9329
  %v9394 = vadd.f32 %v9266, %v9330
  %v9395 = vadd.f32 %v9267, %v9331
  %v9396 = vmax.f32 %v9332, 0.0
  %v9397 = vmax.f32 %v9333, 0.0
  %v9398 = vmax.f32 %v9334, 0.0
  %v9399 = vmax.f32 %v9335, 0.0
  %v9400 = vmax.f32 %v9336, 0.0
  %v9401 = vmax.f32 %v9337, 0.0
  %v9402 = vmax.f32 %v9338, 0.0
  %v9403 = vmax.f32 %v9339, 0.0
  %v9404 = vmax.f32 %v9340, 0.0
  %v9405 = vmax.f32 %v9341, 0.0
  %v9406 = vmax.f32 %v9342, 0.0
  %v9407 = vmax.f32 %v9343, 0.0
  %v9408 = vmax.f32 %v9344, 0.0
  %v9409 = vmax.f32 %v9345, 0.0
  %v9410 = vmax.f32 %v9346, 0.0
  %v9411 = vmax.f32 %v9347, 0.0
  %v9412 = vmax.f32 %v9348, 0.0
  %v9413 = vmax.f32 %v9349, 0.0
  %v9414 = vmax.f32 %v9350, 0.0
  %v9415 = vmax.f32 %v9351, 0.0
  %v9416 = vmax.f32 %v9352, 0.0
  %v9417 = vmax.f32 %v9353, 0.0
  %v9418 = vmax.f32 %v9354, 0.0
  %v9419 = vmax.f32 %v9355, 0.0
  %v9420 = vmax.f32 %v9356, 0.0
  %v9421 = vmax.f32 %v9357, 0.0
  %v9422 = vmax.f32 %v9358, 0.0
  %v9423 = vmax.f32 %v9359, 0.0
  %v9424 = vmax.f32 %v9360, 0.0
  %v9425 = vmax.f32 %v9361, 0.0
  %v9426 = vmax.f32 %v9362, 0.0
  %v9427 = vmax.f32 %v9363, 0.0
  %v9428 = vmax.f32 %v9364, 0.0
  %v9429 = vmax.f32 %v9365, 0.0
  %v9430 = vmax.f32 %v9366, 0.0
  %v9431 = vmax.f32 %v9367, 0.0
  %v9432 = vmax.f32 %v9368, 0.0
  %v9433 = vmax.f32 %v9369, 0.0
  %v9434 = vmax.f32 %v9370, 0.0
  %v9435 = vmax.f32 %v9371, 0.0
  %v9436 = vmax.f32 %v9372, 0.0
  %v9437 = vmax.f32 %v9373, 0.0
  %v9438 = vmax.f32 %v9374, 0.0
  %v9439 = vmax.f32 %v9375, 0.0
  %v9440 = vmax.f32 %v9376, 0.0
  %v9441 = vmax.f32 %v9377, 0.0
  %v9442 = vmax.f32 %v9378, 0.0
  %v9443 = vmax.f32 %v9379, 0.0
  %v9444 = vmax.f32 %v9380, 0.0
  %v9445 = vmax.f32 %v9381, 0.0
  %v9446 = vmax.f32 %v9382, 0.0
  %v9447 = vmax.f32 %v9383, 0.0
  %v9448 = vmax.f32 %v9384, 0.0
  %v9449 = vmax.f32 %v9385, 0.0
  %v9450 = vmax.f32 %v9386, 0.0
  %v9451 = vmax.f32 %v9387, 0.0
  %v9452 = vmax.f32 %v9388, 0.0
  %v9453 = vmax.f32 %v9389, 0.0
  %v9454 = vmax.f32 %v9390, 0.0
  %v9455 = vmax.f32 %v9391, 0.0
  %v9456 = vmax.f32 %v9392, 0.0
  %v9457 = vmax.f32 %v9393, 0.0
  %v9458 = vmax.f32 %v9394, 0.0
  %v9459 = vmax.f32 %v9395, 0.0
  %9460 = vst [vmem:[%s7] sm:$0xff] %v9396
  %9461 = vst [vmem:[%s7 + $0x8] sm:$0xff] %v9397
  %9462 = vst [vmem:[%s7 + $0x10] sm:$0xff] %v9398
  %9463 = vst [vmem:[%s7 + $0x18] sm:$0xff] %v9399
  %9464 = vst [vmem:[%s7 + $0x20] sm:$0xff] %v9400
  %9465 = vst [vmem:[%s7 + $0x28] sm:$0xff] %v9401
  %9466 = vst [vmem:[%s7 + $0x30] sm:$0xff] %v9402
  %9467 = vst [vmem:[%s7 + $0x38] sm:$0xff] %v9403
  %9468 = vst [vmem:[%s7 + $0x40] sm:$0xff] %v9404
  %9469 = vst [vmem:[%s7 + $0x48] sm:$0xff] %v9405
  %9470 = vst [vmem:[%s7 + $0x50] sm:$0xff] %v9406
  %9471 = vst [vmem:[%s7 + $0x58] sm:$0xff] %v9407
  %9472 = vst [vmem:[%s7 + $0x60] sm:$0xff] %v9408
  %9473 = vst [vmem:[%s7 + $0x68] sm:$0xff] %v9409
  %9474 = vst [vmem:[%s7 + $0x70] sm:$0xff] %v9410
  %9475 = vst [vmem:[%s7 + $0x78] sm:$0xff] %v9411
  %9476 = vst [vmem:[%s7 + $0x80] sm:$0xff] %v9412
  %9477 = vst [vmem:[%s7 + $0x88] sm:$0xff] %v9413
  %9478 = vst [vmem:[%s7 + $0x90] sm:$0xff] %v9414
  %9479 = vst [vmem:[%s7 + $0x98] sm:$0xff] %v9415
  %9480 = vst [vmem:[%s7 + $0xa0] sm:$0xff] %v9416
  %9481 = vst [vmem:[%s7 + $0xa8] sm:$0xff] %v9417
  %9482 = vst [vmem:[%s7 + $0xb0] sm:$0xff] %v9418
  %9483 = vst [vmem:[%s7 + $0xb8] sm:$0xff] %v9419
  %9484 = vst [vmem:[%s7 + $0xc0] sm:$0xff] %v9420
  %9485 = vst [vmem:[%s7 + $0xc8] sm:$0xff] %v9421
  %9486 = vst [vmem:[%s7 + $0xd0] sm:$0xff] %v9422
  %9487 = vst [vmem:[%s7 + $0xd8] sm:$0xff] %v9423
  %9488 = vst [vmem:[%s7 + $0xe0] sm:$0xff] %v9424
  %9489 = vst [vmem:[%s7 + $0xe8] sm:$0xff] %v9425
  %9490 = vst [vmem:[%s7 + $0xf0] sm:$0xff] %v9426
  %9491 = vst [vmem:[%s7 + $0xf8] sm:$0xff] %v9427
  %9492 = vst [vmem:[%s7 + $0x100] sm:$0xff] %v9428
  %9493 = vst [vmem:[%s7 + $0x108] sm:$0xff] %v9429
  %9494 = vst [vmem:[%s7 + $0x110] sm:$0xff] %v9430
  %9495 = vst [vmem:[%s7 + $0x118] sm:$0xff] %v9431
  %9496 = vst [vmem:[%s7 + $0x120] sm:$0xff] %v9432
  %9497 = vst [vmem:[%s7 + $0x128] sm:$0xff] %v9433
  %9498 = vst [vmem:[%s7 + $0x130] sm:$0xff] %v9434
  %9499 = vst [vmem:[%s7 + $0x138] sm:$0xff] %v9435
  %9500 = vst [vmem:[%s7 + $0x140] sm:$0xff] %v9436
  %9501 = vst [vmem:[%s7 + $0x148] sm:$0xff] %v9437
  %9502 = vst [vmem:[%s7 + $0x150] sm:$0xff] %v9438
  %9503 = vst [vmem:[%s7 + $0x158] sm:$0xff] %v9439
  %9504 = vst [vmem:[%s7 + $0x160] sm:$0xff] %v9440
  %9505 = vst [vmem:[%s7 + $0x168] sm:$0xff] %v9441
  %9506 = vst [vmem:[%s7 + $0x170] sm:$0xff] %v9442
  %9507 = vst [vmem:[%s7 + $0x178] sm:$0xff] %v9443
  %9508 = vst [vmem:[%s7 + $0x180] sm:$0xff] %v9444
  %9509 = vst [vmem:[%s7 + $0x188] sm:$0xff] %v9445
  %9510 = vst [vmem:[%s7 + $0x190] sm:$0xff] %v9446
  %9511 = vst [vmem:[%s7 + $0x198] sm:$0xff] %v9447
  %9512 = vst [vmem:[%s7 + $0x1a0] sm:$0xff] %v9448
  %9513 = vst [vmem:[%s7 + $0x1a8] sm:$0xff] %v9449
  %9514 = vst [vmem:[%s7 + $0x1b0] sm:$0xff] %v9450
  %9515 = vst [vmem:[%s7 + $0x1b8] sm:$0xff] %v9451
  %9516 = vst [vmem:[%s7 + $0x1c0] sm:$0xff] %v9452
  %9517 = vst [vmem:[%s7 + $0x1c8] sm:$0xff] %v9453
  %9518 = vst [vmem:[%s7 + $0x1d0] sm:$0xff] %v9454
  %9519 = vst [vmem:[%s7 + $0x1d8] sm:$0xff] %v9455
  %9520 = vst [vmem:[%s7 + $0x1e0] sm:$0xff] %v9456
  %9521 = vst [vmem:[%s7 + $0x1e8] sm:$0xff] %v9457
  %9522 = vst [vmem:[%s7 + $0x1f0] sm:$0xff] %v9458
  %9523 = vst [vmem:[%s7 + $0x1f8] sm:$0xff] %v9459
  // Predicated region
  $region30: #{basic_block_forward.1} parent=0 // pred_check
    _
  $region31: #{basic_block_forward.1} parent=0 // pred_check_branch
    %9525 = sbr.rel (0) target = $region33
  $region32: #{basic_block_forward.1} parent=0 // pred_region
    _
  $region33: #{basic_block_forward.1} parent=0 // pred_fallthru
    _
  // Predicated region
  $region34: #{basic_block_forward.1} parent=0 // pred_check
    _
  $region35: #{basic_block_forward.1} parent=0 // pred_check_branch
    %9527 = sbr.rel (0) target = $region37
  $region36: #{basic_block_forward.1} parent=0 // pred_region
    _
  $region37: #{basic_block_forward.1} parent=0 // pred_fallthru
    _

</llo_original>
